<compile_context>
chip_gen: v7x
topology: tpu7x:2x2x1
jax: 0.10.0
libtpu: 0.0.40
codegen_flags: <defaults>
</compile_context>

<pallas_src>
import numpy as np
import jax
import jax.numpy as jnp
from jax.experimental import pallas as pl
from jax.experimental.pallas import tpu as pltpu


# Left/right halo width along W inside the staging scratch.  Using 8 (one full
# sublane tile) keeps every *store* into the scratch sublane-aligned; only the
# shifted *reads* (offsets 7/8/9) are unaligned, which Mosaic handles cheaply.
_PAD_W = 8


# ------------------------------ kernel helpers ------------------------------

def _stage_with_halo(dst_ref, interior):
    """Write `interior` (H, W, C) f32 into the (H+2, W+2*_PAD_W, C) scratch.

    Data lives at rows [1, H], cols [_PAD_W, _PAD_W+W); every location the
    3x3 taps can read as halo is zeroed.  All stores are sublane-aligned.
    """
    H, W, C = interior.shape
    zrow = jnp.zeros((1, W + 2 * _PAD_W, C), jnp.float32)
    zcol = jnp.zeros((H, _PAD_W, C), jnp.float32)
    dst_ref[0:1, :, :] = zrow                                   # top halo row
    dst_ref[H + 1:H + 2, :, :] = zrow                           # bottom halo row
    dst_ref[1:H + 1, 0:_PAD_W, :] = zcol                        # left halo cols
    dst_ref[1:H + 1, W + _PAD_W:W + 2 * _PAD_W, :] = zcol       # right halo cols
    dst_ref[1:H + 1, _PAD_W:_PAD_W + W, :] = interior           # payload


def _conv3x3_from_staged(src_ref, w_ref):
    """3x3 'SAME' conv over the staged scratch -> (H, W, Cout) f32.

    src_ref: (H+2, W+2*_PAD_W, Cin) staged input with zero halo.
    w_ref:   (9, Cin, Cout) taps (tap index = ky*3 + kx), BN scale pre-folded.
    """
    Hp, Wpad, _ = src_ref.shape
    H = Hp - 2
    W = Wpad - 2 * _PAD_W
    Cout = w_ref.shape[-1]
    acc = jnp.zeros((H, W, Cout), jnp.float32)
    # 9 shifted MXU matmuls accumulated in f32 (static slices of the scratch).
    for dy in range(3):
        for dx in range(3):
            patch = src_ref[dy:dy + H, _PAD_W - 1 + dx:_PAD_W - 1 + dx + W, :]
            acc = acc + jnp.einsum(
                "hwc,cd->hwd", patch, w_ref[dy * 3 + dx],
                preferred_element_type=jnp.float32)
    return acc


def _basic_block_kernel(x_ref, w1_ref, b1_ref, w2_ref, b2_ref,
                        out_ref, xpad_ref, mpad_ref):
    """Fused conv/bn/relu -> conv/bn -> +identity -> relu for one image."""
    x = x_ref[...].astype(jnp.float32)                 # (H, W, Cin)

    # ---- conv1 + folded BN1 + ReLU (result stays in VMEM) ----
    _stage_with_halo(xpad_ref, x)
    out1 = _conv3x3_from_staged(xpad_ref, w1_ref) + b1_ref[...]
    out1 = jnp.maximum(out1, 0.0)

    # ---- conv2 + folded BN2 + residual + ReLU ----
    _stage_with_halo(mpad_ref, out1)
    out2 = _conv3x3_from_staged(mpad_ref, w2_ref) + b2_ref[...] + x
    out_ref[...] = jnp.maximum(out2, 0.0).astype(out_ref.dtype)


# --------------------------------- wrapper ----------------------------------

def _basic_block_pallas_nhwc(x, w1_taps, b1, w2_taps, b2):
    N, H, W, Cin = x.shape
    Cout = w1_taps.shape[-1]
    assert Cin == Cout, "identity shortcut requires inplanes == planes"
    assert w2_taps.shape == (9, Cout, Cout)

    flops = 2 * 9 * N * H * W * (Cin * Cout + Cout * Cout)
    bytes_accessed = int(
        x.size * x.dtype.itemsize                     # block input
        + N * H * W * Cout * x.dtype.itemsize         # block output
        + (w1_taps.size + w2_taps.size + b1.size + b2.size) * 4)

    grid_spec = pltpu.PrefetchScalarGridSpec(
        num_scalar_prefetch=0,
        grid=(N,),
        in_specs=[
            pl.BlockSpec((None, H, W, Cin), lambda n: (n, 0, 0, 0)),
            pl.BlockSpec((9, Cin, Cout), lambda n: (0, 0, 0)),
            pl.BlockSpec((1, Cout), lambda n: (0, 0)),
            pl.BlockSpec((9, Cout, Cout), lambda n: (0, 0, 0)),
            pl.BlockSpec((1, Cout), lambda n: (0, 0)),
        ],
        out_specs=pl.BlockSpec((None, H, W, Cout), lambda n: (n, 0, 0, 0)),
        scratch_shapes=[
            pltpu.VMEM((H + 2, W + 2 * _PAD_W, Cin), jnp.float32),   # staged x
            pltpu.VMEM((H + 2, W + 2 * _PAD_W, Cout), jnp.float32),  # staged out1
        ],
    )

    return pl.pallas_call(
        _basic_block_kernel,
        out_shape=jax.ShapeDtypeStruct((N, H, W, Cout), x.dtype),
        grid_spec=grid_spec,
        compiler_params=pltpu.CompilerParams(
            dimension_semantics=("parallel",),        # shard batch over 2 TCs (v7x)
            vmem_limit_bytes=32 * 1024 * 1024,        # <= physical VMEM on all gens
        ),
        cost_estimate=pl.CostEstimate(
            flops=flops, transcendentals=0, bytes_accessed=bytes_accessed),
    )(x, w1_taps, b1, w2_taps, b2)


def _fold_conv_bn(w_oihw, gamma, beta, mean, var, eps=1e-5):
    """Fold inference BN into the conv: returns (taps[9,Cin,Cout]*scale, bias)."""
    scale = gamma * jax.lax.rsqrt(var + eps)               # (Cout,)
    bias = (beta - mean * scale).astype(jnp.float32)       # (Cout,)
    cout, cin = w_oihw.shape[0], w_oihw.shape[1]
    taps = jnp.transpose(w_oihw, (2, 3, 1, 0)).reshape(9, cin, cout)
    taps = (taps * scale.reshape(1, 1, cout)).astype(jnp.float32)
    return taps, bias.reshape(1, cout)


def basic_block_forward_nhwc(x_nhwc, params):
    """ResNet BasicBlock forward in NHWC (no boundary transposes)."""
    w1, b1 = _fold_conv_bn(params["conv1_w"], params["bn1_gamma"],
                           params["bn1_beta"], params["bn1_mean"],
                           params["bn1_var"])
    w2, b2 = _fold_conv_bn(params["conv2_w"], params["bn2_gamma"],
                           params["bn2_beta"], params["bn2_mean"],
                           params["bn2_var"])
    return _basic_block_pallas_nhwc(x_nhwc, w1, b1, w2, b2)


def basic_block_forward(x_nchw, params):
    """ResNet BasicBlock forward with the PyTorch NCHW contract."""
    x = jnp.transpose(x_nchw, (0, 2, 3, 1))       # NCHW -> NHWC (boundary only)
    y = basic_block_forward_nhwc(x, params)
    return jnp.transpose(y, (0, 3, 1, 2))         # NHWC -> NCHW


# -------------------------------- reference ---------------------------------

def _ref_conv3x3(x_nhwc, w_oihw):
    w_hwio = jnp.transpose(w_oihw, (2, 3, 1, 0))
    return jax.lax.conv_general_dilated(
        x_nhwc, w_hwio, window_strides=(1, 1), padding="SAME",
        dimension_numbers=("NHWC", "HWIO", "NHWC"))


def basic_block_ref(x_nchw, params, eps=1e-5):
    x = jnp.transpose(x_nchw, (0, 2, 3, 1))

    def bn(y, g, b, m, v):
        return (y - m) * (g * jax.lax.rsqrt(v + eps)) + b

    out = jnp.maximum(bn(_ref_conv3x3(x, params["conv1_w"]),
                         params["bn1_gamma"], params["bn1_beta"],
                         params["bn1_mean"], params["bn1_var"]), 0.0)
    out = jnp.maximum(bn(_ref_conv3x3(out, params["conv2_w"]),
                         params["bn2_gamma"], params["bn2_beta"],
                         params["bn2_mean"], params["bn2_var"]) + x, 0.0)
    return jnp.transpose(out, (0, 3, 1, 2))


# ----------------------------------- main ------------------------------------

if __name__ == "__main__":
    key = jax.random.PRNGKey(0)
    N, C, H, W = 2, 4, 16, 16          # inplanes = planes = 4, stride = 1
    planes = C

    ks = jax.random.split(key, 8)
    x = jax.random.normal(ks[0], (N, C, H, W), jnp.float32)

    params = {
        "conv1_w": jax.random.normal(ks[1], (planes, C, 3, 3), jnp.float32) * 0.1,
        "conv2_w": jax.random.normal(ks[2], (planes, planes, 3, 3), jnp.float32) * 0.1,
        "bn1_gamma": 1.0 + 0.1 * jax.random.normal(ks[3], (planes,), jnp.float32),
        "bn1_beta": 0.05 * jax.random.normal(ks[4], (planes,), jnp.float32),
        "bn1_mean": 0.02 * jax.random.normal(ks[5], (planes,), jnp.float32),
        "bn1_var": jnp.abs(1.0 + 0.1 * jax.random.normal(ks[6], (planes,), jnp.float32)),
        "bn2_gamma": 1.0 + 0.1 * jax.random.normal(ks[7], (planes,), jnp.float32),
        "bn2_beta": jnp.linspace(-0.1, 0.1, planes, dtype=jnp.float32),
        "bn2_mean": jnp.linspace(-0.05, 0.05, planes, dtype=jnp.float32),
        "bn2_var": jnp.linspace(0.9, 1.1, planes, dtype=jnp.float32),
    }

    out = jax.block_until_ready(jax.jit(basic_block_forward)(x, params))
    ref = jax.block_until_ready(basic_block_ref(x, params))

    np.testing.assert_allclose(np.asarray(out), np.asarray(ref),
                               rtol=1e-4, atol=1e-4)
    assert out.shape == (N, planes, H, W)

    print("KERNEL_OK")
</pallas_src>

<mosaic_0001>
module attributes {stable_mosaic.version = 11 : i64} {
  func.func @_basic_block_kernel(%arg0: i32, %arg1: memref<1x16x16x4xf32, #tpu.memory_space<vmem>>, %arg2: memref<9x4x4xf32, #tpu.memory_space<vmem>>, %arg3: memref<1x4xf32, #tpu.memory_space<vmem>>, %arg4: memref<9x4x4xf32, #tpu.memory_space<vmem>>, %arg5: memref<1x4xf32, #tpu.memory_space<vmem>>, %arg6: memref<1x16x16x4xf32, #tpu.memory_space<vmem>>, %arg7: memref<18x32x4xf32, #tpu.memory_space<vmem>>, %arg8: memref<18x32x4xf32, #tpu.memory_space<vmem>>) attributes {dimension_semantics = [#tpu.dimension_semantics<parallel>], iteration_bounds = array<i64: 2>, scalar_prefetch = 0 : i64, scratch_operands = 2 : i64, tpu.core_type = #tpu.core_type<tc>, window_params = [{transform_indices = @transform_0, window_bounds = array<i64: 1, 16, 16, 4>}, {pipeline_mode = #tpu.pipeline_mode<synchronous>, transform_indices = @transform_1, window_bounds = array<i64: 9, 4, 4>}, {pipeline_mode = #tpu.pipeline_mode<synchronous>, transform_indices = @transform_2, window_bounds = array<i64: 1, 4>}, {pipeline_mode = #tpu.pipeline_mode<synchronous>, transform_indices = @transform_3, window_bounds = array<i64: 9, 4, 4>}, {pipeline_mode = #tpu.pipeline_mode<synchronous>, transform_indices = @transform_4, window_bounds = array<i64: 1, 4>}, {transform_indices = @transform_5, window_bounds = array<i64: 1, 16, 16, 4>}]} {
    %c0 = arith.constant 0 : index
    %c0_0 = arith.constant 0 : index
    %c0_1 = arith.constant 0 : index
    %c0_2 = arith.constant 0 : index
    %0 = vector.load %arg1[%c0, %c0_0, %c0_1, %c0_2] : memref<1x16x16x4xf32, #tpu.memory_space<vmem>>, vector<1x16x16x4xf32>
    %1 = vector.shape_cast %0 : vector<1x16x16x4xf32> to vector<16x16x4xf32>
    %cst = arith.constant 0.000000e+00 : f32
    %2 = vector.broadcast %cst : f32 to vector<1x32x4xf32>
    %cst_3 = arith.constant 0.000000e+00 : f32
    %3 = vector.broadcast %cst_3 : f32 to vector<16x8x4xf32>
    %c0_4 = arith.constant 0 : index
    %c0_5 = arith.constant 0 : index
    %c0_6 = arith.constant 0 : index
    %4 = vector.load %arg7[%c0_4, %c0_5, %c0_6] : memref<18x32x4xf32, #tpu.memory_space<vmem>>, vector<1x32x4xf32>
    tpu.vector_store %arg7[%c0_4, %c0_5, %c0_6], %2 {strides = array<i32>} : memref<18x32x4xf32, #tpu.memory_space<vmem>>, vector<1x32x4xf32>,
    %c17 = arith.constant 17 : index
    %c0_7 = arith.constant 0 : index
    %c0_8 = arith.constant 0 : index
    %5 = vector.load %arg7[%c17, %c0_7, %c0_8] : memref<18x32x4xf32, #tpu.memory_space<vmem>>, vector<1x32x4xf32>
    tpu.vector_store %arg7[%c17, %c0_7, %c0_8], %2 {strides = array<i32>} : memref<18x32x4xf32, #tpu.memory_space<vmem>>, vector<1x32x4xf32>,
    %c1 = arith.constant 1 : index
    %c0_9 = arith.constant 0 : index
    %c0_10 = arith.constant 0 : index
    %6 = vector.load %arg7[%c1, %c0_9, %c0_10] : memref<18x32x4xf32, #tpu.memory_space<vmem>>, vector<16x8x4xf32>
    tpu.vector_store %arg7[%c1, %c0_9, %c0_10], %3 {strides = array<i32>} : memref<18x32x4xf32, #tpu.memory_space<vmem>>, vector<16x8x4xf32>,
    %c1_11 = arith.constant 1 : index
    %c24 = arith.constant 24 : index
    %c0_12 = arith.constant 0 : index
    %7 = vector.load %arg7[%c1_11, %c24, %c0_12] : memref<18x32x4xf32, #tpu.memory_space<vmem>>, vector<16x8x4xf32>
    tpu.vector_store %arg7[%c1_11, %c24, %c0_12], %3 {strides = array<i32>} : memref<18x32x4xf32, #tpu.memory_space<vmem>>, vector<16x8x4xf32>,
    %c1_13 = arith.constant 1 : index
    %c8 = arith.constant 8 : index
    %c0_14 = arith.constant 0 : index
    %8 = vector.load %arg7[%c1_13, %c8, %c0_14] : memref<18x32x4xf32, #tpu.memory_space<vmem>>, vector<16x16x4xf32>
    tpu.vector_store %arg7[%c1_13, %c8, %c0_14], %1 {strides = array<i32>} : memref<18x32x4xf32, #tpu.memory_space<vmem>>, vector<16x16x4xf32>,
    %cst_15 = arith.constant 0.000000e+00 : f32
    %9 = vector.broadcast %cst_15 : f32 to vector<16x16x4xf32>
    %c0_16 = arith.constant 0 : index
    %c7 = arith.constant 7 : index
    %c0_17 = arith.constant 0 : index
    %10 = vector.load %arg7[%c0_16, %c7, %c0_17] : memref<18x32x4xf32, #tpu.memory_space<vmem>>, vector<16x16x4xf32>
    %c0_18 = arith.constant 0 : index
    %c0_19 = arith.constant 0 : index
    %c0_20 = arith.constant 0 : index
    %11 = vector.load %arg2[%c0_18, %c0_19, %c0_20] : memref<9x4x4xf32, #tpu.memory_space<vmem>>, vector<1x4x4xf32>
    %12 = vector.shape_cast %11 : vector<1x4x4xf32> to vector<4x4xf32>
    "tpu.trace_start"() <{level = 10 : i32, message = "hwc,cd->hwd"}> : () -> ()
    %cst_21 = arith.constant dense<0.000000e+00> : vector<16x16x4xf32>
    %13 = tpu.matmul %10, %12, %cst_21 {dimension_numbers = #tpu.dot_dimension_numbers<[2], [0], [0, 1], [1], [0, 0, 0, 1, 1, 1], [], []>} : vector<16x16x4xf32>, vector<4x4xf32>, vector<16x16x4xf32> -> vector<16x16x4xf32>
    "tpu.trace_stop"() : () -> ()
    %14 = arith.addf %9, %13 : vector<16x16x4xf32>
    %c0_22 = arith.constant 0 : index
    %c8_23 = arith.constant 8 : index
    %c0_24 = arith.constant 0 : index
    %15 = vector.load %arg7[%c0_22, %c8_23, %c0_24] : memref<18x32x4xf32, #tpu.memory_space<vmem>>, vector<16x16x4xf32>
    %c1_25 = arith.constant 1 : index
    %c0_26 = arith.constant 0 : index
    %c0_27 = arith.constant 0 : index
    %16 = vector.load %arg2[%c1_25, %c0_26, %c0_27] : memref<9x4x4xf32, #tpu.memory_space<vmem>>, vector<1x4x4xf32>
    %17 = vector.shape_cast %16 : vector<1x4x4xf32> to vector<4x4xf32>
    "tpu.trace_start"() <{level = 10 : i32, message = "hwc,cd->hwd"}> : () -> ()
    %cst_28 = arith.constant dense<0.000000e+00> : vector<16x16x4xf32>
    %18 = tpu.matmul %15, %17, %cst_28 {dimension_numbers = #tpu.dot_dimension_numbers<[2], [0], [0, 1], [1], [0, 0, 0, 1, 1, 1], [], []>} : vector<16x16x4xf32>, vector<4x4xf32>, vector<16x16x4xf32> -> vector<16x16x4xf32>
    "tpu.trace_stop"() : () -> ()
    %19 = arith.addf %14, %18 : vector<16x16x4xf32>
    %c0_29 = arith.constant 0 : index
    %c9 = arith.constant 9 : index
    %c0_30 = arith.constant 0 : index
    %20 = vector.load %arg7[%c0_29, %c9, %c0_30] : memref<18x32x4xf32, #tpu.memory_space<vmem>>, vector<16x16x4xf32>
    %c2 = arith.constant 2 : index
    %c0_31 = arith.constant 0 : index
    %c0_32 = arith.constant 0 : index
    %21 = vector.load %arg2[%c2, %c0_31, %c0_32] : memref<9x4x4xf32, #tpu.memory_space<vmem>>, vector<1x4x4xf32>
    %22 = vector.shape_cast %21 : vector<1x4x4xf32> to vector<4x4xf32>
    "tpu.trace_start"() <{level = 10 : i32, message = "hwc,cd->hwd"}> : () -> ()
    %cst_33 = arith.constant dense<0.000000e+00> : vector<16x16x4xf32>
    %23 = tpu.matmul %20, %22, %cst_33 {dimension_numbers = #tpu.dot_dimension_numbers<[2], [0], [0, 1], [1], [0, 0, 0, 1, 1, 1], [], []>} : vector<16x16x4xf32>, vector<4x4xf32>, vector<16x16x4xf32> -> vector<16x16x4xf32>
    "tpu.trace_stop"() : () -> ()
    %24 = arith.addf %19, %23 : vector<16x16x4xf32>
    %c1_34 = arith.constant 1 : index
    %c7_35 = arith.constant 7 : index
    %c0_36 = arith.constant 0 : index
    %25 = vector.load %arg7[%c1_34, %c7_35, %c0_36] : memref<18x32x4xf32, #tpu.memory_space<vmem>>, vector<16x16x4xf32>
    %c3 = arith.constant 3 : index
    %c0_37 = arith.constant 0 : index
    %c0_38 = arith.constant 0 : index
    %26 = vector.load %arg2[%c3, %c0_37, %c0_38] : memref<9x4x4xf32, #tpu.memory_space<vmem>>, vector<1x4x4xf32>
    %27 = vector.shape_cast %26 : vector<1x4x4xf32> to vector<4x4xf32>
    "tpu.trace_start"() <{level = 10 : i32, message = "hwc,cd->hwd"}> : () -> ()
    %cst_39 = arith.constant dense<0.000000e+00> : vector<16x16x4xf32>
    %28 = tpu.matmul %25, %27, %cst_39 {dimension_numbers = #tpu.dot_dimension_numbers<[2], [0], [0, 1], [1], [0, 0, 0, 1, 1, 1], [], []>} : vector<16x16x4xf32>, vector<4x4xf32>, vector<16x16x4xf32> -> vector<16x16x4xf32>
    "tpu.trace_stop"() : () -> ()
    %29 = arith.addf %24, %28 : vector<16x16x4xf32>
    %c1_40 = arith.constant 1 : index
    %c8_41 = arith.constant 8 : index
    %c0_42 = arith.constant 0 : index
    %30 = vector.load %arg7[%c1_40, %c8_41, %c0_42] : memref<18x32x4xf32, #tpu.memory_space<vmem>>, vector<16x16x4xf32>
    %c4 = arith.constant 4 : index
    %c0_43 = arith.constant 0 : index
    %c0_44 = arith.constant 0 : index
    %31 = vector.load %arg2[%c4, %c0_43, %c0_44] : memref<9x4x4xf32, #tpu.memory_space<vmem>>, vector<1x4x4xf32>
    %32 = vector.shape_cast %31 : vector<1x4x4xf32> to vector<4x4xf32>
    "tpu.trace_start"() <{level = 10 : i32, message = "hwc,cd->hwd"}> : () -> ()
    %cst_45 = arith.constant dense<0.000000e+00> : vector<16x16x4xf32>
    %33 = tpu.matmul %30, %32, %cst_45 {dimension_numbers = #tpu.dot_dimension_numbers<[2], [0], [0, 1], [1], [0, 0, 0, 1, 1, 1], [], []>} : vector<16x16x4xf32>, vector<4x4xf32>, vector<16x16x4xf32> -> vector<16x16x4xf32>
    "tpu.trace_stop"() : () -> ()
    %34 = arith.addf %29, %33 : vector<16x16x4xf32>
    %c1_46 = arith.constant 1 : index
    %c9_47 = arith.constant 9 : index
    %c0_48 = arith.constant 0 : index
    %35 = vector.load %arg7[%c1_46, %c9_47, %c0_48] : memref<18x32x4xf32, #tpu.memory_space<vmem>>, vector<16x16x4xf32>
    %c5 = arith.constant 5 : index
    %c0_49 = arith.constant 0 : index
    %c0_50 = arith.constant 0 : index
    %36 = vector.load %arg2[%c5, %c0_49, %c0_50] : memref<9x4x4xf32, #tpu.memory_space<vmem>>, vector<1x4x4xf32>
    %37 = vector.shape_cast %36 : vector<1x4x4xf32> to vector<4x4xf32>
    "tpu.trace_start"() <{level = 10 : i32, message = "hwc,cd->hwd"}> : () -> ()
    %cst_51 = arith.constant dense<0.000000e+00> : vector<16x16x4xf32>
    %38 = tpu.matmul %35, %37, %cst_51 {dimension_numbers = #tpu.dot_dimension_numbers<[2], [0], [0, 1], [1], [0, 0, 0, 1, 1, 1], [], []>} : vector<16x16x4xf32>, vector<4x4xf32>, vector<16x16x4xf32> -> vector<16x16x4xf32>
    "tpu.trace_stop"() : () -> ()
    %39 = arith.addf %34, %38 : vector<16x16x4xf32>
    %c2_52 = arith.constant 2 : index
    %c7_53 = arith.constant 7 : index
    %c0_54 = arith.constant 0 : index
    %40 = vector.load %arg7[%c2_52, %c7_53, %c0_54] : memref<18x32x4xf32, #tpu.memory_space<vmem>>, vector<16x16x4xf32>
    %c6 = arith.constant 6 : index
    %c0_55 = arith.constant 0 : index
    %c0_56 = arith.constant 0 : index
    %41 = vector.load %arg2[%c6, %c0_55, %c0_56] : memref<9x4x4xf32, #tpu.memory_space<vmem>>, vector<1x4x4xf32>
    %42 = vector.shape_cast %41 : vector<1x4x4xf32> to vector<4x4xf32>
    "tpu.trace_start"() <{level = 10 : i32, message = "hwc,cd->hwd"}> : () -> ()
    %cst_57 = arith.constant dense<0.000000e+00> : vector<16x16x4xf32>
    %43 = tpu.matmul %40, %42, %cst_57 {dimension_numbers = #tpu.dot_dimension_numbers<[2], [0], [0, 1], [1], [0, 0, 0, 1, 1, 1], [], []>} : vector<16x16x4xf32>, vector<4x4xf32>, vector<16x16x4xf32> -> vector<16x16x4xf32>
    "tpu.trace_stop"() : () -> ()
    %44 = arith.addf %39, %43 : vector<16x16x4xf32>
    %c2_58 = arith.constant 2 : index
    %c8_59 = arith.constant 8 : index
    %c0_60 = arith.constant 0 : index
    %45 = vector.load %arg7[%c2_58, %c8_59, %c0_60] : memref<18x32x4xf32, #tpu.memory_space<vmem>>, vector<16x16x4xf32>
    %c7_61 = arith.constant 7 : index
    %c0_62 = arith.constant 0 : index
    %c0_63 = arith.constant 0 : index
    %46 = vector.load %arg2[%c7_61, %c0_62, %c0_63] : memref<9x4x4xf32, #tpu.memory_space<vmem>>, vector<1x4x4xf32>
    %47 = vector.shape_cast %46 : vector<1x4x4xf32> to vector<4x4xf32>
    "tpu.trace_start"() <{level = 10 : i32, message = "hwc,cd->hwd"}> : () -> ()
    %cst_64 = arith.constant dense<0.000000e+00> : vector<16x16x4xf32>
    %48 = tpu.matmul %45, %47, %cst_64 {dimension_numbers = #tpu.dot_dimension_numbers<[2], [0], [0, 1], [1], [0, 0, 0, 1, 1, 1], [], []>} : vector<16x16x4xf32>, vector<4x4xf32>, vector<16x16x4xf32> -> vector<16x16x4xf32>
    "tpu.trace_stop"() : () -> ()
    %49 = arith.addf %44, %48 : vector<16x16x4xf32>
    %c2_65 = arith.constant 2 : index
    %c9_66 = arith.constant 9 : index
    %c0_67 = arith.constant 0 : index
    %50 = vector.load %arg7[%c2_65, %c9_66, %c0_67] : memref<18x32x4xf32, #tpu.memory_space<vmem>>, vector<16x16x4xf32>
    %c8_68 = arith.constant 8 : index
    %c0_69 = arith.constant 0 : index
    %c0_70 = arith.constant 0 : index
    %51 = vector.load %arg2[%c8_68, %c0_69, %c0_70] : memref<9x4x4xf32, #tpu.memory_space<vmem>>, vector<1x4x4xf32>
    %52 = vector.shape_cast %51 : vector<1x4x4xf32> to vector<4x4xf32>
    "tpu.trace_start"() <{level = 10 : i32, message = "hwc,cd->hwd"}> : () -> ()
    %cst_71 = arith.constant dense<0.000000e+00> : vector<16x16x4xf32>
    %53 = tpu.matmul %50, %52, %cst_71 {dimension_numbers = #tpu.dot_dimension_numbers<[2], [0], [0, 1], [1], [0, 0, 0, 1, 1, 1], [], []>} : vector<16x16x4xf32>, vector<4x4xf32>, vector<16x16x4xf32> -> vector<16x16x4xf32>
    "tpu.trace_stop"() : () -> ()
    %54 = arith.addf %49, %53 : vector<16x16x4xf32>
    %c0_72 = arith.constant 0 : index
    %c0_73 = arith.constant 0 : index
    %55 = vector.load %arg3[%c0_72, %c0_73] : memref<1x4xf32, #tpu.memory_space<vmem>>, vector<1x4xf32>
    %56 = vector.shape_cast %55 : vector<1x4xf32> to vector<1x1x4xf32>
    %57 = vector.broadcast %56 : vector<1x1x4xf32> to vector<16x16x4xf32>
    %58 = arith.addf %54, %57 : vector<16x16x4xf32>
    %cst_74 = arith.constant 0.000000e+00 : f32
    %59 = vector.broadcast %cst_74 : f32 to vector<16x16x4xf32>
    %60 = arith.maximumf %58, %59 : vector<16x16x4xf32>
    %cst_75 = arith.constant 0.000000e+00 : f32
    %61 = vector.broadcast %cst_75 : f32 to vector<1x32x4xf32>
    %cst_76 = arith.constant 0.000000e+00 : f32
    %62 = vector.broadcast %cst_76 : f32 to vector<16x8x4xf32>
    %c0_77 = arith.constant 0 : index
    %c0_78 = arith.constant 0 : index
    %c0_79 = arith.constant 0 : index
    %63 = vector.load %arg8[%c0_77, %c0_78, %c0_79] : memref<18x32x4xf32, #tpu.memory_space<vmem>>, vector<1x32x4xf32>
    tpu.vector_store %arg8[%c0_77, %c0_78, %c0_79], %61 {strides = array<i32>} : memref<18x32x4xf32, #tpu.memory_space<vmem>>, vector<1x32x4xf32>,
    %c17_80 = arith.constant 17 : index
    %c0_81 = arith.constant 0 : index
    %c0_82 = arith.constant 0 : index
    %64 = vector.load %arg8[%c17_80, %c0_81, %c0_82] : memref<18x32x4xf32, #tpu.memory_space<vmem>>, vector<1x32x4xf32>
    tpu.vector_store %arg8[%c17_80, %c0_81, %c0_82], %61 {strides = array<i32>} : memref<18x32x4xf32, #tpu.memory_space<vmem>>, vector<1x32x4xf32>,
    %c1_83 = arith.constant 1 : index
    %c0_84 = arith.constant 0 : index
    %c0_85 = arith.constant 0 : index
    %65 = vector.load %arg8[%c1_83, %c0_84, %c0_85] : memref<18x32x4xf32, #tpu.memory_space<vmem>>, vector<16x8x4xf32>
    tpu.vector_store %arg8[%c1_83, %c0_84, %c0_85], %62 {strides = array<i32>} : memref<18x32x4xf32, #tpu.memory_space<vmem>>, vector<16x8x4xf32>,
    %c1_86 = arith.constant 1 : index
    %c24_87 = arith.constant 24 : index
    %c0_88 = arith.constant 0 : index
    %66 = vector.load %arg8[%c1_86, %c24_87, %c0_88] : memref<18x32x4xf32, #tpu.memory_space<vmem>>, vector<16x8x4xf32>
    tpu.vector_store %arg8[%c1_86, %c24_87, %c0_88], %62 {strides = array<i32>} : memref<18x32x4xf32, #tpu.memory_space<vmem>>, vector<16x8x4xf32>,
    %c1_89 = arith.constant 1 : index
    %c8_90 = arith.constant 8 : index
    %c0_91 = arith.constant 0 : index
    %67 = vector.load %arg8[%c1_89, %c8_90, %c0_91] : memref<18x32x4xf32, #tpu.memory_space<vmem>>, vector<16x16x4xf32>
    tpu.vector_store %arg8[%c1_89, %c8_90, %c0_91], %60 {strides = array<i32>} : memref<18x32x4xf32, #tpu.memory_space<vmem>>, vector<16x16x4xf32>,
    %cst_92 = arith.constant 0.000000e+00 : f32
    %68 = vector.broadcast %cst_92 : f32 to vector<16x16x4xf32>
    %c0_93 = arith.constant 0 : index
    %c7_94 = arith.constant 7 : index
    %c0_95 = arith.constant 0 : index
    %69 = vector.load %arg8[%c0_93, %c7_94, %c0_95] : memref<18x32x4xf32, #tpu.memory_space<vmem>>, vector<16x16x4xf32>
    %c0_96 = arith.constant 0 : index
    %c0_97 = arith.constant 0 : index
    %c0_98 = arith.constant 0 : index
    %70 = vector.load %arg4[%c0_96, %c0_97, %c0_98] : memref<9x4x4xf32, #tpu.memory_space<vmem>>, vector<1x4x4xf32>
    %71 = vector.shape_cast %70 : vector<1x4x4xf32> to vector<4x4xf32>
    "tpu.trace_start"() <{level = 10 : i32, message = "hwc,cd->hwd"}> : () -> ()
    %cst_99 = arith.constant dense<0.000000e+00> : vector<16x16x4xf32>
    %72 = tpu.matmul %69, %71, %cst_99 {dimension_numbers = #tpu.dot_dimension_numbers<[2], [0], [0, 1], [1], [0, 0, 0, 1, 1, 1], [], []>} : vector<16x16x4xf32>, vector<4x4xf32>, vector<16x16x4xf32> -> vector<16x16x4xf32>
    "tpu.trace_stop"() : () -> ()
    %73 = arith.addf %68, %72 : vector<16x16x4xf32>
    %c0_100 = arith.constant 0 : index
    %c8_101 = arith.constant 8 : index
    %c0_102 = arith.constant 0 : index
    %74 = vector.load %arg8[%c0_100, %c8_101, %c0_102] : memref<18x32x4xf32, #tpu.memory_space<vmem>>, vector<16x16x4xf32>
    %c1_103 = arith.constant 1 : index
    %c0_104 = arith.constant 0 : index
    %c0_105 = arith.constant 0 : index
    %75 = vector.load %arg4[%c1_103, %c0_104, %c0_105] : memref<9x4x4xf32, #tpu.memory_space<vmem>>, vector<1x4x4xf32>
    %76 = vector.shape_cast %75 : vector<1x4x4xf32> to vector<4x4xf32>
    "tpu.trace_start"() <{level = 10 : i32, message = "hwc,cd->hwd"}> : () -> ()
    %cst_106 = arith.constant dense<0.000000e+00> : vector<16x16x4xf32>
    %77 = tpu.matmul %74, %76, %cst_106 {dimension_numbers = #tpu.dot_dimension_numbers<[2], [0], [0, 1], [1], [0, 0, 0, 1, 1, 1], [], []>} : vector<16x16x4xf32>, vector<4x4xf32>, vector<16x16x4xf32> -> vector<16x16x4xf32>
    "tpu.trace_stop"() : () -> ()
    %78 = arith.addf %73, %77 : vector<16x16x4xf32>
    %c0_107 = arith.constant 0 : index
    %c9_108 = arith.constant 9 : index
    %c0_109 = arith.constant 0 : index
    %79 = vector.load %arg8[%c0_107, %c9_108, %c0_109] : memref<18x32x4xf32, #tpu.memory_space<vmem>>, vector<16x16x4xf32>
    %c2_110 = arith.constant 2 : index
    %c0_111 = arith.constant 0 : index
    %c0_112 = arith.constant 0 : index
    %80 = vector.load %arg4[%c2_110, %c0_111, %c0_112] : memref<9x4x4xf32, #tpu.memory_space<vmem>>, vector<1x4x4xf32>
    %81 = vector.shape_cast %80 : vector<1x4x4xf32> to vector<4x4xf32>
    "tpu.trace_start"() <{level = 10 : i32, message = "hwc,cd->hwd"}> : () -> ()
    %cst_113 = arith.constant dense<0.000000e+00> : vector<16x16x4xf32>
    %82 = tpu.matmul %79, %81, %cst_113 {dimension_numbers = #tpu.dot_dimension_numbers<[2], [0], [0, 1], [1], [0, 0, 0, 1, 1, 1], [], []>} : vector<16x16x4xf32>, vector<4x4xf32>, vector<16x16x4xf32> -> vector<16x16x4xf32>
    "tpu.trace_stop"() : () -> ()
    %83 = arith.addf %78, %82 : vector<16x16x4xf32>
    %c1_114 = arith.constant 1 : index
    %c7_115 = arith.constant 7 : index
    %c0_116 = arith.constant 0 : index
    %84 = vector.load %arg8[%c1_114, %c7_115, %c0_116] : memref<18x32x4xf32, #tpu.memory_space<vmem>>, vector<16x16x4xf32>
    %c3_117 = arith.constant 3 : index
    %c0_118 = arith.constant 0 : index
    %c0_119 = arith.constant 0 : index
    %85 = vector.load %arg4[%c3_117, %c0_118, %c0_119] : memref<9x4x4xf32, #tpu.memory_space<vmem>>, vector<1x4x4xf32>
    %86 = vector.shape_cast %85 : vector<1x4x4xf32> to vector<4x4xf32>
    "tpu.trace_start"() <{level = 10 : i32, message = "hwc,cd->hwd"}> : () -> ()
    %cst_120 = arith.constant dense<0.000000e+00> : vector<16x16x4xf32>
    %87 = tpu.matmul %84, %86, %cst_120 {dimension_numbers = #tpu.dot_dimension_numbers<[2], [0], [0, 1], [1], [0, 0, 0, 1, 1, 1], [], []>} : vector<16x16x4xf32>, vector<4x4xf32>, vector<16x16x4xf32> -> vector<16x16x4xf32>
    "tpu.trace_stop"() : () -> ()
    %88 = arith.addf %83, %87 : vector<16x16x4xf32>
    %c1_121 = arith.constant 1 : index
    %c8_122 = arith.constant 8 : index
    %c0_123 = arith.constant 0 : index
    %89 = vector.load %arg8[%c1_121, %c8_122, %c0_123] : memref<18x32x4xf32, #tpu.memory_space<vmem>>, vector<16x16x4xf32>
    %c4_124 = arith.constant 4 : index
    %c0_125 = arith.constant 0 : index
    %c0_126 = arith.constant 0 : index
    %90 = vector.load %arg4[%c4_124, %c0_125, %c0_126] : memref<9x4x4xf32, #tpu.memory_space<vmem>>, vector<1x4x4xf32>
    %91 = vector.shape_cast %90 : vector<1x4x4xf32> to vector<4x4xf32>
    "tpu.trace_start"() <{level = 10 : i32, message = "hwc,cd->hwd"}> : () -> ()
    %cst_127 = arith.constant dense<0.000000e+00> : vector<16x16x4xf32>
    %92 = tpu.matmul %89, %91, %cst_127 {dimension_numbers = #tpu.dot_dimension_numbers<[2], [0], [0, 1], [1], [0, 0, 0, 1, 1, 1], [], []>} : vector<16x16x4xf32>, vector<4x4xf32>, vector<16x16x4xf32> -> vector<16x16x4xf32>
    "tpu.trace_stop"() : () -> ()
    %93 = arith.addf %88, %92 : vector<16x16x4xf32>
    %c1_128 = arith.constant 1 : index
    %c9_129 = arith.constant 9 : index
    %c0_130 = arith.constant 0 : index
    %94 = vector.load %arg8[%c1_128, %c9_129, %c0_130] : memref<18x32x4xf32, #tpu.memory_space<vmem>>, vector<16x16x4xf32>
    %c5_131 = arith.constant 5 : index
    %c0_132 = arith.constant 0 : index
    %c0_133 = arith.constant 0 : index
    %95 = vector.load %arg4[%c5_131, %c0_132, %c0_133] : memref<9x4x4xf32, #tpu.memory_space<vmem>>, vector<1x4x4xf32>
    %96 = vector.shape_cast %95 : vector<1x4x4xf32> to vector<4x4xf32>
    "tpu.trace_start"() <{level = 10 : i32, message = "hwc,cd->hwd"}> : () -> ()
    %cst_134 = arith.constant dense<0.000000e+00> : vector<16x16x4xf32>
    %97 = tpu.matmul %94, %96, %cst_134 {dimension_numbers = #tpu.dot_dimension_numbers<[2], [0], [0, 1], [1], [0, 0, 0, 1, 1, 1], [], []>} : vector<16x16x4xf32>, vector<4x4xf32>, vector<16x16x4xf32> -> vector<16x16x4xf32>
    "tpu.trace_stop"() : () -> ()
    %98 = arith.addf %93, %97 : vector<16x16x4xf32>
    %c2_135 = arith.constant 2 : index
    %c7_136 = arith.constant 7 : index
    %c0_137 = arith.constant 0 : index
    %99 = vector.load %arg8[%c2_135, %c7_136, %c0_137] : memref<18x32x4xf32, #tpu.memory_space<vmem>>, vector<16x16x4xf32>
    %c6_138 = arith.constant 6 : index
    %c0_139 = arith.constant 0 : index
    %c0_140 = arith.constant 0 : index
    %100 = vector.load %arg4[%c6_138, %c0_139, %c0_140] : memref<9x4x4xf32, #tpu.memory_space<vmem>>, vector<1x4x4xf32>
    %101 = vector.shape_cast %100 : vector<1x4x4xf32> to vector<4x4xf32>
    "tpu.trace_start"() <{level = 10 : i32, message = "hwc,cd->hwd"}> : () -> ()
    %cst_141 = arith.constant dense<0.000000e+00> : vector<16x16x4xf32>
    %102 = tpu.matmul %99, %101, %cst_141 {dimension_numbers = #tpu.dot_dimension_numbers<[2], [0], [0, 1], [1], [0, 0, 0, 1, 1, 1], [], []>} : vector<16x16x4xf32>, vector<4x4xf32>, vector<16x16x4xf32> -> vector<16x16x4xf32>
    "tpu.trace_stop"() : () -> ()
    %103 = arith.addf %98, %102 : vector<16x16x4xf32>
    %c2_142 = arith.constant 2 : index
    %c8_143 = arith.constant 8 : index
    %c0_144 = arith.constant 0 : index
    %104 = vector.load %arg8[%c2_142, %c8_143, %c0_144] : memref<18x32x4xf32, #tpu.memory_space<vmem>>, vector<16x16x4xf32>
    %c7_145 = arith.constant 7 : index
    %c0_146 = arith.constant 0 : index
    %c0_147 = arith.constant 0 : index
    %105 = vector.load %arg4[%c7_145, %c0_146, %c0_147] : memref<9x4x4xf32, #tpu.memory_space<vmem>>, vector<1x4x4xf32>
    %106 = vector.shape_cast %105 : vector<1x4x4xf32> to vector<4x4xf32>
    "tpu.trace_start"() <{level = 10 : i32, message = "hwc,cd->hwd"}> : () -> ()
    %cst_148 = arith.constant dense<0.000000e+00> : vector<16x16x4xf32>
    %107 = tpu.matmul %104, %106, %cst_148 {dimension_numbers = #tpu.dot_dimension_numbers<[2], [0], [0, 1], [1], [0, 0, 0, 1, 1, 1], [], []>} : vector<16x16x4xf32>, vector<4x4xf32>, vector<16x16x4xf32> -> vector<16x16x4xf32>
    "tpu.trace_stop"() : () -> ()
    %108 = arith.addf %103, %107 : vector<16x16x4xf32>
    %c2_149 = arith.constant 2 : index
    %c9_150 = arith.constant 9 : index
    %c0_151 = arith.constant 0 : index
    %109 = vector.load %arg8[%c2_149, %c9_150, %c0_151] : memref<18x32x4xf32, #tpu.memory_space<vmem>>, vector<16x16x4xf32>
    %c8_152 = arith.constant 8 : index
    %c0_153 = arith.constant 0 : index
    %c0_154 = arith.constant 0 : index
    %110 = vector.load %arg4[%c8_152, %c0_153, %c0_154] : memref<9x4x4xf32, #tpu.memory_space<vmem>>, vector<1x4x4xf32>
    %111 = vector.shape_cast %110 : vector<1x4x4xf32> to vector<4x4xf32>
    "tpu.trace_start"() <{level = 10 : i32, message = "hwc,cd->hwd"}> : () -> ()
    %cst_155 = arith.constant dense<0.000000e+00> : vector<16x16x4xf32>
    %112 = tpu.matmul %109, %111, %cst_155 {dimension_numbers = #tpu.dot_dimension_numbers<[2], [0], [0, 1], [1], [0, 0, 0, 1, 1, 1], [], []>} : vector<16x16x4xf32>, vector<4x4xf32>, vector<16x16x4xf32> -> vector<16x16x4xf32>
    "tpu.trace_stop"() : () -> ()
    %113 = arith.addf %108, %112 : vector<16x16x4xf32>
    %c0_156 = arith.constant 0 : index
    %c0_157 = arith.constant 0 : index
    %114 = vector.load %arg5[%c0_156, %c0_157] : memref<1x4xf32, #tpu.memory_space<vmem>>, vector<1x4xf32>
    %115 = vector.shape_cast %114 : vector<1x4xf32> to vector<1x1x4xf32>
    %116 = vector.broadcast %115 : vector<1x1x4xf32> to vector<16x16x4xf32>
    %117 = arith.addf %113, %116 : vector<16x16x4xf32>
    %118 = arith.addf %117, %1 : vector<16x16x4xf32>
    %cst_158 = arith.constant 0.000000e+00 : f32
    %119 = vector.broadcast %cst_158 : f32 to vector<16x16x4xf32>
    %120 = arith.maximumf %118, %119 : vector<16x16x4xf32>
    %c0_159 = arith.constant 0 : index
    %c0_160 = arith.constant 0 : index
    %c0_161 = arith.constant 0 : index
    %c0_162 = arith.constant 0 : index
    %121 = vector.load %arg6[%c0_159, %c0_160, %c0_161, %c0_162] : memref<1x16x16x4xf32, #tpu.memory_space<vmem>>, vector<1x16x16x4xf32>
    %122 = vector.shape_cast %121 : vector<1x16x16x4xf32> to vector<16x16x4xf32>
    %123 = vector.shape_cast %120 : vector<16x16x4xf32> to vector<1x16x16x4xf32>
    tpu.vector_store %arg6[%c0_159, %c0_160, %c0_161, %c0_162], %123 {strides = array<i32>} : memref<1x16x16x4xf32, #tpu.memory_space<vmem>>, vector<1x16x16x4xf32>,
    return
  }
  func.func @transform_0(%arg0: i32) -> (i32, i32, i32, i32) {
    %c0_i32 = arith.constant 0 : i32
    %c0_i32_0 = arith.constant 0 : i32
    %c0_i32_1 = arith.constant 0 : i32
    %c0_i32_2 = arith.constant 0 : i32
    return %arg0, %c0_i32, %c0_i32_0, %c0_i32_1 : i32, i32, i32, i32
  }
  func.func @transform_1(%arg0: i32) -> (i32, i32, i32) {
    %c0_i32 = arith.constant 0 : i32
    %c0_i32_0 = arith.constant 0 : i32
    %c0_i32_1 = arith.constant 0 : i32
    %c0_i32_2 = arith.constant 0 : i32
    return %c0_i32, %c0_i32_0, %c0_i32_1 : i32, i32, i32
  }
  func.func @transform_2(%arg0: i32) -> (i32, i32) {
    %c0_i32 = arith.constant 0 : i32
    %c0_i32_0 = arith.constant 0 : i32
    %c0_i32_1 = arith.constant 0 : i32
    return %c0_i32, %c0_i32_0 : i32, i32
  }
  func.func @transform_3(%arg0: i32) -> (i32, i32, i32) {
    %c0_i32 = arith.constant 0 : i32
    %c0_i32_0 = arith.constant 0 : i32
    %c0_i32_1 = arith.constant 0 : i32
    %c0_i32_2 = arith.constant 0 : i32
    return %c0_i32, %c0_i32_0, %c0_i32_1 : i32, i32, i32
  }
  func.func @transform_4(%arg0: i32) -> (i32, i32) {
    %c0_i32 = arith.constant 0 : i32
    %c0_i32_0 = arith.constant 0 : i32
    %c0_i32_1 = arith.constant 0 : i32
    return %c0_i32, %c0_i32_0 : i32, i32
  }
  func.func @transform_5(%arg0: i32) -> (i32, i32, i32, i32) {
    %c0_i32 = arith.constant 0 : i32
    %c0_i32_0 = arith.constant 0 : i32
    %c0_i32_1 = arith.constant 0 : i32
    %c0_i32_2 = arith.constant 0 : i32
    return %arg0, %c0_i32, %c0_i32_0, %c0_i32_1 : i32, i32, i32, i32
  }
}

</mosaic_0001>

<llo_original>
// kernel: basic_block_forward.1
$region0: #{basic_block_forward.1}
  #allocation0 [shape = 'u32[]', space=smem, size = 0x4, offset = 0x4, fixed_abs, tag = 'smem constant byte address 0x4 - core index']
  #allocation1 [shape = 'u32[144,128]{1,0:T(1,128)}', space=vmem, size = 0x12000, scoped, tag = 'internal scratch']
  #allocation2 [shape = 'f32[18,32,4]{2,1,0:T(8,128)}', space=vmem, size = 0x48000, scoped, tag = 'scratch operand']
  #allocation3 [shape = 'f32[18,32,4]{2,1,0:T(8,128)}', space=vmem, size = 0x48000, scoped, tag = 'scratch operand']
  %s0 = inlined_call_operand.vmem [shape: f32[2,16,16,4], index: 0, kind: input, shape index: {}]
  %s1 = inlined_call_operand.vmem [shape: f32[9,4,4], index: 1, kind: input, shape index: {}]
  %s2 = inlined_call_operand.vmem [shape: f32[1,4], index: 2, kind: input, shape index: {}]
  %s3 = inlined_call_operand.vmem [shape: f32[9,4,4], index: 3, kind: input, shape index: {}]
  %s4 = inlined_call_operand.vmem [shape: f32[1,4], index: 4, kind: input, shape index: {}]
  %s5 = inlined_call_operand.vmem [shape: f32[2,16,16,4], index: 5, kind: output, shape index: {}]
  %s6 = sld [smem:[#allocation0]]
  $region53: #{basic_block_forward.1} parent=0
    _
  %s8 = ssub.s32 1, %s6
  %s9 = scalar_select 0, %s8, %s6
  loop: start=0, step=1, limit=4
  $region2: #{basic_block_forward.1} parent=0 // loop_pre_header
    _
  $region3: #{basic_block_forward.1} parent=0 // loop_header
    %s11 = sphi 0, %s15
    %p12 = scmp.ge.s32.totalorder %s11, 4
    %s21 = sphi 0, %s23
    %s24 = sphi 0, %s21
    %s25 = sphi 0, %s24
    %s41 = sphi 0, %s25
    %s45 = sphi 0, %s45
    %s47 = sphi 0, %s45
    %s48 = sphi 0, %s47
    %s62 = sphi 0, %s48
    %s66 = sphi 0, %s66
    %s68 = sphi 0, %s66
    %s69 = sphi 0, %s68
    %s83 = sphi 0, %s69
    %s87 = sphi 0, %s87
    %s89 = sphi 0, %s87
    %s90 = sphi 0, %s89
    %s104 = sphi 0, %s90
    %s108 = sphi 0, %s108
    %s110 = sphi 0, %s108
    %s111 = sphi 0, %s110
    %s125 = sphi 0, %s111
    %s131 = sphi 0, %s133
    %s134 = sphi 0, %s131
    %s135 = sphi 0, %s134
    %s151 = sphi 0, %s135
  $region4: #{basic_block_forward.1} parent=0 // loop_header_branch
    %14 = sbr.rel (%p12) target = $region8
  $region5: #{basic_block_forward.1} parent=0 // loop_body
    %s16 = ssub.s32 %s11, 1
    %s17 = ssub.s32 %s11, 2
    %s18 = sadd.s32 %s11, 1
    %s19 = ssub.s32 %s11, %s18
    %p20 = scmp.eq.s32.totalorder %s19, 0
    %s22 = sadd.s32 %s21, 1
    %s23 = scalar_select %p20, %s21, %s22
    %p26 = pneg %p20
    %p27 = scmp.eq.s32.totalorder %s11, 1
    %p28 = por %p26, %p27
    %p29 = scmp.ne.s32.totalorder %s21, %s24
    %p30 = scmp.eq.s32.totalorder %s11, 0
    %p31 = por %p29, %p30
    %p32 = scmp.ne.s32.totalorder %s21, %s24
    %p33 = scmp.eq.s32.totalorder %s16, 1
    %p34 = por %p32, %p33
    %p35 = scmp.ne.s32.totalorder %s24, %s25
    %p36 = scmp.eq.s32.totalorder %s16, 0
    %p37 = por %p35, %p36
    %p38 = scmp.ne.s32.totalorder %s24, %s25
    %p39 = scmp.eq.s32.totalorder %s17, 1
    %p40 = por %p38, %p39
    %p42 = scmp.ne.s32.totalorder %s25, %s41
    %p43 = scmp.eq.s32.totalorder %s17, 0
    %p44 = por %p42, %p43
    %s46 = sadd.s32 %s45, 1
    %p49 = scmp.eq.s32.totalorder %s11, 1
    %p50 = scmp.ne.s32.totalorder %s45, %s47
    %p51 = scmp.eq.s32.totalorder %s11, 0
    %p52 = por %p50, %p51
    %p53 = scmp.ne.s32.totalorder %s45, %s47
    %p54 = scmp.eq.s32.totalorder %s16, 1
    %p55 = por %p53, %p54
    %p56 = scmp.ne.s32.totalorder %s47, %s48
    %p57 = scmp.eq.s32.totalorder %s16, 0
    %p58 = por %p56, %p57
    %p59 = scmp.ne.s32.totalorder %s47, %s48
    %p60 = scmp.eq.s32.totalorder %s17, 1
    %p61 = por %p59, %p60
    %p63 = scmp.ne.s32.totalorder %s48, %s62
    %p64 = scmp.eq.s32.totalorder %s17, 0
    %p65 = por %p63, %p64
    %s67 = sadd.s32 %s66, 1
    %p70 = scmp.eq.s32.totalorder %s11, 1
    %p71 = scmp.ne.s32.totalorder %s66, %s68
    %p72 = scmp.eq.s32.totalorder %s11, 0
    %p73 = por %p71, %p72
    %p74 = scmp.ne.s32.totalorder %s66, %s68
    %p75 = scmp.eq.s32.totalorder %s16, 1
    %p76 = por %p74, %p75
    %p77 = scmp.ne.s32.totalorder %s68, %s69
    %p78 = scmp.eq.s32.totalorder %s16, 0
    %p79 = por %p77, %p78
    %p80 = scmp.ne.s32.totalorder %s68, %s69
    %p81 = scmp.eq.s32.totalorder %s17, 1
    %p82 = por %p80, %p81
    %p84 = scmp.ne.s32.totalorder %s69, %s83
    %p85 = scmp.eq.s32.totalorder %s17, 0
    %p86 = por %p84, %p85
    %s88 = sadd.s32 %s87, 1
    %p91 = scmp.eq.s32.totalorder %s11, 1
    %p92 = scmp.ne.s32.totalorder %s87, %s89
    %p93 = scmp.eq.s32.totalorder %s11, 0
    %p94 = por %p92, %p93
    %p95 = scmp.ne.s32.totalorder %s87, %s89
    %p96 = scmp.eq.s32.totalorder %s16, 1
    %p97 = por %p95, %p96
    %p98 = scmp.ne.s32.totalorder %s89, %s90
    %p99 = scmp.eq.s32.totalorder %s16, 0
    %p100 = por %p98, %p99
    %p101 = scmp.ne.s32.totalorder %s89, %s90
    %p102 = scmp.eq.s32.totalorder %s17, 1
    %p103 = por %p101, %p102
    %p105 = scmp.ne.s32.totalorder %s90, %s104
    %p106 = scmp.eq.s32.totalorder %s17, 0
    %p107 = por %p105, %p106
    %s109 = sadd.s32 %s108, 1
    %p112 = scmp.eq.s32.totalorder %s11, 1
    %p113 = scmp.ne.s32.totalorder %s108, %s110
    %p114 = scmp.eq.s32.totalorder %s11, 0
    %p115 = por %p113, %p114
    %p116 = scmp.ne.s32.totalorder %s108, %s110
    %p117 = scmp.eq.s32.totalorder %s16, 1
    %p118 = por %p116, %p117
    %p119 = scmp.ne.s32.totalorder %s110, %s111
    %p120 = scmp.eq.s32.totalorder %s16, 0
    %p121 = por %p119, %p120
    %p122 = scmp.ne.s32.totalorder %s110, %s111
    %p123 = scmp.eq.s32.totalorder %s17, 1
    %p124 = por %p122, %p123
    %p126 = scmp.ne.s32.totalorder %s111, %s125
    %p127 = scmp.eq.s32.totalorder %s17, 0
    %p128 = por %p126, %p127
    %s129 = ssub.s32 %s11, %s18
    %p130 = scmp.eq.s32.totalorder %s129, 0
    %s132 = sadd.s32 %s131, 1
    %s133 = scalar_select %p130, %s131, %s132
    %p136 = pneg %p130
    %p137 = scmp.eq.s32.totalorder %s11, 1
    %p138 = por %p136, %p137
    %p139 = scmp.ne.s32.totalorder %s131, %s134
    %p140 = scmp.eq.s32.totalorder %s11, 0
    %p141 = por %p139, %p140
    %p142 = scmp.ne.s32.totalorder %s131, %s134
    %p143 = scmp.eq.s32.totalorder %s16, 1
    %p144 = por %p142, %p143
    %p145 = scmp.ne.s32.totalorder %s134, %s135
    %p146 = scmp.eq.s32.totalorder %s16, 0
    %p147 = por %p145, %p146
    %p148 = scmp.ne.s32.totalorder %s134, %s135
    %p149 = scmp.eq.s32.totalorder %s17, 1
    %p150 = por %p148, %p149
    %p152 = scmp.ne.s32.totalorder %s135, %s151
    %p153 = scmp.eq.s32.totalorder %s17, 0
    %p154 = por %p152, %p153
    %p155 = scmp.le.s32.totalorder 1, %s11
    %p156 = scmp.lt.s32.totalorder %s11, 3
    %p157 = pnand %p155, %p156
    %p158 = pneg %p157
    // Predicated region
    $region9: #{basic_block_forward.1} parent=5 // pred_check
      _
    $region10: #{basic_block_forward.1} parent=5 // pred_check_branch
      %160 = sbr.rel (%p157) target = $region12
    $region11: #{basic_block_forward.1} parent=5 // pred_region
      %s161 = ssub.s32 %s11, 1
      // Predicated region
      $region13: #{basic_block_forward.1} parent=11 // pred_check
        %p162 = pneg %p58
      $region14: #{basic_block_forward.1} parent=11 // pred_check_branch
        %164 = sbr.rel (%p162) target = $region16
      $region15: #{basic_block_forward.1} parent=11 // pred_region
        _
      $region16: #{basic_block_forward.1} parent=11 // pred_fallthru
        _
      // Predicated region
      $region17: #{basic_block_forward.1} parent=11 // pred_check
        %p165 = pneg %p79
      $region18: #{basic_block_forward.1} parent=11 // pred_check_branch
        %167 = sbr.rel (%p165) target = $region20
      $region19: #{basic_block_forward.1} parent=11 // pred_region
        _
      $region20: #{basic_block_forward.1} parent=11 // pred_fallthru
        _
      // Predicated region
      $region21: #{basic_block_forward.1} parent=11 // pred_check
        %p168 = pneg %p100
      $region22: #{basic_block_forward.1} parent=11 // pred_check_branch
        %170 = sbr.rel (%p168) target = $region24
      $region23: #{basic_block_forward.1} parent=11 // pred_region
        _
      $region24: #{basic_block_forward.1} parent=11 // pred_fallthru
        _
      // Predicated region
      $region25: #{basic_block_forward.1} parent=11 // pred_check
        %p171 = pneg %p121
      $region26: #{basic_block_forward.1} parent=11 // pred_check_branch
        %173 = sbr.rel (%p171) target = $region28
      $region27: #{basic_block_forward.1} parent=11 // pred_region
        _
      $region28: #{basic_block_forward.1} parent=11 // pred_fallthru
        _
    $region12: #{basic_block_forward.1} parent=5 // pred_fallthru
      _
    %p174 = scmp.lt.s32.totalorder %s11, 2
    // Predicated region
    $region29: #{basic_block_forward.1} parent=5 // pred_check
      %p175 = pneg %p174
    $region30: #{basic_block_forward.1} parent=5 // pred_check_branch
      %177 = sbr.rel (%p175) target = $region32
    $region31: #{basic_block_forward.1} parent=5 // pred_region
      // Predicated region
      $region33: #{basic_block_forward.1} parent=31 // pred_check
        %p178 = pneg %p31
      $region34: #{basic_block_forward.1} parent=31 // pred_check_branch
        %180 = sbr.rel (%p178) target = $region36
      $region35: #{basic_block_forward.1} parent=31 // pred_region
        %p181 = scmp.lt.s32.totalorder %s11, 1
        %s182 = scalar_select %p181, %s11, 1
        %s183 = smul.addr %s182, 32
        %s184 = smul.addr %s183, 8
        %s185 = scalar_lea.vmem %s0, %s184
      $region36: #{basic_block_forward.1} parent=31 // pred_fallthru
        _
    $region32: #{basic_block_forward.1} parent=5 // pred_fallthru
      _
    %p186 = scmp.le.s32.totalorder 1, %s11
    %p187 = scmp.lt.s32.totalorder %s11, 3
    %p188 = pnand %p186, %p187
    %p189 = pneg %p188
    // Predicated region
    $region37: #{basic_block_forward.1} parent=5 // pred_check
      _
    $region38: #{basic_block_forward.1} parent=5 // pred_check_branch
      %191 = sbr.rel (%p188) target = $region40
    $region39: #{basic_block_forward.1} parent=5 // pred_region
      %s192 = ssub.s32 %s11, 1
      %p193 = scmp.lt.s32.totalorder %s16, 1
      %s194 = scalar_select %p193, %s16, 1
      %s195 = smul.addr %s194, 32
      %s196 = smul.addr %s195, 8
      %s197 = scalar_lea.vmem %s0, %s196
      %p198 = pneg %p37
      %p199 = pneg %p34
      %p200 = pneg %p58
      %p201 = pneg %p55
      %p202 = pneg %p79
      %p203 = pneg %p76
      %p204 = pneg %p100
      %p205 = pneg %p97
      %p206 = pneg %p121
      %p207 = pneg %p118
      %p208 = pneg %p147
      %p209 = pneg %p144
      %p210 = scmp.lt.s32.totalorder %s16, 1
      %s211 = scalar_select %p210, %s16, 1
      %s212 = smul.addr %s211, 32
      %s213 = smul.addr %s212, 8
      %s214 = scalar_lea.vmem %s5, %s213
      %p215 = scmp.lt.s32.totalorder %s16, 1
      %s216 = scalar_select %p215, %s16, 1
      %s217 = smul.addr %s216, 32
      %s218 = smul.addr %s217, 8
      %s219 = scalar_lea.vmem %s0, %s218
      %p220 = scmp.lt.s32.totalorder %s16, 1
      %s221 = scalar_select %p220, %s16, 1
      %s222 = smul.addr %s221, 32
      %s223 = smul.addr %s222, 8
      %s224 = scalar_lea.vmem %s5, %s223
      %v225 = vld [vmem:[%s219] sm:$0xff]
      %v226 = vld [vmem:[%s219 + $0x8] sm:$0xff]
      %v227 = vld [vmem:[%s219 + $0x10] sm:$0xff]
      %v228 = vld [vmem:[%s219 + $0x18] sm:$0xff]
      %v229 = vld [vmem:[%s219 + $0x20] sm:$0xff]
      %v230 = vld [vmem:[%s219 + $0x28] sm:$0xff]
      %v231 = vld [vmem:[%s219 + $0x30] sm:$0xff]
      %v232 = vld [vmem:[%s219 + $0x38] sm:$0xff]
      %v233 = vld [vmem:[%s219 + $0x40] sm:$0xff]
      %v234 = vld [vmem:[%s219 + $0x48] sm:$0xff]
      %v235 = vld [vmem:[%s219 + $0x50] sm:$0xff]
      %v236 = vld [vmem:[%s219 + $0x58] sm:$0xff]
      %v237 = vld [vmem:[%s219 + $0x60] sm:$0xff]
      %v238 = vld [vmem:[%s219 + $0x68] sm:$0xff]
      %v239 = vld [vmem:[%s219 + $0x70] sm:$0xff]
      %v240 = vld [vmem:[%s219 + $0x78] sm:$0xff]
      %v241 = vld [vmem:[%s219 + $0x80] sm:$0xff]
      %v242 = vld [vmem:[%s219 + $0x88] sm:$0xff]
      %v243 = vld [vmem:[%s219 + $0x90] sm:$0xff]
      %v244 = vld [vmem:[%s219 + $0x98] sm:$0xff]
      %v245 = vld [vmem:[%s219 + $0xa0] sm:$0xff]
      %v246 = vld [vmem:[%s219 + $0xa8] sm:$0xff]
      %v247 = vld [vmem:[%s219 + $0xb0] sm:$0xff]
      %v248 = vld [vmem:[%s219 + $0xb8] sm:$0xff]
      %v249 = vld [vmem:[%s219 + $0xc0] sm:$0xff]
      %v250 = vld [vmem:[%s219 + $0xc8] sm:$0xff]
      %v251 = vld [vmem:[%s219 + $0xd0] sm:$0xff]
      %v252 = vld [vmem:[%s219 + $0xd8] sm:$0xff]
      %v253 = vld [vmem:[%s219 + $0xe0] sm:$0xff]
      %v254 = vld [vmem:[%s219 + $0xe8] sm:$0xff]
      %v255 = vld [vmem:[%s219 + $0xf0] sm:$0xff]
      %v256 = vld [vmem:[%s219 + $0xf8] sm:$0xff]
      %vm257 = vcmask 31744
      %258 = vst.msk [vmem:[#allocation2] sm:$0xff] %vm257, 0.0
      %259 = vst.msk [vmem:[#allocation2 + $0x8] sm:$0xff] %vm257, 0.0
      %260 = vst.msk [vmem:[#allocation2 + $0x10] sm:$0xff] %vm257, 0.0
      %261 = vst.msk [vmem:[#allocation2 + $0x18] sm:$0xff] %vm257, 0.0
      %s262 = scalar_lea.vmem [#allocation2], 544
      %263 = vst.msk [vmem:[%s262] sm:$0xff] %vm257, 0.0
      %264 = vst.msk [vmem:[%s262 + $0x8] sm:$0xff] %vm257, 0.0
      %265 = vst.msk [vmem:[%s262 + $0x10] sm:$0xff] %vm257, 0.0
      %266 = vst.msk [vmem:[%s262 + $0x18] sm:$0xff] %vm257, 0.0
      %s267 = scalar_lea.vmem [#allocation2], 32
      %268 = vst.msk [vmem:[%s267] sm:$0xff] %vm257, 0.0
      %269 = vst.msk [vmem:[%s267 + $0x20] sm:$0xff] %vm257, 0.0
      %270 = vst.msk [vmem:[%s267 + $0x40] sm:$0xff] %vm257, 0.0
      %271 = vst.msk [vmem:[%s267 + $0x60] sm:$0xff] %vm257, 0.0
      %272 = vst.msk [vmem:[%s267 + $0x80] sm:$0xff] %vm257, 0.0
      %273 = vst.msk [vmem:[%s267 + $0xa0] sm:$0xff] %vm257, 0.0
      %274 = vst.msk [vmem:[%s267 + $0xc0] sm:$0xff] %vm257, 0.0
      %275 = vst.msk [vmem:[%s267 + $0xe0] sm:$0xff] %vm257, 0.0
      %276 = vst.msk [vmem:[%s267 + $0x100] sm:$0xff] %vm257, 0.0
      %277 = vst.msk [vmem:[%s267 + $0x120] sm:$0xff] %vm257, 0.0
      %278 = vst.msk [vmem:[%s267 + $0x140] sm:$0xff] %vm257, 0.0
      %279 = vst.msk [vmem:[%s267 + $0x160] sm:$0xff] %vm257, 0.0
      %280 = vst.msk [vmem:[%s267 + $0x180] sm:$0xff] %vm257, 0.0
      %281 = vst.msk [vmem:[%s267 + $0x1a0] sm:$0xff] %vm257, 0.0
      %282 = vst.msk [vmem:[%s267 + $0x1c0] sm:$0xff] %vm257, 0.0
      %283 = vst.msk [vmem:[%s267 + $0x1e0] sm:$0xff] %vm257, 0.0
      %284 = vst.msk [vmem:[%s267 + $0x18] sm:$0xff] %vm257, 0.0
      %285 = vst.msk [vmem:[%s267 + $0x38] sm:$0xff] %vm257, 0.0
      %286 = vst.msk [vmem:[%s267 + $0x58] sm:$0xff] %vm257, 0.0
      %287 = vst.msk [vmem:[%s267 + $0x78] sm:$0xff] %vm257, 0.0
      %288 = vst.msk [vmem:[%s267 + $0x98] sm:$0xff] %vm257, 0.0
      %289 = vst.msk [vmem:[%s267 + $0xb8] sm:$0xff] %vm257, 0.0
      %290 = vst.msk [vmem:[%s267 + $0xd8] sm:$0xff] %vm257, 0.0
      %291 = vst.msk [vmem:[%s267 + $0xf8] sm:$0xff] %vm257, 0.0
      %292 = vst.msk [vmem:[%s267 + $0x118] sm:$0xff] %vm257, 0.0
      %293 = vst.msk [vmem:[%s267 + $0x138] sm:$0xff] %vm257, 0.0
      %294 = vst.msk [vmem:[%s267 + $0x158] sm:$0xff] %vm257, 0.0
      %295 = vst.msk [vmem:[%s267 + $0x178] sm:$0xff] %vm257, 0.0
      %296 = vst.msk [vmem:[%s267 + $0x198] sm:$0xff] %vm257, 0.0
      %297 = vst.msk [vmem:[%s267 + $0x1b8] sm:$0xff] %vm257, 0.0
      %298 = vst.msk [vmem:[%s267 + $0x1d8] sm:$0xff] %vm257, 0.0
      %299 = vst.msk [vmem:[%s267 + $0x1f8] sm:$0xff] %vm257, 0.0
      %300 = vst.msk [vmem:[%s267 + $0x8] sm:$0xff] %vm257, %v225
      %301 = vst.msk [vmem:[%s267 + $0x10] sm:$0xff] %vm257, %v226
      %302 = vst.msk [vmem:[%s267 + $0x28] sm:$0xff] %vm257, %v227
      %303 = vst.msk [vmem:[%s267 + $0x30] sm:$0xff] %vm257, %v228
      %304 = vst.msk [vmem:[%s267 + $0x48] sm:$0xff] %vm257, %v229
      %305 = vst.msk [vmem:[%s267 + $0x50] sm:$0xff] %vm257, %v230
      %306 = vst.msk [vmem:[%s267 + $0x68] sm:$0xff] %vm257, %v231
      %307 = vst.msk [vmem:[%s267 + $0x70] sm:$0xff] %vm257, %v232
      %308 = vst.msk [vmem:[%s267 + $0x88] sm:$0xff] %vm257, %v233
      %309 = vst.msk [vmem:[%s267 + $0x90] sm:$0xff] %vm257, %v234
      %310 = vst.msk [vmem:[%s267 + $0xa8] sm:$0xff] %vm257, %v235
      %311 = vst.msk [vmem:[%s267 + $0xb0] sm:$0xff] %vm257, %v236
      %312 = vst.msk [vmem:[%s267 + $0xc8] sm:$0xff] %vm257, %v237
      %313 = vst.msk [vmem:[%s267 + $0xd0] sm:$0xff] %vm257, %v238
      %314 = vst.msk [vmem:[%s267 + $0xe8] sm:$0xff] %vm257, %v239
      %315 = vst.msk [vmem:[%s267 + $0xf0] sm:$0xff] %vm257, %v240
      %316 = vst.msk [vmem:[%s267 + $0x108] sm:$0xff] %vm257, %v241
      %317 = vst.msk [vmem:[%s267 + $0x110] sm:$0xff] %vm257, %v242
      %318 = vst.msk [vmem:[%s267 + $0x128] sm:$0xff] %vm257, %v243
      %319 = vst.msk [vmem:[%s267 + $0x130] sm:$0xff] %vm257, %v244
      %320 = vst.msk [vmem:[%s267 + $0x148] sm:$0xff] %vm257, %v245
      %321 = vst.msk [vmem:[%s267 + $0x150] sm:$0xff] %vm257, %v246
      %322 = vst.msk [vmem:[%s267 + $0x168] sm:$0xff] %vm257, %v247
      %323 = vst.msk [vmem:[%s267 + $0x170] sm:$0xff] %vm257, %v248
      %324 = vst.msk [vmem:[%s267 + $0x188] sm:$0xff] %vm257, %v249
      %325 = vst.msk [vmem:[%s267 + $0x190] sm:$0xff] %vm257, %v250
      %326 = vst.msk [vmem:[%s267 + $0x1a8] sm:$0xff] %vm257, %v251
      %327 = vst.msk [vmem:[%s267 + $0x1b0] sm:$0xff] %vm257, %v252
      %328 = vst.msk [vmem:[%s267 + $0x1c8] sm:$0xff] %vm257, %v253
      %329 = vst.msk [vmem:[%s267 + $0x1d0] sm:$0xff] %vm257, %v254
      %330 = vst.msk [vmem:[%s267 + $0x1e8] sm:$0xff] %vm257, %v255
      %331 = vst.msk [vmem:[%s267 + $0x1f0] sm:$0xff] %vm257, %v256
      %v332 = vld [vmem:[#allocation2 + $0x7] sm:$0xff]
      %v333 = vld [vmem:[#allocation2 + $0xf] sm:$0xff]
      %v334 = vld [vmem:[#allocation2 + $0x27] sm:$0xff]
      %v335 = vld [vmem:[#allocation2 + $0x2f] sm:$0xff]
      %v336 = vld [vmem:[#allocation2 + $0x47] sm:$0xff]
      %v337 = vld [vmem:[#allocation2 + $0x4f] sm:$0xff]
      %v338 = vld [vmem:[#allocation2 + $0x67] sm:$0xff]
      %v339 = vld [vmem:[#allocation2 + $0x6f] sm:$0xff]
      %v340 = vld [vmem:[#allocation2 + $0x87] sm:$0xff]
      %v341 = vld [vmem:[#allocation2 + $0x8f] sm:$0xff]
      %v342 = vld [vmem:[#allocation2 + $0xa7] sm:$0xff]
      %v343 = vld [vmem:[#allocation2 + $0xaf] sm:$0xff]
      %v344 = vld [vmem:[#allocation2 + $0xc7] sm:$0xff]
      %v345 = vld [vmem:[#allocation2 + $0xcf] sm:$0xff]
      %v346 = vld [vmem:[#allocation2 + $0xe7] sm:$0xff]
      %v347 = vld [vmem:[#allocation2 + $0xef] sm:$0xff]
      %v348 = vld [vmem:[#allocation2 + $0x107] sm:$0xff]
      %v349 = vld [vmem:[#allocation2 + $0x10f] sm:$0xff]
      %v350 = vld [vmem:[#allocation2 + $0x127] sm:$0xff]
      %v351 = vld [vmem:[#allocation2 + $0x12f] sm:$0xff]
      %v352 = vld [vmem:[#allocation2 + $0x147] sm:$0xff]
      %v353 = vld [vmem:[#allocation2 + $0x14f] sm:$0xff]
      %v354 = vld [vmem:[#allocation2 + $0x167] sm:$0xff]
      %v355 = vld [vmem:[#allocation2 + $0x16f] sm:$0xff]
      %v356 = vld [vmem:[#allocation2 + $0x187] sm:$0xff]
      %v357 = vld [vmem:[#allocation2 + $0x18f] sm:$0xff]
      %v358 = vld [vmem:[#allocation2 + $0x1a7] sm:$0xff]
      %v359 = vld [vmem:[#allocation2 + $0x1af] sm:$0xff]
      %v360 = vld [vmem:[#allocation2 + $0x1c7] sm:$0xff]
      %v361 = vld [vmem:[#allocation2 + $0x1cf] sm:$0xff]
      %v362 = vld [vmem:[#allocation2 + $0x1e7] sm:$0xff]
      %v363 = vld [vmem:[#allocation2 + $0x1ef] sm:$0xff]
      %v364 = vld [vmem:[%s1] sm:$0xf]
      %v365 = vld [vmem:[#allocation2 + $0x8] sm:$0xff]
      %v366 = vld [vmem:[#allocation2 + $0x10] sm:$0xff]
      %v367 = vld [vmem:[#allocation2 + $0x28] sm:$0xff]
      %v368 = vld [vmem:[#allocation2 + $0x30] sm:$0xff]
      %v369 = vld [vmem:[#allocation2 + $0x48] sm:$0xff]
      %v370 = vld [vmem:[#allocation2 + $0x50] sm:$0xff]
      %v371 = vld [vmem:[#allocation2 + $0x68] sm:$0xff]
      %v372 = vld [vmem:[#allocation2 + $0x70] sm:$0xff]
      %v373 = vld [vmem:[#allocation2 + $0x88] sm:$0xff]
      %v374 = vld [vmem:[#allocation2 + $0x90] sm:$0xff]
      %v375 = vld [vmem:[#allocation2 + $0xa8] sm:$0xff]
      %v376 = vld [vmem:[#allocation2 + $0xb0] sm:$0xff]
      %v377 = vld [vmem:[#allocation2 + $0xc8] sm:$0xff]
      %v378 = vld [vmem:[#allocation2 + $0xd0] sm:$0xff]
      %v379 = vld [vmem:[#allocation2 + $0xe8] sm:$0xff]
      %v380 = vld [vmem:[#allocation2 + $0xf0] sm:$0xff]
      %v381 = vld [vmem:[#allocation2 + $0x108] sm:$0xff]
      %v382 = vld [vmem:[#allocation2 + $0x110] sm:$0xff]
      %v383 = vld [vmem:[#allocation2 + $0x128] sm:$0xff]
      %v384 = vld [vmem:[#allocation2 + $0x130] sm:$0xff]
      %v385 = vld [vmem:[#allocation2 + $0x148] sm:$0xff]
      %v386 = vld [vmem:[#allocation2 + $0x150] sm:$0xff]
      %v387 = vld [vmem:[#allocation2 + $0x168] sm:$0xff]
      %v388 = vld [vmem:[#allocation2 + $0x170] sm:$0xff]
      %v389 = vld [vmem:[#allocation2 + $0x188] sm:$0xff]
      %v390 = vld [vmem:[#allocation2 + $0x190] sm:$0xff]
      %v391 = vld [vmem:[#allocation2 + $0x1a8] sm:$0xff]
      %v392 = vld [vmem:[#allocation2 + $0x1b0] sm:$0xff]
      %v393 = vld [vmem:[#allocation2 + $0x1c8] sm:$0xff]
      %v394 = vld [vmem:[#allocation2 + $0x1d0] sm:$0xff]
      %v395 = vld [vmem:[#allocation2 + $0x1e8] sm:$0xff]
      %v396 = vld [vmem:[#allocation2 + $0x1f0] sm:$0xff]
      %s397 = scalar_lea.vmem %s1, 4
      %v398 = vld [vmem:[%s397] sm:$0xf]
      %v400 = vsel %vm257, %v365, 0
      %v403 = vsel %vm257, %v366, 0
      %v406 = vsel %vm257, %v367, 0
      %v409 = vsel %vm257, %v368, 0
      %v412 = vsel %vm257, %v369, 0
      %v415 = vsel %vm257, %v370, 0
      %v418 = vsel %vm257, %v371, 0
      %v421 = vsel %vm257, %v372, 0
      %v424 = vsel %vm257, %v373, 0
      %v427 = vsel %vm257, %v374, 0
      %v430 = vsel %vm257, %v375, 0
      %v433 = vsel %vm257, %v376, 0
      %v436 = vsel %vm257, %v377, 0
      %v439 = vsel %vm257, %v378, 0
      %v442 = vsel %vm257, %v379, 0
      %v445 = vsel %vm257, %v380, 0
      %v448 = vsel %vm257, %v381, 0
      %v451 = vsel %vm257, %v382, 0
      %v454 = vsel %vm257, %v383, 0
      %v457 = vsel %vm257, %v384, 0
      %v460 = vsel %vm257, %v385, 0
      %v463 = vsel %vm257, %v386, 0
      %v466 = vsel %vm257, %v387, 0
      %v469 = vsel %vm257, %v388, 0
      %v472 = vsel %vm257, %v389, 0
      %v475 = vsel %vm257, %v390, 0
      %v478 = vsel %vm257, %v391, 0
      %v481 = vsel %vm257, %v392, 0
      %v484 = vsel %vm257, %v393, 0
      %v487 = vsel %vm257, %v394, 0
      %v490 = vsel %vm257, %v395, 0
      %v493 = vsel %vm257, %v396, 0
      %vm495 = vcmask 1043456
      %v497 = vsel %vm495, %v398, 0
      %499 = vmatprep.subr.mxu0 0.0
      %500 = vmatpush1.msra.mxu0 %v497
      %501 = vmatprep.subr.mxu0 0.0
      %502 = vmatpush1.msra.mxu0 0.0
      %503 = vmatprep.subr.mxu0 0.0
      %504 = vmatpush1.msra.mxu0 0.0
      %505 = vmatprep.subr.mxu0 0.0
      %506 = vmatpush1.msra.mxu0 0.0
      %507 = vmatprep.subr.mxu0 0.0
      %508 = vmatpush1.msra.mxu0 0.0
      %509 = vmatprep.subr.mxu0 0.0
      %510 = vmatpush1.msra.mxu0 0.0
      %511 = vmatprep.subr.mxu0 0.0
      %512 = vmatpush1.msra.mxu0 0.0
      %513 = vmatprep.subr.mxu0 0.0
      %514 = vmatpush1.msra.mxu0 0.0
      %515 = vmatprep.subr.mxu0 0.0
      %516 = vmatpush1.msra.mxu0 0.0
      %517 = vmatprep.subr.mxu0 0.0
      %518 = vmatpush1.msra.mxu0 0.0
      %519 = vmatprep.subr.mxu0 0.0
      %520 = vmatpush1.msra.mxu0 0.0
      %521 = vmatprep.subr.mxu0 0.0
      %522 = vmatpush1.msra.mxu0 0.0
      %523 = vmatprep.subr.mxu0 0.0
      %524 = vmatpush1.msra.mxu0 0.0
      %525 = vmatprep.subr.mxu0 0.0
      %526 = vmatpush1.msra.mxu0 0.0
      %527 = vmatprep.subr.mxu0 0.0
      %528 = vmatpush1.msra.mxu0 0.0
      %529 = vmatprep.subr.mxu0 0.0
      %530 = vmatpush1.msra.mxu0 0.0
      %531 = vmatprep.subr.mxu0 0.0
      %532 = vmatpush1.msra.mxu0 0.0
      %533 = vmatprep.subr.mxu0 0.0
      %534 = vmatpush1.msra.mxu0 0.0
      %535 = vmatprep.subr.mxu0 0.0
      %536 = vmatpush1.msra.mxu0 0.0
      %537 = vmatprep.subr.mxu0 0.0
      %538 = vmatpush1.msra.mxu0 0.0
      %539 = vmatprep.subr.mxu0 0.0
      %540 = vmatpush1.msra.mxu0 0.0
      %541 = vmatprep.subr.mxu0 0.0
      %542 = vmatpush1.msra.mxu0 0.0
      %543 = vmatprep.subr.mxu0 0.0
      %544 = vmatpush1.msra.mxu0 0.0
      %545 = vmatprep.subr.mxu0 0.0
      %546 = vmatpush1.msra.mxu0 0.0
      %547 = vmatprep.subr.mxu0 0.0
      %548 = vmatpush1.msra.mxu0 0.0
      %549 = vmatprep.subr.mxu0 0.0
      %550 = vmatpush1.msra.mxu0 0.0
      %551 = vmatprep.subr.mxu0 0.0
      %552 = vmatpush1.msra.mxu0 0.0
      %553 = vmatprep.subr.mxu0 0.0
      %554 = vmatpush1.msra.mxu0 0.0
      %555 = vmatprep.subr.mxu0 0.0
      %556 = vmatpush1.msra.mxu0 0.0
      %557 = vmatprep.subr.mxu0 0.0
      %558 = vmatpush1.msra.mxu0 0.0
      %559 = vmatprep.subr.mxu0 0.0
      %560 = vmatpush1.msra.mxu0 0.0
      %561 = vmatprep.subr.mxu0 0.0
      %562 = vmatpush1.msra.mxu0 0.0
      %563 = vmatprep.mubr.f32.mxu0 0.0
      %564 = vmatmul.mubr.f32.gmra.mrb[0].mxu0 %v400
      %v565 = vpop.f32.mrb[0].mxu0
      %v566 = vadd.f32 0.0, %v565
      %v567 = vpop.f32.mrb[0].mxu0
      %568 = vmatprep.mubr.f32.mxu0 0.0
      %569 = vmatmul.mubr.f32.gmra.mrb[0].mxu0 %v403
      %v570 = vpop.f32.mrb[0].mxu0
      %v571 = vadd.f32 0.0, %v570
      %v572 = vpop.f32.mrb[0].mxu0
      %573 = vmatprep.mubr.f32.mxu0 0.0
      %574 = vmatmul.mubr.f32.gmra.mrb[0].mxu0 %v406
      %v575 = vpop.f32.mrb[0].mxu0
      %v576 = vadd.f32 0.0, %v575
      %v577 = vpop.f32.mrb[0].mxu0
      %578 = vmatprep.mubr.f32.mxu0 0.0
      %579 = vmatmul.mubr.f32.gmra.mrb[0].mxu0 %v409
      %v580 = vpop.f32.mrb[0].mxu0
      %v581 = vadd.f32 0.0, %v580
      %v582 = vpop.f32.mrb[0].mxu0
      %583 = vmatprep.mubr.f32.mxu0 0.0
      %584 = vmatmul.mubr.f32.gmra.mrb[0].mxu0 %v412
      %v585 = vpop.f32.mrb[0].mxu0
      %v586 = vadd.f32 0.0, %v585
      %v587 = vpop.f32.mrb[0].mxu0
      %588 = vmatprep.mubr.f32.mxu0 0.0
      %589 = vmatmul.mubr.f32.gmra.mrb[0].mxu0 %v415
      %v590 = vpop.f32.mrb[0].mxu0
      %v591 = vadd.f32 0.0, %v590
      %v592 = vpop.f32.mrb[0].mxu0
      %593 = vmatprep.mubr.f32.mxu0 0.0
      %594 = vmatmul.mubr.f32.gmra.mrb[0].mxu0 %v418
      %v595 = vpop.f32.mrb[0].mxu0
      %v596 = vadd.f32 0.0, %v595
      %v597 = vpop.f32.mrb[0].mxu0
      %598 = vmatprep.mubr.f32.mxu0 0.0
      %599 = vmatmul.mubr.f32.gmra.mrb[0].mxu0 %v421
      %v600 = vpop.f32.mrb[0].mxu0
      %v601 = vadd.f32 0.0, %v600
      %v602 = vpop.f32.mrb[0].mxu0
      %603 = vmatprep.mubr.f32.mxu0 0.0
      %604 = vmatmul.mubr.f32.gmra.mrb[0].mxu0 %v424
      %v605 = vpop.f32.mrb[0].mxu0
      %v606 = vadd.f32 0.0, %v605
      %v607 = vpop.f32.mrb[0].mxu0
      %608 = vmatprep.mubr.f32.mxu0 0.0
      %609 = vmatmul.mubr.f32.gmra.mrb[0].mxu0 %v427
      %v610 = vpop.f32.mrb[0].mxu0
      %v611 = vadd.f32 0.0, %v610
      %v612 = vpop.f32.mrb[0].mxu0
      %613 = vmatprep.mubr.f32.mxu0 0.0
      %614 = vmatmul.mubr.f32.gmra.mrb[0].mxu0 %v430
      %v615 = vpop.f32.mrb[0].mxu0
      %v616 = vadd.f32 0.0, %v615
      %v617 = vpop.f32.mrb[0].mxu0
      %618 = vmatprep.mubr.f32.mxu0 0.0
      %619 = vmatmul.mubr.f32.gmra.mrb[0].mxu0 %v433
      %v620 = vpop.f32.mrb[0].mxu0
      %v621 = vadd.f32 0.0, %v620
      %v622 = vpop.f32.mrb[0].mxu0
      %623 = vmatprep.mubr.f32.mxu0 0.0
      %624 = vmatmul.mubr.f32.gmra.mrb[0].mxu0 %v436
      %v625 = vpop.f32.mrb[0].mxu0
      %v626 = vadd.f32 0.0, %v625
      %v627 = vpop.f32.mrb[0].mxu0
      %628 = vmatprep.mubr.f32.mxu0 0.0
      %629 = vmatmul.mubr.f32.gmra.mrb[0].mxu0 %v439
      %v630 = vpop.f32.mrb[0].mxu0
      %v631 = vadd.f32 0.0, %v630
      %v632 = vpop.f32.mrb[0].mxu0
      %633 = vmatprep.mubr.f32.mxu0 0.0
      %634 = vmatmul.mubr.f32.gmra.mrb[0].mxu0 %v442
      %v635 = vpop.f32.mrb[0].mxu0
      %v636 = vadd.f32 0.0, %v635
      %v637 = vpop.f32.mrb[0].mxu0
      %638 = vmatprep.mubr.f32.mxu0 0.0
      %639 = vmatmul.mubr.f32.gmra.mrb[0].mxu0 %v445
      %v640 = vpop.f32.mrb[0].mxu0
      %v641 = vadd.f32 0.0, %v640
      %v642 = vpop.f32.mrb[0].mxu0
      %643 = vmatprep.mubr.f32.mxu0 0.0
      %644 = vmatmul.mubr.f32.gmra.mrb[0].mxu0 %v448
      %v645 = vpop.f32.mrb[0].mxu0
      %v646 = vadd.f32 0.0, %v645
      %v647 = vpop.f32.mrb[0].mxu0
      %648 = vmatprep.mubr.f32.mxu0 0.0
      %649 = vmatmul.mubr.f32.gmra.mrb[0].mxu0 %v451
      %v650 = vpop.f32.mrb[0].mxu0
      %v651 = vadd.f32 0.0, %v650
      %v652 = vpop.f32.mrb[0].mxu0
      %653 = vmatprep.mubr.f32.mxu0 0.0
      %654 = vmatmul.mubr.f32.gmra.mrb[0].mxu0 %v454
      %v655 = vpop.f32.mrb[0].mxu0
      %v656 = vadd.f32 0.0, %v655
      %v657 = vpop.f32.mrb[0].mxu0
      %658 = vmatprep.mubr.f32.mxu0 0.0
      %659 = vmatmul.mubr.f32.gmra.mrb[0].mxu0 %v457
      %v660 = vpop.f32.mrb[0].mxu0
      %v661 = vadd.f32 0.0, %v660
      %v662 = vpop.f32.mrb[0].mxu0
      %663 = vmatprep.mubr.f32.mxu0 0.0
      %664 = vmatmul.mubr.f32.gmra.mrb[0].mxu0 %v460
      %v665 = vpop.f32.mrb[0].mxu0
      %v666 = vadd.f32 0.0, %v665
      %v667 = vpop.f32.mrb[0].mxu0
      %668 = vmatprep.mubr.f32.mxu0 0.0
      %669 = vmatmul.mubr.f32.gmra.mrb[0].mxu0 %v463
      %v670 = vpop.f32.mrb[0].mxu0
      %v671 = vadd.f32 0.0, %v670
      %v672 = vpop.f32.mrb[0].mxu0
      %673 = vmatprep.mubr.f32.mxu0 0.0
      %674 = vmatmul.mubr.f32.gmra.mrb[0].mxu0 %v466
      %v675 = vpop.f32.mrb[0].mxu0
      %v676 = vadd.f32 0.0, %v675
      %v677 = vpop.f32.mrb[0].mxu0
      %678 = vmatprep.mubr.f32.mxu0 0.0
      %679 = vmatmul.mubr.f32.gmra.mrb[0].mxu0 %v469
      %v680 = vpop.f32.mrb[0].mxu0
      %v681 = vadd.f32 0.0, %v680
      %v682 = vpop.f32.mrb[0].mxu0
      %683 = vmatprep.mubr.f32.mxu0 0.0
      %684 = vmatmul.mubr.f32.gmra.mrb[0].mxu0 %v472
      %v685 = vpop.f32.mrb[0].mxu0
      %v686 = vadd.f32 0.0, %v685
      %v687 = vpop.f32.mrb[0].mxu0
      %688 = vmatprep.mubr.f32.mxu0 0.0
      %689 = vmatmul.mubr.f32.gmra.mrb[0].mxu0 %v475
      %v690 = vpop.f32.mrb[0].mxu0
      %v691 = vadd.f32 0.0, %v690
      %v692 = vpop.f32.mrb[0].mxu0
      %693 = vmatprep.mubr.f32.mxu0 0.0
      %694 = vmatmul.mubr.f32.gmra.mrb[0].mxu0 %v478
      %v695 = vpop.f32.mrb[0].mxu0
      %v696 = vadd.f32 0.0, %v695
      %v697 = vpop.f32.mrb[0].mxu0
      %698 = vmatprep.mubr.f32.mxu0 0.0
      %699 = vmatmul.mubr.f32.gmra.mrb[0].mxu0 %v481
      %v700 = vpop.f32.mrb[0].mxu0
      %v701 = vadd.f32 0.0, %v700
      %v702 = vpop.f32.mrb[0].mxu0
      %703 = vmatprep.mubr.f32.mxu0 0.0
      %704 = vmatmul.mubr.f32.gmra.mrb[0].mxu0 %v484
      %v705 = vpop.f32.mrb[0].mxu0
      %v706 = vadd.f32 0.0, %v705
      %v707 = vpop.f32.mrb[0].mxu0
      %708 = vmatprep.mubr.f32.mxu0 0.0
      %709 = vmatmul.mubr.f32.gmra.mrb[0].mxu0 %v487
      %v710 = vpop.f32.mrb[0].mxu0
      %v711 = vadd.f32 0.0, %v710
      %v712 = vpop.f32.mrb[0].mxu0
      %713 = vmatprep.mubr.f32.mxu0 0.0
      %714 = vmatmul.mubr.f32.gmra.mrb[0].mxu0 %v490
      %v715 = vpop.f32.mrb[0].mxu0
      %v716 = vadd.f32 0.0, %v715
      %v717 = vpop.f32.mrb[0].mxu0
      %718 = vmatprep.mubr.f32.mxu0 0.0
      %719 = vmatmul.mubr.f32.gmra.mrb[0].mxu0 %v493
      %v720 = vpop.f32.mrb[0].mxu0
      %v721 = vadd.f32 0.0, %v720
      %v722 = vpop.f32.mrb[0].mxu0
      %723 = vdwg.mxu0
      %v725 = vsel %vm257, %v332, 0
      %v728 = vsel %vm257, %v333, 0
      %v731 = vsel %vm257, %v334, 0
      %v734 = vsel %vm257, %v335, 0
      %v737 = vsel %vm257, %v336, 0
      %v740 = vsel %vm257, %v337, 0
      %v743 = vsel %vm257, %v338, 0
      %v746 = vsel %vm257, %v339, 0
      %v749 = vsel %vm257, %v340, 0
      %v752 = vsel %vm257, %v341, 0
      %v755 = vsel %vm257, %v342, 0
      %v758 = vsel %vm257, %v343, 0
      %v761 = vsel %vm257, %v344, 0
      %v764 = vsel %vm257, %v345, 0
      %v767 = vsel %vm257, %v346, 0
      %v770 = vsel %vm257, %v347, 0
      %v773 = vsel %vm257, %v348, 0
      %v776 = vsel %vm257, %v349, 0
      %v779 = vsel %vm257, %v350, 0
      %v782 = vsel %vm257, %v351, 0
      %v785 = vsel %vm257, %v352, 0
      %v788 = vsel %vm257, %v353, 0
      %v791 = vsel %vm257, %v354, 0
      %v794 = vsel %vm257, %v355, 0
      %v797 = vsel %vm257, %v356, 0
      %v800 = vsel %vm257, %v357, 0
      %v803 = vsel %vm257, %v358, 0
      %v806 = vsel %vm257, %v359, 0
      %v809 = vsel %vm257, %v360, 0
      %v812 = vsel %vm257, %v361, 0
      %v815 = vsel %vm257, %v362, 0
      %v818 = vsel %vm257, %v363, 0
      %v821 = vsel %vm495, %v364, 0
      %823 = vmatprep.subr.mxu0 0.0
      %824 = vmatpush1.msra.mxu0 %v821
      %825 = vmatprep.subr.mxu0 0.0
      %826 = vmatpush1.msra.mxu0 0.0
      %827 = vmatprep.subr.mxu0 0.0
      %828 = vmatpush1.msra.mxu0 0.0
      %829 = vmatprep.subr.mxu0 0.0
      %830 = vmatpush1.msra.mxu0 0.0
      %831 = vmatprep.subr.mxu0 0.0
      %832 = vmatpush1.msra.mxu0 0.0
      %833 = vmatprep.subr.mxu0 0.0
      %834 = vmatpush1.msra.mxu0 0.0
      %835 = vmatprep.subr.mxu0 0.0
      %836 = vmatpush1.msra.mxu0 0.0
      %837 = vmatprep.subr.mxu0 0.0
      %838 = vmatpush1.msra.mxu0 0.0
      %839 = vmatprep.subr.mxu0 0.0
      %840 = vmatpush1.msra.mxu0 0.0
      %841 = vmatprep.subr.mxu0 0.0
      %842 = vmatpush1.msra.mxu0 0.0
      %843 = vmatprep.subr.mxu0 0.0
      %844 = vmatpush1.msra.mxu0 0.0
      %845 = vmatprep.subr.mxu0 0.0
      %846 = vmatpush1.msra.mxu0 0.0
      %847 = vmatprep.subr.mxu0 0.0
      %848 = vmatpush1.msra.mxu0 0.0
      %849 = vmatprep.subr.mxu0 0.0
      %850 = vmatpush1.msra.mxu0 0.0
      %851 = vmatprep.subr.mxu0 0.0
      %852 = vmatpush1.msra.mxu0 0.0
      %853 = vmatprep.subr.mxu0 0.0
      %854 = vmatpush1.msra.mxu0 0.0
      %855 = vmatprep.subr.mxu0 0.0
      %856 = vmatpush1.msra.mxu0 0.0
      %857 = vmatprep.subr.mxu0 0.0
      %858 = vmatpush1.msra.mxu0 0.0
      %859 = vmatprep.subr.mxu0 0.0
      %860 = vmatpush1.msra.mxu0 0.0
      %861 = vmatprep.subr.mxu0 0.0
      %862 = vmatpush1.msra.mxu0 0.0
      %863 = vmatprep.subr.mxu0 0.0
      %864 = vmatpush1.msra.mxu0 0.0
      %865 = vmatprep.subr.mxu0 0.0
      %866 = vmatpush1.msra.mxu0 0.0
      %867 = vmatprep.subr.mxu0 0.0
      %868 = vmatpush1.msra.mxu0 0.0
      %869 = vmatprep.subr.mxu0 0.0
      %870 = vmatpush1.msra.mxu0 0.0
      %871 = vmatprep.subr.mxu0 0.0
      %872 = vmatpush1.msra.mxu0 0.0
      %873 = vmatprep.subr.mxu0 0.0
      %874 = vmatpush1.msra.mxu0 0.0
      %875 = vmatprep.subr.mxu0 0.0
      %876 = vmatpush1.msra.mxu0 0.0
      %877 = vmatprep.subr.mxu0 0.0
      %878 = vmatpush1.msra.mxu0 0.0
      %879 = vmatprep.subr.mxu0 0.0
      %880 = vmatpush1.msra.mxu0 0.0
      %881 = vmatprep.subr.mxu0 0.0
      %882 = vmatpush1.msra.mxu0 0.0
      %883 = vmatprep.subr.mxu0 0.0
      %884 = vmatpush1.msra.mxu0 0.0
      %885 = vmatprep.subr.mxu0 0.0
      %886 = vmatpush1.msra.mxu0 0.0
      %887 = vmatprep.mubr.f32.mxu0 0.0
      %888 = vmatmul.mubr.f32.gmra.mrb[0].mxu0 %v725
      %v889 = vpop.f32.mrb[0].mxu0
      %v890 = vadd.f32 %v566, %v889
      %v891 = vpop.f32.mrb[0].mxu0
      %892 = vmatprep.mubr.f32.mxu0 0.0
      %893 = vmatmul.mubr.f32.gmra.mrb[0].mxu0 %v728
      %v894 = vpop.f32.mrb[0].mxu0
      %v895 = vadd.f32 %v571, %v894
      %v896 = vpop.f32.mrb[0].mxu0
      %897 = vmatprep.mubr.f32.mxu0 0.0
      %898 = vmatmul.mubr.f32.gmra.mrb[0].mxu0 %v731
      %v899 = vpop.f32.mrb[0].mxu0
      %v900 = vadd.f32 %v576, %v899
      %v901 = vpop.f32.mrb[0].mxu0
      %902 = vmatprep.mubr.f32.mxu0 0.0
      %903 = vmatmul.mubr.f32.gmra.mrb[0].mxu0 %v734
      %v904 = vpop.f32.mrb[0].mxu0
      %v905 = vadd.f32 %v581, %v904
      %v906 = vpop.f32.mrb[0].mxu0
      %907 = vmatprep.mubr.f32.mxu0 0.0
      %908 = vmatmul.mubr.f32.gmra.mrb[0].mxu0 %v737
      %v909 = vpop.f32.mrb[0].mxu0
      %v910 = vadd.f32 %v586, %v909
      %v911 = vpop.f32.mrb[0].mxu0
      %912 = vmatprep.mubr.f32.mxu0 0.0
      %913 = vmatmul.mubr.f32.gmra.mrb[0].mxu0 %v740
      %v914 = vpop.f32.mrb[0].mxu0
      %v915 = vadd.f32 %v591, %v914
      %v916 = vpop.f32.mrb[0].mxu0
      %917 = vmatprep.mubr.f32.mxu0 0.0
      %918 = vmatmul.mubr.f32.gmra.mrb[0].mxu0 %v743
      %v919 = vpop.f32.mrb[0].mxu0
      %v920 = vadd.f32 %v596, %v919
      %v921 = vpop.f32.mrb[0].mxu0
      %922 = vmatprep.mubr.f32.mxu0 0.0
      %923 = vmatmul.mubr.f32.gmra.mrb[0].mxu0 %v746
      %v924 = vpop.f32.mrb[0].mxu0
      %v925 = vadd.f32 %v601, %v924
      %v926 = vpop.f32.mrb[0].mxu0
      %927 = vmatprep.mubr.f32.mxu0 0.0
      %928 = vmatmul.mubr.f32.gmra.mrb[0].mxu0 %v749
      %v929 = vpop.f32.mrb[0].mxu0
      %v930 = vadd.f32 %v606, %v929
      %v931 = vpop.f32.mrb[0].mxu0
      %932 = vmatprep.mubr.f32.mxu0 0.0
      %933 = vmatmul.mubr.f32.gmra.mrb[0].mxu0 %v752
      %v934 = vpop.f32.mrb[0].mxu0
      %v935 = vadd.f32 %v611, %v934
      %v936 = vpop.f32.mrb[0].mxu0
      %937 = vmatprep.mubr.f32.mxu0 0.0
      %938 = vmatmul.mubr.f32.gmra.mrb[0].mxu0 %v755
      %v939 = vpop.f32.mrb[0].mxu0
      %v940 = vadd.f32 %v616, %v939
      %v941 = vpop.f32.mrb[0].mxu0
      %942 = vmatprep.mubr.f32.mxu0 0.0
      %943 = vmatmul.mubr.f32.gmra.mrb[0].mxu0 %v758
      %v944 = vpop.f32.mrb[0].mxu0
      %v945 = vadd.f32 %v621, %v944
      %v946 = vpop.f32.mrb[0].mxu0
      %947 = vmatprep.mubr.f32.mxu0 0.0
      %948 = vmatmul.mubr.f32.gmra.mrb[0].mxu0 %v761
      %v949 = vpop.f32.mrb[0].mxu0
      %v950 = vadd.f32 %v626, %v949
      %v951 = vpop.f32.mrb[0].mxu0
      %952 = vmatprep.mubr.f32.mxu0 0.0
      %953 = vmatmul.mubr.f32.gmra.mrb[0].mxu0 %v764
      %v954 = vpop.f32.mrb[0].mxu0
      %v955 = vadd.f32 %v631, %v954
      %v956 = vpop.f32.mrb[0].mxu0
      %957 = vmatprep.mubr.f32.mxu0 0.0
      %958 = vmatmul.mubr.f32.gmra.mrb[0].mxu0 %v767
      %v959 = vpop.f32.mrb[0].mxu0
      %v960 = vadd.f32 %v636, %v959
      %v961 = vpop.f32.mrb[0].mxu0
      %962 = vmatprep.mubr.f32.mxu0 0.0
      %963 = vmatmul.mubr.f32.gmra.mrb[0].mxu0 %v770
      %v964 = vpop.f32.mrb[0].mxu0
      %v965 = vadd.f32 %v641, %v964
      %v966 = vpop.f32.mrb[0].mxu0
      %967 = vmatprep.mubr.f32.mxu0 0.0
      %968 = vmatmul.mubr.f32.gmra.mrb[0].mxu0 %v773
      %v969 = vpop.f32.mrb[0].mxu0
      %v970 = vadd.f32 %v646, %v969
      %v971 = vpop.f32.mrb[0].mxu0
      %972 = vmatprep.mubr.f32.mxu0 0.0
      %973 = vmatmul.mubr.f32.gmra.mrb[0].mxu0 %v776
      %v974 = vpop.f32.mrb[0].mxu0
      %v975 = vadd.f32 %v651, %v974
      %v976 = vpop.f32.mrb[0].mxu0
      %977 = vmatprep.mubr.f32.mxu0 0.0
      %978 = vmatmul.mubr.f32.gmra.mrb[0].mxu0 %v779
      %v979 = vpop.f32.mrb[0].mxu0
      %v980 = vadd.f32 %v656, %v979
      %v981 = vpop.f32.mrb[0].mxu0
      %982 = vmatprep.mubr.f32.mxu0 0.0
      %983 = vmatmul.mubr.f32.gmra.mrb[0].mxu0 %v782
      %v984 = vpop.f32.mrb[0].mxu0
      %v985 = vadd.f32 %v661, %v984
      %v986 = vpop.f32.mrb[0].mxu0
      %987 = vmatprep.mubr.f32.mxu0 0.0
      %988 = vmatmul.mubr.f32.gmra.mrb[0].mxu0 %v785
      %v989 = vpop.f32.mrb[0].mxu0
      %v990 = vadd.f32 %v666, %v989
      %v991 = vpop.f32.mrb[0].mxu0
      %992 = vmatprep.mubr.f32.mxu0 0.0
      %993 = vmatmul.mubr.f32.gmra.mrb[0].mxu0 %v788
      %v994 = vpop.f32.mrb[0].mxu0
      %v995 = vadd.f32 %v671, %v994
      %v996 = vpop.f32.mrb[0].mxu0
      %997 = vmatprep.mubr.f32.mxu0 0.0
      %998 = vmatmul.mubr.f32.gmra.mrb[0].mxu0 %v791
      %v999 = vpop.f32.mrb[0].mxu0
      %v1000 = vadd.f32 %v676, %v999
      %v1001 = vpop.f32.mrb[0].mxu0
      %1002 = vmatprep.mubr.f32.mxu0 0.0
      %1003 = vmatmul.mubr.f32.gmra.mrb[0].mxu0 %v794
      %v1004 = vpop.f32.mrb[0].mxu0
      %v1005 = vadd.f32 %v681, %v1004
      %v1006 = vpop.f32.mrb[0].mxu0
      %1007 = vmatprep.mubr.f32.mxu0 0.0
      %1008 = vmatmul.mubr.f32.gmra.mrb[0].mxu0 %v797
      %v1009 = vpop.f32.mrb[0].mxu0
      %v1010 = vadd.f32 %v686, %v1009
      %v1011 = vpop.f32.mrb[0].mxu0
      %1012 = vmatprep.mubr.f32.mxu0 0.0
      %1013 = vmatmul.mubr.f32.gmra.mrb[0].mxu0 %v800
      %v1014 = vpop.f32.mrb[0].mxu0
      %v1015 = vadd.f32 %v691, %v1014
      %v1016 = vpop.f32.mrb[0].mxu0
      %1017 = vmatprep.mubr.f32.mxu0 0.0
      %1018 = vmatmul.mubr.f32.gmra.mrb[0].mxu0 %v803
      %v1019 = vpop.f32.mrb[0].mxu0
      %v1020 = vadd.f32 %v696, %v1019
      %v1021 = vpop.f32.mrb[0].mxu0
      %1022 = vmatprep.mubr.f32.mxu0 0.0
      %1023 = vmatmul.mubr.f32.gmra.mrb[0].mxu0 %v806
      %v1024 = vpop.f32.mrb[0].mxu0
      %v1025 = vadd.f32 %v701, %v1024
      %v1026 = vpop.f32.mrb[0].mxu0
      %1027 = vmatprep.mubr.f32.mxu0 0.0
      %1028 = vmatmul.mubr.f32.gmra.mrb[0].mxu0 %v809
      %v1029 = vpop.f32.mrb[0].mxu0
      %v1030 = vadd.f32 %v706, %v1029
      %v1031 = vpop.f32.mrb[0].mxu0
      %1032 = vmatprep.mubr.f32.mxu0 0.0
      %1033 = vmatmul.mubr.f32.gmra.mrb[0].mxu0 %v812
      %v1034 = vpop.f32.mrb[0].mxu0
      %v1035 = vadd.f32 %v711, %v1034
      %v1036 = vpop.f32.mrb[0].mxu0
      %1037 = vmatprep.mubr.f32.mxu0 0.0
      %1038 = vmatmul.mubr.f32.gmra.mrb[0].mxu0 %v815
      %v1039 = vpop.f32.mrb[0].mxu0
      %v1040 = vadd.f32 %v716, %v1039
      %v1041 = vpop.f32.mrb[0].mxu0
      %1042 = vmatprep.mubr.f32.mxu0 0.0
      %1043 = vmatmul.mubr.f32.gmra.mrb[0].mxu0 %v818
      %v1044 = vpop.f32.mrb[0].mxu0
      %v1045 = vadd.f32 %v721, %v1044
      %v1046 = vpop.f32.mrb[0].mxu0
      %1047 = vdwg.mxu0
      %v1048 = vld [vmem:[#allocation2 + $0x9] sm:$0xff]
      %v1049 = vld [vmem:[#allocation2 + $0x11] sm:$0xff]
      %v1050 = vld [vmem:[#allocation2 + $0x29] sm:$0xff]
      %v1051 = vld [vmem:[#allocation2 + $0x31] sm:$0xff]
      %v1052 = vld [vmem:[#allocation2 + $0x49] sm:$0xff]
      %v1053 = vld [vmem:[#allocation2 + $0x51] sm:$0xff]
      %v1054 = vld [vmem:[#allocation2 + $0x69] sm:$0xff]
      %v1055 = vld [vmem:[#allocation2 + $0x71] sm:$0xff]
      %v1056 = vld [vmem:[#allocation2 + $0x89] sm:$0xff]
      %v1057 = vld [vmem:[#allocation2 + $0x91] sm:$0xff]
      %v1058 = vld [vmem:[#allocation2 + $0xa9] sm:$0xff]
      %v1059 = vld [vmem:[#allocation2 + $0xb1] sm:$0xff]
      %v1060 = vld [vmem:[#allocation2 + $0xc9] sm:$0xff]
      %v1061 = vld [vmem:[#allocation2 + $0xd1] sm:$0xff]
      %v1062 = vld [vmem:[#allocation2 + $0xe9] sm:$0xff]
      %v1063 = vld [vmem:[#allocation2 + $0xf1] sm:$0xff]
      %v1064 = vld [vmem:[#allocation2 + $0x109] sm:$0xff]
      %v1065 = vld [vmem:[#allocation2 + $0x111] sm:$0xff]
      %v1066 = vld [vmem:[#allocation2 + $0x129] sm:$0xff]
      %v1067 = vld [vmem:[#allocation2 + $0x131] sm:$0xff]
      %v1068 = vld [vmem:[#allocation2 + $0x149] sm:$0xff]
      %v1069 = vld [vmem:[#allocation2 + $0x151] sm:$0xff]
      %v1070 = vld [vmem:[#allocation2 + $0x169] sm:$0xff]
      %v1071 = vld [vmem:[#allocation2 + $0x171] sm:$0xff]
      %v1072 = vld [vmem:[#allocation2 + $0x189] sm:$0xff]
      %v1073 = vld [vmem:[#allocation2 + $0x191] sm:$0xff]
      %v1074 = vld [vmem:[#allocation2 + $0x1a9] sm:$0xff]
      %v1075 = vld [vmem:[#allocation2 + $0x1b1] sm:$0xff]
      %v1076 = vld [vmem:[#allocation2 + $0x1c9] sm:$0xff]
      %v1077 = vld [vmem:[#allocation2 + $0x1d1] sm:$0xff]
      %v1078 = vld [vmem:[#allocation2 + $0x1e9] sm:$0xff]
      %v1079 = vld [vmem:[#allocation2 + $0x1f1] sm:$0xff]
      %s1080 = scalar_lea.vmem %s1, 8
      %v1081 = vld [vmem:[%s1080] sm:$0xf]
      %v1083 = vsel %vm257, %v1048, 0
      %v1086 = vsel %vm257, %v1049, 0
      %v1089 = vsel %vm257, %v1050, 0
      %v1092 = vsel %vm257, %v1051, 0
      %v1095 = vsel %vm257, %v1052, 0
      %v1098 = vsel %vm257, %v1053, 0
      %v1101 = vsel %vm257, %v1054, 0
      %v1104 = vsel %vm257, %v1055, 0
      %v1107 = vsel %vm257, %v1056, 0
      %v1110 = vsel %vm257, %v1057, 0
      %v1113 = vsel %vm257, %v1058, 0
      %v1116 = vsel %vm257, %v1059, 0
      %v1119 = vsel %vm257, %v1060, 0
      %v1122 = vsel %vm257, %v1061, 0
      %v1125 = vsel %vm257, %v1062, 0
      %v1128 = vsel %vm257, %v1063, 0
      %v1131 = vsel %vm257, %v1064, 0
      %v1134 = vsel %vm257, %v1065, 0
      %v1137 = vsel %vm257, %v1066, 0
      %v1140 = vsel %vm257, %v1067, 0
      %v1143 = vsel %vm257, %v1068, 0
      %v1146 = vsel %vm257, %v1069, 0
      %v1149 = vsel %vm257, %v1070, 0
      %v1152 = vsel %vm257, %v1071, 0
      %v1155 = vsel %vm257, %v1072, 0
      %v1158 = vsel %vm257, %v1073, 0
      %v1161 = vsel %vm257, %v1074, 0
      %v1164 = vsel %vm257, %v1075, 0
      %v1167 = vsel %vm257, %v1076, 0
      %v1170 = vsel %vm257, %v1077, 0
      %v1173 = vsel %vm257, %v1078, 0
      %v1176 = vsel %vm257, %v1079, 0
      %v1179 = vsel %vm495, %v1081, 0
      %1181 = vmatprep.subr.mxu0 0.0
      %1182 = vmatpush1.msra.mxu0 %v1179
      %1183 = vmatprep.subr.mxu0 0.0
      %1184 = vmatpush1.msra.mxu0 0.0
      %1185 = vmatprep.subr.mxu0 0.0
      %1186 = vmatpush1.msra.mxu0 0.0
      %1187 = vmatprep.subr.mxu0 0.0
      %1188 = vmatpush1.msra.mxu0 0.0
      %1189 = vmatprep.subr.mxu0 0.0
      %1190 = vmatpush1.msra.mxu0 0.0
      %1191 = vmatprep.subr.mxu0 0.0
      %1192 = vmatpush1.msra.mxu0 0.0
      %1193 = vmatprep.subr.mxu0 0.0
      %1194 = vmatpush1.msra.mxu0 0.0
      %1195 = vmatprep.subr.mxu0 0.0
      %1196 = vmatpush1.msra.mxu0 0.0
      %1197 = vmatprep.subr.mxu0 0.0
      %1198 = vmatpush1.msra.mxu0 0.0
      %1199 = vmatprep.subr.mxu0 0.0
      %1200 = vmatpush1.msra.mxu0 0.0
      %1201 = vmatprep.subr.mxu0 0.0
      %1202 = vmatpush1.msra.mxu0 0.0
      %1203 = vmatprep.subr.mxu0 0.0
      %1204 = vmatpush1.msra.mxu0 0.0
      %1205 = vmatprep.subr.mxu0 0.0
      %1206 = vmatpush1.msra.mxu0 0.0
      %1207 = vmatprep.subr.mxu0 0.0
      %1208 = vmatpush1.msra.mxu0 0.0
      %1209 = vmatprep.subr.mxu0 0.0
      %1210 = vmatpush1.msra.mxu0 0.0
      %1211 = vmatprep.subr.mxu0 0.0
      %1212 = vmatpush1.msra.mxu0 0.0
      %1213 = vmatprep.subr.mxu0 0.0
      %1214 = vmatpush1.msra.mxu0 0.0
      %1215 = vmatprep.subr.mxu0 0.0
      %1216 = vmatpush1.msra.mxu0 0.0
      %1217 = vmatprep.subr.mxu0 0.0
      %1218 = vmatpush1.msra.mxu0 0.0
      %1219 = vmatprep.subr.mxu0 0.0
      %1220 = vmatpush1.msra.mxu0 0.0
      %1221 = vmatprep.subr.mxu0 0.0
      %1222 = vmatpush1.msra.mxu0 0.0
      %1223 = vmatprep.subr.mxu0 0.0
      %1224 = vmatpush1.msra.mxu0 0.0
      %1225 = vmatprep.subr.mxu0 0.0
      %1226 = vmatpush1.msra.mxu0 0.0
      %1227 = vmatprep.subr.mxu0 0.0
      %1228 = vmatpush1.msra.mxu0 0.0
      %1229 = vmatprep.subr.mxu0 0.0
      %1230 = vmatpush1.msra.mxu0 0.0
      %1231 = vmatprep.subr.mxu0 0.0
      %1232 = vmatpush1.msra.mxu0 0.0
      %1233 = vmatprep.subr.mxu0 0.0
      %1234 = vmatpush1.msra.mxu0 0.0
      %1235 = vmatprep.subr.mxu0 0.0
      %1236 = vmatpush1.msra.mxu0 0.0
      %1237 = vmatprep.subr.mxu0 0.0
      %1238 = vmatpush1.msra.mxu0 0.0
      %1239 = vmatprep.subr.mxu0 0.0
      %1240 = vmatpush1.msra.mxu0 0.0
      %1241 = vmatprep.subr.mxu0 0.0
      %1242 = vmatpush1.msra.mxu0 0.0
      %1243 = vmatprep.subr.mxu0 0.0
      %1244 = vmatpush1.msra.mxu0 0.0
      %1245 = vmatprep.mubr.f32.mxu0 0.0
      %1246 = vmatmul.mubr.f32.gmra.mrb[0].mxu0 %v1083
      %v1247 = vpop.f32.mrb[0].mxu0
      %v1248 = vadd.f32 0.0, %v1247
      %v1249 = vpop.f32.mrb[0].mxu0
      %1250 = vmatprep.mubr.f32.mxu0 0.0
      %1251 = vmatmul.mubr.f32.gmra.mrb[0].mxu0 %v1086
      %v1252 = vpop.f32.mrb[0].mxu0
      %v1253 = vadd.f32 0.0, %v1252
      %v1254 = vpop.f32.mrb[0].mxu0
      %1255 = vmatprep.mubr.f32.mxu0 0.0
      %1256 = vmatmul.mubr.f32.gmra.mrb[0].mxu0 %v1089
      %v1257 = vpop.f32.mrb[0].mxu0
      %v1258 = vadd.f32 0.0, %v1257
      %v1259 = vpop.f32.mrb[0].mxu0
      %1260 = vmatprep.mubr.f32.mxu0 0.0
      %1261 = vmatmul.mubr.f32.gmra.mrb[0].mxu0 %v1092
      %v1262 = vpop.f32.mrb[0].mxu0
      %v1263 = vadd.f32 0.0, %v1262
      %v1264 = vpop.f32.mrb[0].mxu0
      %1265 = vmatprep.mubr.f32.mxu0 0.0
      %1266 = vmatmul.mubr.f32.gmra.mrb[0].mxu0 %v1095
      %v1267 = vpop.f32.mrb[0].mxu0
      %v1268 = vadd.f32 0.0, %v1267
      %v1269 = vpop.f32.mrb[0].mxu0
      %1270 = vmatprep.mubr.f32.mxu0 0.0
      %1271 = vmatmul.mubr.f32.gmra.mrb[0].mxu0 %v1098
      %v1272 = vpop.f32.mrb[0].mxu0
      %v1273 = vadd.f32 0.0, %v1272
      %v1274 = vpop.f32.mrb[0].mxu0
      %1275 = vmatprep.mubr.f32.mxu0 0.0
      %1276 = vmatmul.mubr.f32.gmra.mrb[0].mxu0 %v1101
      %v1277 = vpop.f32.mrb[0].mxu0
      %v1278 = vadd.f32 0.0, %v1277
      %v1279 = vpop.f32.mrb[0].mxu0
      %1280 = vmatprep.mubr.f32.mxu0 0.0
      %1281 = vmatmul.mubr.f32.gmra.mrb[0].mxu0 %v1104
      %v1282 = vpop.f32.mrb[0].mxu0
      %v1283 = vadd.f32 0.0, %v1282
      %v1284 = vpop.f32.mrb[0].mxu0
      %1285 = vmatprep.mubr.f32.mxu0 0.0
      %1286 = vmatmul.mubr.f32.gmra.mrb[0].mxu0 %v1107
      %v1287 = vpop.f32.mrb[0].mxu0
      %v1288 = vadd.f32 0.0, %v1287
      %v1289 = vpop.f32.mrb[0].mxu0
      %1290 = vmatprep.mubr.f32.mxu0 0.0
      %1291 = vmatmul.mubr.f32.gmra.mrb[0].mxu0 %v1110
      %v1292 = vpop.f32.mrb[0].mxu0
      %v1293 = vadd.f32 0.0, %v1292
      %v1294 = vpop.f32.mrb[0].mxu0
      %1295 = vmatprep.mubr.f32.mxu0 0.0
      %1296 = vmatmul.mubr.f32.gmra.mrb[0].mxu0 %v1113
      %v1297 = vpop.f32.mrb[0].mxu0
      %v1298 = vadd.f32 0.0, %v1297
      %v1299 = vpop.f32.mrb[0].mxu0
      %1300 = vmatprep.mubr.f32.mxu0 0.0
      %1301 = vmatmul.mubr.f32.gmra.mrb[0].mxu0 %v1116
      %v1302 = vpop.f32.mrb[0].mxu0
      %v1303 = vadd.f32 0.0, %v1302
      %v1304 = vpop.f32.mrb[0].mxu0
      %1305 = vmatprep.mubr.f32.mxu0 0.0
      %1306 = vmatmul.mubr.f32.gmra.mrb[0].mxu0 %v1119
      %v1307 = vpop.f32.mrb[0].mxu0
      %v1308 = vadd.f32 0.0, %v1307
      %v1309 = vpop.f32.mrb[0].mxu0
      %1310 = vmatprep.mubr.f32.mxu0 0.0
      %1311 = vmatmul.mubr.f32.gmra.mrb[0].mxu0 %v1122
      %v1312 = vpop.f32.mrb[0].mxu0
      %v1313 = vadd.f32 0.0, %v1312
      %v1314 = vpop.f32.mrb[0].mxu0
      %1315 = vmatprep.mubr.f32.mxu0 0.0
      %1316 = vmatmul.mubr.f32.gmra.mrb[0].mxu0 %v1125
      %v1317 = vpop.f32.mrb[0].mxu0
      %v1318 = vadd.f32 0.0, %v1317
      %v1319 = vpop.f32.mrb[0].mxu0
      %1320 = vmatprep.mubr.f32.mxu0 0.0
      %1321 = vmatmul.mubr.f32.gmra.mrb[0].mxu0 %v1128
      %v1322 = vpop.f32.mrb[0].mxu0
      %v1323 = vadd.f32 0.0, %v1322
      %v1324 = vpop.f32.mrb[0].mxu0
      %1325 = vmatprep.mubr.f32.mxu0 0.0
      %1326 = vmatmul.mubr.f32.gmra.mrb[0].mxu0 %v1131
      %v1327 = vpop.f32.mrb[0].mxu0
      %v1328 = vadd.f32 0.0, %v1327
      %v1329 = vpop.f32.mrb[0].mxu0
      %1330 = vmatprep.mubr.f32.mxu0 0.0
      %1331 = vmatmul.mubr.f32.gmra.mrb[0].mxu0 %v1134
      %v1332 = vpop.f32.mrb[0].mxu0
      %v1333 = vadd.f32 0.0, %v1332
      %v1334 = vpop.f32.mrb[0].mxu0
      %1335 = vmatprep.mubr.f32.mxu0 0.0
      %1336 = vmatmul.mubr.f32.gmra.mrb[0].mxu0 %v1137
      %v1337 = vpop.f32.mrb[0].mxu0
      %v1338 = vadd.f32 0.0, %v1337
      %v1339 = vpop.f32.mrb[0].mxu0
      %1340 = vmatprep.mubr.f32.mxu0 0.0
      %1341 = vmatmul.mubr.f32.gmra.mrb[0].mxu0 %v1140
      %v1342 = vpop.f32.mrb[0].mxu0
      %v1343 = vadd.f32 0.0, %v1342
      %v1344 = vpop.f32.mrb[0].mxu0
      %1345 = vmatprep.mubr.f32.mxu0 0.0
      %1346 = vmatmul.mubr.f32.gmra.mrb[0].mxu0 %v1143
      %v1347 = vpop.f32.mrb[0].mxu0
      %v1348 = vadd.f32 0.0, %v1347
      %v1349 = vpop.f32.mrb[0].mxu0
      %1350 = vmatprep.mubr.f32.mxu0 0.0
      %1351 = vmatmul.mubr.f32.gmra.mrb[0].mxu0 %v1146
      %v1352 = vpop.f32.mrb[0].mxu0
      %v1353 = vadd.f32 0.0, %v1352
      %v1354 = vpop.f32.mrb[0].mxu0
      %1355 = vmatprep.mubr.f32.mxu0 0.0
      %1356 = vmatmul.mubr.f32.gmra.mrb[0].mxu0 %v1149
      %v1357 = vpop.f32.mrb[0].mxu0
      %v1358 = vadd.f32 0.0, %v1357
      %v1359 = vpop.f32.mrb[0].mxu0
      %1360 = vmatprep.mubr.f32.mxu0 0.0
      %1361 = vmatmul.mubr.f32.gmra.mrb[0].mxu0 %v1152
      %v1362 = vpop.f32.mrb[0].mxu0
      %v1363 = vadd.f32 0.0, %v1362
      %v1364 = vpop.f32.mrb[0].mxu0
      %1365 = vmatprep.mubr.f32.mxu0 0.0
      %1366 = vmatmul.mubr.f32.gmra.mrb[0].mxu0 %v1155
      %v1367 = vpop.f32.mrb[0].mxu0
      %v1368 = vadd.f32 0.0, %v1367
      %v1369 = vpop.f32.mrb[0].mxu0
      %1370 = vmatprep.mubr.f32.mxu0 0.0
      %1371 = vmatmul.mubr.f32.gmra.mrb[0].mxu0 %v1158
      %v1372 = vpop.f32.mrb[0].mxu0
      %v1373 = vadd.f32 0.0, %v1372
      %v1374 = vpop.f32.mrb[0].mxu0
      %1375 = vmatprep.mubr.f32.mxu0 0.0
      %1376 = vmatmul.mubr.f32.gmra.mrb[0].mxu0 %v1161
      %v1377 = vpop.f32.mrb[0].mxu0
      %v1378 = vadd.f32 0.0, %v1377
      %v1379 = vpop.f32.mrb[0].mxu0
      %1380 = vmatprep.mubr.f32.mxu0 0.0
      %1381 = vmatmul.mubr.f32.gmra.mrb[0].mxu0 %v1164
      %v1382 = vpop.f32.mrb[0].mxu0
      %v1383 = vadd.f32 0.0, %v1382
      %v1384 = vpop.f32.mrb[0].mxu0
      %1385 = vmatprep.mubr.f32.mxu0 0.0
      %1386 = vmatmul.mubr.f32.gmra.mrb[0].mxu0 %v1167
      %v1387 = vpop.f32.mrb[0].mxu0
      %v1388 = vadd.f32 0.0, %v1387
      %v1389 = vpop.f32.mrb[0].mxu0
      %1390 = vmatprep.mubr.f32.mxu0 0.0
      %1391 = vmatmul.mubr.f32.gmra.mrb[0].mxu0 %v1170
      %v1392 = vpop.f32.mrb[0].mxu0
      %v1393 = vadd.f32 0.0, %v1392
      %v1394 = vpop.f32.mrb[0].mxu0
      %1395 = vmatprep.mubr.f32.mxu0 0.0
      %1396 = vmatmul.mubr.f32.gmra.mrb[0].mxu0 %v1173
      %v1397 = vpop.f32.mrb[0].mxu0
      %v1398 = vadd.f32 0.0, %v1397
      %v1399 = vpop.f32.mrb[0].mxu0
      %1400 = vmatprep.mubr.f32.mxu0 0.0
      %1401 = vmatmul.mubr.f32.gmra.mrb[0].mxu0 %v1176
      %v1402 = vpop.f32.mrb[0].mxu0
      %v1403 = vadd.f32 0.0, %v1402
      %v1404 = vpop.f32.mrb[0].mxu0
      %1405 = vdwg.mxu0
      %v1406 = vadd.f32 %v890, %v1248
      %v1407 = vadd.f32 %v895, %v1253
      %v1408 = vadd.f32 %v900, %v1258
      %v1409 = vadd.f32 %v905, %v1263
      %v1410 = vadd.f32 %v910, %v1268
      %v1411 = vadd.f32 %v915, %v1273
      %v1412 = vadd.f32 %v920, %v1278
      %v1413 = vadd.f32 %v925, %v1283
      %v1414 = vadd.f32 %v930, %v1288
      %v1415 = vadd.f32 %v935, %v1293
      %v1416 = vadd.f32 %v940, %v1298
      %v1417 = vadd.f32 %v945, %v1303
      %v1418 = vadd.f32 %v950, %v1308
      %v1419 = vadd.f32 %v955, %v1313
      %v1420 = vadd.f32 %v960, %v1318
      %v1421 = vadd.f32 %v965, %v1323
      %v1422 = vadd.f32 %v970, %v1328
      %v1423 = vadd.f32 %v975, %v1333
      %v1424 = vadd.f32 %v980, %v1338
      %v1425 = vadd.f32 %v985, %v1343
      %v1426 = vadd.f32 %v990, %v1348
      %v1427 = vadd.f32 %v995, %v1353
      %v1428 = vadd.f32 %v1000, %v1358
      %v1429 = vadd.f32 %v1005, %v1363
      %v1430 = vadd.f32 %v1010, %v1368
      %v1431 = vadd.f32 %v1015, %v1373
      %v1432 = vadd.f32 %v1020, %v1378
      %v1433 = vadd.f32 %v1025, %v1383
      %v1434 = vadd.f32 %v1030, %v1388
      %v1435 = vadd.f32 %v1035, %v1393
      %v1436 = vadd.f32 %v1040, %v1398
      %v1437 = vadd.f32 %v1045, %v1403
      %v1438 = vld [vmem:[%s267 + $0x7] sm:$0xff]
      %v1439 = vld [vmem:[%s267 + $0xf] sm:$0xff]
      %v1440 = vld [vmem:[%s267 + $0x27] sm:$0xff]
      %v1441 = vld [vmem:[%s267 + $0x2f] sm:$0xff]
      %v1442 = vld [vmem:[%s267 + $0x47] sm:$0xff]
      %v1443 = vld [vmem:[%s267 + $0x4f] sm:$0xff]
      %v1444 = vld [vmem:[%s267 + $0x67] sm:$0xff]
      %v1445 = vld [vmem:[%s267 + $0x6f] sm:$0xff]
      %v1446 = vld [vmem:[%s267 + $0x87] sm:$0xff]
      %v1447 = vld [vmem:[%s267 + $0x8f] sm:$0xff]
      %v1448 = vld [vmem:[%s267 + $0xa7] sm:$0xff]
      %v1449 = vld [vmem:[%s267 + $0xaf] sm:$0xff]
      %v1450 = vld [vmem:[%s267 + $0xc7] sm:$0xff]
      %v1451 = vld [vmem:[%s267 + $0xcf] sm:$0xff]
      %v1452 = vld [vmem:[%s267 + $0xe7] sm:$0xff]
      %v1453 = vld [vmem:[%s267 + $0xef] sm:$0xff]
      %v1454 = vld [vmem:[%s267 + $0x107] sm:$0xff]
      %v1455 = vld [vmem:[%s267 + $0x10f] sm:$0xff]
      %v1456 = vld [vmem:[%s267 + $0x127] sm:$0xff]
      %v1457 = vld [vmem:[%s267 + $0x12f] sm:$0xff]
      %v1458 = vld [vmem:[%s267 + $0x147] sm:$0xff]
      %v1459 = vld [vmem:[%s267 + $0x14f] sm:$0xff]
      %v1460 = vld [vmem:[%s267 + $0x167] sm:$0xff]
      %v1461 = vld [vmem:[%s267 + $0x16f] sm:$0xff]
      %v1462 = vld [vmem:[%s267 + $0x187] sm:$0xff]
      %v1463 = vld [vmem:[%s267 + $0x18f] sm:$0xff]
      %v1464 = vld [vmem:[%s267 + $0x1a7] sm:$0xff]
      %v1465 = vld [vmem:[%s267 + $0x1af] sm:$0xff]
      %v1466 = vld [vmem:[%s267 + $0x1c7] sm:$0xff]
      %v1467 = vld [vmem:[%s267 + $0x1cf] sm:$0xff]
      %v1468 = vld [vmem:[%s267 + $0x1e7] sm:$0xff]
      %v1469 = vld [vmem:[%s267 + $0x1ef] sm:$0xff]
      %s1470 = scalar_lea.vmem %s1, 12
      %v1471 = vld [vmem:[%s1470] sm:$0xf]
      %v1473 = vsel %vm257, %v1438, 0
      %v1476 = vsel %vm257, %v1439, 0
      %v1479 = vsel %vm257, %v1440, 0
      %v1482 = vsel %vm257, %v1441, 0
      %v1485 = vsel %vm257, %v1442, 0
      %v1488 = vsel %vm257, %v1443, 0
      %v1491 = vsel %vm257, %v1444, 0
      %v1494 = vsel %vm257, %v1445, 0
      %v1497 = vsel %vm257, %v1446, 0
      %v1500 = vsel %vm257, %v1447, 0
      %v1503 = vsel %vm257, %v1448, 0
      %v1506 = vsel %vm257, %v1449, 0
      %v1509 = vsel %vm257, %v1450, 0
      %v1512 = vsel %vm257, %v1451, 0
      %v1515 = vsel %vm257, %v1452, 0
      %v1518 = vsel %vm257, %v1453, 0
      %v1521 = vsel %vm257, %v1454, 0
      %v1524 = vsel %vm257, %v1455, 0
      %v1527 = vsel %vm257, %v1456, 0
      %v1530 = vsel %vm257, %v1457, 0
      %v1533 = vsel %vm257, %v1458, 0
      %v1536 = vsel %vm257, %v1459, 0
      %v1539 = vsel %vm257, %v1460, 0
      %v1542 = vsel %vm257, %v1461, 0
      %v1545 = vsel %vm257, %v1462, 0
      %v1548 = vsel %vm257, %v1463, 0
      %v1551 = vsel %vm257, %v1464, 0
      %v1554 = vsel %vm257, %v1465, 0
      %v1557 = vsel %vm257, %v1466, 0
      %v1560 = vsel %vm257, %v1467, 0
      %v1563 = vsel %vm257, %v1468, 0
      %v1566 = vsel %vm257, %v1469, 0
      %v1569 = vsel %vm495, %v1471, 0
      %1571 = vmatprep.subr.mxu0 0.0
      %1572 = vmatpush1.msra.mxu0 %v1569
      %1573 = vmatprep.subr.mxu0 0.0
      %1574 = vmatpush1.msra.mxu0 0.0
      %1575 = vmatprep.subr.mxu0 0.0
      %1576 = vmatpush1.msra.mxu0 0.0
      %1577 = vmatprep.subr.mxu0 0.0
      %1578 = vmatpush1.msra.mxu0 0.0
      %1579 = vmatprep.subr.mxu0 0.0
      %1580 = vmatpush1.msra.mxu0 0.0
      %1581 = vmatprep.subr.mxu0 0.0
      %1582 = vmatpush1.msra.mxu0 0.0
      %1583 = vmatprep.subr.mxu0 0.0
      %1584 = vmatpush1.msra.mxu0 0.0
      %1585 = vmatprep.subr.mxu0 0.0
      %1586 = vmatpush1.msra.mxu0 0.0
      %1587 = vmatprep.subr.mxu0 0.0
      %1588 = vmatpush1.msra.mxu0 0.0
      %1589 = vmatprep.subr.mxu0 0.0
      %1590 = vmatpush1.msra.mxu0 0.0
      %1591 = vmatprep.subr.mxu0 0.0
      %1592 = vmatpush1.msra.mxu0 0.0
      %1593 = vmatprep.subr.mxu0 0.0
      %1594 = vmatpush1.msra.mxu0 0.0
      %1595 = vmatprep.subr.mxu0 0.0
      %1596 = vmatpush1.msra.mxu0 0.0
      %1597 = vmatprep.subr.mxu0 0.0
      %1598 = vmatpush1.msra.mxu0 0.0
      %1599 = vmatprep.subr.mxu0 0.0
      %1600 = vmatpush1.msra.mxu0 0.0
      %1601 = vmatprep.subr.mxu0 0.0
      %1602 = vmatpush1.msra.mxu0 0.0
      %1603 = vmatprep.subr.mxu0 0.0
      %1604 = vmatpush1.msra.mxu0 0.0
      %1605 = vmatprep.subr.mxu0 0.0
      %1606 = vmatpush1.msra.mxu0 0.0
      %1607 = vmatprep.subr.mxu0 0.0
      %1608 = vmatpush1.msra.mxu0 0.0
      %1609 = vmatprep.subr.mxu0 0.0
      %1610 = vmatpush1.msra.mxu0 0.0
      %1611 = vmatprep.subr.mxu0 0.0
      %1612 = vmatpush1.msra.mxu0 0.0
      %1613 = vmatprep.subr.mxu0 0.0
      %1614 = vmatpush1.msra.mxu0 0.0
      %1615 = vmatprep.subr.mxu0 0.0
      %1616 = vmatpush1.msra.mxu0 0.0
      %1617 = vmatprep.subr.mxu0 0.0
      %1618 = vmatpush1.msra.mxu0 0.0
      %1619 = vmatprep.subr.mxu0 0.0
      %1620 = vmatpush1.msra.mxu0 0.0
      %1621 = vmatprep.subr.mxu0 0.0
      %1622 = vmatpush1.msra.mxu0 0.0
      %1623 = vmatprep.subr.mxu0 0.0
      %1624 = vmatpush1.msra.mxu0 0.0
      %1625 = vmatprep.subr.mxu0 0.0
      %1626 = vmatpush1.msra.mxu0 0.0
      %1627 = vmatprep.subr.mxu0 0.0
      %1628 = vmatpush1.msra.mxu0 0.0
      %1629 = vmatprep.subr.mxu0 0.0
      %1630 = vmatpush1.msra.mxu0 0.0
      %1631 = vmatprep.subr.mxu0 0.0
      %1632 = vmatpush1.msra.mxu0 0.0
      %1633 = vmatprep.subr.mxu0 0.0
      %1634 = vmatpush1.msra.mxu0 0.0
      %1635 = vmatprep.mubr.f32.mxu0 0.0
      %1636 = vmatmul.mubr.f32.gmra.mrb[0].mxu0 %v1473
      %v1637 = vpop.f32.mrb[0].mxu0
      %v1638 = vadd.f32 0.0, %v1637
      %v1639 = vpop.f32.mrb[0].mxu0
      %1640 = vmatprep.mubr.f32.mxu0 0.0
      %1641 = vmatmul.mubr.f32.gmra.mrb[0].mxu0 %v1476
      %v1642 = vpop.f32.mrb[0].mxu0
      %v1643 = vadd.f32 0.0, %v1642
      %v1644 = vpop.f32.mrb[0].mxu0
      %1645 = vmatprep.mubr.f32.mxu0 0.0
      %1646 = vmatmul.mubr.f32.gmra.mrb[0].mxu0 %v1479
      %v1647 = vpop.f32.mrb[0].mxu0
      %v1648 = vadd.f32 0.0, %v1647
      %v1649 = vpop.f32.mrb[0].mxu0
      %1650 = vmatprep.mubr.f32.mxu0 0.0
      %1651 = vmatmul.mubr.f32.gmra.mrb[0].mxu0 %v1482
      %v1652 = vpop.f32.mrb[0].mxu0
      %v1653 = vadd.f32 0.0, %v1652
      %v1654 = vpop.f32.mrb[0].mxu0
      %1655 = vmatprep.mubr.f32.mxu0 0.0
      %1656 = vmatmul.mubr.f32.gmra.mrb[0].mxu0 %v1485
      %v1657 = vpop.f32.mrb[0].mxu0
      %v1658 = vadd.f32 0.0, %v1657
      %v1659 = vpop.f32.mrb[0].mxu0
      %1660 = vmatprep.mubr.f32.mxu0 0.0
      %1661 = vmatmul.mubr.f32.gmra.mrb[0].mxu0 %v1488
      %v1662 = vpop.f32.mrb[0].mxu0
      %v1663 = vadd.f32 0.0, %v1662
      %v1664 = vpop.f32.mrb[0].mxu0
      %1665 = vmatprep.mubr.f32.mxu0 0.0
      %1666 = vmatmul.mubr.f32.gmra.mrb[0].mxu0 %v1491
      %v1667 = vpop.f32.mrb[0].mxu0
      %v1668 = vadd.f32 0.0, %v1667
      %v1669 = vpop.f32.mrb[0].mxu0
      %1670 = vmatprep.mubr.f32.mxu0 0.0
      %1671 = vmatmul.mubr.f32.gmra.mrb[0].mxu0 %v1494
      %v1672 = vpop.f32.mrb[0].mxu0
      %v1673 = vadd.f32 0.0, %v1672
      %v1674 = vpop.f32.mrb[0].mxu0
      %1675 = vmatprep.mubr.f32.mxu0 0.0
      %1676 = vmatmul.mubr.f32.gmra.mrb[0].mxu0 %v1497
      %v1677 = vpop.f32.mrb[0].mxu0
      %v1678 = vadd.f32 0.0, %v1677
      %v1679 = vpop.f32.mrb[0].mxu0
      %1680 = vmatprep.mubr.f32.mxu0 0.0
      %1681 = vmatmul.mubr.f32.gmra.mrb[0].mxu0 %v1500
      %v1682 = vpop.f32.mrb[0].mxu0
      %v1683 = vadd.f32 0.0, %v1682
      %v1684 = vpop.f32.mrb[0].mxu0
      %1685 = vmatprep.mubr.f32.mxu0 0.0
      %1686 = vmatmul.mubr.f32.gmra.mrb[0].mxu0 %v1503
      %v1687 = vpop.f32.mrb[0].mxu0
      %v1688 = vadd.f32 0.0, %v1687
      %v1689 = vpop.f32.mrb[0].mxu0
      %1690 = vmatprep.mubr.f32.mxu0 0.0
      %1691 = vmatmul.mubr.f32.gmra.mrb[0].mxu0 %v1506
      %v1692 = vpop.f32.mrb[0].mxu0
      %v1693 = vadd.f32 0.0, %v1692
      %v1694 = vpop.f32.mrb[0].mxu0
      %1695 = vmatprep.mubr.f32.mxu0 0.0
      %1696 = vmatmul.mubr.f32.gmra.mrb[0].mxu0 %v1509
      %v1697 = vpop.f32.mrb[0].mxu0
      %v1698 = vadd.f32 0.0, %v1697
      %v1699 = vpop.f32.mrb[0].mxu0
      %1700 = vmatprep.mubr.f32.mxu0 0.0
      %1701 = vmatmul.mubr.f32.gmra.mrb[0].mxu0 %v1512
      %v1702 = vpop.f32.mrb[0].mxu0
      %v1703 = vadd.f32 0.0, %v1702
      %v1704 = vpop.f32.mrb[0].mxu0
      %1705 = vmatprep.mubr.f32.mxu0 0.0
      %1706 = vmatmul.mubr.f32.gmra.mrb[0].mxu0 %v1515
      %v1707 = vpop.f32.mrb[0].mxu0
      %v1708 = vadd.f32 0.0, %v1707
      %v1709 = vpop.f32.mrb[0].mxu0
      %1710 = vmatprep.mubr.f32.mxu0 0.0
      %1711 = vmatmul.mubr.f32.gmra.mrb[0].mxu0 %v1518
      %v1712 = vpop.f32.mrb[0].mxu0
      %v1713 = vadd.f32 0.0, %v1712
      %v1714 = vpop.f32.mrb[0].mxu0
      %1715 = vmatprep.mubr.f32.mxu0 0.0
      %1716 = vmatmul.mubr.f32.gmra.mrb[0].mxu0 %v1521
      %v1717 = vpop.f32.mrb[0].mxu0
      %v1718 = vadd.f32 0.0, %v1717
      %v1719 = vpop.f32.mrb[0].mxu0
      %1720 = vmatprep.mubr.f32.mxu0 0.0
      %1721 = vmatmul.mubr.f32.gmra.mrb[0].mxu0 %v1524
      %v1722 = vpop.f32.mrb[0].mxu0
      %v1723 = vadd.f32 0.0, %v1722
      %v1724 = vpop.f32.mrb[0].mxu0
      %1725 = vmatprep.mubr.f32.mxu0 0.0
      %1726 = vmatmul.mubr.f32.gmra.mrb[0].mxu0 %v1527
      %v1727 = vpop.f32.mrb[0].mxu0
      %v1728 = vadd.f32 0.0, %v1727
      %v1729 = vpop.f32.mrb[0].mxu0
      %1730 = vmatprep.mubr.f32.mxu0 0.0
      %1731 = vmatmul.mubr.f32.gmra.mrb[0].mxu0 %v1530
      %v1732 = vpop.f32.mrb[0].mxu0
      %v1733 = vadd.f32 0.0, %v1732
      %v1734 = vpop.f32.mrb[0].mxu0
      %1735 = vmatprep.mubr.f32.mxu0 0.0
      %1736 = vmatmul.mubr.f32.gmra.mrb[0].mxu0 %v1533
      %v1737 = vpop.f32.mrb[0].mxu0
      %v1738 = vadd.f32 0.0, %v1737
      %v1739 = vpop.f32.mrb[0].mxu0
      %1740 = vmatprep.mubr.f32.mxu0 0.0
      %1741 = vmatmul.mubr.f32.gmra.mrb[0].mxu0 %v1536
      %v1742 = vpop.f32.mrb[0].mxu0
      %v1743 = vadd.f32 0.0, %v1742
      %v1744 = vpop.f32.mrb[0].mxu0
      %1745 = vmatprep.mubr.f32.mxu0 0.0
      %1746 = vmatmul.mubr.f32.gmra.mrb[0].mxu0 %v1539
      %v1747 = vpop.f32.mrb[0].mxu0
      %v1748 = vadd.f32 0.0, %v1747
      %v1749 = vpop.f32.mrb[0].mxu0
      %1750 = vmatprep.mubr.f32.mxu0 0.0
      %1751 = vmatmul.mubr.f32.gmra.mrb[0].mxu0 %v1542
      %v1752 = vpop.f32.mrb[0].mxu0
      %v1753 = vadd.f32 0.0, %v1752
      %v1754 = vpop.f32.mrb[0].mxu0
      %1755 = vmatprep.mubr.f32.mxu0 0.0
      %1756 = vmatmul.mubr.f32.gmra.mrb[0].mxu0 %v1545
      %v1757 = vpop.f32.mrb[0].mxu0
      %v1758 = vadd.f32 0.0, %v1757
      %v1759 = vpop.f32.mrb[0].mxu0
      %1760 = vmatprep.mubr.f32.mxu0 0.0
      %1761 = vmatmul.mubr.f32.gmra.mrb[0].mxu0 %v1548
      %v1762 = vpop.f32.mrb[0].mxu0
      %v1763 = vadd.f32 0.0, %v1762
      %v1764 = vpop.f32.mrb[0].mxu0
      %1765 = vmatprep.mubr.f32.mxu0 0.0
      %1766 = vmatmul.mubr.f32.gmra.mrb[0].mxu0 %v1551
      %v1767 = vpop.f32.mrb[0].mxu0
      %v1768 = vadd.f32 0.0, %v1767
      %v1769 = vpop.f32.mrb[0].mxu0
      %1770 = vmatprep.mubr.f32.mxu0 0.0
      %1771 = vmatmul.mubr.f32.gmra.mrb[0].mxu0 %v1554
      %v1772 = vpop.f32.mrb[0].mxu0
      %v1773 = vadd.f32 0.0, %v1772
      %v1774 = vpop.f32.mrb[0].mxu0
      %1775 = vmatprep.mubr.f32.mxu0 0.0
      %1776 = vmatmul.mubr.f32.gmra.mrb[0].mxu0 %v1557
      %v1777 = vpop.f32.mrb[0].mxu0
      %v1778 = vadd.f32 0.0, %v1777
      %v1779 = vpop.f32.mrb[0].mxu0
      %1780 = vmatprep.mubr.f32.mxu0 0.0
      %1781 = vmatmul.mubr.f32.gmra.mrb[0].mxu0 %v1560
      %v1782 = vpop.f32.mrb[0].mxu0
      %v1783 = vadd.f32 0.0, %v1782
      %v1784 = vpop.f32.mrb[0].mxu0
      %1785 = vmatprep.mubr.f32.mxu0 0.0
      %1786 = vmatmul.mubr.f32.gmra.mrb[0].mxu0 %v1563
      %v1787 = vpop.f32.mrb[0].mxu0
      %v1788 = vadd.f32 0.0, %v1787
      %v1789 = vpop.f32.mrb[0].mxu0
      %1790 = vmatprep.mubr.f32.mxu0 0.0
      %1791 = vmatmul.mubr.f32.gmra.mrb[0].mxu0 %v1566
      %v1792 = vpop.f32.mrb[0].mxu0
      %v1793 = vadd.f32 0.0, %v1792
      %v1794 = vpop.f32.mrb[0].mxu0
      %1795 = vdwg.mxu0
      %v1796 = vadd.f32 %v1406, %v1638
      %v1797 = vadd.f32 %v1407, %v1643
      %v1798 = vadd.f32 %v1408, %v1648
      %v1799 = vadd.f32 %v1409, %v1653
      %v1800 = vadd.f32 %v1410, %v1658
      %v1801 = vadd.f32 %v1411, %v1663
      %v1802 = vadd.f32 %v1412, %v1668
      %v1803 = vadd.f32 %v1413, %v1673
      %v1804 = vadd.f32 %v1414, %v1678
      %v1805 = vadd.f32 %v1415, %v1683
      %v1806 = vadd.f32 %v1416, %v1688
      %v1807 = vadd.f32 %v1417, %v1693
      %v1808 = vadd.f32 %v1418, %v1698
      %v1809 = vadd.f32 %v1419, %v1703
      %v1810 = vadd.f32 %v1420, %v1708
      %v1811 = vadd.f32 %v1421, %v1713
      %v1812 = vadd.f32 %v1422, %v1718
      %v1813 = vadd.f32 %v1423, %v1723
      %v1814 = vadd.f32 %v1424, %v1728
      %v1815 = vadd.f32 %v1425, %v1733
      %v1816 = vadd.f32 %v1426, %v1738
      %v1817 = vadd.f32 %v1427, %v1743
      %v1818 = vadd.f32 %v1428, %v1748
      %v1819 = vadd.f32 %v1429, %v1753
      %v1820 = vadd.f32 %v1430, %v1758
      %v1821 = vadd.f32 %v1431, %v1763
      %v1822 = vadd.f32 %v1432, %v1768
      %v1823 = vadd.f32 %v1433, %v1773
      %v1824 = vadd.f32 %v1434, %v1778
      %v1825 = vadd.f32 %v1435, %v1783
      %v1826 = vadd.f32 %v1436, %v1788
      %v1827 = vadd.f32 %v1437, %v1793
      %v1828 = vld [vmem:[%s267 + $0x8] sm:$0xff]
      %v1829 = vld [vmem:[%s267 + $0x10] sm:$0xff]
      %v1830 = vld [vmem:[%s267 + $0x28] sm:$0xff]
      %v1831 = vld [vmem:[%s267 + $0x30] sm:$0xff]
      %v1832 = vld [vmem:[%s267 + $0x48] sm:$0xff]
      %v1833 = vld [vmem:[%s267 + $0x50] sm:$0xff]
      %v1834 = vld [vmem:[%s267 + $0x68] sm:$0xff]
      %v1835 = vld [vmem:[%s267 + $0x70] sm:$0xff]
      %v1836 = vld [vmem:[%s267 + $0x88] sm:$0xff]
      %v1837 = vld [vmem:[%s267 + $0x90] sm:$0xff]
      %v1838 = vld [vmem:[%s267 + $0xa8] sm:$0xff]
      %v1839 = vld [vmem:[%s267 + $0xb0] sm:$0xff]
      %v1840 = vld [vmem:[%s267 + $0xc8] sm:$0xff]
      %v1841 = vld [vmem:[%s267 + $0xd0] sm:$0xff]
      %v1842 = vld [vmem:[%s267 + $0xe8] sm:$0xff]
      %v1843 = vld [vmem:[%s267 + $0xf0] sm:$0xff]
      %v1844 = vld [vmem:[%s267 + $0x108] sm:$0xff]
      %v1845 = vld [vmem:[%s267 + $0x110] sm:$0xff]
      %v1846 = vld [vmem:[%s267 + $0x128] sm:$0xff]
      %v1847 = vld [vmem:[%s267 + $0x130] sm:$0xff]
      %v1848 = vld [vmem:[%s267 + $0x148] sm:$0xff]
      %v1849 = vld [vmem:[%s267 + $0x150] sm:$0xff]
      %v1850 = vld [vmem:[%s267 + $0x168] sm:$0xff]
      %v1851 = vld [vmem:[%s267 + $0x170] sm:$0xff]
      %v1852 = vld [vmem:[%s267 + $0x188] sm:$0xff]
      %v1853 = vld [vmem:[%s267 + $0x190] sm:$0xff]
      %v1854 = vld [vmem:[%s267 + $0x1a8] sm:$0xff]
      %v1855 = vld [vmem:[%s267 + $0x1b0] sm:$0xff]
      %v1856 = vld [vmem:[%s267 + $0x1c8] sm:$0xff]
      %v1857 = vld [vmem:[%s267 + $0x1d0] sm:$0xff]
      %v1858 = vld [vmem:[%s267 + $0x1e8] sm:$0xff]
      %v1859 = vld [vmem:[%s267 + $0x1f0] sm:$0xff]
      %s1860 = scalar_lea.vmem %s1, 16
      %v1861 = vld [vmem:[%s1860] sm:$0xf]
      %v1863 = vsel %vm257, %v1828, 0
      %v1866 = vsel %vm257, %v1829, 0
      %v1869 = vsel %vm257, %v1830, 0
      %v1872 = vsel %vm257, %v1831, 0
      %v1875 = vsel %vm257, %v1832, 0
      %v1878 = vsel %vm257, %v1833, 0
      %v1881 = vsel %vm257, %v1834, 0
      %v1884 = vsel %vm257, %v1835, 0
      %v1887 = vsel %vm257, %v1836, 0
      %v1890 = vsel %vm257, %v1837, 0
      %v1893 = vsel %vm257, %v1838, 0
      %v1896 = vsel %vm257, %v1839, 0
      %v1899 = vsel %vm257, %v1840, 0
      %v1902 = vsel %vm257, %v1841, 0
      %v1905 = vsel %vm257, %v1842, 0
      %v1908 = vsel %vm257, %v1843, 0
      %v1911 = vsel %vm257, %v1844, 0
      %v1914 = vsel %vm257, %v1845, 0
      %v1917 = vsel %vm257, %v1846, 0
      %v1920 = vsel %vm257, %v1847, 0
      %v1923 = vsel %vm257, %v1848, 0
      %v1926 = vsel %vm257, %v1849, 0
      %v1929 = vsel %vm257, %v1850, 0
      %v1932 = vsel %vm257, %v1851, 0
      %v1935 = vsel %vm257, %v1852, 0
      %v1938 = vsel %vm257, %v1853, 0
      %v1941 = vsel %vm257, %v1854, 0
      %v1944 = vsel %vm257, %v1855, 0
      %v1947 = vsel %vm257, %v1856, 0
      %v1950 = vsel %vm257, %v1857, 0
      %v1953 = vsel %vm257, %v1858, 0
      %v1956 = vsel %vm257, %v1859, 0
      %v1959 = vsel %vm495, %v1861, 0
      %1961 = vmatprep.subr.mxu0 0.0
      %1962 = vmatpush1.msra.mxu0 %v1959
      %1963 = vmatprep.subr.mxu0 0.0
      %1964 = vmatpush1.msra.mxu0 0.0
      %1965 = vmatprep.subr.mxu0 0.0
      %1966 = vmatpush1.msra.mxu0 0.0
      %1967 = vmatprep.subr.mxu0 0.0
      %1968 = vmatpush1.msra.mxu0 0.0
      %1969 = vmatprep.subr.mxu0 0.0
      %1970 = vmatpush1.msra.mxu0 0.0
      %1971 = vmatprep.subr.mxu0 0.0
      %1972 = vmatpush1.msra.mxu0 0.0
      %1973 = vmatprep.subr.mxu0 0.0
      %1974 = vmatpush1.msra.mxu0 0.0
      %1975 = vmatprep.subr.mxu0 0.0
      %1976 = vmatpush1.msra.mxu0 0.0
      %1977 = vmatprep.subr.mxu0 0.0
      %1978 = vmatpush1.msra.mxu0 0.0
      %1979 = vmatprep.subr.mxu0 0.0
      %1980 = vmatpush1.msra.mxu0 0.0
      %1981 = vmatprep.subr.mxu0 0.0
      %1982 = vmatpush1.msra.mxu0 0.0
      %1983 = vmatprep.subr.mxu0 0.0
      %1984 = vmatpush1.msra.mxu0 0.0
      %1985 = vmatprep.subr.mxu0 0.0
      %1986 = vmatpush1.msra.mxu0 0.0
      %1987 = vmatprep.subr.mxu0 0.0
      %1988 = vmatpush1.msra.mxu0 0.0
      %1989 = vmatprep.subr.mxu0 0.0
      %1990 = vmatpush1.msra.mxu0 0.0
      %1991 = vmatprep.subr.mxu0 0.0
      %1992 = vmatpush1.msra.mxu0 0.0
      %1993 = vmatprep.subr.mxu0 0.0
      %1994 = vmatpush1.msra.mxu0 0.0
      %1995 = vmatprep.subr.mxu0 0.0
      %1996 = vmatpush1.msra.mxu0 0.0
      %1997 = vmatprep.subr.mxu0 0.0
      %1998 = vmatpush1.msra.mxu0 0.0
      %1999 = vmatprep.subr.mxu0 0.0
      %2000 = vmatpush1.msra.mxu0 0.0
      %2001 = vmatprep.subr.mxu0 0.0
      %2002 = vmatpush1.msra.mxu0 0.0
      %2003 = vmatprep.subr.mxu0 0.0
      %2004 = vmatpush1.msra.mxu0 0.0
      %2005 = vmatprep.subr.mxu0 0.0
      %2006 = vmatpush1.msra.mxu0 0.0
      %2007 = vmatprep.subr.mxu0 0.0
      %2008 = vmatpush1.msra.mxu0 0.0
      %2009 = vmatprep.subr.mxu0 0.0
      %2010 = vmatpush1.msra.mxu0 0.0
      %2011 = vmatprep.subr.mxu0 0.0
      %2012 = vmatpush1.msra.mxu0 0.0
      %2013 = vmatprep.subr.mxu0 0.0
      %2014 = vmatpush1.msra.mxu0 0.0
      %2015 = vmatprep.subr.mxu0 0.0
      %2016 = vmatpush1.msra.mxu0 0.0
      %2017 = vmatprep.subr.mxu0 0.0
      %2018 = vmatpush1.msra.mxu0 0.0
      %2019 = vmatprep.subr.mxu0 0.0
      %2020 = vmatpush1.msra.mxu0 0.0
      %2021 = vmatprep.subr.mxu0 0.0
      %2022 = vmatpush1.msra.mxu0 0.0
      %2023 = vmatprep.subr.mxu0 0.0
      %2024 = vmatpush1.msra.mxu0 0.0
      %2025 = vmatprep.mubr.f32.mxu0 0.0
      %2026 = vmatmul.mubr.f32.gmra.mrb[0].mxu0 %v1863
      %v2027 = vpop.f32.mrb[0].mxu0
      %v2028 = vadd.f32 0.0, %v2027
      %v2029 = vpop.f32.mrb[0].mxu0
      %2030 = vmatprep.mubr.f32.mxu0 0.0
      %2031 = vmatmul.mubr.f32.gmra.mrb[0].mxu0 %v1866
      %v2032 = vpop.f32.mrb[0].mxu0
      %v2033 = vadd.f32 0.0, %v2032
      %v2034 = vpop.f32.mrb[0].mxu0
      %2035 = vmatprep.mubr.f32.mxu0 0.0
      %2036 = vmatmul.mubr.f32.gmra.mrb[0].mxu0 %v1869
      %v2037 = vpop.f32.mrb[0].mxu0
      %v2038 = vadd.f32 0.0, %v2037
      %v2039 = vpop.f32.mrb[0].mxu0
      %2040 = vmatprep.mubr.f32.mxu0 0.0
      %2041 = vmatmul.mubr.f32.gmra.mrb[0].mxu0 %v1872
      %v2042 = vpop.f32.mrb[0].mxu0
      %v2043 = vadd.f32 0.0, %v2042
      %v2044 = vpop.f32.mrb[0].mxu0
      %2045 = vmatprep.mubr.f32.mxu0 0.0
      %2046 = vmatmul.mubr.f32.gmra.mrb[0].mxu0 %v1875
      %v2047 = vpop.f32.mrb[0].mxu0
      %v2048 = vadd.f32 0.0, %v2047
      %v2049 = vpop.f32.mrb[0].mxu0
      %2050 = vmatprep.mubr.f32.mxu0 0.0
      %2051 = vmatmul.mubr.f32.gmra.mrb[0].mxu0 %v1878
      %v2052 = vpop.f32.mrb[0].mxu0
      %v2053 = vadd.f32 0.0, %v2052
      %v2054 = vpop.f32.mrb[0].mxu0
      %2055 = vmatprep.mubr.f32.mxu0 0.0
      %2056 = vmatmul.mubr.f32.gmra.mrb[0].mxu0 %v1881
      %v2057 = vpop.f32.mrb[0].mxu0
      %v2058 = vadd.f32 0.0, %v2057
      %v2059 = vpop.f32.mrb[0].mxu0
      %2060 = vmatprep.mubr.f32.mxu0 0.0
      %2061 = vmatmul.mubr.f32.gmra.mrb[0].mxu0 %v1884
      %v2062 = vpop.f32.mrb[0].mxu0
      %v2063 = vadd.f32 0.0, %v2062
      %v2064 = vpop.f32.mrb[0].mxu0
      %2065 = vmatprep.mubr.f32.mxu0 0.0
      %2066 = vmatmul.mubr.f32.gmra.mrb[0].mxu0 %v1887
      %v2067 = vpop.f32.mrb[0].mxu0
      %v2068 = vadd.f32 0.0, %v2067
      %v2069 = vpop.f32.mrb[0].mxu0
      %2070 = vmatprep.mubr.f32.mxu0 0.0
      %2071 = vmatmul.mubr.f32.gmra.mrb[0].mxu0 %v1890
      %v2072 = vpop.f32.mrb[0].mxu0
      %v2073 = vadd.f32 0.0, %v2072
      %v2074 = vpop.f32.mrb[0].mxu0
      %2075 = vmatprep.mubr.f32.mxu0 0.0
      %2076 = vmatmul.mubr.f32.gmra.mrb[0].mxu0 %v1893
      %v2077 = vpop.f32.mrb[0].mxu0
      %v2078 = vadd.f32 0.0, %v2077
      %v2079 = vpop.f32.mrb[0].mxu0
      %2080 = vmatprep.mubr.f32.mxu0 0.0
      %2081 = vmatmul.mubr.f32.gmra.mrb[0].mxu0 %v1896
      %v2082 = vpop.f32.mrb[0].mxu0
      %v2083 = vadd.f32 0.0, %v2082
      %v2084 = vpop.f32.mrb[0].mxu0
      %2085 = vmatprep.mubr.f32.mxu0 0.0
      %2086 = vmatmul.mubr.f32.gmra.mrb[0].mxu0 %v1899
      %v2087 = vpop.f32.mrb[0].mxu0
      %v2088 = vadd.f32 0.0, %v2087
      %v2089 = vpop.f32.mrb[0].mxu0
      %2090 = vmatprep.mubr.f32.mxu0 0.0
      %2091 = vmatmul.mubr.f32.gmra.mrb[0].mxu0 %v1902
      %v2092 = vpop.f32.mrb[0].mxu0
      %v2093 = vadd.f32 0.0, %v2092
      %v2094 = vpop.f32.mrb[0].mxu0
      %2095 = vmatprep.mubr.f32.mxu0 0.0
      %2096 = vmatmul.mubr.f32.gmra.mrb[0].mxu0 %v1905
      %v2097 = vpop.f32.mrb[0].mxu0
      %v2098 = vadd.f32 0.0, %v2097
      %v2099 = vpop.f32.mrb[0].mxu0
      %2100 = vmatprep.mubr.f32.mxu0 0.0
      %2101 = vmatmul.mubr.f32.gmra.mrb[0].mxu0 %v1908
      %v2102 = vpop.f32.mrb[0].mxu0
      %v2103 = vadd.f32 0.0, %v2102
      %v2104 = vpop.f32.mrb[0].mxu0
      %2105 = vmatprep.mubr.f32.mxu0 0.0
      %2106 = vmatmul.mubr.f32.gmra.mrb[0].mxu0 %v1911
      %v2107 = vpop.f32.mrb[0].mxu0
      %v2108 = vadd.f32 0.0, %v2107
      %v2109 = vpop.f32.mrb[0].mxu0
      %2110 = vmatprep.mubr.f32.mxu0 0.0
      %2111 = vmatmul.mubr.f32.gmra.mrb[0].mxu0 %v1914
      %v2112 = vpop.f32.mrb[0].mxu0
      %v2113 = vadd.f32 0.0, %v2112
      %v2114 = vpop.f32.mrb[0].mxu0
      %2115 = vmatprep.mubr.f32.mxu0 0.0
      %2116 = vmatmul.mubr.f32.gmra.mrb[0].mxu0 %v1917
      %v2117 = vpop.f32.mrb[0].mxu0
      %v2118 = vadd.f32 0.0, %v2117
      %v2119 = vpop.f32.mrb[0].mxu0
      %2120 = vmatprep.mubr.f32.mxu0 0.0
      %2121 = vmatmul.mubr.f32.gmra.mrb[0].mxu0 %v1920
      %v2122 = vpop.f32.mrb[0].mxu0
      %v2123 = vadd.f32 0.0, %v2122
      %v2124 = vpop.f32.mrb[0].mxu0
      %2125 = vmatprep.mubr.f32.mxu0 0.0
      %2126 = vmatmul.mubr.f32.gmra.mrb[0].mxu0 %v1923
      %v2127 = vpop.f32.mrb[0].mxu0
      %v2128 = vadd.f32 0.0, %v2127
      %v2129 = vpop.f32.mrb[0].mxu0
      %2130 = vmatprep.mubr.f32.mxu0 0.0
      %2131 = vmatmul.mubr.f32.gmra.mrb[0].mxu0 %v1926
      %v2132 = vpop.f32.mrb[0].mxu0
      %v2133 = vadd.f32 0.0, %v2132
      %v2134 = vpop.f32.mrb[0].mxu0
      %2135 = vmatprep.mubr.f32.mxu0 0.0
      %2136 = vmatmul.mubr.f32.gmra.mrb[0].mxu0 %v1929
      %v2137 = vpop.f32.mrb[0].mxu0
      %v2138 = vadd.f32 0.0, %v2137
      %v2139 = vpop.f32.mrb[0].mxu0
      %2140 = vmatprep.mubr.f32.mxu0 0.0
      %2141 = vmatmul.mubr.f32.gmra.mrb[0].mxu0 %v1932
      %v2142 = vpop.f32.mrb[0].mxu0
      %v2143 = vadd.f32 0.0, %v2142
      %v2144 = vpop.f32.mrb[0].mxu0
      %2145 = vmatprep.mubr.f32.mxu0 0.0
      %2146 = vmatmul.mubr.f32.gmra.mrb[0].mxu0 %v1935
      %v2147 = vpop.f32.mrb[0].mxu0
      %v2148 = vadd.f32 0.0, %v2147
      %v2149 = vpop.f32.mrb[0].mxu0
      %2150 = vmatprep.mubr.f32.mxu0 0.0
      %2151 = vmatmul.mubr.f32.gmra.mrb[0].mxu0 %v1938
      %v2152 = vpop.f32.mrb[0].mxu0
      %v2153 = vadd.f32 0.0, %v2152
      %v2154 = vpop.f32.mrb[0].mxu0
      %2155 = vmatprep.mubr.f32.mxu0 0.0
      %2156 = vmatmul.mubr.f32.gmra.mrb[0].mxu0 %v1941
      %v2157 = vpop.f32.mrb[0].mxu0
      %v2158 = vadd.f32 0.0, %v2157
      %v2159 = vpop.f32.mrb[0].mxu0
      %2160 = vmatprep.mubr.f32.mxu0 0.0
      %2161 = vmatmul.mubr.f32.gmra.mrb[0].mxu0 %v1944
      %v2162 = vpop.f32.mrb[0].mxu0
      %v2163 = vadd.f32 0.0, %v2162
      %v2164 = vpop.f32.mrb[0].mxu0
      %2165 = vmatprep.mubr.f32.mxu0 0.0
      %2166 = vmatmul.mubr.f32.gmra.mrb[0].mxu0 %v1947
      %v2167 = vpop.f32.mrb[0].mxu0
      %v2168 = vadd.f32 0.0, %v2167
      %v2169 = vpop.f32.mrb[0].mxu0
      %2170 = vmatprep.mubr.f32.mxu0 0.0
      %2171 = vmatmul.mubr.f32.gmra.mrb[0].mxu0 %v1950
      %v2172 = vpop.f32.mrb[0].mxu0
      %v2173 = vadd.f32 0.0, %v2172
      %v2174 = vpop.f32.mrb[0].mxu0
      %2175 = vmatprep.mubr.f32.mxu0 0.0
      %2176 = vmatmul.mubr.f32.gmra.mrb[0].mxu0 %v1953
      %v2177 = vpop.f32.mrb[0].mxu0
      %v2178 = vadd.f32 0.0, %v2177
      %v2179 = vpop.f32.mrb[0].mxu0
      %2180 = vmatprep.mubr.f32.mxu0 0.0
      %2181 = vmatmul.mubr.f32.gmra.mrb[0].mxu0 %v1956
      %v2182 = vpop.f32.mrb[0].mxu0
      %v2183 = vadd.f32 0.0, %v2182
      %v2184 = vpop.f32.mrb[0].mxu0
      %2185 = vdwg.mxu0
      %v2186 = vadd.f32 %v1796, %v2028
      %v2187 = vadd.f32 %v1797, %v2033
      %v2188 = vadd.f32 %v1798, %v2038
      %v2189 = vadd.f32 %v1799, %v2043
      %v2190 = vadd.f32 %v1800, %v2048
      %v2191 = vadd.f32 %v1801, %v2053
      %v2192 = vadd.f32 %v1802, %v2058
      %v2193 = vadd.f32 %v1803, %v2063
      %v2194 = vadd.f32 %v1804, %v2068
      %v2195 = vadd.f32 %v1805, %v2073
      %v2196 = vadd.f32 %v1806, %v2078
      %v2197 = vadd.f32 %v1807, %v2083
      %v2198 = vadd.f32 %v1808, %v2088
      %v2199 = vadd.f32 %v1809, %v2093
      %v2200 = vadd.f32 %v1810, %v2098
      %v2201 = vadd.f32 %v1811, %v2103
      %v2202 = vadd.f32 %v1812, %v2108
      %v2203 = vadd.f32 %v1813, %v2113
      %v2204 = vadd.f32 %v1814, %v2118
      %v2205 = vadd.f32 %v1815, %v2123
      %v2206 = vadd.f32 %v1816, %v2128
      %v2207 = vadd.f32 %v1817, %v2133
      %v2208 = vadd.f32 %v1818, %v2138
      %v2209 = vadd.f32 %v1819, %v2143
      %v2210 = vadd.f32 %v1820, %v2148
      %v2211 = vadd.f32 %v1821, %v2153
      %v2212 = vadd.f32 %v1822, %v2158
      %v2213 = vadd.f32 %v1823, %v2163
      %v2214 = vadd.f32 %v1824, %v2168
      %v2215 = vadd.f32 %v1825, %v2173
      %v2216 = vadd.f32 %v1826, %v2178
      %v2217 = vadd.f32 %v1827, %v2183
      %v2218 = vld [vmem:[%s267 + $0x9] sm:$0xff]
      %v2219 = vld [vmem:[%s267 + $0x11] sm:$0xff]
      %v2220 = vld [vmem:[%s267 + $0x29] sm:$0xff]
      %v2221 = vld [vmem:[%s267 + $0x31] sm:$0xff]
      %v2222 = vld [vmem:[%s267 + $0x49] sm:$0xff]
      %v2223 = vld [vmem:[%s267 + $0x51] sm:$0xff]
      %v2224 = vld [vmem:[%s267 + $0x69] sm:$0xff]
      %v2225 = vld [vmem:[%s267 + $0x71] sm:$0xff]
      %v2226 = vld [vmem:[%s267 + $0x89] sm:$0xff]
      %v2227 = vld [vmem:[%s267 + $0x91] sm:$0xff]
      %v2228 = vld [vmem:[%s267 + $0xa9] sm:$0xff]
      %v2229 = vld [vmem:[%s267 + $0xb1] sm:$0xff]
      %v2230 = vld [vmem:[%s267 + $0xc9] sm:$0xff]
      %v2231 = vld [vmem:[%s267 + $0xd1] sm:$0xff]
      %v2232 = vld [vmem:[%s267 + $0xe9] sm:$0xff]
      %v2233 = vld [vmem:[%s267 + $0xf1] sm:$0xff]
      %v2234 = vld [vmem:[%s267 + $0x109] sm:$0xff]
      %v2235 = vld [vmem:[%s267 + $0x111] sm:$0xff]
      %v2236 = vld [vmem:[%s267 + $0x129] sm:$0xff]
      %v2237 = vld [vmem:[%s267 + $0x131] sm:$0xff]
      %v2238 = vld [vmem:[%s267 + $0x149] sm:$0xff]
      %v2239 = vld [vmem:[%s267 + $0x151] sm:$0xff]
      %v2240 = vld [vmem:[%s267 + $0x169] sm:$0xff]
      %v2241 = vld [vmem:[%s267 + $0x171] sm:$0xff]
      %v2242 = vld [vmem:[%s267 + $0x189] sm:$0xff]
      %v2243 = vld [vmem:[%s267 + $0x191] sm:$0xff]
      %v2244 = vld [vmem:[%s267 + $0x1a9] sm:$0xff]
      %v2245 = vld [vmem:[%s267 + $0x1b1] sm:$0xff]
      %v2246 = vld [vmem:[%s267 + $0x1c9] sm:$0xff]
      %v2247 = vld [vmem:[%s267 + $0x1d1] sm:$0xff]
      %v2248 = vld [vmem:[%s267 + $0x1e9] sm:$0xff]
      %v2249 = vld [vmem:[%s267 + $0x1f1] sm:$0xff]
      %s2250 = scalar_lea.vmem %s1, 20
      %v2251 = vld [vmem:[%s2250] sm:$0xf]
      %v2253 = vsel %vm257, %v2218, 0
      %v2256 = vsel %vm257, %v2219, 0
      %v2259 = vsel %vm257, %v2220, 0
      %v2262 = vsel %vm257, %v2221, 0
      %v2265 = vsel %vm257, %v2222, 0
      %v2268 = vsel %vm257, %v2223, 0
      %v2271 = vsel %vm257, %v2224, 0
      %v2274 = vsel %vm257, %v2225, 0
      %v2277 = vsel %vm257, %v2226, 0
      %v2280 = vsel %vm257, %v2227, 0
      %v2283 = vsel %vm257, %v2228, 0
      %v2286 = vsel %vm257, %v2229, 0
      %v2289 = vsel %vm257, %v2230, 0
      %v2292 = vsel %vm257, %v2231, 0
      %v2295 = vsel %vm257, %v2232, 0
      %v2298 = vsel %vm257, %v2233, 0
      %v2301 = vsel %vm257, %v2234, 0
      %v2304 = vsel %vm257, %v2235, 0
      %v2307 = vsel %vm257, %v2236, 0
      %v2310 = vsel %vm257, %v2237, 0
      %v2313 = vsel %vm257, %v2238, 0
      %v2316 = vsel %vm257, %v2239, 0
      %v2319 = vsel %vm257, %v2240, 0
      %v2322 = vsel %vm257, %v2241, 0
      %v2325 = vsel %vm257, %v2242, 0
      %v2328 = vsel %vm257, %v2243, 0
      %v2331 = vsel %vm257, %v2244, 0
      %v2334 = vsel %vm257, %v2245, 0
      %v2337 = vsel %vm257, %v2246, 0
      %v2340 = vsel %vm257, %v2247, 0
      %v2343 = vsel %vm257, %v2248, 0
      %v2346 = vsel %vm257, %v2249, 0
      %v2349 = vsel %vm495, %v2251, 0
      %2351 = vmatprep.subr.mxu0 0.0
      %2352 = vmatpush1.msra.mxu0 %v2349
      %2353 = vmatprep.subr.mxu0 0.0
      %2354 = vmatpush1.msra.mxu0 0.0
      %2355 = vmatprep.subr.mxu0 0.0
      %2356 = vmatpush1.msra.mxu0 0.0
      %2357 = vmatprep.subr.mxu0 0.0
      %2358 = vmatpush1.msra.mxu0 0.0
      %2359 = vmatprep.subr.mxu0 0.0
      %2360 = vmatpush1.msra.mxu0 0.0
      %2361 = vmatprep.subr.mxu0 0.0
      %2362 = vmatpush1.msra.mxu0 0.0
      %2363 = vmatprep.subr.mxu0 0.0
      %2364 = vmatpush1.msra.mxu0 0.0
      %2365 = vmatprep.subr.mxu0 0.0
      %2366 = vmatpush1.msra.mxu0 0.0
      %2367 = vmatprep.subr.mxu0 0.0
      %2368 = vmatpush1.msra.mxu0 0.0
      %2369 = vmatprep.subr.mxu0 0.0
      %2370 = vmatpush1.msra.mxu0 0.0
      %2371 = vmatprep.subr.mxu0 0.0
      %2372 = vmatpush1.msra.mxu0 0.0
      %2373 = vmatprep.subr.mxu0 0.0
      %2374 = vmatpush1.msra.mxu0 0.0
      %2375 = vmatprep.subr.mxu0 0.0
      %2376 = vmatpush1.msra.mxu0 0.0
      %2377 = vmatprep.subr.mxu0 0.0
      %2378 = vmatpush1.msra.mxu0 0.0
      %2379 = vmatprep.subr.mxu0 0.0
      %2380 = vmatpush1.msra.mxu0 0.0
      %2381 = vmatprep.subr.mxu0 0.0
      %2382 = vmatpush1.msra.mxu0 0.0
      %2383 = vmatprep.subr.mxu0 0.0
      %2384 = vmatpush1.msra.mxu0 0.0
      %2385 = vmatprep.subr.mxu0 0.0
      %2386 = vmatpush1.msra.mxu0 0.0
      %2387 = vmatprep.subr.mxu0 0.0
      %2388 = vmatpush1.msra.mxu0 0.0
      %2389 = vmatprep.subr.mxu0 0.0
      %2390 = vmatpush1.msra.mxu0 0.0
      %2391 = vmatprep.subr.mxu0 0.0
      %2392 = vmatpush1.msra.mxu0 0.0
      %2393 = vmatprep.subr.mxu0 0.0
      %2394 = vmatpush1.msra.mxu0 0.0
      %2395 = vmatprep.subr.mxu0 0.0
      %2396 = vmatpush1.msra.mxu0 0.0
      %2397 = vmatprep.subr.mxu0 0.0
      %2398 = vmatpush1.msra.mxu0 0.0
      %2399 = vmatprep.subr.mxu0 0.0
      %2400 = vmatpush1.msra.mxu0 0.0
      %2401 = vmatprep.subr.mxu0 0.0
      %2402 = vmatpush1.msra.mxu0 0.0
      %2403 = vmatprep.subr.mxu0 0.0
      %2404 = vmatpush1.msra.mxu0 0.0
      %2405 = vmatprep.subr.mxu0 0.0
      %2406 = vmatpush1.msra.mxu0 0.0
      %2407 = vmatprep.subr.mxu0 0.0
      %2408 = vmatpush1.msra.mxu0 0.0
      %2409 = vmatprep.subr.mxu0 0.0
      %2410 = vmatpush1.msra.mxu0 0.0
      %2411 = vmatprep.subr.mxu0 0.0
      %2412 = vmatpush1.msra.mxu0 0.0
      %2413 = vmatprep.subr.mxu0 0.0
      %2414 = vmatpush1.msra.mxu0 0.0
      %2415 = vmatprep.mubr.f32.mxu0 0.0
      %2416 = vmatmul.mubr.f32.gmra.mrb[0].mxu0 %v2253
      %v2417 = vpop.f32.mrb[0].mxu0
      %v2418 = vadd.f32 0.0, %v2417
      %v2419 = vpop.f32.mrb[0].mxu0
      %2420 = vmatprep.mubr.f32.mxu0 0.0
      %2421 = vmatmul.mubr.f32.gmra.mrb[0].mxu0 %v2256
      %v2422 = vpop.f32.mrb[0].mxu0
      %v2423 = vadd.f32 0.0, %v2422
      %v2424 = vpop.f32.mrb[0].mxu0
      %2425 = vmatprep.mubr.f32.mxu0 0.0
      %2426 = vmatmul.mubr.f32.gmra.mrb[0].mxu0 %v2259
      %v2427 = vpop.f32.mrb[0].mxu0
      %v2428 = vadd.f32 0.0, %v2427
      %v2429 = vpop.f32.mrb[0].mxu0
      %2430 = vmatprep.mubr.f32.mxu0 0.0
      %2431 = vmatmul.mubr.f32.gmra.mrb[0].mxu0 %v2262
      %v2432 = vpop.f32.mrb[0].mxu0
      %v2433 = vadd.f32 0.0, %v2432
      %v2434 = vpop.f32.mrb[0].mxu0
      %2435 = vmatprep.mubr.f32.mxu0 0.0
      %2436 = vmatmul.mubr.f32.gmra.mrb[0].mxu0 %v2265
      %v2437 = vpop.f32.mrb[0].mxu0
      %v2438 = vadd.f32 0.0, %v2437
      %v2439 = vpop.f32.mrb[0].mxu0
      %2440 = vmatprep.mubr.f32.mxu0 0.0
      %2441 = vmatmul.mubr.f32.gmra.mrb[0].mxu0 %v2268
      %v2442 = vpop.f32.mrb[0].mxu0
      %v2443 = vadd.f32 0.0, %v2442
      %v2444 = vpop.f32.mrb[0].mxu0
      %2445 = vmatprep.mubr.f32.mxu0 0.0
      %2446 = vmatmul.mubr.f32.gmra.mrb[0].mxu0 %v2271
      %v2447 = vpop.f32.mrb[0].mxu0
      %v2448 = vadd.f32 0.0, %v2447
      %v2449 = vpop.f32.mrb[0].mxu0
      %2450 = vmatprep.mubr.f32.mxu0 0.0
      %2451 = vmatmul.mubr.f32.gmra.mrb[0].mxu0 %v2274
      %v2452 = vpop.f32.mrb[0].mxu0
      %v2453 = vadd.f32 0.0, %v2452
      %v2454 = vpop.f32.mrb[0].mxu0
      %2455 = vmatprep.mubr.f32.mxu0 0.0
      %2456 = vmatmul.mubr.f32.gmra.mrb[0].mxu0 %v2277
      %v2457 = vpop.f32.mrb[0].mxu0
      %v2458 = vadd.f32 0.0, %v2457
      %v2459 = vpop.f32.mrb[0].mxu0
      %2460 = vmatprep.mubr.f32.mxu0 0.0
      %2461 = vmatmul.mubr.f32.gmra.mrb[0].mxu0 %v2280
      %v2462 = vpop.f32.mrb[0].mxu0
      %v2463 = vadd.f32 0.0, %v2462
      %v2464 = vpop.f32.mrb[0].mxu0
      %2465 = vmatprep.mubr.f32.mxu0 0.0
      %2466 = vmatmul.mubr.f32.gmra.mrb[0].mxu0 %v2283
      %v2467 = vpop.f32.mrb[0].mxu0
      %v2468 = vadd.f32 0.0, %v2467
      %v2469 = vpop.f32.mrb[0].mxu0
      %2470 = vmatprep.mubr.f32.mxu0 0.0
      %2471 = vmatmul.mubr.f32.gmra.mrb[0].mxu0 %v2286
      %v2472 = vpop.f32.mrb[0].mxu0
      %v2473 = vadd.f32 0.0, %v2472
      %v2474 = vpop.f32.mrb[0].mxu0
      %2475 = vmatprep.mubr.f32.mxu0 0.0
      %2476 = vmatmul.mubr.f32.gmra.mrb[0].mxu0 %v2289
      %v2477 = vpop.f32.mrb[0].mxu0
      %v2478 = vadd.f32 0.0, %v2477
      %v2479 = vpop.f32.mrb[0].mxu0
      %2480 = vmatprep.mubr.f32.mxu0 0.0
      %2481 = vmatmul.mubr.f32.gmra.mrb[0].mxu0 %v2292
      %v2482 = vpop.f32.mrb[0].mxu0
      %v2483 = vadd.f32 0.0, %v2482
      %v2484 = vpop.f32.mrb[0].mxu0
      %2485 = vmatprep.mubr.f32.mxu0 0.0
      %2486 = vmatmul.mubr.f32.gmra.mrb[0].mxu0 %v2295
      %v2487 = vpop.f32.mrb[0].mxu0
      %v2488 = vadd.f32 0.0, %v2487
      %v2489 = vpop.f32.mrb[0].mxu0
      %2490 = vmatprep.mubr.f32.mxu0 0.0
      %2491 = vmatmul.mubr.f32.gmra.mrb[0].mxu0 %v2298
      %v2492 = vpop.f32.mrb[0].mxu0
      %v2493 = vadd.f32 0.0, %v2492
      %v2494 = vpop.f32.mrb[0].mxu0
      %2495 = vmatprep.mubr.f32.mxu0 0.0
      %2496 = vmatmul.mubr.f32.gmra.mrb[0].mxu0 %v2301
      %v2497 = vpop.f32.mrb[0].mxu0
      %v2498 = vadd.f32 0.0, %v2497
      %v2499 = vpop.f32.mrb[0].mxu0
      %2500 = vmatprep.mubr.f32.mxu0 0.0
      %2501 = vmatmul.mubr.f32.gmra.mrb[0].mxu0 %v2304
      %v2502 = vpop.f32.mrb[0].mxu0
      %v2503 = vadd.f32 0.0, %v2502
      %v2504 = vpop.f32.mrb[0].mxu0
      %2505 = vmatprep.mubr.f32.mxu0 0.0
      %2506 = vmatmul.mubr.f32.gmra.mrb[0].mxu0 %v2307
      %v2507 = vpop.f32.mrb[0].mxu0
      %v2508 = vadd.f32 0.0, %v2507
      %v2509 = vpop.f32.mrb[0].mxu0
      %2510 = vmatprep.mubr.f32.mxu0 0.0
      %2511 = vmatmul.mubr.f32.gmra.mrb[0].mxu0 %v2310
      %v2512 = vpop.f32.mrb[0].mxu0
      %v2513 = vadd.f32 0.0, %v2512
      %v2514 = vpop.f32.mrb[0].mxu0
      %2515 = vmatprep.mubr.f32.mxu0 0.0
      %2516 = vmatmul.mubr.f32.gmra.mrb[0].mxu0 %v2313
      %v2517 = vpop.f32.mrb[0].mxu0
      %v2518 = vadd.f32 0.0, %v2517
      %v2519 = vpop.f32.mrb[0].mxu0
      %2520 = vmatprep.mubr.f32.mxu0 0.0
      %2521 = vmatmul.mubr.f32.gmra.mrb[0].mxu0 %v2316
      %v2522 = vpop.f32.mrb[0].mxu0
      %v2523 = vadd.f32 0.0, %v2522
      %v2524 = vpop.f32.mrb[0].mxu0
      %2525 = vmatprep.mubr.f32.mxu0 0.0
      %2526 = vmatmul.mubr.f32.gmra.mrb[0].mxu0 %v2319
      %v2527 = vpop.f32.mrb[0].mxu0
      %v2528 = vadd.f32 0.0, %v2527
      %v2529 = vpop.f32.mrb[0].mxu0
      %2530 = vmatprep.mubr.f32.mxu0 0.0
      %2531 = vmatmul.mubr.f32.gmra.mrb[0].mxu0 %v2322
      %v2532 = vpop.f32.mrb[0].mxu0
      %v2533 = vadd.f32 0.0, %v2532
      %v2534 = vpop.f32.mrb[0].mxu0
      %2535 = vmatprep.mubr.f32.mxu0 0.0
      %2536 = vmatmul.mubr.f32.gmra.mrb[0].mxu0 %v2325
      %v2537 = vpop.f32.mrb[0].mxu0
      %v2538 = vadd.f32 0.0, %v2537
      %v2539 = vpop.f32.mrb[0].mxu0
      %2540 = vmatprep.mubr.f32.mxu0 0.0
      %2541 = vmatmul.mubr.f32.gmra.mrb[0].mxu0 %v2328
      %v2542 = vpop.f32.mrb[0].mxu0
      %v2543 = vadd.f32 0.0, %v2542
      %v2544 = vpop.f32.mrb[0].mxu0
      %2545 = vmatprep.mubr.f32.mxu0 0.0
      %2546 = vmatmul.mubr.f32.gmra.mrb[0].mxu0 %v2331
      %v2547 = vpop.f32.mrb[0].mxu0
      %v2548 = vadd.f32 0.0, %v2547
      %v2549 = vpop.f32.mrb[0].mxu0
      %2550 = vmatprep.mubr.f32.mxu0 0.0
      %2551 = vmatmul.mubr.f32.gmra.mrb[0].mxu0 %v2334
      %v2552 = vpop.f32.mrb[0].mxu0
      %v2553 = vadd.f32 0.0, %v2552
      %v2554 = vpop.f32.mrb[0].mxu0
      %2555 = vmatprep.mubr.f32.mxu0 0.0
      %2556 = vmatmul.mubr.f32.gmra.mrb[0].mxu0 %v2337
      %v2557 = vpop.f32.mrb[0].mxu0
      %v2558 = vadd.f32 0.0, %v2557
      %v2559 = vpop.f32.mrb[0].mxu0
      %2560 = vmatprep.mubr.f32.mxu0 0.0
      %2561 = vmatmul.mubr.f32.gmra.mrb[0].mxu0 %v2340
      %v2562 = vpop.f32.mrb[0].mxu0
      %v2563 = vadd.f32 0.0, %v2562
      %v2564 = vpop.f32.mrb[0].mxu0
      %2565 = vmatprep.mubr.f32.mxu0 0.0
      %2566 = vmatmul.mubr.f32.gmra.mrb[0].mxu0 %v2343
      %v2567 = vpop.f32.mrb[0].mxu0
      %v2568 = vadd.f32 0.0, %v2567
      %v2569 = vpop.f32.mrb[0].mxu0
      %2570 = vmatprep.mubr.f32.mxu0 0.0
      %2571 = vmatmul.mubr.f32.gmra.mrb[0].mxu0 %v2346
      %v2572 = vpop.f32.mrb[0].mxu0
      %v2573 = vadd.f32 0.0, %v2572
      %v2574 = vpop.f32.mrb[0].mxu0
      %2575 = vdwg.mxu0
      %v2576 = vadd.f32 %v2186, %v2418
      %v2577 = vadd.f32 %v2187, %v2423
      %v2578 = vadd.f32 %v2188, %v2428
      %v2579 = vadd.f32 %v2189, %v2433
      %v2580 = vadd.f32 %v2190, %v2438
      %v2581 = vadd.f32 %v2191, %v2443
      %v2582 = vadd.f32 %v2192, %v2448
      %v2583 = vadd.f32 %v2193, %v2453
      %v2584 = vadd.f32 %v2194, %v2458
      %v2585 = vadd.f32 %v2195, %v2463
      %v2586 = vadd.f32 %v2196, %v2468
      %v2587 = vadd.f32 %v2197, %v2473
      %v2588 = vadd.f32 %v2198, %v2478
      %v2589 = vadd.f32 %v2199, %v2483
      %v2590 = vadd.f32 %v2200, %v2488
      %v2591 = vadd.f32 %v2201, %v2493
      %v2592 = vadd.f32 %v2202, %v2498
      %v2593 = vadd.f32 %v2203, %v2503
      %v2594 = vadd.f32 %v2204, %v2508
      %v2595 = vadd.f32 %v2205, %v2513
      %v2596 = vadd.f32 %v2206, %v2518
      %v2597 = vadd.f32 %v2207, %v2523
      %v2598 = vadd.f32 %v2208, %v2528
      %v2599 = vadd.f32 %v2209, %v2533
      %v2600 = vadd.f32 %v2210, %v2538
      %v2601 = vadd.f32 %v2211, %v2543
      %v2602 = vadd.f32 %v2212, %v2548
      %v2603 = vadd.f32 %v2213, %v2553
      %v2604 = vadd.f32 %v2214, %v2558
      %v2605 = vadd.f32 %v2215, %v2563
      %v2606 = vadd.f32 %v2216, %v2568
      %v2607 = vadd.f32 %v2217, %v2573
      %s2608 = scalar_lea.vmem [#allocation2], 64
      %v2609 = vld [vmem:[%s2608 + $0x7] sm:$0xff]
      %v2610 = vld [vmem:[%s2608 + $0xf] sm:$0xff]
      %v2611 = vld [vmem:[%s2608 + $0x27] sm:$0xff]
      %v2612 = vld [vmem:[%s2608 + $0x2f] sm:$0xff]
      %v2613 = vld [vmem:[%s2608 + $0x47] sm:$0xff]
      %v2614 = vld [vmem:[%s2608 + $0x4f] sm:$0xff]
      %v2615 = vld [vmem:[%s2608 + $0x67] sm:$0xff]
      %v2616 = vld [vmem:[%s2608 + $0x6f] sm:$0xff]
      %v2617 = vld [vmem:[%s2608 + $0x87] sm:$0xff]
      %v2618 = vld [vmem:[%s2608 + $0x8f] sm:$0xff]
      %v2619 = vld [vmem:[%s2608 + $0xa7] sm:$0xff]
      %v2620 = vld [vmem:[%s2608 + $0xaf] sm:$0xff]
      %v2621 = vld [vmem:[%s2608 + $0xc7] sm:$0xff]
      %v2622 = vld [vmem:[%s2608 + $0xcf] sm:$0xff]
      %v2623 = vld [vmem:[%s2608 + $0xe7] sm:$0xff]
      %v2624 = vld [vmem:[%s2608 + $0xef] sm:$0xff]
      %v2625 = vld [vmem:[%s2608 + $0x107] sm:$0xff]
      %v2626 = vld [vmem:[%s2608 + $0x10f] sm:$0xff]
      %v2627 = vld [vmem:[%s2608 + $0x127] sm:$0xff]
      %v2628 = vld [vmem:[%s2608 + $0x12f] sm:$0xff]
      %v2629 = vld [vmem:[%s2608 + $0x147] sm:$0xff]
      %v2630 = vld [vmem:[%s2608 + $0x14f] sm:$0xff]
      %v2631 = vld [vmem:[%s2608 + $0x167] sm:$0xff]
      %v2632 = vld [vmem:[%s2608 + $0x16f] sm:$0xff]
      %v2633 = vld [vmem:[%s2608 + $0x187] sm:$0xff]
      %v2634 = vld [vmem:[%s2608 + $0x18f] sm:$0xff]
      %v2635 = vld [vmem:[%s2608 + $0x1a7] sm:$0xff]
      %v2636 = vld [vmem:[%s2608 + $0x1af] sm:$0xff]
      %v2637 = vld [vmem:[%s2608 + $0x1c7] sm:$0xff]
      %v2638 = vld [vmem:[%s2608 + $0x1cf] sm:$0xff]
      %v2639 = vld [vmem:[%s2608 + $0x1e7] sm:$0xff]
      %v2640 = vld [vmem:[%s2608 + $0x1ef] sm:$0xff]
      %s2641 = scalar_lea.vmem %s1, 24
      %v2642 = vld [vmem:[%s2641] sm:$0xf]
      %v2644 = vsel %vm257, %v2609, 0
      %v2647 = vsel %vm257, %v2610, 0
      %v2650 = vsel %vm257, %v2611, 0
      %v2653 = vsel %vm257, %v2612, 0
      %v2656 = vsel %vm257, %v2613, 0
      %v2659 = vsel %vm257, %v2614, 0
      %v2662 = vsel %vm257, %v2615, 0
      %v2665 = vsel %vm257, %v2616, 0
      %v2668 = vsel %vm257, %v2617, 0
      %v2671 = vsel %vm257, %v2618, 0
      %v2674 = vsel %vm257, %v2619, 0
      %v2677 = vsel %vm257, %v2620, 0
      %v2680 = vsel %vm257, %v2621, 0
      %v2683 = vsel %vm257, %v2622, 0
      %v2686 = vsel %vm257, %v2623, 0
      %v2689 = vsel %vm257, %v2624, 0
      %v2692 = vsel %vm257, %v2625, 0
      %v2695 = vsel %vm257, %v2626, 0
      %v2698 = vsel %vm257, %v2627, 0
      %v2701 = vsel %vm257, %v2628, 0
      %v2704 = vsel %vm257, %v2629, 0
      %v2707 = vsel %vm257, %v2630, 0
      %v2710 = vsel %vm257, %v2631, 0
      %v2713 = vsel %vm257, %v2632, 0
      %v2716 = vsel %vm257, %v2633, 0
      %v2719 = vsel %vm257, %v2634, 0
      %v2722 = vsel %vm257, %v2635, 0
      %v2725 = vsel %vm257, %v2636, 0
      %v2728 = vsel %vm257, %v2637, 0
      %v2731 = vsel %vm257, %v2638, 0
      %v2734 = vsel %vm257, %v2639, 0
      %v2737 = vsel %vm257, %v2640, 0
      %v2740 = vsel %vm495, %v2642, 0
      %2742 = vmatprep.subr.mxu0 0.0
      %2743 = vmatpush1.msra.mxu0 %v2740
      %2744 = vmatprep.subr.mxu0 0.0
      %2745 = vmatpush1.msra.mxu0 0.0
      %2746 = vmatprep.subr.mxu0 0.0
      %2747 = vmatpush1.msra.mxu0 0.0
      %2748 = vmatprep.subr.mxu0 0.0
      %2749 = vmatpush1.msra.mxu0 0.0
      %2750 = vmatprep.subr.mxu0 0.0
      %2751 = vmatpush1.msra.mxu0 0.0
      %2752 = vmatprep.subr.mxu0 0.0
      %2753 = vmatpush1.msra.mxu0 0.0
      %2754 = vmatprep.subr.mxu0 0.0
      %2755 = vmatpush1.msra.mxu0 0.0
      %2756 = vmatprep.subr.mxu0 0.0
      %2757 = vmatpush1.msra.mxu0 0.0
      %2758 = vmatprep.subr.mxu0 0.0
      %2759 = vmatpush1.msra.mxu0 0.0
      %2760 = vmatprep.subr.mxu0 0.0
      %2761 = vmatpush1.msra.mxu0 0.0
      %2762 = vmatprep.subr.mxu0 0.0
      %2763 = vmatpush1.msra.mxu0 0.0
      %2764 = vmatprep.subr.mxu0 0.0
      %2765 = vmatpush1.msra.mxu0 0.0
      %2766 = vmatprep.subr.mxu0 0.0
      %2767 = vmatpush1.msra.mxu0 0.0
      %2768 = vmatprep.subr.mxu0 0.0
      %2769 = vmatpush1.msra.mxu0 0.0
      %2770 = vmatprep.subr.mxu0 0.0
      %2771 = vmatpush1.msra.mxu0 0.0
      %2772 = vmatprep.subr.mxu0 0.0
      %2773 = vmatpush1.msra.mxu0 0.0
      %2774 = vmatprep.subr.mxu0 0.0
      %2775 = vmatpush1.msra.mxu0 0.0
      %2776 = vmatprep.subr.mxu0 0.0
      %2777 = vmatpush1.msra.mxu0 0.0
      %2778 = vmatprep.subr.mxu0 0.0
      %2779 = vmatpush1.msra.mxu0 0.0
      %2780 = vmatprep.subr.mxu0 0.0
      %2781 = vmatpush1.msra.mxu0 0.0
      %2782 = vmatprep.subr.mxu0 0.0
      %2783 = vmatpush1.msra.mxu0 0.0
      %2784 = vmatprep.subr.mxu0 0.0
      %2785 = vmatpush1.msra.mxu0 0.0
      %2786 = vmatprep.subr.mxu0 0.0
      %2787 = vmatpush1.msra.mxu0 0.0
      %2788 = vmatprep.subr.mxu0 0.0
      %2789 = vmatpush1.msra.mxu0 0.0
      %2790 = vmatprep.subr.mxu0 0.0
      %2791 = vmatpush1.msra.mxu0 0.0
      %2792 = vmatprep.subr.mxu0 0.0
      %2793 = vmatpush1.msra.mxu0 0.0
      %2794 = vmatprep.subr.mxu0 0.0
      %2795 = vmatpush1.msra.mxu0 0.0
      %2796 = vmatprep.subr.mxu0 0.0
      %2797 = vmatpush1.msra.mxu0 0.0
      %2798 = vmatprep.subr.mxu0 0.0
      %2799 = vmatpush1.msra.mxu0 0.0
      %2800 = vmatprep.subr.mxu0 0.0
      %2801 = vmatpush1.msra.mxu0 0.0
      %2802 = vmatprep.subr.mxu0 0.0
      %2803 = vmatpush1.msra.mxu0 0.0
      %2804 = vmatprep.subr.mxu0 0.0
      %2805 = vmatpush1.msra.mxu0 0.0
      %2806 = vmatprep.mubr.f32.mxu0 0.0
      %2807 = vmatmul.mubr.f32.gmra.mrb[0].mxu0 %v2644
      %v2808 = vpop.f32.mrb[0].mxu0
      %v2809 = vadd.f32 0.0, %v2808
      %v2810 = vpop.f32.mrb[0].mxu0
      %2811 = vmatprep.mubr.f32.mxu0 0.0
      %2812 = vmatmul.mubr.f32.gmra.mrb[0].mxu0 %v2647
      %v2813 = vpop.f32.mrb[0].mxu0
      %v2814 = vadd.f32 0.0, %v2813
      %v2815 = vpop.f32.mrb[0].mxu0
      %2816 = vmatprep.mubr.f32.mxu0 0.0
      %2817 = vmatmul.mubr.f32.gmra.mrb[0].mxu0 %v2650
      %v2818 = vpop.f32.mrb[0].mxu0
      %v2819 = vadd.f32 0.0, %v2818
      %v2820 = vpop.f32.mrb[0].mxu0
      %2821 = vmatprep.mubr.f32.mxu0 0.0
      %2822 = vmatmul.mubr.f32.gmra.mrb[0].mxu0 %v2653
      %v2823 = vpop.f32.mrb[0].mxu0
      %v2824 = vadd.f32 0.0, %v2823
      %v2825 = vpop.f32.mrb[0].mxu0
      %2826 = vmatprep.mubr.f32.mxu0 0.0
      %2827 = vmatmul.mubr.f32.gmra.mrb[0].mxu0 %v2656
      %v2828 = vpop.f32.mrb[0].mxu0
      %v2829 = vadd.f32 0.0, %v2828
      %v2830 = vpop.f32.mrb[0].mxu0
      %2831 = vmatprep.mubr.f32.mxu0 0.0
      %2832 = vmatmul.mubr.f32.gmra.mrb[0].mxu0 %v2659
      %v2833 = vpop.f32.mrb[0].mxu0
      %v2834 = vadd.f32 0.0, %v2833
      %v2835 = vpop.f32.mrb[0].mxu0
      %2836 = vmatprep.mubr.f32.mxu0 0.0
      %2837 = vmatmul.mubr.f32.gmra.mrb[0].mxu0 %v2662
      %v2838 = vpop.f32.mrb[0].mxu0
      %v2839 = vadd.f32 0.0, %v2838
      %v2840 = vpop.f32.mrb[0].mxu0
      %2841 = vmatprep.mubr.f32.mxu0 0.0
      %2842 = vmatmul.mubr.f32.gmra.mrb[0].mxu0 %v2665
      %v2843 = vpop.f32.mrb[0].mxu0
      %v2844 = vadd.f32 0.0, %v2843
      %v2845 = vpop.f32.mrb[0].mxu0
      %2846 = vmatprep.mubr.f32.mxu0 0.0
      %2847 = vmatmul.mubr.f32.gmra.mrb[0].mxu0 %v2668
      %v2848 = vpop.f32.mrb[0].mxu0
      %v2849 = vadd.f32 0.0, %v2848
      %v2850 = vpop.f32.mrb[0].mxu0
      %2851 = vmatprep.mubr.f32.mxu0 0.0
      %2852 = vmatmul.mubr.f32.gmra.mrb[0].mxu0 %v2671
      %v2853 = vpop.f32.mrb[0].mxu0
      %v2854 = vadd.f32 0.0, %v2853
      %v2855 = vpop.f32.mrb[0].mxu0
      %2856 = vmatprep.mubr.f32.mxu0 0.0
      %2857 = vmatmul.mubr.f32.gmra.mrb[0].mxu0 %v2674
      %v2858 = vpop.f32.mrb[0].mxu0
      %v2859 = vadd.f32 0.0, %v2858
      %v2860 = vpop.f32.mrb[0].mxu0
      %2861 = vmatprep.mubr.f32.mxu0 0.0
      %2862 = vmatmul.mubr.f32.gmra.mrb[0].mxu0 %v2677
      %v2863 = vpop.f32.mrb[0].mxu0
      %v2864 = vadd.f32 0.0, %v2863
      %v2865 = vpop.f32.mrb[0].mxu0
      %2866 = vmatprep.mubr.f32.mxu0 0.0
      %2867 = vmatmul.mubr.f32.gmra.mrb[0].mxu0 %v2680
      %v2868 = vpop.f32.mrb[0].mxu0
      %v2869 = vadd.f32 0.0, %v2868
      %v2870 = vpop.f32.mrb[0].mxu0
      %2871 = vmatprep.mubr.f32.mxu0 0.0
      %2872 = vmatmul.mubr.f32.gmra.mrb[0].mxu0 %v2683
      %v2873 = vpop.f32.mrb[0].mxu0
      %v2874 = vadd.f32 0.0, %v2873
      %v2875 = vpop.f32.mrb[0].mxu0
      %2876 = vmatprep.mubr.f32.mxu0 0.0
      %2877 = vmatmul.mubr.f32.gmra.mrb[0].mxu0 %v2686
      %v2878 = vpop.f32.mrb[0].mxu0
      %v2879 = vadd.f32 0.0, %v2878
      %v2880 = vpop.f32.mrb[0].mxu0
      %2881 = vmatprep.mubr.f32.mxu0 0.0
      %2882 = vmatmul.mubr.f32.gmra.mrb[0].mxu0 %v2689
      %v2883 = vpop.f32.mrb[0].mxu0
      %v2884 = vadd.f32 0.0, %v2883
      %v2885 = vpop.f32.mrb[0].mxu0
      %2886 = vmatprep.mubr.f32.mxu0 0.0
      %2887 = vmatmul.mubr.f32.gmra.mrb[0].mxu0 %v2692
      %v2888 = vpop.f32.mrb[0].mxu0
      %v2889 = vadd.f32 0.0, %v2888
      %v2890 = vpop.f32.mrb[0].mxu0
      %2891 = vmatprep.mubr.f32.mxu0 0.0
      %2892 = vmatmul.mubr.f32.gmra.mrb[0].mxu0 %v2695
      %v2893 = vpop.f32.mrb[0].mxu0
      %v2894 = vadd.f32 0.0, %v2893
      %v2895 = vpop.f32.mrb[0].mxu0
      %2896 = vmatprep.mubr.f32.mxu0 0.0
      %2897 = vmatmul.mubr.f32.gmra.mrb[0].mxu0 %v2698
      %v2898 = vpop.f32.mrb[0].mxu0
      %v2899 = vadd.f32 0.0, %v2898
      %v2900 = vpop.f32.mrb[0].mxu0
      %2901 = vmatprep.mubr.f32.mxu0 0.0
      %2902 = vmatmul.mubr.f32.gmra.mrb[0].mxu0 %v2701
      %v2903 = vpop.f32.mrb[0].mxu0
      %v2904 = vadd.f32 0.0, %v2903
      %v2905 = vpop.f32.mrb[0].mxu0
      %2906 = vmatprep.mubr.f32.mxu0 0.0
      %2907 = vmatmul.mubr.f32.gmra.mrb[0].mxu0 %v2704
      %v2908 = vpop.f32.mrb[0].mxu0
      %v2909 = vadd.f32 0.0, %v2908
      %v2910 = vpop.f32.mrb[0].mxu0
      %2911 = vmatprep.mubr.f32.mxu0 0.0
      %2912 = vmatmul.mubr.f32.gmra.mrb[0].mxu0 %v2707
      %v2913 = vpop.f32.mrb[0].mxu0
      %v2914 = vadd.f32 0.0, %v2913
      %v2915 = vpop.f32.mrb[0].mxu0
      %2916 = vmatprep.mubr.f32.mxu0 0.0
      %2917 = vmatmul.mubr.f32.gmra.mrb[0].mxu0 %v2710
      %v2918 = vpop.f32.mrb[0].mxu0
      %v2919 = vadd.f32 0.0, %v2918
      %v2920 = vpop.f32.mrb[0].mxu0
      %2921 = vmatprep.mubr.f32.mxu0 0.0
      %2922 = vmatmul.mubr.f32.gmra.mrb[0].mxu0 %v2713
      %v2923 = vpop.f32.mrb[0].mxu0
      %v2924 = vadd.f32 0.0, %v2923
      %v2925 = vpop.f32.mrb[0].mxu0
      %2926 = vmatprep.mubr.f32.mxu0 0.0
      %2927 = vmatmul.mubr.f32.gmra.mrb[0].mxu0 %v2716
      %v2928 = vpop.f32.mrb[0].mxu0
      %v2929 = vadd.f32 0.0, %v2928
      %v2930 = vpop.f32.mrb[0].mxu0
      %2931 = vmatprep.mubr.f32.mxu0 0.0
      %2932 = vmatmul.mubr.f32.gmra.mrb[0].mxu0 %v2719
      %v2933 = vpop.f32.mrb[0].mxu0
      %v2934 = vadd.f32 0.0, %v2933
      %v2935 = vpop.f32.mrb[0].mxu0
      %2936 = vmatprep.mubr.f32.mxu0 0.0
      %2937 = vmatmul.mubr.f32.gmra.mrb[0].mxu0 %v2722
      %v2938 = vpop.f32.mrb[0].mxu0
      %v2939 = vadd.f32 0.0, %v2938
      %v2940 = vpop.f32.mrb[0].mxu0
      %2941 = vmatprep.mubr.f32.mxu0 0.0
      %2942 = vmatmul.mubr.f32.gmra.mrb[0].mxu0 %v2725
      %v2943 = vpop.f32.mrb[0].mxu0
      %v2944 = vadd.f32 0.0, %v2943
      %v2945 = vpop.f32.mrb[0].mxu0
      %2946 = vmatprep.mubr.f32.mxu0 0.0
      %2947 = vmatmul.mubr.f32.gmra.mrb[0].mxu0 %v2728
      %v2948 = vpop.f32.mrb[0].mxu0
      %v2949 = vadd.f32 0.0, %v2948
      %v2950 = vpop.f32.mrb[0].mxu0
      %2951 = vmatprep.mubr.f32.mxu0 0.0
      %2952 = vmatmul.mubr.f32.gmra.mrb[0].mxu0 %v2731
      %v2953 = vpop.f32.mrb[0].mxu0
      %v2954 = vadd.f32 0.0, %v2953
      %v2955 = vpop.f32.mrb[0].mxu0
      %2956 = vmatprep.mubr.f32.mxu0 0.0
      %2957 = vmatmul.mubr.f32.gmra.mrb[0].mxu0 %v2734
      %v2958 = vpop.f32.mrb[0].mxu0
      %v2959 = vadd.f32 0.0, %v2958
      %v2960 = vpop.f32.mrb[0].mxu0
      %2961 = vmatprep.mubr.f32.mxu0 0.0
      %2962 = vmatmul.mubr.f32.gmra.mrb[0].mxu0 %v2737
      %v2963 = vpop.f32.mrb[0].mxu0
      %v2964 = vadd.f32 0.0, %v2963
      %v2965 = vpop.f32.mrb[0].mxu0
      %2966 = vdwg.mxu0
      %v2967 = vadd.f32 %v2576, %v2809
      %v2968 = vadd.f32 %v2577, %v2814
      %v2969 = vadd.f32 %v2578, %v2819
      %v2970 = vadd.f32 %v2579, %v2824
      %v2971 = vadd.f32 %v2580, %v2829
      %v2972 = vadd.f32 %v2581, %v2834
      %v2973 = vadd.f32 %v2582, %v2839
      %v2974 = vadd.f32 %v2583, %v2844
      %v2975 = vadd.f32 %v2584, %v2849
      %v2976 = vadd.f32 %v2585, %v2854
      %v2977 = vadd.f32 %v2586, %v2859
      %v2978 = vadd.f32 %v2587, %v2864
      %v2979 = vadd.f32 %v2588, %v2869
      %v2980 = vadd.f32 %v2589, %v2874
      %v2981 = vadd.f32 %v2590, %v2879
      %v2982 = vadd.f32 %v2591, %v2884
      %v2983 = vadd.f32 %v2592, %v2889
      %v2984 = vadd.f32 %v2593, %v2894
      %v2985 = vadd.f32 %v2594, %v2899
      %v2986 = vadd.f32 %v2595, %v2904
      %v2987 = vadd.f32 %v2596, %v2909
      %v2988 = vadd.f32 %v2597, %v2914
      %v2989 = vadd.f32 %v2598, %v2919
      %v2990 = vadd.f32 %v2599, %v2924
      %v2991 = vadd.f32 %v2600, %v2929
      %v2992 = vadd.f32 %v2601, %v2934
      %v2993 = vadd.f32 %v2602, %v2939
      %v2994 = vadd.f32 %v2603, %v2944
      %v2995 = vadd.f32 %v2604, %v2949
      %v2996 = vadd.f32 %v2605, %v2954
      %v2997 = vadd.f32 %v2606, %v2959
      %v2998 = vadd.f32 %v2607, %v2964
      %v2999 = vld [vmem:[%s2608 + $0x8] sm:$0xff]
      %v3000 = vld [vmem:[%s2608 + $0x10] sm:$0xff]
      %v3001 = vld [vmem:[%s2608 + $0x28] sm:$0xff]
      %v3002 = vld [vmem:[%s2608 + $0x30] sm:$0xff]
      %v3003 = vld [vmem:[%s2608 + $0x48] sm:$0xff]
      %v3004 = vld [vmem:[%s2608 + $0x50] sm:$0xff]
      %v3005 = vld [vmem:[%s2608 + $0x68] sm:$0xff]
      %v3006 = vld [vmem:[%s2608 + $0x70] sm:$0xff]
      %v3007 = vld [vmem:[%s2608 + $0x88] sm:$0xff]
      %v3008 = vld [vmem:[%s2608 + $0x90] sm:$0xff]
      %v3009 = vld [vmem:[%s2608 + $0xa8] sm:$0xff]
      %v3010 = vld [vmem:[%s2608 + $0xb0] sm:$0xff]
      %v3011 = vld [vmem:[%s2608 + $0xc8] sm:$0xff]
      %v3012 = vld [vmem:[%s2608 + $0xd0] sm:$0xff]
      %v3013 = vld [vmem:[%s2608 + $0xe8] sm:$0xff]
      %v3014 = vld [vmem:[%s2608 + $0xf0] sm:$0xff]
      %v3015 = vld [vmem:[%s2608 + $0x108] sm:$0xff]
      %v3016 = vld [vmem:[%s2608 + $0x110] sm:$0xff]
      %v3017 = vld [vmem:[%s2608 + $0x128] sm:$0xff]
      %v3018 = vld [vmem:[%s2608 + $0x130] sm:$0xff]
      %v3019 = vld [vmem:[%s2608 + $0x148] sm:$0xff]
      %v3020 = vld [vmem:[%s2608 + $0x150] sm:$0xff]
      %v3021 = vld [vmem:[%s2608 + $0x168] sm:$0xff]
      %v3022 = vld [vmem:[%s2608 + $0x170] sm:$0xff]
      %v3023 = vld [vmem:[%s2608 + $0x188] sm:$0xff]
      %v3024 = vld [vmem:[%s2608 + $0x190] sm:$0xff]
      %v3025 = vld [vmem:[%s2608 + $0x1a8] sm:$0xff]
      %v3026 = vld [vmem:[%s2608 + $0x1b0] sm:$0xff]
      %v3027 = vld [vmem:[%s2608 + $0x1c8] sm:$0xff]
      %v3028 = vld [vmem:[%s2608 + $0x1d0] sm:$0xff]
      %v3029 = vld [vmem:[%s2608 + $0x1e8] sm:$0xff]
      %v3030 = vld [vmem:[%s2608 + $0x1f0] sm:$0xff]
      %s3031 = scalar_lea.vmem %s1, 28
      %v3032 = vld [vmem:[%s3031] sm:$0xf]
      %v3034 = vsel %vm257, %v2999, 0
      %v3037 = vsel %vm257, %v3000, 0
      %v3040 = vsel %vm257, %v3001, 0
      %v3043 = vsel %vm257, %v3002, 0
      %v3046 = vsel %vm257, %v3003, 0
      %v3049 = vsel %vm257, %v3004, 0
      %v3052 = vsel %vm257, %v3005, 0
      %v3055 = vsel %vm257, %v3006, 0
      %v3058 = vsel %vm257, %v3007, 0
      %v3061 = vsel %vm257, %v3008, 0
      %v3064 = vsel %vm257, %v3009, 0
      %v3067 = vsel %vm257, %v3010, 0
      %v3070 = vsel %vm257, %v3011, 0
      %v3073 = vsel %vm257, %v3012, 0
      %v3076 = vsel %vm257, %v3013, 0
      %v3079 = vsel %vm257, %v3014, 0
      %v3082 = vsel %vm257, %v3015, 0
      %v3085 = vsel %vm257, %v3016, 0
      %v3088 = vsel %vm257, %v3017, 0
      %v3091 = vsel %vm257, %v3018, 0
      %v3094 = vsel %vm257, %v3019, 0
      %v3097 = vsel %vm257, %v3020, 0
      %v3100 = vsel %vm257, %v3021, 0
      %v3103 = vsel %vm257, %v3022, 0
      %v3106 = vsel %vm257, %v3023, 0
      %v3109 = vsel %vm257, %v3024, 0
      %v3112 = vsel %vm257, %v3025, 0
      %v3115 = vsel %vm257, %v3026, 0
      %v3118 = vsel %vm257, %v3027, 0
      %v3121 = vsel %vm257, %v3028, 0
      %v3124 = vsel %vm257, %v3029, 0
      %v3127 = vsel %vm257, %v3030, 0
      %v3130 = vsel %vm495, %v3032, 0
      %3132 = vmatprep.subr.mxu0 0.0
      %3133 = vmatpush1.msra.mxu0 %v3130
      %3134 = vmatprep.subr.mxu0 0.0
      %3135 = vmatpush1.msra.mxu0 0.0
      %3136 = vmatprep.subr.mxu0 0.0
      %3137 = vmatpush1.msra.mxu0 0.0
      %3138 = vmatprep.subr.mxu0 0.0
      %3139 = vmatpush1.msra.mxu0 0.0
      %3140 = vmatprep.subr.mxu0 0.0
      %3141 = vmatpush1.msra.mxu0 0.0
      %3142 = vmatprep.subr.mxu0 0.0
      %3143 = vmatpush1.msra.mxu0 0.0
      %3144 = vmatprep.subr.mxu0 0.0
      %3145 = vmatpush1.msra.mxu0 0.0
      %3146 = vmatprep.subr.mxu0 0.0
      %3147 = vmatpush1.msra.mxu0 0.0
      %3148 = vmatprep.subr.mxu0 0.0
      %3149 = vmatpush1.msra.mxu0 0.0
      %3150 = vmatprep.subr.mxu0 0.0
      %3151 = vmatpush1.msra.mxu0 0.0
      %3152 = vmatprep.subr.mxu0 0.0
      %3153 = vmatpush1.msra.mxu0 0.0
      %3154 = vmatprep.subr.mxu0 0.0
      %3155 = vmatpush1.msra.mxu0 0.0
      %3156 = vmatprep.subr.mxu0 0.0
      %3157 = vmatpush1.msra.mxu0 0.0
      %3158 = vmatprep.subr.mxu0 0.0
      %3159 = vmatpush1.msra.mxu0 0.0
      %3160 = vmatprep.subr.mxu0 0.0
      %3161 = vmatpush1.msra.mxu0 0.0
      %3162 = vmatprep.subr.mxu0 0.0
      %3163 = vmatpush1.msra.mxu0 0.0
      %3164 = vmatprep.subr.mxu0 0.0
      %3165 = vmatpush1.msra.mxu0 0.0
      %3166 = vmatprep.subr.mxu0 0.0
      %3167 = vmatpush1.msra.mxu0 0.0
      %3168 = vmatprep.subr.mxu0 0.0
      %3169 = vmatpush1.msra.mxu0 0.0
      %3170 = vmatprep.subr.mxu0 0.0
      %3171 = vmatpush1.msra.mxu0 0.0
      %3172 = vmatprep.subr.mxu0 0.0
      %3173 = vmatpush1.msra.mxu0 0.0
      %3174 = vmatprep.subr.mxu0 0.0
      %3175 = vmatpush1.msra.mxu0 0.0
      %3176 = vmatprep.subr.mxu0 0.0
      %3177 = vmatpush1.msra.mxu0 0.0
      %3178 = vmatprep.subr.mxu0 0.0
      %3179 = vmatpush1.msra.mxu0 0.0
      %3180 = vmatprep.subr.mxu0 0.0
      %3181 = vmatpush1.msra.mxu0 0.0
      %3182 = vmatprep.subr.mxu0 0.0
      %3183 = vmatpush1.msra.mxu0 0.0
      %3184 = vmatprep.subr.mxu0 0.0
      %3185 = vmatpush1.msra.mxu0 0.0
      %3186 = vmatprep.subr.mxu0 0.0
      %3187 = vmatpush1.msra.mxu0 0.0
      %3188 = vmatprep.subr.mxu0 0.0
      %3189 = vmatpush1.msra.mxu0 0.0
      %3190 = vmatprep.subr.mxu0 0.0
      %3191 = vmatpush1.msra.mxu0 0.0
      %3192 = vmatprep.subr.mxu0 0.0
      %3193 = vmatpush1.msra.mxu0 0.0
      %3194 = vmatprep.subr.mxu0 0.0
      %3195 = vmatpush1.msra.mxu0 0.0
      %3196 = vmatprep.mubr.f32.mxu0 0.0
      %3197 = vmatmul.mubr.f32.gmra.mrb[0].mxu0 %v3034
      %v3198 = vpop.f32.mrb[0].mxu0
      %v3199 = vadd.f32 0.0, %v3198
      %v3200 = vpop.f32.mrb[0].mxu0
      %3201 = vmatprep.mubr.f32.mxu0 0.0
      %3202 = vmatmul.mubr.f32.gmra.mrb[0].mxu0 %v3037
      %v3203 = vpop.f32.mrb[0].mxu0
      %v3204 = vadd.f32 0.0, %v3203
      %v3205 = vpop.f32.mrb[0].mxu0
      %3206 = vmatprep.mubr.f32.mxu0 0.0
      %3207 = vmatmul.mubr.f32.gmra.mrb[0].mxu0 %v3040
      %v3208 = vpop.f32.mrb[0].mxu0
      %v3209 = vadd.f32 0.0, %v3208
      %v3210 = vpop.f32.mrb[0].mxu0
      %3211 = vmatprep.mubr.f32.mxu0 0.0
      %3212 = vmatmul.mubr.f32.gmra.mrb[0].mxu0 %v3043
      %v3213 = vpop.f32.mrb[0].mxu0
      %v3214 = vadd.f32 0.0, %v3213
      %v3215 = vpop.f32.mrb[0].mxu0
      %3216 = vmatprep.mubr.f32.mxu0 0.0
      %3217 = vmatmul.mubr.f32.gmra.mrb[0].mxu0 %v3046
      %v3218 = vpop.f32.mrb[0].mxu0
      %v3219 = vadd.f32 0.0, %v3218
      %v3220 = vpop.f32.mrb[0].mxu0
      %3221 = vmatprep.mubr.f32.mxu0 0.0
      %3222 = vmatmul.mubr.f32.gmra.mrb[0].mxu0 %v3049
      %v3223 = vpop.f32.mrb[0].mxu0
      %v3224 = vadd.f32 0.0, %v3223
      %v3225 = vpop.f32.mrb[0].mxu0
      %3226 = vmatprep.mubr.f32.mxu0 0.0
      %3227 = vmatmul.mubr.f32.gmra.mrb[0].mxu0 %v3052
      %v3228 = vpop.f32.mrb[0].mxu0
      %v3229 = vadd.f32 0.0, %v3228
      %v3230 = vpop.f32.mrb[0].mxu0
      %3231 = vmatprep.mubr.f32.mxu0 0.0
      %3232 = vmatmul.mubr.f32.gmra.mrb[0].mxu0 %v3055
      %v3233 = vpop.f32.mrb[0].mxu0
      %v3234 = vadd.f32 0.0, %v3233
      %v3235 = vpop.f32.mrb[0].mxu0
      %3236 = vmatprep.mubr.f32.mxu0 0.0
      %3237 = vmatmul.mubr.f32.gmra.mrb[0].mxu0 %v3058
      %v3238 = vpop.f32.mrb[0].mxu0
      %v3239 = vadd.f32 0.0, %v3238
      %v3240 = vpop.f32.mrb[0].mxu0
      %3241 = vmatprep.mubr.f32.mxu0 0.0
      %3242 = vmatmul.mubr.f32.gmra.mrb[0].mxu0 %v3061
      %v3243 = vpop.f32.mrb[0].mxu0
      %v3244 = vadd.f32 0.0, %v3243
      %v3245 = vpop.f32.mrb[0].mxu0
      %3246 = vmatprep.mubr.f32.mxu0 0.0
      %3247 = vmatmul.mubr.f32.gmra.mrb[0].mxu0 %v3064
      %v3248 = vpop.f32.mrb[0].mxu0
      %v3249 = vadd.f32 0.0, %v3248
      %v3250 = vpop.f32.mrb[0].mxu0
      %3251 = vmatprep.mubr.f32.mxu0 0.0
      %3252 = vmatmul.mubr.f32.gmra.mrb[0].mxu0 %v3067
      %v3253 = vpop.f32.mrb[0].mxu0
      %v3254 = vadd.f32 0.0, %v3253
      %v3255 = vpop.f32.mrb[0].mxu0
      %3256 = vmatprep.mubr.f32.mxu0 0.0
      %3257 = vmatmul.mubr.f32.gmra.mrb[0].mxu0 %v3070
      %v3258 = vpop.f32.mrb[0].mxu0
      %v3259 = vadd.f32 0.0, %v3258
      %v3260 = vpop.f32.mrb[0].mxu0
      %3261 = vmatprep.mubr.f32.mxu0 0.0
      %3262 = vmatmul.mubr.f32.gmra.mrb[0].mxu0 %v3073
      %v3263 = vpop.f32.mrb[0].mxu0
      %v3264 = vadd.f32 0.0, %v3263
      %v3265 = vpop.f32.mrb[0].mxu0
      %3266 = vmatprep.mubr.f32.mxu0 0.0
      %3267 = vmatmul.mubr.f32.gmra.mrb[0].mxu0 %v3076
      %v3268 = vpop.f32.mrb[0].mxu0
      %v3269 = vadd.f32 0.0, %v3268
      %v3270 = vpop.f32.mrb[0].mxu0
      %3271 = vmatprep.mubr.f32.mxu0 0.0
      %3272 = vmatmul.mubr.f32.gmra.mrb[0].mxu0 %v3079
      %v3273 = vpop.f32.mrb[0].mxu0
      %v3274 = vadd.f32 0.0, %v3273
      %v3275 = vpop.f32.mrb[0].mxu0
      %3276 = vmatprep.mubr.f32.mxu0 0.0
      %3277 = vmatmul.mubr.f32.gmra.mrb[0].mxu0 %v3082
      %v3278 = vpop.f32.mrb[0].mxu0
      %v3279 = vadd.f32 0.0, %v3278
      %v3280 = vpop.f32.mrb[0].mxu0
      %3281 = vmatprep.mubr.f32.mxu0 0.0
      %3282 = vmatmul.mubr.f32.gmra.mrb[0].mxu0 %v3085
      %v3283 = vpop.f32.mrb[0].mxu0
      %v3284 = vadd.f32 0.0, %v3283
      %v3285 = vpop.f32.mrb[0].mxu0
      %3286 = vmatprep.mubr.f32.mxu0 0.0
      %3287 = vmatmul.mubr.f32.gmra.mrb[0].mxu0 %v3088
      %v3288 = vpop.f32.mrb[0].mxu0
      %v3289 = vadd.f32 0.0, %v3288
      %v3290 = vpop.f32.mrb[0].mxu0
      %3291 = vmatprep.mubr.f32.mxu0 0.0
      %3292 = vmatmul.mubr.f32.gmra.mrb[0].mxu0 %v3091
      %v3293 = vpop.f32.mrb[0].mxu0
      %v3294 = vadd.f32 0.0, %v3293
      %v3295 = vpop.f32.mrb[0].mxu0
      %3296 = vmatprep.mubr.f32.mxu0 0.0
      %3297 = vmatmul.mubr.f32.gmra.mrb[0].mxu0 %v3094
      %v3298 = vpop.f32.mrb[0].mxu0
      %v3299 = vadd.f32 0.0, %v3298
      %v3300 = vpop.f32.mrb[0].mxu0
      %3301 = vmatprep.mubr.f32.mxu0 0.0
      %3302 = vmatmul.mubr.f32.gmra.mrb[0].mxu0 %v3097
      %v3303 = vpop.f32.mrb[0].mxu0
      %v3304 = vadd.f32 0.0, %v3303
      %v3305 = vpop.f32.mrb[0].mxu0
      %3306 = vmatprep.mubr.f32.mxu0 0.0
      %3307 = vmatmul.mubr.f32.gmra.mrb[0].mxu0 %v3100
      %v3308 = vpop.f32.mrb[0].mxu0
      %v3309 = vadd.f32 0.0, %v3308
      %v3310 = vpop.f32.mrb[0].mxu0
      %3311 = vmatprep.mubr.f32.mxu0 0.0
      %3312 = vmatmul.mubr.f32.gmra.mrb[0].mxu0 %v3103
      %v3313 = vpop.f32.mrb[0].mxu0
      %v3314 = vadd.f32 0.0, %v3313
      %v3315 = vpop.f32.mrb[0].mxu0
      %3316 = vmatprep.mubr.f32.mxu0 0.0
      %3317 = vmatmul.mubr.f32.gmra.mrb[0].mxu0 %v3106
      %v3318 = vpop.f32.mrb[0].mxu0
      %v3319 = vadd.f32 0.0, %v3318
      %v3320 = vpop.f32.mrb[0].mxu0
      %3321 = vmatprep.mubr.f32.mxu0 0.0
      %3322 = vmatmul.mubr.f32.gmra.mrb[0].mxu0 %v3109
      %v3323 = vpop.f32.mrb[0].mxu0
      %v3324 = vadd.f32 0.0, %v3323
      %v3325 = vpop.f32.mrb[0].mxu0
      %3326 = vmatprep.mubr.f32.mxu0 0.0
      %3327 = vmatmul.mubr.f32.gmra.mrb[0].mxu0 %v3112
      %v3328 = vpop.f32.mrb[0].mxu0
      %v3329 = vadd.f32 0.0, %v3328
      %v3330 = vpop.f32.mrb[0].mxu0
      %3331 = vmatprep.mubr.f32.mxu0 0.0
      %3332 = vmatmul.mubr.f32.gmra.mrb[0].mxu0 %v3115
      %v3333 = vpop.f32.mrb[0].mxu0
      %v3334 = vadd.f32 0.0, %v3333
      %v3335 = vpop.f32.mrb[0].mxu0
      %3336 = vmatprep.mubr.f32.mxu0 0.0
      %3337 = vmatmul.mubr.f32.gmra.mrb[0].mxu0 %v3118
      %v3338 = vpop.f32.mrb[0].mxu0
      %v3339 = vadd.f32 0.0, %v3338
      %v3340 = vpop.f32.mrb[0].mxu0
      %3341 = vmatprep.mubr.f32.mxu0 0.0
      %3342 = vmatmul.mubr.f32.gmra.mrb[0].mxu0 %v3121
      %v3343 = vpop.f32.mrb[0].mxu0
      %v3344 = vadd.f32 0.0, %v3343
      %v3345 = vpop.f32.mrb[0].mxu0
      %3346 = vmatprep.mubr.f32.mxu0 0.0
      %3347 = vmatmul.mubr.f32.gmra.mrb[0].mxu0 %v3124
      %v3348 = vpop.f32.mrb[0].mxu0
      %v3349 = vadd.f32 0.0, %v3348
      %v3350 = vpop.f32.mrb[0].mxu0
      %3351 = vmatprep.mubr.f32.mxu0 0.0
      %3352 = vmatmul.mubr.f32.gmra.mrb[0].mxu0 %v3127
      %v3353 = vpop.f32.mrb[0].mxu0
      %v3354 = vadd.f32 0.0, %v3353
      %v3355 = vpop.f32.mrb[0].mxu0
      %3356 = vdwg.mxu0
      %v3357 = vadd.f32 %v2967, %v3199
      %v3358 = vadd.f32 %v2968, %v3204
      %v3359 = vadd.f32 %v2969, %v3209
      %v3360 = vadd.f32 %v2970, %v3214
      %v3361 = vadd.f32 %v2971, %v3219
      %v3362 = vadd.f32 %v2972, %v3224
      %v3363 = vadd.f32 %v2973, %v3229
      %v3364 = vadd.f32 %v2974, %v3234
      %v3365 = vadd.f32 %v2975, %v3239
      %v3366 = vadd.f32 %v2976, %v3244
      %v3367 = vadd.f32 %v2977, %v3249
      %v3368 = vadd.f32 %v2978, %v3254
      %v3369 = vadd.f32 %v2979, %v3259
      %v3370 = vadd.f32 %v2980, %v3264
      %v3371 = vadd.f32 %v2981, %v3269
      %v3372 = vadd.f32 %v2982, %v3274
      %v3373 = vadd.f32 %v2983, %v3279
      %v3374 = vadd.f32 %v2984, %v3284
      %v3375 = vadd.f32 %v2985, %v3289
      %v3376 = vadd.f32 %v2986, %v3294
      %v3377 = vadd.f32 %v2987, %v3299
      %v3378 = vadd.f32 %v2988, %v3304
      %v3379 = vadd.f32 %v2989, %v3309
      %v3380 = vadd.f32 %v2990, %v3314
      %v3381 = vadd.f32 %v2991, %v3319
      %v3382 = vadd.f32 %v2992, %v3324
      %v3383 = vadd.f32 %v2993, %v3329
      %v3384 = vadd.f32 %v2994, %v3334
      %v3385 = vadd.f32 %v2995, %v3339
      %v3386 = vadd.f32 %v2996, %v3344
      %v3387 = vadd.f32 %v2997, %v3349
      %v3388 = vadd.f32 %v2998, %v3354
      %v3389 = vld [vmem:[%s2608 + $0x9] sm:$0xff]
      %v3390 = vld [vmem:[%s2608 + $0x11] sm:$0xff]
      %v3391 = vld [vmem:[%s2608 + $0x29] sm:$0xff]
      %v3392 = vld [vmem:[%s2608 + $0x31] sm:$0xff]
      %v3393 = vld [vmem:[%s2608 + $0x49] sm:$0xff]
      %v3394 = vld [vmem:[%s2608 + $0x51] sm:$0xff]
      %v3395 = vld [vmem:[%s2608 + $0x69] sm:$0xff]
      %v3396 = vld [vmem:[%s2608 + $0x71] sm:$0xff]
      %v3397 = vld [vmem:[%s2608 + $0x89] sm:$0xff]
      %v3398 = vld [vmem:[%s2608 + $0x91] sm:$0xff]
      %v3399 = vld [vmem:[%s2608 + $0xa9] sm:$0xff]
      %v3400 = vld [vmem:[%s2608 + $0xb1] sm:$0xff]
      %v3401 = vld [vmem:[%s2608 + $0xc9] sm:$0xff]
      %v3402 = vld [vmem:[%s2608 + $0xd1] sm:$0xff]
      %v3403 = vld [vmem:[%s2608 + $0xe9] sm:$0xff]
      %v3404 = vld [vmem:[%s2608 + $0xf1] sm:$0xff]
      %v3405 = vld [vmem:[%s2608 + $0x109] sm:$0xff]
      %v3406 = vld [vmem:[%s2608 + $0x111] sm:$0xff]
      %v3407 = vld [vmem:[%s2608 + $0x129] sm:$0xff]
      %v3408 = vld [vmem:[%s2608 + $0x131] sm:$0xff]
      %v3409 = vld [vmem:[%s2608 + $0x149] sm:$0xff]
      %v3410 = vld [vmem:[%s2608 + $0x151] sm:$0xff]
      %v3411 = vld [vmem:[%s2608 + $0x169] sm:$0xff]
      %v3412 = vld [vmem:[%s2608 + $0x171] sm:$0xff]
      %v3413 = vld [vmem:[%s2608 + $0x189] sm:$0xff]
      %v3414 = vld [vmem:[%s2608 + $0x191] sm:$0xff]
      %v3415 = vld [vmem:[%s2608 + $0x1a9] sm:$0xff]
      %v3416 = vld [vmem:[%s2608 + $0x1b1] sm:$0xff]
      %v3417 = vld [vmem:[%s2608 + $0x1c9] sm:$0xff]
      %v3418 = vld [vmem:[%s2608 + $0x1d1] sm:$0xff]
      %v3419 = vld [vmem:[%s2608 + $0x1e9] sm:$0xff]
      %v3420 = vld [vmem:[%s2608 + $0x1f1] sm:$0xff]
      %s3421 = scalar_lea.vmem %s1, 32
      %v3422 = vld [vmem:[%s3421] sm:$0xf]
      %v3424 = vsel %vm257, %v3389, 0
      %v3427 = vsel %vm257, %v3390, 0
      %v3430 = vsel %vm257, %v3391, 0
      %v3433 = vsel %vm257, %v3392, 0
      %v3436 = vsel %vm257, %v3393, 0
      %v3439 = vsel %vm257, %v3394, 0
      %v3442 = vsel %vm257, %v3395, 0
      %v3445 = vsel %vm257, %v3396, 0
      %v3448 = vsel %vm257, %v3397, 0
      %v3451 = vsel %vm257, %v3398, 0
      %v3454 = vsel %vm257, %v3399, 0
      %v3457 = vsel %vm257, %v3400, 0
      %v3460 = vsel %vm257, %v3401, 0
      %v3463 = vsel %vm257, %v3402, 0
      %v3466 = vsel %vm257, %v3403, 0
      %v3469 = vsel %vm257, %v3404, 0
      %v3472 = vsel %vm257, %v3405, 0
      %v3475 = vsel %vm257, %v3406, 0
      %v3478 = vsel %vm257, %v3407, 0
      %v3481 = vsel %vm257, %v3408, 0
      %v3484 = vsel %vm257, %v3409, 0
      %v3487 = vsel %vm257, %v3410, 0
      %v3490 = vsel %vm257, %v3411, 0
      %v3493 = vsel %vm257, %v3412, 0
      %v3496 = vsel %vm257, %v3413, 0
      %v3499 = vsel %vm257, %v3414, 0
      %v3502 = vsel %vm257, %v3415, 0
      %v3505 = vsel %vm257, %v3416, 0
      %v3508 = vsel %vm257, %v3417, 0
      %v3511 = vsel %vm257, %v3418, 0
      %v3514 = vsel %vm257, %v3419, 0
      %v3517 = vsel %vm257, %v3420, 0
      %v3520 = vsel %vm495, %v3422, 0
      %3522 = vmatprep.subr.mxu0 0.0
      %3523 = vmatpush1.msra.mxu0 %v3520
      %3524 = vmatprep.subr.mxu0 0.0
      %3525 = vmatpush1.msra.mxu0 0.0
      %3526 = vmatprep.subr.mxu0 0.0
      %3527 = vmatpush1.msra.mxu0 0.0
      %3528 = vmatprep.subr.mxu0 0.0
      %3529 = vmatpush1.msra.mxu0 0.0
      %3530 = vmatprep.subr.mxu0 0.0
      %3531 = vmatpush1.msra.mxu0 0.0
      %3532 = vmatprep.subr.mxu0 0.0
      %3533 = vmatpush1.msra.mxu0 0.0
      %3534 = vmatprep.subr.mxu0 0.0
      %3535 = vmatpush1.msra.mxu0 0.0
      %3536 = vmatprep.subr.mxu0 0.0
      %3537 = vmatpush1.msra.mxu0 0.0
      %3538 = vmatprep.subr.mxu0 0.0
      %3539 = vmatpush1.msra.mxu0 0.0
      %3540 = vmatprep.subr.mxu0 0.0
      %3541 = vmatpush1.msra.mxu0 0.0
      %3542 = vmatprep.subr.mxu0 0.0
      %3543 = vmatpush1.msra.mxu0 0.0
      %3544 = vmatprep.subr.mxu0 0.0
      %3545 = vmatpush1.msra.mxu0 0.0
      %3546 = vmatprep.subr.mxu0 0.0
      %3547 = vmatpush1.msra.mxu0 0.0
      %3548 = vmatprep.subr.mxu0 0.0
      %3549 = vmatpush1.msra.mxu0 0.0
      %3550 = vmatprep.subr.mxu0 0.0
      %3551 = vmatpush1.msra.mxu0 0.0
      %3552 = vmatprep.subr.mxu0 0.0
      %3553 = vmatpush1.msra.mxu0 0.0
      %3554 = vmatprep.subr.mxu0 0.0
      %3555 = vmatpush1.msra.mxu0 0.0
      %3556 = vmatprep.subr.mxu0 0.0
      %3557 = vmatpush1.msra.mxu0 0.0
      %3558 = vmatprep.subr.mxu0 0.0
      %3559 = vmatpush1.msra.mxu0 0.0
      %3560 = vmatprep.subr.mxu0 0.0
      %3561 = vmatpush1.msra.mxu0 0.0
      %3562 = vmatprep.subr.mxu0 0.0
      %3563 = vmatpush1.msra.mxu0 0.0
      %3564 = vmatprep.subr.mxu0 0.0
      %3565 = vmatpush1.msra.mxu0 0.0
      %3566 = vmatprep.subr.mxu0 0.0
      %3567 = vmatpush1.msra.mxu0 0.0
      %3568 = vmatprep.subr.mxu0 0.0
      %3569 = vmatpush1.msra.mxu0 0.0
      %3570 = vmatprep.subr.mxu0 0.0
      %3571 = vmatpush1.msra.mxu0 0.0
      %3572 = vmatprep.subr.mxu0 0.0
      %3573 = vmatpush1.msra.mxu0 0.0
      %3574 = vmatprep.subr.mxu0 0.0
      %3575 = vmatpush1.msra.mxu0 0.0
      %3576 = vmatprep.subr.mxu0 0.0
      %3577 = vmatpush1.msra.mxu0 0.0
      %3578 = vmatprep.subr.mxu0 0.0
      %3579 = vmatpush1.msra.mxu0 0.0
      %3580 = vmatprep.subr.mxu0 0.0
      %3581 = vmatpush1.msra.mxu0 0.0
      %3582 = vmatprep.subr.mxu0 0.0
      %3583 = vmatpush1.msra.mxu0 0.0
      %3584 = vmatprep.subr.mxu0 0.0
      %3585 = vmatpush1.msra.mxu0 0.0
      %3586 = vmatprep.mubr.f32.mxu0 0.0
      %3587 = vmatmul.mubr.f32.gmra.mrb[0].mxu0 %v3424
      %v3588 = vpop.f32.mrb[0].mxu0
      %v3589 = vadd.f32 0.0, %v3588
      %v3590 = vpop.f32.mrb[0].mxu0
      %3591 = vmatprep.mubr.f32.mxu0 0.0
      %3592 = vmatmul.mubr.f32.gmra.mrb[0].mxu0 %v3427
      %v3593 = vpop.f32.mrb[0].mxu0
      %v3594 = vadd.f32 0.0, %v3593
      %v3595 = vpop.f32.mrb[0].mxu0
      %3596 = vmatprep.mubr.f32.mxu0 0.0
      %3597 = vmatmul.mubr.f32.gmra.mrb[0].mxu0 %v3430
      %v3598 = vpop.f32.mrb[0].mxu0
      %v3599 = vadd.f32 0.0, %v3598
      %v3600 = vpop.f32.mrb[0].mxu0
      %3601 = vmatprep.mubr.f32.mxu0 0.0
      %3602 = vmatmul.mubr.f32.gmra.mrb[0].mxu0 %v3433
      %v3603 = vpop.f32.mrb[0].mxu0
      %v3604 = vadd.f32 0.0, %v3603
      %v3605 = vpop.f32.mrb[0].mxu0
      %3606 = vmatprep.mubr.f32.mxu0 0.0
      %3607 = vmatmul.mubr.f32.gmra.mrb[0].mxu0 %v3436
      %v3608 = vpop.f32.mrb[0].mxu0
      %v3609 = vadd.f32 0.0, %v3608
      %v3610 = vpop.f32.mrb[0].mxu0
      %3611 = vmatprep.mubr.f32.mxu0 0.0
      %3612 = vmatmul.mubr.f32.gmra.mrb[0].mxu0 %v3439
      %v3613 = vpop.f32.mrb[0].mxu0
      %v3614 = vadd.f32 0.0, %v3613
      %v3615 = vpop.f32.mrb[0].mxu0
      %3616 = vmatprep.mubr.f32.mxu0 0.0
      %3617 = vmatmul.mubr.f32.gmra.mrb[0].mxu0 %v3442
      %v3618 = vpop.f32.mrb[0].mxu0
      %v3619 = vadd.f32 0.0, %v3618
      %v3620 = vpop.f32.mrb[0].mxu0
      %3621 = vmatprep.mubr.f32.mxu0 0.0
      %3622 = vmatmul.mubr.f32.gmra.mrb[0].mxu0 %v3445
      %v3623 = vpop.f32.mrb[0].mxu0
      %v3624 = vadd.f32 0.0, %v3623
      %v3625 = vpop.f32.mrb[0].mxu0
      %3626 = vmatprep.mubr.f32.mxu0 0.0
      %3627 = vmatmul.mubr.f32.gmra.mrb[0].mxu0 %v3448
      %v3628 = vpop.f32.mrb[0].mxu0
      %v3629 = vadd.f32 0.0, %v3628
      %v3630 = vpop.f32.mrb[0].mxu0
      %3631 = vmatprep.mubr.f32.mxu0 0.0
      %3632 = vmatmul.mubr.f32.gmra.mrb[0].mxu0 %v3451
      %v3633 = vpop.f32.mrb[0].mxu0
      %v3634 = vadd.f32 0.0, %v3633
      %v3635 = vpop.f32.mrb[0].mxu0
      %3636 = vmatprep.mubr.f32.mxu0 0.0
      %3637 = vmatmul.mubr.f32.gmra.mrb[0].mxu0 %v3454
      %v3638 = vpop.f32.mrb[0].mxu0
      %v3639 = vadd.f32 0.0, %v3638
      %v3640 = vpop.f32.mrb[0].mxu0
      %3641 = vmatprep.mubr.f32.mxu0 0.0
      %3642 = vmatmul.mubr.f32.gmra.mrb[0].mxu0 %v3457
      %v3643 = vpop.f32.mrb[0].mxu0
      %v3644 = vadd.f32 0.0, %v3643
      %v3645 = vpop.f32.mrb[0].mxu0
      %3646 = vmatprep.mubr.f32.mxu0 0.0
      %3647 = vmatmul.mubr.f32.gmra.mrb[0].mxu0 %v3460
      %v3648 = vpop.f32.mrb[0].mxu0
      %v3649 = vadd.f32 0.0, %v3648
      %v3650 = vpop.f32.mrb[0].mxu0
      %3651 = vmatprep.mubr.f32.mxu0 0.0
      %3652 = vmatmul.mubr.f32.gmra.mrb[0].mxu0 %v3463
      %v3653 = vpop.f32.mrb[0].mxu0
      %v3654 = vadd.f32 0.0, %v3653
      %v3655 = vpop.f32.mrb[0].mxu0
      %3656 = vmatprep.mubr.f32.mxu0 0.0
      %3657 = vmatmul.mubr.f32.gmra.mrb[0].mxu0 %v3466
      %v3658 = vpop.f32.mrb[0].mxu0
      %v3659 = vadd.f32 0.0, %v3658
      %v3660 = vpop.f32.mrb[0].mxu0
      %3661 = vmatprep.mubr.f32.mxu0 0.0
      %3662 = vmatmul.mubr.f32.gmra.mrb[0].mxu0 %v3469
      %v3663 = vpop.f32.mrb[0].mxu0
      %v3664 = vadd.f32 0.0, %v3663
      %v3665 = vpop.f32.mrb[0].mxu0
      %3666 = vmatprep.mubr.f32.mxu0 0.0
      %3667 = vmatmul.mubr.f32.gmra.mrb[0].mxu0 %v3472
      %v3668 = vpop.f32.mrb[0].mxu0
      %v3669 = vadd.f32 0.0, %v3668
      %v3670 = vpop.f32.mrb[0].mxu0
      %3671 = vmatprep.mubr.f32.mxu0 0.0
      %3672 = vmatmul.mubr.f32.gmra.mrb[0].mxu0 %v3475
      %v3673 = vpop.f32.mrb[0].mxu0
      %v3674 = vadd.f32 0.0, %v3673
      %v3675 = vpop.f32.mrb[0].mxu0
      %3676 = vmatprep.mubr.f32.mxu0 0.0
      %3677 = vmatmul.mubr.f32.gmra.mrb[0].mxu0 %v3478
      %v3678 = vpop.f32.mrb[0].mxu0
      %v3679 = vadd.f32 0.0, %v3678
      %v3680 = vpop.f32.mrb[0].mxu0
      %3681 = vmatprep.mubr.f32.mxu0 0.0
      %3682 = vmatmul.mubr.f32.gmra.mrb[0].mxu0 %v3481
      %v3683 = vpop.f32.mrb[0].mxu0
      %v3684 = vadd.f32 0.0, %v3683
      %v3685 = vpop.f32.mrb[0].mxu0
      %3686 = vmatprep.mubr.f32.mxu0 0.0
      %3687 = vmatmul.mubr.f32.gmra.mrb[0].mxu0 %v3484
      %v3688 = vpop.f32.mrb[0].mxu0
      %v3689 = vadd.f32 0.0, %v3688
      %v3690 = vpop.f32.mrb[0].mxu0
      %3691 = vmatprep.mubr.f32.mxu0 0.0
      %3692 = vmatmul.mubr.f32.gmra.mrb[0].mxu0 %v3487
      %v3693 = vpop.f32.mrb[0].mxu0
      %v3694 = vadd.f32 0.0, %v3693
      %v3695 = vpop.f32.mrb[0].mxu0
      %3696 = vmatprep.mubr.f32.mxu0 0.0
      %3697 = vmatmul.mubr.f32.gmra.mrb[0].mxu0 %v3490
      %v3698 = vpop.f32.mrb[0].mxu0
      %v3699 = vadd.f32 0.0, %v3698
      %v3700 = vpop.f32.mrb[0].mxu0
      %3701 = vmatprep.mubr.f32.mxu0 0.0
      %3702 = vmatmul.mubr.f32.gmra.mrb[0].mxu0 %v3493
      %v3703 = vpop.f32.mrb[0].mxu0
      %v3704 = vadd.f32 0.0, %v3703
      %v3705 = vpop.f32.mrb[0].mxu0
      %3706 = vmatprep.mubr.f32.mxu0 0.0
      %3707 = vmatmul.mubr.f32.gmra.mrb[0].mxu0 %v3496
      %v3708 = vpop.f32.mrb[0].mxu0
      %v3709 = vadd.f32 0.0, %v3708
      %v3710 = vpop.f32.mrb[0].mxu0
      %3711 = vmatprep.mubr.f32.mxu0 0.0
      %3712 = vmatmul.mubr.f32.gmra.mrb[0].mxu0 %v3499
      %v3713 = vpop.f32.mrb[0].mxu0
      %v3714 = vadd.f32 0.0, %v3713
      %v3715 = vpop.f32.mrb[0].mxu0
      %3716 = vmatprep.mubr.f32.mxu0 0.0
      %3717 = vmatmul.mubr.f32.gmra.mrb[0].mxu0 %v3502
      %v3718 = vpop.f32.mrb[0].mxu0
      %v3719 = vadd.f32 0.0, %v3718
      %v3720 = vpop.f32.mrb[0].mxu0
      %3721 = vmatprep.mubr.f32.mxu0 0.0
      %3722 = vmatmul.mubr.f32.gmra.mrb[0].mxu0 %v3505
      %v3723 = vpop.f32.mrb[0].mxu0
      %v3724 = vadd.f32 0.0, %v3723
      %v3725 = vpop.f32.mrb[0].mxu0
      %3726 = vmatprep.mubr.f32.mxu0 0.0
      %3727 = vmatmul.mubr.f32.gmra.mrb[0].mxu0 %v3508
      %v3728 = vpop.f32.mrb[0].mxu0
      %v3729 = vadd.f32 0.0, %v3728
      %v3730 = vpop.f32.mrb[0].mxu0
      %3731 = vmatprep.mubr.f32.mxu0 0.0
      %3732 = vmatmul.mubr.f32.gmra.mrb[0].mxu0 %v3511
      %v3733 = vpop.f32.mrb[0].mxu0
      %v3734 = vadd.f32 0.0, %v3733
      %v3735 = vpop.f32.mrb[0].mxu0
      %3736 = vmatprep.mubr.f32.mxu0 0.0
      %3737 = vmatmul.mubr.f32.gmra.mrb[0].mxu0 %v3514
      %v3738 = vpop.f32.mrb[0].mxu0
      %v3739 = vadd.f32 0.0, %v3738
      %v3740 = vpop.f32.mrb[0].mxu0
      %3741 = vmatprep.mubr.f32.mxu0 0.0
      %3742 = vmatmul.mubr.f32.gmra.mrb[0].mxu0 %v3517
      %v3743 = vpop.f32.mrb[0].mxu0
      %v3744 = vadd.f32 0.0, %v3743
      %v3745 = vpop.f32.mrb[0].mxu0
      %3746 = vdwg.mxu0
      %v3747 = vadd.f32 %v3357, %v3589
      %v3748 = vadd.f32 %v3358, %v3594
      %v3749 = vadd.f32 %v3359, %v3599
      %v3750 = vadd.f32 %v3360, %v3604
      %v3751 = vadd.f32 %v3361, %v3609
      %v3752 = vadd.f32 %v3362, %v3614
      %v3753 = vadd.f32 %v3363, %v3619
      %v3754 = vadd.f32 %v3364, %v3624
      %v3755 = vadd.f32 %v3365, %v3629
      %v3756 = vadd.f32 %v3366, %v3634
      %v3757 = vadd.f32 %v3367, %v3639
      %v3758 = vadd.f32 %v3368, %v3644
      %v3759 = vadd.f32 %v3369, %v3649
      %v3760 = vadd.f32 %v3370, %v3654
      %v3761 = vadd.f32 %v3371, %v3659
      %v3762 = vadd.f32 %v3372, %v3664
      %v3763 = vadd.f32 %v3373, %v3669
      %v3764 = vadd.f32 %v3374, %v3674
      %v3765 = vadd.f32 %v3375, %v3679
      %v3766 = vadd.f32 %v3376, %v3684
      %v3767 = vadd.f32 %v3377, %v3689
      %v3768 = vadd.f32 %v3378, %v3694
      %v3769 = vadd.f32 %v3379, %v3699
      %v3770 = vadd.f32 %v3380, %v3704
      %v3771 = vadd.f32 %v3381, %v3709
      %v3772 = vadd.f32 %v3382, %v3714
      %v3773 = vadd.f32 %v3383, %v3719
      %v3774 = vadd.f32 %v3384, %v3724
      %v3775 = vadd.f32 %v3385, %v3729
      %v3776 = vadd.f32 %v3386, %v3734
      %v3777 = vadd.f32 %v3387, %v3739
      %v3778 = vadd.f32 %v3388, %v3744
      %v3779 = vld [vmem:[%s2] sm:$0x1]
      %v3781 = vlaneseq
      %v3782 = vshrl.u32 %v3781, 7
      %v3783 = vsub.s32 0, %v3782
      %v3784 = vrot.slane %v3779, %v3783
      %v3786 = vadd.f32 %v3747, %v3784
      %v3787 = vadd.f32 %v3748, %v3784
      %v3788 = vadd.f32 %v3749, %v3784
      %v3789 = vadd.f32 %v3750, %v3784
      %v3790 = vadd.f32 %v3751, %v3784
      %v3791 = vadd.f32 %v3752, %v3784
      %v3792 = vadd.f32 %v3753, %v3784
      %v3793 = vadd.f32 %v3754, %v3784
      %v3794 = vadd.f32 %v3755, %v3784
      %v3795 = vadd.f32 %v3756, %v3784
      %v3796 = vadd.f32 %v3757, %v3784
      %v3797 = vadd.f32 %v3758, %v3784
      %v3798 = vadd.f32 %v3759, %v3784
      %v3799 = vadd.f32 %v3760, %v3784
      %v3800 = vadd.f32 %v3761, %v3784
      %v3801 = vadd.f32 %v3762, %v3784
      %v3802 = vadd.f32 %v3763, %v3784
      %v3803 = vadd.f32 %v3764, %v3784
      %v3804 = vadd.f32 %v3765, %v3784
      %v3805 = vadd.f32 %v3766, %v3784
      %v3806 = vadd.f32 %v3767, %v3784
      %v3807 = vadd.f32 %v3768, %v3784
      %v3808 = vadd.f32 %v3769, %v3784
      %v3809 = vadd.f32 %v3770, %v3784
      %v3810 = vadd.f32 %v3771, %v3784
      %v3811 = vadd.f32 %v3772, %v3784
      %v3812 = vadd.f32 %v3773, %v3784
      %v3813 = vadd.f32 %v3774, %v3784
      %v3814 = vadd.f32 %v3775, %v3784
      %v3815 = vadd.f32 %v3776, %v3784
      %v3816 = vadd.f32 %v3777, %v3784
      %v3817 = vadd.f32 %v3778, %v3784
      %v3818 = vmax.f32 %v3786, 0.0
      %v3819 = vmax.f32 %v3787, 0.0
      %v3820 = vmax.f32 %v3788, 0.0
      %v3821 = vmax.f32 %v3789, 0.0
      %v3822 = vmax.f32 %v3790, 0.0
      %v3823 = vmax.f32 %v3791, 0.0
      %v3824 = vmax.f32 %v3792, 0.0
      %v3825 = vmax.f32 %v3793, 0.0
      %v3826 = vmax.f32 %v3794, 0.0
      %v3827 = vmax.f32 %v3795, 0.0
      %v3828 = vmax.f32 %v3796, 0.0
      %v3829 = vmax.f32 %v3797, 0.0
      %v3830 = vmax.f32 %v3798, 0.0
      %v3831 = vmax.f32 %v3799, 0.0
      %v3832 = vmax.f32 %v3800, 0.0
      %v3833 = vmax.f32 %v3801, 0.0
      %v3834 = vmax.f32 %v3802, 0.0
      %v3835 = vmax.f32 %v3803, 0.0
      %v3836 = vmax.f32 %v3804, 0.0
      %v3837 = vmax.f32 %v3805, 0.0
      %v3838 = vmax.f32 %v3806, 0.0
      %v3839 = vmax.f32 %v3807, 0.0
      %v3840 = vmax.f32 %v3808, 0.0
      %v3841 = vmax.f32 %v3809, 0.0
      %v3842 = vmax.f32 %v3810, 0.0
      %v3843 = vmax.f32 %v3811, 0.0
      %v3844 = vmax.f32 %v3812, 0.0
      %v3845 = vmax.f32 %v3813, 0.0
      %v3846 = vmax.f32 %v3814, 0.0
      %v3847 = vmax.f32 %v3815, 0.0
      %v3848 = vmax.f32 %v3816, 0.0
      %v3849 = vmax.f32 %v3817, 0.0
      %3850 = vst.msk [vmem:[#allocation3] sm:$0xff] %vm257, 0.0
      %3851 = vst.msk [vmem:[#allocation3 + $0x8] sm:$0xff] %vm257, 0.0
      %3852 = vst.msk [vmem:[#allocation3 + $0x10] sm:$0xff] %vm257, 0.0
      %3853 = vst.msk [vmem:[#allocation3 + $0x18] sm:$0xff] %vm257, 0.0
      %s3854 = scalar_lea.vmem [#allocation3], 544
      %3855 = vst.msk [vmem:[%s3854] sm:$0xff] %vm257, 0.0
      %3856 = vst.msk [vmem:[%s3854 + $0x8] sm:$0xff] %vm257, 0.0
      %3857 = vst.msk [vmem:[%s3854 + $0x10] sm:$0xff] %vm257, 0.0
      %3858 = vst.msk [vmem:[%s3854 + $0x18] sm:$0xff] %vm257, 0.0
      %s3859 = scalar_lea.vmem [#allocation3], 32
      %3860 = vst.msk [vmem:[%s3859] sm:$0xff] %vm257, 0.0
      %3861 = vst.msk [vmem:[%s3859 + $0x20] sm:$0xff] %vm257, 0.0
      %3862 = vst.msk [vmem:[%s3859 + $0x40] sm:$0xff] %vm257, 0.0
      %3863 = vst.msk [vmem:[%s3859 + $0x60] sm:$0xff] %vm257, 0.0
      %3864 = vst.msk [vmem:[%s3859 + $0x80] sm:$0xff] %vm257, 0.0
      %3865 = vst.msk [vmem:[%s3859 + $0xa0] sm:$0xff] %vm257, 0.0
      %3866 = vst.msk [vmem:[%s3859 + $0xc0] sm:$0xff] %vm257, 0.0
      %3867 = vst.msk [vmem:[%s3859 + $0xe0] sm:$0xff] %vm257, 0.0
      %3868 = vst.msk [vmem:[%s3859 + $0x100] sm:$0xff] %vm257, 0.0
      %3869 = vst.msk [vmem:[%s3859 + $0x120] sm:$0xff] %vm257, 0.0
      %3870 = vst.msk [vmem:[%s3859 + $0x140] sm:$0xff] %vm257, 0.0
      %3871 = vst.msk [vmem:[%s3859 + $0x160] sm:$0xff] %vm257, 0.0
      %3872 = vst.msk [vmem:[%s3859 + $0x180] sm:$0xff] %vm257, 0.0
      %3873 = vst.msk [vmem:[%s3859 + $0x1a0] sm:$0xff] %vm257, 0.0
      %3874 = vst.msk [vmem:[%s3859 + $0x1c0] sm:$0xff] %vm257, 0.0
      %3875 = vst.msk [vmem:[%s3859 + $0x1e0] sm:$0xff] %vm257, 0.0
      %3876 = vst.msk [vmem:[%s3859 + $0x18] sm:$0xff] %vm257, 0.0
      %3877 = vst.msk [vmem:[%s3859 + $0x38] sm:$0xff] %vm257, 0.0
      %3878 = vst.msk [vmem:[%s3859 + $0x58] sm:$0xff] %vm257, 0.0
      %3879 = vst.msk [vmem:[%s3859 + $0x78] sm:$0xff] %vm257, 0.0
      %3880 = vst.msk [vmem:[%s3859 + $0x98] sm:$0xff] %vm257, 0.0
      %3881 = vst.msk [vmem:[%s3859 + $0xb8] sm:$0xff] %vm257, 0.0
      %3882 = vst.msk [vmem:[%s3859 + $0xd8] sm:$0xff] %vm257, 0.0
      %3883 = vst.msk [vmem:[%s3859 + $0xf8] sm:$0xff] %vm257, 0.0
      %3884 = vst.msk [vmem:[%s3859 + $0x118] sm:$0xff] %vm257, 0.0
      %3885 = vst.msk [vmem:[%s3859 + $0x138] sm:$0xff] %vm257, 0.0
      %3886 = vst.msk [vmem:[%s3859 + $0x158] sm:$0xff] %vm257, 0.0
      %3887 = vst.msk [vmem:[%s3859 + $0x178] sm:$0xff] %vm257, 0.0
      %3888 = vst.msk [vmem:[%s3859 + $0x198] sm:$0xff] %vm257, 0.0
      %3889 = vst.msk [vmem:[%s3859 + $0x1b8] sm:$0xff] %vm257, 0.0
      %3890 = vst.msk [vmem:[%s3859 + $0x1d8] sm:$0xff] %vm257, 0.0
      %3891 = vst.msk [vmem:[%s3859 + $0x1f8] sm:$0xff] %vm257, 0.0
      %3892 = vst.msk [vmem:[%s3859 + $0x8] sm:$0xff] %vm257, %v3818
      %3893 = vst.msk [vmem:[%s3859 + $0x10] sm:$0xff] %vm257, %v3819
      %3894 = vst.msk [vmem:[%s3859 + $0x28] sm:$0xff] %vm257, %v3820
      %3895 = vst.msk [vmem:[%s3859 + $0x30] sm:$0xff] %vm257, %v3821
      %3896 = vst.msk [vmem:[%s3859 + $0x48] sm:$0xff] %vm257, %v3822
      %3897 = vst.msk [vmem:[%s3859 + $0x50] sm:$0xff] %vm257, %v3823
      %3898 = vst.msk [vmem:[%s3859 + $0x68] sm:$0xff] %vm257, %v3824
      %3899 = vst.msk [vmem:[%s3859 + $0x70] sm:$0xff] %vm257, %v3825
      %3900 = vst.msk [vmem:[%s3859 + $0x88] sm:$0xff] %vm257, %v3826
      %3901 = vst.msk [vmem:[%s3859 + $0x90] sm:$0xff] %vm257, %v3827
      %3902 = vst.msk [vmem:[%s3859 + $0xa8] sm:$0xff] %vm257, %v3828
      %3903 = vst.msk [vmem:[%s3859 + $0xb0] sm:$0xff] %vm257, %v3829
      %3904 = vst.msk [vmem:[%s3859 + $0xc8] sm:$0xff] %vm257, %v3830
      %3905 = vst.msk [vmem:[%s3859 + $0xd0] sm:$0xff] %vm257, %v3831
      %3906 = vst.msk [vmem:[%s3859 + $0xe8] sm:$0xff] %vm257, %v3832
      %3907 = vst.msk [vmem:[%s3859 + $0xf0] sm:$0xff] %vm257, %v3833
      %3908 = vst.msk [vmem:[%s3859 + $0x108] sm:$0xff] %vm257, %v3834
      %3909 = vst.msk [vmem:[%s3859 + $0x110] sm:$0xff] %vm257, %v3835
      %3910 = vst.msk [vmem:[%s3859 + $0x128] sm:$0xff] %vm257, %v3836
      %3911 = vst.msk [vmem:[%s3859 + $0x130] sm:$0xff] %vm257, %v3837
      %3912 = vst.msk [vmem:[%s3859 + $0x148] sm:$0xff] %vm257, %v3838
      %3913 = vst.msk [vmem:[%s3859 + $0x150] sm:$0xff] %vm257, %v3839
      %3914 = vst.msk [vmem:[%s3859 + $0x168] sm:$0xff] %vm257, %v3840
      %3915 = vst.msk [vmem:[%s3859 + $0x170] sm:$0xff] %vm257, %v3841
      %3916 = vst.msk [vmem:[%s3859 + $0x188] sm:$0xff] %vm257, %v3842
      %3917 = vst.msk [vmem:[%s3859 + $0x190] sm:$0xff] %vm257, %v3843
      %3918 = vst.msk [vmem:[%s3859 + $0x1a8] sm:$0xff] %vm257, %v3844
      %3919 = vst.msk [vmem:[%s3859 + $0x1b0] sm:$0xff] %vm257, %v3845
      %3920 = vst.msk [vmem:[%s3859 + $0x1c8] sm:$0xff] %vm257, %v3846
      %3921 = vst.msk [vmem:[%s3859 + $0x1d0] sm:$0xff] %vm257, %v3847
      %3922 = vst.msk [vmem:[%s3859 + $0x1e8] sm:$0xff] %vm257, %v3848
      %3923 = vst.msk [vmem:[%s3859 + $0x1f0] sm:$0xff] %vm257, %v3849
      %v3924 = vld [vmem:[#allocation3 + $0x7] sm:$0xff]
      %v3925 = vld [vmem:[#allocation3 + $0xf] sm:$0xff]
      %v3926 = vld [vmem:[#allocation3 + $0x27] sm:$0xff]
      %v3927 = vld [vmem:[#allocation3 + $0x2f] sm:$0xff]
      %v3928 = vld [vmem:[#allocation3 + $0x47] sm:$0xff]
      %v3929 = vld [vmem:[#allocation3 + $0x4f] sm:$0xff]
      %v3930 = vld [vmem:[#allocation3 + $0x67] sm:$0xff]
      %v3931 = vld [vmem:[#allocation3 + $0x6f] sm:$0xff]
      %v3932 = vld [vmem:[#allocation3 + $0x87] sm:$0xff]
      %v3933 = vld [vmem:[#allocation3 + $0x8f] sm:$0xff]
      %v3934 = vld [vmem:[#allocation3 + $0xa7] sm:$0xff]
      %v3935 = vld [vmem:[#allocation3 + $0xaf] sm:$0xff]
      %v3936 = vld [vmem:[#allocation3 + $0xc7] sm:$0xff]
      %v3937 = vld [vmem:[#allocation3 + $0xcf] sm:$0xff]
      %v3938 = vld [vmem:[#allocation3 + $0xe7] sm:$0xff]
      %v3939 = vld [vmem:[#allocation3 + $0xef] sm:$0xff]
      %v3940 = vld [vmem:[#allocation3 + $0x107] sm:$0xff]
      %v3941 = vld [vmem:[#allocation3 + $0x10f] sm:$0xff]
      %v3942 = vld [vmem:[#allocation3 + $0x127] sm:$0xff]
      %v3943 = vld [vmem:[#allocation3 + $0x12f] sm:$0xff]
      %v3944 = vld [vmem:[#allocation3 + $0x147] sm:$0xff]
      %v3945 = vld [vmem:[#allocation3 + $0x14f] sm:$0xff]
      %v3946 = vld [vmem:[#allocation3 + $0x167] sm:$0xff]
      %v3947 = vld [vmem:[#allocation3 + $0x16f] sm:$0xff]
      %v3948 = vld [vmem:[#allocation3 + $0x187] sm:$0xff]
      %v3949 = vld [vmem:[#allocation3 + $0x18f] sm:$0xff]
      %v3950 = vld [vmem:[#allocation3 + $0x1a7] sm:$0xff]
      %v3951 = vld [vmem:[#allocation3 + $0x1af] sm:$0xff]
      %v3952 = vld [vmem:[#allocation3 + $0x1c7] sm:$0xff]
      %v3953 = vld [vmem:[#allocation3 + $0x1cf] sm:$0xff]
      %v3954 = vld [vmem:[#allocation3 + $0x1e7] sm:$0xff]
      %v3955 = vld [vmem:[#allocation3 + $0x1ef] sm:$0xff]
      %v3956 = vld [vmem:[%s3] sm:$0xf]
      %v3957 = vld [vmem:[#allocation3 + $0x8] sm:$0xff]
      %v3958 = vld [vmem:[#allocation3 + $0x10] sm:$0xff]
      %v3959 = vld [vmem:[#allocation3 + $0x28] sm:$0xff]
      %v3960 = vld [vmem:[#allocation3 + $0x30] sm:$0xff]
      %v3961 = vld [vmem:[#allocation3 + $0x48] sm:$0xff]
      %v3962 = vld [vmem:[#allocation3 + $0x50] sm:$0xff]
      %v3963 = vld [vmem:[#allocation3 + $0x68] sm:$0xff]
      %v3964 = vld [vmem:[#allocation3 + $0x70] sm:$0xff]
      %v3965 = vld [vmem:[#allocation3 + $0x88] sm:$0xff]
      %v3966 = vld [vmem:[#allocation3 + $0x90] sm:$0xff]
      %v3967 = vld [vmem:[#allocation3 + $0xa8] sm:$0xff]
      %v3968 = vld [vmem:[#allocation3 + $0xb0] sm:$0xff]
      %v3969 = vld [vmem:[#allocation3 + $0xc8] sm:$0xff]
      %v3970 = vld [vmem:[#allocation3 + $0xd0] sm:$0xff]
      %v3971 = vld [vmem:[#allocation3 + $0xe8] sm:$0xff]
      %v3972 = vld [vmem:[#allocation3 + $0xf0] sm:$0xff]
      %v3973 = vld [vmem:[#allocation3 + $0x108] sm:$0xff]
      %v3974 = vld [vmem:[#allocation3 + $0x110] sm:$0xff]
      %v3975 = vld [vmem:[#allocation3 + $0x128] sm:$0xff]
      %v3976 = vld [vmem:[#allocation3 + $0x130] sm:$0xff]
      %v3977 = vld [vmem:[#allocation3 + $0x148] sm:$0xff]
      %v3978 = vld [vmem:[#allocation3 + $0x150] sm:$0xff]
      %v3979 = vld [vmem:[#allocation3 + $0x168] sm:$0xff]
      %v3980 = vld [vmem:[#allocation3 + $0x170] sm:$0xff]
      %v3981 = vld [vmem:[#allocation3 + $0x188] sm:$0xff]
      %v3982 = vld [vmem:[#allocation3 + $0x190] sm:$0xff]
      %v3983 = vld [vmem:[#allocation3 + $0x1a8] sm:$0xff]
      %v3984 = vld [vmem:[#allocation3 + $0x1b0] sm:$0xff]
      %v3985 = vld [vmem:[#allocation3 + $0x1c8] sm:$0xff]
      %v3986 = vld [vmem:[#allocation3 + $0x1d0] sm:$0xff]
      %v3987 = vld [vmem:[#allocation3 + $0x1e8] sm:$0xff]
      %v3988 = vld [vmem:[#allocation3 + $0x1f0] sm:$0xff]
      %s3989 = scalar_lea.vmem %s3, 4
      %v3990 = vld [vmem:[%s3989] sm:$0xf]
      %v3992 = vsel %vm257, %v3957, 0
      %v3995 = vsel %vm257, %v3958, 0
      %v3998 = vsel %vm257, %v3959, 0
      %v4001 = vsel %vm257, %v3960, 0
      %v4004 = vsel %vm257, %v3961, 0
      %v4007 = vsel %vm257, %v3962, 0
      %v4010 = vsel %vm257, %v3963, 0
      %v4013 = vsel %vm257, %v3964, 0
      %v4016 = vsel %vm257, %v3965, 0
      %v4019 = vsel %vm257, %v3966, 0
      %v4022 = vsel %vm257, %v3967, 0
      %v4025 = vsel %vm257, %v3968, 0
      %v4028 = vsel %vm257, %v3969, 0
      %v4031 = vsel %vm257, %v3970, 0
      %v4034 = vsel %vm257, %v3971, 0
      %v4037 = vsel %vm257, %v3972, 0
      %v4040 = vsel %vm257, %v3973, 0
      %v4043 = vsel %vm257, %v3974, 0
      %v4046 = vsel %vm257, %v3975, 0
      %v4049 = vsel %vm257, %v3976, 0
      %v4052 = vsel %vm257, %v3977, 0
      %v4055 = vsel %vm257, %v3978, 0
      %v4058 = vsel %vm257, %v3979, 0
      %v4061 = vsel %vm257, %v3980, 0
      %v4064 = vsel %vm257, %v3981, 0
      %v4067 = vsel %vm257, %v3982, 0
      %v4070 = vsel %vm257, %v3983, 0
      %v4073 = vsel %vm257, %v3984, 0
      %v4076 = vsel %vm257, %v3985, 0
      %v4079 = vsel %vm257, %v3986, 0
      %v4082 = vsel %vm257, %v3987, 0
      %v4085 = vsel %vm257, %v3988, 0
      %v4088 = vsel %vm495, %v3990, 0
      %4090 = vmatprep.subr.mxu0 0.0
      %4091 = vmatpush1.msra.mxu0 %v4088
      %4092 = vmatprep.subr.mxu0 0.0
      %4093 = vmatpush1.msra.mxu0 0.0
      %4094 = vmatprep.subr.mxu0 0.0
      %4095 = vmatpush1.msra.mxu0 0.0
      %4096 = vmatprep.subr.mxu0 0.0
      %4097 = vmatpush1.msra.mxu0 0.0
      %4098 = vmatprep.subr.mxu0 0.0
      %4099 = vmatpush1.msra.mxu0 0.0
      %4100 = vmatprep.subr.mxu0 0.0
      %4101 = vmatpush1.msra.mxu0 0.0
      %4102 = vmatprep.subr.mxu0 0.0
      %4103 = vmatpush1.msra.mxu0 0.0
      %4104 = vmatprep.subr.mxu0 0.0
      %4105 = vmatpush1.msra.mxu0 0.0
      %4106 = vmatprep.subr.mxu0 0.0
      %4107 = vmatpush1.msra.mxu0 0.0
      %4108 = vmatprep.subr.mxu0 0.0
      %4109 = vmatpush1.msra.mxu0 0.0
      %4110 = vmatprep.subr.mxu0 0.0
      %4111 = vmatpush1.msra.mxu0 0.0
      %4112 = vmatprep.subr.mxu0 0.0
      %4113 = vmatpush1.msra.mxu0 0.0
      %4114 = vmatprep.subr.mxu0 0.0
      %4115 = vmatpush1.msra.mxu0 0.0
      %4116 = vmatprep.subr.mxu0 0.0
      %4117 = vmatpush1.msra.mxu0 0.0
      %4118 = vmatprep.subr.mxu0 0.0
      %4119 = vmatpush1.msra.mxu0 0.0
      %4120 = vmatprep.subr.mxu0 0.0
      %4121 = vmatpush1.msra.mxu0 0.0
      %4122 = vmatprep.subr.mxu0 0.0
      %4123 = vmatpush1.msra.mxu0 0.0
      %4124 = vmatprep.subr.mxu0 0.0
      %4125 = vmatpush1.msra.mxu0 0.0
      %4126 = vmatprep.subr.mxu0 0.0
      %4127 = vmatpush1.msra.mxu0 0.0
      %4128 = vmatprep.subr.mxu0 0.0
      %4129 = vmatpush1.msra.mxu0 0.0
      %4130 = vmatprep.subr.mxu0 0.0
      %4131 = vmatpush1.msra.mxu0 0.0
      %4132 = vmatprep.subr.mxu0 0.0
      %4133 = vmatpush1.msra.mxu0 0.0
      %4134 = vmatprep.subr.mxu0 0.0
      %4135 = vmatpush1.msra.mxu0 0.0
      %4136 = vmatprep.subr.mxu0 0.0
      %4137 = vmatpush1.msra.mxu0 0.0
      %4138 = vmatprep.subr.mxu0 0.0
      %4139 = vmatpush1.msra.mxu0 0.0
      %4140 = vmatprep.subr.mxu0 0.0
      %4141 = vmatpush1.msra.mxu0 0.0
      %4142 = vmatprep.subr.mxu0 0.0
      %4143 = vmatpush1.msra.mxu0 0.0
      %4144 = vmatprep.subr.mxu0 0.0
      %4145 = vmatpush1.msra.mxu0 0.0
      %4146 = vmatprep.subr.mxu0 0.0
      %4147 = vmatpush1.msra.mxu0 0.0
      %4148 = vmatprep.subr.mxu0 0.0
      %4149 = vmatpush1.msra.mxu0 0.0
      %4150 = vmatprep.subr.mxu0 0.0
      %4151 = vmatpush1.msra.mxu0 0.0
      %4152 = vmatprep.subr.mxu0 0.0
      %4153 = vmatpush1.msra.mxu0 0.0
      %4154 = vmatprep.mubr.f32.mxu0 0.0
      %4155 = vmatmul.mubr.f32.gmra.mrb[0].mxu0 %v3992
      %v4156 = vpop.f32.mrb[0].mxu0
      %v4157 = vadd.f32 0.0, %v4156
      %v4158 = vpop.f32.mrb[0].mxu0
      %4159 = vmatprep.mubr.f32.mxu0 0.0
      %4160 = vmatmul.mubr.f32.gmra.mrb[0].mxu0 %v3995
      %v4161 = vpop.f32.mrb[0].mxu0
      %v4162 = vadd.f32 0.0, %v4161
      %v4163 = vpop.f32.mrb[0].mxu0
      %4164 = vmatprep.mubr.f32.mxu0 0.0
      %4165 = vmatmul.mubr.f32.gmra.mrb[0].mxu0 %v3998
      %v4166 = vpop.f32.mrb[0].mxu0
      %v4167 = vadd.f32 0.0, %v4166
      %v4168 = vpop.f32.mrb[0].mxu0
      %4169 = vmatprep.mubr.f32.mxu0 0.0
      %4170 = vmatmul.mubr.f32.gmra.mrb[0].mxu0 %v4001
      %v4171 = vpop.f32.mrb[0].mxu0
      %v4172 = vadd.f32 0.0, %v4171
      %v4173 = vpop.f32.mrb[0].mxu0
      %4174 = vmatprep.mubr.f32.mxu0 0.0
      %4175 = vmatmul.mubr.f32.gmra.mrb[0].mxu0 %v4004
      %v4176 = vpop.f32.mrb[0].mxu0
      %v4177 = vadd.f32 0.0, %v4176
      %v4178 = vpop.f32.mrb[0].mxu0
      %4179 = vmatprep.mubr.f32.mxu0 0.0
      %4180 = vmatmul.mubr.f32.gmra.mrb[0].mxu0 %v4007
      %v4181 = vpop.f32.mrb[0].mxu0
      %v4182 = vadd.f32 0.0, %v4181
      %v4183 = vpop.f32.mrb[0].mxu0
      %4184 = vmatprep.mubr.f32.mxu0 0.0
      %4185 = vmatmul.mubr.f32.gmra.mrb[0].mxu0 %v4010
      %v4186 = vpop.f32.mrb[0].mxu0
      %v4187 = vadd.f32 0.0, %v4186
      %v4188 = vpop.f32.mrb[0].mxu0
      %4189 = vmatprep.mubr.f32.mxu0 0.0
      %4190 = vmatmul.mubr.f32.gmra.mrb[0].mxu0 %v4013
      %v4191 = vpop.f32.mrb[0].mxu0
      %v4192 = vadd.f32 0.0, %v4191
      %v4193 = vpop.f32.mrb[0].mxu0
      %4194 = vmatprep.mubr.f32.mxu0 0.0
      %4195 = vmatmul.mubr.f32.gmra.mrb[0].mxu0 %v4016
      %v4196 = vpop.f32.mrb[0].mxu0
      %v4197 = vadd.f32 0.0, %v4196
      %v4198 = vpop.f32.mrb[0].mxu0
      %4199 = vmatprep.mubr.f32.mxu0 0.0
      %4200 = vmatmul.mubr.f32.gmra.mrb[0].mxu0 %v4019
      %v4201 = vpop.f32.mrb[0].mxu0
      %v4202 = vadd.f32 0.0, %v4201
      %v4203 = vpop.f32.mrb[0].mxu0
      %4204 = vmatprep.mubr.f32.mxu0 0.0
      %4205 = vmatmul.mubr.f32.gmra.mrb[0].mxu0 %v4022
      %v4206 = vpop.f32.mrb[0].mxu0
      %v4207 = vadd.f32 0.0, %v4206
      %v4208 = vpop.f32.mrb[0].mxu0
      %4209 = vmatprep.mubr.f32.mxu0 0.0
      %4210 = vmatmul.mubr.f32.gmra.mrb[0].mxu0 %v4025
      %v4211 = vpop.f32.mrb[0].mxu0
      %v4212 = vadd.f32 0.0, %v4211
      %v4213 = vpop.f32.mrb[0].mxu0
      %4214 = vmatprep.mubr.f32.mxu0 0.0
      %4215 = vmatmul.mubr.f32.gmra.mrb[0].mxu0 %v4028
      %v4216 = vpop.f32.mrb[0].mxu0
      %v4217 = vadd.f32 0.0, %v4216
      %v4218 = vpop.f32.mrb[0].mxu0
      %4219 = vmatprep.mubr.f32.mxu0 0.0
      %4220 = vmatmul.mubr.f32.gmra.mrb[0].mxu0 %v4031
      %v4221 = vpop.f32.mrb[0].mxu0
      %v4222 = vadd.f32 0.0, %v4221
      %v4223 = vpop.f32.mrb[0].mxu0
      %4224 = vmatprep.mubr.f32.mxu0 0.0
      %4225 = vmatmul.mubr.f32.gmra.mrb[0].mxu0 %v4034
      %v4226 = vpop.f32.mrb[0].mxu0
      %v4227 = vadd.f32 0.0, %v4226
      %v4228 = vpop.f32.mrb[0].mxu0
      %4229 = vmatprep.mubr.f32.mxu0 0.0
      %4230 = vmatmul.mubr.f32.gmra.mrb[0].mxu0 %v4037
      %v4231 = vpop.f32.mrb[0].mxu0
      %v4232 = vadd.f32 0.0, %v4231
      %v4233 = vpop.f32.mrb[0].mxu0
      %4234 = vmatprep.mubr.f32.mxu0 0.0
      %4235 = vmatmul.mubr.f32.gmra.mrb[0].mxu0 %v4040
      %v4236 = vpop.f32.mrb[0].mxu0
      %v4237 = vadd.f32 0.0, %v4236
      %v4238 = vpop.f32.mrb[0].mxu0
      %4239 = vmatprep.mubr.f32.mxu0 0.0
      %4240 = vmatmul.mubr.f32.gmra.mrb[0].mxu0 %v4043
      %v4241 = vpop.f32.mrb[0].mxu0
      %v4242 = vadd.f32 0.0, %v4241
      %v4243 = vpop.f32.mrb[0].mxu0
      %4244 = vmatprep.mubr.f32.mxu0 0.0
      %4245 = vmatmul.mubr.f32.gmra.mrb[0].mxu0 %v4046
      %v4246 = vpop.f32.mrb[0].mxu0
      %v4247 = vadd.f32 0.0, %v4246
      %v4248 = vpop.f32.mrb[0].mxu0
      %4249 = vmatprep.mubr.f32.mxu0 0.0
      %4250 = vmatmul.mubr.f32.gmra.mrb[0].mxu0 %v4049
      %v4251 = vpop.f32.mrb[0].mxu0
      %v4252 = vadd.f32 0.0, %v4251
      %v4253 = vpop.f32.mrb[0].mxu0
      %4254 = vmatprep.mubr.f32.mxu0 0.0
      %4255 = vmatmul.mubr.f32.gmra.mrb[0].mxu0 %v4052
      %v4256 = vpop.f32.mrb[0].mxu0
      %v4257 = vadd.f32 0.0, %v4256
      %v4258 = vpop.f32.mrb[0].mxu0
      %4259 = vmatprep.mubr.f32.mxu0 0.0
      %4260 = vmatmul.mubr.f32.gmra.mrb[0].mxu0 %v4055
      %v4261 = vpop.f32.mrb[0].mxu0
      %v4262 = vadd.f32 0.0, %v4261
      %v4263 = vpop.f32.mrb[0].mxu0
      %4264 = vmatprep.mubr.f32.mxu0 0.0
      %4265 = vmatmul.mubr.f32.gmra.mrb[0].mxu0 %v4058
      %v4266 = vpop.f32.mrb[0].mxu0
      %v4267 = vadd.f32 0.0, %v4266
      %v4268 = vpop.f32.mrb[0].mxu0
      %4269 = vmatprep.mubr.f32.mxu0 0.0
      %4270 = vmatmul.mubr.f32.gmra.mrb[0].mxu0 %v4061
      %v4271 = vpop.f32.mrb[0].mxu0
      %v4272 = vadd.f32 0.0, %v4271
      %v4273 = vpop.f32.mrb[0].mxu0
      %4274 = vmatprep.mubr.f32.mxu0 0.0
      %4275 = vmatmul.mubr.f32.gmra.mrb[0].mxu0 %v4064
      %v4276 = vpop.f32.mrb[0].mxu0
      %v4277 = vadd.f32 0.0, %v4276
      %v4278 = vpop.f32.mrb[0].mxu0
      %4279 = vmatprep.mubr.f32.mxu0 0.0
      %4280 = vmatmul.mubr.f32.gmra.mrb[0].mxu0 %v4067
      %v4281 = vpop.f32.mrb[0].mxu0
      %v4282 = vadd.f32 0.0, %v4281
      %v4283 = vpop.f32.mrb[0].mxu0
      %4284 = vmatprep.mubr.f32.mxu0 0.0
      %4285 = vmatmul.mubr.f32.gmra.mrb[0].mxu0 %v4070
      %v4286 = vpop.f32.mrb[0].mxu0
      %v4287 = vadd.f32 0.0, %v4286
      %v4288 = vpop.f32.mrb[0].mxu0
      %4289 = vmatprep.mubr.f32.mxu0 0.0
      %4290 = vmatmul.mubr.f32.gmra.mrb[0].mxu0 %v4073
      %v4291 = vpop.f32.mrb[0].mxu0
      %v4292 = vadd.f32 0.0, %v4291
      %v4293 = vpop.f32.mrb[0].mxu0
      %4294 = vmatprep.mubr.f32.mxu0 0.0
      %4295 = vmatmul.mubr.f32.gmra.mrb[0].mxu0 %v4076
      %v4296 = vpop.f32.mrb[0].mxu0
      %v4297 = vadd.f32 0.0, %v4296
      %v4298 = vpop.f32.mrb[0].mxu0
      %4299 = vmatprep.mubr.f32.mxu0 0.0
      %4300 = vmatmul.mubr.f32.gmra.mrb[0].mxu0 %v4079
      %v4301 = vpop.f32.mrb[0].mxu0
      %v4302 = vadd.f32 0.0, %v4301
      %v4303 = vpop.f32.mrb[0].mxu0
      %4304 = vmatprep.mubr.f32.mxu0 0.0
      %4305 = vmatmul.mubr.f32.gmra.mrb[0].mxu0 %v4082
      %v4306 = vpop.f32.mrb[0].mxu0
      %v4307 = vadd.f32 0.0, %v4306
      %v4308 = vpop.f32.mrb[0].mxu0
      %4309 = vmatprep.mubr.f32.mxu0 0.0
      %4310 = vmatmul.mubr.f32.gmra.mrb[0].mxu0 %v4085
      %v4311 = vpop.f32.mrb[0].mxu0
      %v4312 = vadd.f32 0.0, %v4311
      %v4313 = vpop.f32.mrb[0].mxu0
      %4314 = vdwg.mxu0
      %v4316 = vsel %vm257, %v3924, 0
      %v4319 = vsel %vm257, %v3925, 0
      %v4322 = vsel %vm257, %v3926, 0
      %v4325 = vsel %vm257, %v3927, 0
      %v4328 = vsel %vm257, %v3928, 0
      %v4331 = vsel %vm257, %v3929, 0
      %v4334 = vsel %vm257, %v3930, 0
      %v4337 = vsel %vm257, %v3931, 0
      %v4340 = vsel %vm257, %v3932, 0
      %v4343 = vsel %vm257, %v3933, 0
      %v4346 = vsel %vm257, %v3934, 0
      %v4349 = vsel %vm257, %v3935, 0
      %v4352 = vsel %vm257, %v3936, 0
      %v4355 = vsel %vm257, %v3937, 0
      %v4358 = vsel %vm257, %v3938, 0
      %v4361 = vsel %vm257, %v3939, 0
      %v4364 = vsel %vm257, %v3940, 0
      %v4367 = vsel %vm257, %v3941, 0
      %v4370 = vsel %vm257, %v3942, 0
      %v4373 = vsel %vm257, %v3943, 0
      %v4376 = vsel %vm257, %v3944, 0
      %v4379 = vsel %vm257, %v3945, 0
      %v4382 = vsel %vm257, %v3946, 0
      %v4385 = vsel %vm257, %v3947, 0
      %v4388 = vsel %vm257, %v3948, 0
      %v4391 = vsel %vm257, %v3949, 0
      %v4394 = vsel %vm257, %v3950, 0
      %v4397 = vsel %vm257, %v3951, 0
      %v4400 = vsel %vm257, %v3952, 0
      %v4403 = vsel %vm257, %v3953, 0
      %v4406 = vsel %vm257, %v3954, 0
      %v4409 = vsel %vm257, %v3955, 0
      %v4412 = vsel %vm495, %v3956, 0
      %4414 = vmatprep.subr.mxu0 0.0
      %4415 = vmatpush1.msra.mxu0 %v4412
      %4416 = vmatprep.subr.mxu0 0.0
      %4417 = vmatpush1.msra.mxu0 0.0
      %4418 = vmatprep.subr.mxu0 0.0
      %4419 = vmatpush1.msra.mxu0 0.0
      %4420 = vmatprep.subr.mxu0 0.0
      %4421 = vmatpush1.msra.mxu0 0.0
      %4422 = vmatprep.subr.mxu0 0.0
      %4423 = vmatpush1.msra.mxu0 0.0
      %4424 = vmatprep.subr.mxu0 0.0
      %4425 = vmatpush1.msra.mxu0 0.0
      %4426 = vmatprep.subr.mxu0 0.0
      %4427 = vmatpush1.msra.mxu0 0.0
      %4428 = vmatprep.subr.mxu0 0.0
      %4429 = vmatpush1.msra.mxu0 0.0
      %4430 = vmatprep.subr.mxu0 0.0
      %4431 = vmatpush1.msra.mxu0 0.0
      %4432 = vmatprep.subr.mxu0 0.0
      %4433 = vmatpush1.msra.mxu0 0.0
      %4434 = vmatprep.subr.mxu0 0.0
      %4435 = vmatpush1.msra.mxu0 0.0
      %4436 = vmatprep.subr.mxu0 0.0
      %4437 = vmatpush1.msra.mxu0 0.0
      %4438 = vmatprep.subr.mxu0 0.0
      %4439 = vmatpush1.msra.mxu0 0.0
      %4440 = vmatprep.subr.mxu0 0.0
      %4441 = vmatpush1.msra.mxu0 0.0
      %4442 = vmatprep.subr.mxu0 0.0
      %4443 = vmatpush1.msra.mxu0 0.0
      %4444 = vmatprep.subr.mxu0 0.0
      %4445 = vmatpush1.msra.mxu0 0.0
      %4446 = vmatprep.subr.mxu0 0.0
      %4447 = vmatpush1.msra.mxu0 0.0
      %4448 = vmatprep.subr.mxu0 0.0
      %4449 = vmatpush1.msra.mxu0 0.0
      %4450 = vmatprep.subr.mxu0 0.0
      %4451 = vmatpush1.msra.mxu0 0.0
      %4452 = vmatprep.subr.mxu0 0.0
      %4453 = vmatpush1.msra.mxu0 0.0
      %4454 = vmatprep.subr.mxu0 0.0
      %4455 = vmatpush1.msra.mxu0 0.0
      %4456 = vmatprep.subr.mxu0 0.0
      %4457 = vmatpush1.msra.mxu0 0.0
      %4458 = vmatprep.subr.mxu0 0.0
      %4459 = vmatpush1.msra.mxu0 0.0
      %4460 = vmatprep.subr.mxu0 0.0
      %4461 = vmatpush1.msra.mxu0 0.0
      %4462 = vmatprep.subr.mxu0 0.0
      %4463 = vmatpush1.msra.mxu0 0.0
      %4464 = vmatprep.subr.mxu0 0.0
      %4465 = vmatpush1.msra.mxu0 0.0
      %4466 = vmatprep.subr.mxu0 0.0
      %4467 = vmatpush1.msra.mxu0 0.0
      %4468 = vmatprep.subr.mxu0 0.0
      %4469 = vmatpush1.msra.mxu0 0.0
      %4470 = vmatprep.subr.mxu0 0.0
      %4471 = vmatpush1.msra.mxu0 0.0
      %4472 = vmatprep.subr.mxu0 0.0
      %4473 = vmatpush1.msra.mxu0 0.0
      %4474 = vmatprep.subr.mxu0 0.0
      %4475 = vmatpush1.msra.mxu0 0.0
      %4476 = vmatprep.subr.mxu0 0.0
      %4477 = vmatpush1.msra.mxu0 0.0
      %4478 = vmatprep.mubr.f32.mxu0 0.0
      %4479 = vmatmul.mubr.f32.gmra.mrb[0].mxu0 %v4316
      %v4480 = vpop.f32.mrb[0].mxu0
      %v4481 = vadd.f32 %v4157, %v4480
      %v4482 = vpop.f32.mrb[0].mxu0
      %4483 = vmatprep.mubr.f32.mxu0 0.0
      %4484 = vmatmul.mubr.f32.gmra.mrb[0].mxu0 %v4319
      %v4485 = vpop.f32.mrb[0].mxu0
      %v4486 = vadd.f32 %v4162, %v4485
      %v4487 = vpop.f32.mrb[0].mxu0
      %4488 = vmatprep.mubr.f32.mxu0 0.0
      %4489 = vmatmul.mubr.f32.gmra.mrb[0].mxu0 %v4322
      %v4490 = vpop.f32.mrb[0].mxu0
      %v4491 = vadd.f32 %v4167, %v4490
      %v4492 = vpop.f32.mrb[0].mxu0
      %4493 = vmatprep.mubr.f32.mxu0 0.0
      %4494 = vmatmul.mubr.f32.gmra.mrb[0].mxu0 %v4325
      %v4495 = vpop.f32.mrb[0].mxu0
      %v4496 = vadd.f32 %v4172, %v4495
      %v4497 = vpop.f32.mrb[0].mxu0
      %4498 = vmatprep.mubr.f32.mxu0 0.0
      %4499 = vmatmul.mubr.f32.gmra.mrb[0].mxu0 %v4328
      %v4500 = vpop.f32.mrb[0].mxu0
      %v4501 = vadd.f32 %v4177, %v4500
      %v4502 = vpop.f32.mrb[0].mxu0
      %4503 = vmatprep.mubr.f32.mxu0 0.0
      %4504 = vmatmul.mubr.f32.gmra.mrb[0].mxu0 %v4331
      %v4505 = vpop.f32.mrb[0].mxu0
      %v4506 = vadd.f32 %v4182, %v4505
      %v4507 = vpop.f32.mrb[0].mxu0
      %4508 = vmatprep.mubr.f32.mxu0 0.0
      %4509 = vmatmul.mubr.f32.gmra.mrb[0].mxu0 %v4334
      %v4510 = vpop.f32.mrb[0].mxu0
      %v4511 = vadd.f32 %v4187, %v4510
      %v4512 = vpop.f32.mrb[0].mxu0
      %4513 = vmatprep.mubr.f32.mxu0 0.0
      %4514 = vmatmul.mubr.f32.gmra.mrb[0].mxu0 %v4337
      %v4515 = vpop.f32.mrb[0].mxu0
      %v4516 = vadd.f32 %v4192, %v4515
      %v4517 = vpop.f32.mrb[0].mxu0
      %4518 = vmatprep.mubr.f32.mxu0 0.0
      %4519 = vmatmul.mubr.f32.gmra.mrb[0].mxu0 %v4340
      %v4520 = vpop.f32.mrb[0].mxu0
      %v4521 = vadd.f32 %v4197, %v4520
      %v4522 = vpop.f32.mrb[0].mxu0
      %4523 = vmatprep.mubr.f32.mxu0 0.0
      %4524 = vmatmul.mubr.f32.gmra.mrb[0].mxu0 %v4343
      %v4525 = vpop.f32.mrb[0].mxu0
      %v4526 = vadd.f32 %v4202, %v4525
      %v4527 = vpop.f32.mrb[0].mxu0
      %4528 = vmatprep.mubr.f32.mxu0 0.0
      %4529 = vmatmul.mubr.f32.gmra.mrb[0].mxu0 %v4346
      %v4530 = vpop.f32.mrb[0].mxu0
      %v4531 = vadd.f32 %v4207, %v4530
      %v4532 = vpop.f32.mrb[0].mxu0
      %4533 = vmatprep.mubr.f32.mxu0 0.0
      %4534 = vmatmul.mubr.f32.gmra.mrb[0].mxu0 %v4349
      %v4535 = vpop.f32.mrb[0].mxu0
      %v4536 = vadd.f32 %v4212, %v4535
      %v4537 = vpop.f32.mrb[0].mxu0
      %4538 = vmatprep.mubr.f32.mxu0 0.0
      %4539 = vmatmul.mubr.f32.gmra.mrb[0].mxu0 %v4352
      %v4540 = vpop.f32.mrb[0].mxu0
      %v4541 = vadd.f32 %v4217, %v4540
      %v4542 = vpop.f32.mrb[0].mxu0
      %4543 = vmatprep.mubr.f32.mxu0 0.0
      %4544 = vmatmul.mubr.f32.gmra.mrb[0].mxu0 %v4355
      %v4545 = vpop.f32.mrb[0].mxu0
      %v4546 = vadd.f32 %v4222, %v4545
      %v4547 = vpop.f32.mrb[0].mxu0
      %4548 = vmatprep.mubr.f32.mxu0 0.0
      %4549 = vmatmul.mubr.f32.gmra.mrb[0].mxu0 %v4358
      %v4550 = vpop.f32.mrb[0].mxu0
      %v4551 = vadd.f32 %v4227, %v4550
      %v4552 = vpop.f32.mrb[0].mxu0
      %4553 = vmatprep.mubr.f32.mxu0 0.0
      %4554 = vmatmul.mubr.f32.gmra.mrb[0].mxu0 %v4361
      %v4555 = vpop.f32.mrb[0].mxu0
      %v4556 = vadd.f32 %v4232, %v4555
      %v4557 = vpop.f32.mrb[0].mxu0
      %4558 = vmatprep.mubr.f32.mxu0 0.0
      %4559 = vmatmul.mubr.f32.gmra.mrb[0].mxu0 %v4364
      %v4560 = vpop.f32.mrb[0].mxu0
      %v4561 = vadd.f32 %v4237, %v4560
      %v4562 = vpop.f32.mrb[0].mxu0
      %4563 = vmatprep.mubr.f32.mxu0 0.0
      %4564 = vmatmul.mubr.f32.gmra.mrb[0].mxu0 %v4367
      %v4565 = vpop.f32.mrb[0].mxu0
      %v4566 = vadd.f32 %v4242, %v4565
      %v4567 = vpop.f32.mrb[0].mxu0
      %4568 = vmatprep.mubr.f32.mxu0 0.0
      %4569 = vmatmul.mubr.f32.gmra.mrb[0].mxu0 %v4370
      %v4570 = vpop.f32.mrb[0].mxu0
      %v4571 = vadd.f32 %v4247, %v4570
      %v4572 = vpop.f32.mrb[0].mxu0
      %4573 = vmatprep.mubr.f32.mxu0 0.0
      %4574 = vmatmul.mubr.f32.gmra.mrb[0].mxu0 %v4373
      %v4575 = vpop.f32.mrb[0].mxu0
      %v4576 = vadd.f32 %v4252, %v4575
      %v4577 = vpop.f32.mrb[0].mxu0
      %4578 = vmatprep.mubr.f32.mxu0 0.0
      %4579 = vmatmul.mubr.f32.gmra.mrb[0].mxu0 %v4376
      %v4580 = vpop.f32.mrb[0].mxu0
      %v4581 = vadd.f32 %v4257, %v4580
      %v4582 = vpop.f32.mrb[0].mxu0
      %4583 = vmatprep.mubr.f32.mxu0 0.0
      %4584 = vmatmul.mubr.f32.gmra.mrb[0].mxu0 %v4379
      %v4585 = vpop.f32.mrb[0].mxu0
      %v4586 = vadd.f32 %v4262, %v4585
      %v4587 = vpop.f32.mrb[0].mxu0
      %4588 = vmatprep.mubr.f32.mxu0 0.0
      %4589 = vmatmul.mubr.f32.gmra.mrb[0].mxu0 %v4382
      %v4590 = vpop.f32.mrb[0].mxu0
      %v4591 = vadd.f32 %v4267, %v4590
      %v4592 = vpop.f32.mrb[0].mxu0
      %4593 = vmatprep.mubr.f32.mxu0 0.0
      %4594 = vmatmul.mubr.f32.gmra.mrb[0].mxu0 %v4385
      %v4595 = vpop.f32.mrb[0].mxu0
      %v4596 = vadd.f32 %v4272, %v4595
      %v4597 = vpop.f32.mrb[0].mxu0
      %4598 = vmatprep.mubr.f32.mxu0 0.0
      %4599 = vmatmul.mubr.f32.gmra.mrb[0].mxu0 %v4388
      %v4600 = vpop.f32.mrb[0].mxu0
      %v4601 = vadd.f32 %v4277, %v4600
      %v4602 = vpop.f32.mrb[0].mxu0
      %4603 = vmatprep.mubr.f32.mxu0 0.0
      %4604 = vmatmul.mubr.f32.gmra.mrb[0].mxu0 %v4391
      %v4605 = vpop.f32.mrb[0].mxu0
      %v4606 = vadd.f32 %v4282, %v4605
      %v4607 = vpop.f32.mrb[0].mxu0
      %4608 = vmatprep.mubr.f32.mxu0 0.0
      %4609 = vmatmul.mubr.f32.gmra.mrb[0].mxu0 %v4394
      %v4610 = vpop.f32.mrb[0].mxu0
      %v4611 = vadd.f32 %v4287, %v4610
      %v4612 = vpop.f32.mrb[0].mxu0
      %4613 = vmatprep.mubr.f32.mxu0 0.0
      %4614 = vmatmul.mubr.f32.gmra.mrb[0].mxu0 %v4397
      %v4615 = vpop.f32.mrb[0].mxu0
      %v4616 = vadd.f32 %v4292, %v4615
      %v4617 = vpop.f32.mrb[0].mxu0
      %4618 = vmatprep.mubr.f32.mxu0 0.0
      %4619 = vmatmul.mubr.f32.gmra.mrb[0].mxu0 %v4400
      %v4620 = vpop.f32.mrb[0].mxu0
      %v4621 = vadd.f32 %v4297, %v4620
      %v4622 = vpop.f32.mrb[0].mxu0
      %4623 = vmatprep.mubr.f32.mxu0 0.0
      %4624 = vmatmul.mubr.f32.gmra.mrb[0].mxu0 %v4403
      %v4625 = vpop.f32.mrb[0].mxu0
      %v4626 = vadd.f32 %v4302, %v4625
      %v4627 = vpop.f32.mrb[0].mxu0
      %4628 = vmatprep.mubr.f32.mxu0 0.0
      %4629 = vmatmul.mubr.f32.gmra.mrb[0].mxu0 %v4406
      %v4630 = vpop.f32.mrb[0].mxu0
      %v4631 = vadd.f32 %v4307, %v4630
      %v4632 = vpop.f32.mrb[0].mxu0
      %4633 = vmatprep.mubr.f32.mxu0 0.0
      %4634 = vmatmul.mubr.f32.gmra.mrb[0].mxu0 %v4409
      %v4635 = vpop.f32.mrb[0].mxu0
      %v4636 = vadd.f32 %v4312, %v4635
      %v4637 = vpop.f32.mrb[0].mxu0
      %4638 = vdwg.mxu0
      %v4639 = vld [vmem:[#allocation3 + $0x9] sm:$0xff]
      %v4640 = vld [vmem:[#allocation3 + $0x11] sm:$0xff]
      %v4641 = vld [vmem:[#allocation3 + $0x29] sm:$0xff]
      %v4642 = vld [vmem:[#allocation3 + $0x31] sm:$0xff]
      %v4643 = vld [vmem:[#allocation3 + $0x49] sm:$0xff]
      %v4644 = vld [vmem:[#allocation3 + $0x51] sm:$0xff]
      %v4645 = vld [vmem:[#allocation3 + $0x69] sm:$0xff]
      %v4646 = vld [vmem:[#allocation3 + $0x71] sm:$0xff]
      %v4647 = vld [vmem:[#allocation3 + $0x89] sm:$0xff]
      %v4648 = vld [vmem:[#allocation3 + $0x91] sm:$0xff]
      %v4649 = vld [vmem:[#allocation3 + $0xa9] sm:$0xff]
      %v4650 = vld [vmem:[#allocation3 + $0xb1] sm:$0xff]
      %v4651 = vld [vmem:[#allocation3 + $0xc9] sm:$0xff]
      %v4652 = vld [vmem:[#allocation3 + $0xd1] sm:$0xff]
      %v4653 = vld [vmem:[#allocation3 + $0xe9] sm:$0xff]
      %v4654 = vld [vmem:[#allocation3 + $0xf1] sm:$0xff]
      %v4655 = vld [vmem:[#allocation3 + $0x109] sm:$0xff]
      %v4656 = vld [vmem:[#allocation3 + $0x111] sm:$0xff]
      %v4657 = vld [vmem:[#allocation3 + $0x129] sm:$0xff]
      %v4658 = vld [vmem:[#allocation3 + $0x131] sm:$0xff]
      %v4659 = vld [vmem:[#allocation3 + $0x149] sm:$0xff]
      %v4660 = vld [vmem:[#allocation3 + $0x151] sm:$0xff]
      %v4661 = vld [vmem:[#allocation3 + $0x169] sm:$0xff]
      %v4662 = vld [vmem:[#allocation3 + $0x171] sm:$0xff]
      %v4663 = vld [vmem:[#allocation3 + $0x189] sm:$0xff]
      %v4664 = vld [vmem:[#allocation3 + $0x191] sm:$0xff]
      %v4665 = vld [vmem:[#allocation3 + $0x1a9] sm:$0xff]
      %v4666 = vld [vmem:[#allocation3 + $0x1b1] sm:$0xff]
      %v4667 = vld [vmem:[#allocation3 + $0x1c9] sm:$0xff]
      %v4668 = vld [vmem:[#allocation3 + $0x1d1] sm:$0xff]
      %v4669 = vld [vmem:[#allocation3 + $0x1e9] sm:$0xff]
      %v4670 = vld [vmem:[#allocation3 + $0x1f1] sm:$0xff]
      %s4671 = scalar_lea.vmem %s3, 8
      %v4672 = vld [vmem:[%s4671] sm:$0xf]
      %v4674 = vsel %vm257, %v4639, 0
      %v4677 = vsel %vm257, %v4640, 0
      %v4680 = vsel %vm257, %v4641, 0
      %v4683 = vsel %vm257, %v4642, 0
      %v4686 = vsel %vm257, %v4643, 0
      %v4689 = vsel %vm257, %v4644, 0
      %v4692 = vsel %vm257, %v4645, 0
      %v4695 = vsel %vm257, %v4646, 0
      %v4698 = vsel %vm257, %v4647, 0
      %v4701 = vsel %vm257, %v4648, 0
      %v4704 = vsel %vm257, %v4649, 0
      %v4707 = vsel %vm257, %v4650, 0
      %v4710 = vsel %vm257, %v4651, 0
      %v4713 = vsel %vm257, %v4652, 0
      %v4716 = vsel %vm257, %v4653, 0
      %v4719 = vsel %vm257, %v4654, 0
      %v4722 = vsel %vm257, %v4655, 0
      %v4725 = vsel %vm257, %v4656, 0
      %v4728 = vsel %vm257, %v4657, 0
      %v4731 = vsel %vm257, %v4658, 0
      %v4734 = vsel %vm257, %v4659, 0
      %v4737 = vsel %vm257, %v4660, 0
      %v4740 = vsel %vm257, %v4661, 0
      %v4743 = vsel %vm257, %v4662, 0
      %v4746 = vsel %vm257, %v4663, 0
      %v4749 = vsel %vm257, %v4664, 0
      %v4752 = vsel %vm257, %v4665, 0
      %v4755 = vsel %vm257, %v4666, 0
      %v4758 = vsel %vm257, %v4667, 0
      %v4761 = vsel %vm257, %v4668, 0
      %v4764 = vsel %vm257, %v4669, 0
      %v4767 = vsel %vm257, %v4670, 0
      %v4770 = vsel %vm495, %v4672, 0
      %4772 = vmatprep.subr.mxu0 0.0
      %4773 = vmatpush1.msra.mxu0 %v4770
      %4774 = vmatprep.subr.mxu0 0.0
      %4775 = vmatpush1.msra.mxu0 0.0
      %4776 = vmatprep.subr.mxu0 0.0
      %4777 = vmatpush1.msra.mxu0 0.0
      %4778 = vmatprep.subr.mxu0 0.0
      %4779 = vmatpush1.msra.mxu0 0.0
      %4780 = vmatprep.subr.mxu0 0.0
      %4781 = vmatpush1.msra.mxu0 0.0
      %4782 = vmatprep.subr.mxu0 0.0
      %4783 = vmatpush1.msra.mxu0 0.0
      %4784 = vmatprep.subr.mxu0 0.0
      %4785 = vmatpush1.msra.mxu0 0.0
      %4786 = vmatprep.subr.mxu0 0.0
      %4787 = vmatpush1.msra.mxu0 0.0
      %4788 = vmatprep.subr.mxu0 0.0
      %4789 = vmatpush1.msra.mxu0 0.0
      %4790 = vmatprep.subr.mxu0 0.0
      %4791 = vmatpush1.msra.mxu0 0.0
      %4792 = vmatprep.subr.mxu0 0.0
      %4793 = vmatpush1.msra.mxu0 0.0
      %4794 = vmatprep.subr.mxu0 0.0
      %4795 = vmatpush1.msra.mxu0 0.0
      %4796 = vmatprep.subr.mxu0 0.0
      %4797 = vmatpush1.msra.mxu0 0.0
      %4798 = vmatprep.subr.mxu0 0.0
      %4799 = vmatpush1.msra.mxu0 0.0
      %4800 = vmatprep.subr.mxu0 0.0
      %4801 = vmatpush1.msra.mxu0 0.0
      %4802 = vmatprep.subr.mxu0 0.0
      %4803 = vmatpush1.msra.mxu0 0.0
      %4804 = vmatprep.subr.mxu0 0.0
      %4805 = vmatpush1.msra.mxu0 0.0
      %4806 = vmatprep.subr.mxu0 0.0
      %4807 = vmatpush1.msra.mxu0 0.0
      %4808 = vmatprep.subr.mxu0 0.0
      %4809 = vmatpush1.msra.mxu0 0.0
      %4810 = vmatprep.subr.mxu0 0.0
      %4811 = vmatpush1.msra.mxu0 0.0
      %4812 = vmatprep.subr.mxu0 0.0
      %4813 = vmatpush1.msra.mxu0 0.0
      %4814 = vmatprep.subr.mxu0 0.0
      %4815 = vmatpush1.msra.mxu0 0.0
      %4816 = vmatprep.subr.mxu0 0.0
      %4817 = vmatpush1.msra.mxu0 0.0
      %4818 = vmatprep.subr.mxu0 0.0
      %4819 = vmatpush1.msra.mxu0 0.0
      %4820 = vmatprep.subr.mxu0 0.0
      %4821 = vmatpush1.msra.mxu0 0.0
      %4822 = vmatprep.subr.mxu0 0.0
      %4823 = vmatpush1.msra.mxu0 0.0
      %4824 = vmatprep.subr.mxu0 0.0
      %4825 = vmatpush1.msra.mxu0 0.0
      %4826 = vmatprep.subr.mxu0 0.0
      %4827 = vmatpush1.msra.mxu0 0.0
      %4828 = vmatprep.subr.mxu0 0.0
      %4829 = vmatpush1.msra.mxu0 0.0
      %4830 = vmatprep.subr.mxu0 0.0
      %4831 = vmatpush1.msra.mxu0 0.0
      %4832 = vmatprep.subr.mxu0 0.0
      %4833 = vmatpush1.msra.mxu0 0.0
      %4834 = vmatprep.subr.mxu0 0.0
      %4835 = vmatpush1.msra.mxu0 0.0
      %4836 = vmatprep.mubr.f32.mxu0 0.0
      %4837 = vmatmul.mubr.f32.gmra.mrb[0].mxu0 %v4674
      %v4838 = vpop.f32.mrb[0].mxu0
      %v4839 = vadd.f32 0.0, %v4838
      %v4840 = vpop.f32.mrb[0].mxu0
      %4841 = vmatprep.mubr.f32.mxu0 0.0
      %4842 = vmatmul.mubr.f32.gmra.mrb[0].mxu0 %v4677
      %v4843 = vpop.f32.mrb[0].mxu0
      %v4844 = vadd.f32 0.0, %v4843
      %v4845 = vpop.f32.mrb[0].mxu0
      %4846 = vmatprep.mubr.f32.mxu0 0.0
      %4847 = vmatmul.mubr.f32.gmra.mrb[0].mxu0 %v4680
      %v4848 = vpop.f32.mrb[0].mxu0
      %v4849 = vadd.f32 0.0, %v4848
      %v4850 = vpop.f32.mrb[0].mxu0
      %4851 = vmatprep.mubr.f32.mxu0 0.0
      %4852 = vmatmul.mubr.f32.gmra.mrb[0].mxu0 %v4683
      %v4853 = vpop.f32.mrb[0].mxu0
      %v4854 = vadd.f32 0.0, %v4853
      %v4855 = vpop.f32.mrb[0].mxu0
      %4856 = vmatprep.mubr.f32.mxu0 0.0
      %4857 = vmatmul.mubr.f32.gmra.mrb[0].mxu0 %v4686
      %v4858 = vpop.f32.mrb[0].mxu0
      %v4859 = vadd.f32 0.0, %v4858
      %v4860 = vpop.f32.mrb[0].mxu0
      %4861 = vmatprep.mubr.f32.mxu0 0.0
      %4862 = vmatmul.mubr.f32.gmra.mrb[0].mxu0 %v4689
      %v4863 = vpop.f32.mrb[0].mxu0
      %v4864 = vadd.f32 0.0, %v4863
      %v4865 = vpop.f32.mrb[0].mxu0
      %4866 = vmatprep.mubr.f32.mxu0 0.0
      %4867 = vmatmul.mubr.f32.gmra.mrb[0].mxu0 %v4692
      %v4868 = vpop.f32.mrb[0].mxu0
      %v4869 = vadd.f32 0.0, %v4868
      %v4870 = vpop.f32.mrb[0].mxu0
      %4871 = vmatprep.mubr.f32.mxu0 0.0
      %4872 = vmatmul.mubr.f32.gmra.mrb[0].mxu0 %v4695
      %v4873 = vpop.f32.mrb[0].mxu0
      %v4874 = vadd.f32 0.0, %v4873
      %v4875 = vpop.f32.mrb[0].mxu0
      %4876 = vmatprep.mubr.f32.mxu0 0.0
      %4877 = vmatmul.mubr.f32.gmra.mrb[0].mxu0 %v4698
      %v4878 = vpop.f32.mrb[0].mxu0
      %v4879 = vadd.f32 0.0, %v4878
      %v4880 = vpop.f32.mrb[0].mxu0
      %4881 = vmatprep.mubr.f32.mxu0 0.0
      %4882 = vmatmul.mubr.f32.gmra.mrb[0].mxu0 %v4701
      %v4883 = vpop.f32.mrb[0].mxu0
      %v4884 = vadd.f32 0.0, %v4883
      %v4885 = vpop.f32.mrb[0].mxu0
      %4886 = vmatprep.mubr.f32.mxu0 0.0
      %4887 = vmatmul.mubr.f32.gmra.mrb[0].mxu0 %v4704
      %v4888 = vpop.f32.mrb[0].mxu0
      %v4889 = vadd.f32 0.0, %v4888
      %v4890 = vpop.f32.mrb[0].mxu0
      %4891 = vmatprep.mubr.f32.mxu0 0.0
      %4892 = vmatmul.mubr.f32.gmra.mrb[0].mxu0 %v4707
      %v4893 = vpop.f32.mrb[0].mxu0
      %v4894 = vadd.f32 0.0, %v4893
      %v4895 = vpop.f32.mrb[0].mxu0
      %4896 = vmatprep.mubr.f32.mxu0 0.0
      %4897 = vmatmul.mubr.f32.gmra.mrb[0].mxu0 %v4710
      %v4898 = vpop.f32.mrb[0].mxu0
      %v4899 = vadd.f32 0.0, %v4898
      %v4900 = vpop.f32.mrb[0].mxu0
      %4901 = vmatprep.mubr.f32.mxu0 0.0
      %4902 = vmatmul.mubr.f32.gmra.mrb[0].mxu0 %v4713
      %v4903 = vpop.f32.mrb[0].mxu0
      %v4904 = vadd.f32 0.0, %v4903
      %v4905 = vpop.f32.mrb[0].mxu0
      %4906 = vmatprep.mubr.f32.mxu0 0.0
      %4907 = vmatmul.mubr.f32.gmra.mrb[0].mxu0 %v4716
      %v4908 = vpop.f32.mrb[0].mxu0
      %v4909 = vadd.f32 0.0, %v4908
      %v4910 = vpop.f32.mrb[0].mxu0
      %4911 = vmatprep.mubr.f32.mxu0 0.0
      %4912 = vmatmul.mubr.f32.gmra.mrb[0].mxu0 %v4719
      %v4913 = vpop.f32.mrb[0].mxu0
      %v4914 = vadd.f32 0.0, %v4913
      %v4915 = vpop.f32.mrb[0].mxu0
      %4916 = vmatprep.mubr.f32.mxu0 0.0
      %4917 = vmatmul.mubr.f32.gmra.mrb[0].mxu0 %v4722
      %v4918 = vpop.f32.mrb[0].mxu0
      %v4919 = vadd.f32 0.0, %v4918
      %v4920 = vpop.f32.mrb[0].mxu0
      %4921 = vmatprep.mubr.f32.mxu0 0.0
      %4922 = vmatmul.mubr.f32.gmra.mrb[0].mxu0 %v4725
      %v4923 = vpop.f32.mrb[0].mxu0
      %v4924 = vadd.f32 0.0, %v4923
      %v4925 = vpop.f32.mrb[0].mxu0
      %4926 = vmatprep.mubr.f32.mxu0 0.0
      %4927 = vmatmul.mubr.f32.gmra.mrb[0].mxu0 %v4728
      %v4928 = vpop.f32.mrb[0].mxu0
      %v4929 = vadd.f32 0.0, %v4928
      %v4930 = vpop.f32.mrb[0].mxu0
      %4931 = vmatprep.mubr.f32.mxu0 0.0
      %4932 = vmatmul.mubr.f32.gmra.mrb[0].mxu0 %v4731
      %v4933 = vpop.f32.mrb[0].mxu0
      %v4934 = vadd.f32 0.0, %v4933
      %v4935 = vpop.f32.mrb[0].mxu0
      %4936 = vmatprep.mubr.f32.mxu0 0.0
      %4937 = vmatmul.mubr.f32.gmra.mrb[0].mxu0 %v4734
      %v4938 = vpop.f32.mrb[0].mxu0
      %v4939 = vadd.f32 0.0, %v4938
      %v4940 = vpop.f32.mrb[0].mxu0
      %4941 = vmatprep.mubr.f32.mxu0 0.0
      %4942 = vmatmul.mubr.f32.gmra.mrb[0].mxu0 %v4737
      %v4943 = vpop.f32.mrb[0].mxu0
      %v4944 = vadd.f32 0.0, %v4943
      %v4945 = vpop.f32.mrb[0].mxu0
      %4946 = vmatprep.mubr.f32.mxu0 0.0
      %4947 = vmatmul.mubr.f32.gmra.mrb[0].mxu0 %v4740
      %v4948 = vpop.f32.mrb[0].mxu0
      %v4949 = vadd.f32 0.0, %v4948
      %v4950 = vpop.f32.mrb[0].mxu0
      %4951 = vmatprep.mubr.f32.mxu0 0.0
      %4952 = vmatmul.mubr.f32.gmra.mrb[0].mxu0 %v4743
      %v4953 = vpop.f32.mrb[0].mxu0
      %v4954 = vadd.f32 0.0, %v4953
      %v4955 = vpop.f32.mrb[0].mxu0
      %4956 = vmatprep.mubr.f32.mxu0 0.0
      %4957 = vmatmul.mubr.f32.gmra.mrb[0].mxu0 %v4746
      %v4958 = vpop.f32.mrb[0].mxu0
      %v4959 = vadd.f32 0.0, %v4958
      %v4960 = vpop.f32.mrb[0].mxu0
      %4961 = vmatprep.mubr.f32.mxu0 0.0
      %4962 = vmatmul.mubr.f32.gmra.mrb[0].mxu0 %v4749
      %v4963 = vpop.f32.mrb[0].mxu0
      %v4964 = vadd.f32 0.0, %v4963
      %v4965 = vpop.f32.mrb[0].mxu0
      %4966 = vmatprep.mubr.f32.mxu0 0.0
      %4967 = vmatmul.mubr.f32.gmra.mrb[0].mxu0 %v4752
      %v4968 = vpop.f32.mrb[0].mxu0
      %v4969 = vadd.f32 0.0, %v4968
      %v4970 = vpop.f32.mrb[0].mxu0
      %4971 = vmatprep.mubr.f32.mxu0 0.0
      %4972 = vmatmul.mubr.f32.gmra.mrb[0].mxu0 %v4755
      %v4973 = vpop.f32.mrb[0].mxu0
      %v4974 = vadd.f32 0.0, %v4973
      %v4975 = vpop.f32.mrb[0].mxu0
      %4976 = vmatprep.mubr.f32.mxu0 0.0
      %4977 = vmatmul.mubr.f32.gmra.mrb[0].mxu0 %v4758
      %v4978 = vpop.f32.mrb[0].mxu0
      %v4979 = vadd.f32 0.0, %v4978
      %v4980 = vpop.f32.mrb[0].mxu0
      %4981 = vmatprep.mubr.f32.mxu0 0.0
      %4982 = vmatmul.mubr.f32.gmra.mrb[0].mxu0 %v4761
      %v4983 = vpop.f32.mrb[0].mxu0
      %v4984 = vadd.f32 0.0, %v4983
      %v4985 = vpop.f32.mrb[0].mxu0
      %4986 = vmatprep.mubr.f32.mxu0 0.0
      %4987 = vmatmul.mubr.f32.gmra.mrb[0].mxu0 %v4764
      %v4988 = vpop.f32.mrb[0].mxu0
      %v4989 = vadd.f32 0.0, %v4988
      %v4990 = vpop.f32.mrb[0].mxu0
      %4991 = vmatprep.mubr.f32.mxu0 0.0
      %4992 = vmatmul.mubr.f32.gmra.mrb[0].mxu0 %v4767
      %v4993 = vpop.f32.mrb[0].mxu0
      %v4994 = vadd.f32 0.0, %v4993
      %v4995 = vpop.f32.mrb[0].mxu0
      %4996 = vdwg.mxu0
      %v4997 = vadd.f32 %v4481, %v4839
      %v4998 = vadd.f32 %v4486, %v4844
      %v4999 = vadd.f32 %v4491, %v4849
      %v5000 = vadd.f32 %v4496, %v4854
      %v5001 = vadd.f32 %v4501, %v4859
      %v5002 = vadd.f32 %v4506, %v4864
      %v5003 = vadd.f32 %v4511, %v4869
      %v5004 = vadd.f32 %v4516, %v4874
      %v5005 = vadd.f32 %v4521, %v4879
      %v5006 = vadd.f32 %v4526, %v4884
      %v5007 = vadd.f32 %v4531, %v4889
      %v5008 = vadd.f32 %v4536, %v4894
      %v5009 = vadd.f32 %v4541, %v4899
      %v5010 = vadd.f32 %v4546, %v4904
      %v5011 = vadd.f32 %v4551, %v4909
      %v5012 = vadd.f32 %v4556, %v4914
      %v5013 = vadd.f32 %v4561, %v4919
      %v5014 = vadd.f32 %v4566, %v4924
      %v5015 = vadd.f32 %v4571, %v4929
      %v5016 = vadd.f32 %v4576, %v4934
      %v5017 = vadd.f32 %v4581, %v4939
      %v5018 = vadd.f32 %v4586, %v4944
      %v5019 = vadd.f32 %v4591, %v4949
      %v5020 = vadd.f32 %v4596, %v4954
      %v5021 = vadd.f32 %v4601, %v4959
      %v5022 = vadd.f32 %v4606, %v4964
      %v5023 = vadd.f32 %v4611, %v4969
      %v5024 = vadd.f32 %v4616, %v4974
      %v5025 = vadd.f32 %v4621, %v4979
      %v5026 = vadd.f32 %v4626, %v4984
      %v5027 = vadd.f32 %v4631, %v4989
      %v5028 = vadd.f32 %v4636, %v4994
      %v5029 = vld [vmem:[%s3859 + $0x7] sm:$0xff]
      %v5030 = vld [vmem:[%s3859 + $0xf] sm:$0xff]
      %v5031 = vld [vmem:[%s3859 + $0x27] sm:$0xff]
      %v5032 = vld [vmem:[%s3859 + $0x2f] sm:$0xff]
      %v5033 = vld [vmem:[%s3859 + $0x47] sm:$0xff]
      %v5034 = vld [vmem:[%s3859 + $0x4f] sm:$0xff]
      %v5035 = vld [vmem:[%s3859 + $0x67] sm:$0xff]
      %v5036 = vld [vmem:[%s3859 + $0x6f] sm:$0xff]
      %v5037 = vld [vmem:[%s3859 + $0x87] sm:$0xff]
      %v5038 = vld [vmem:[%s3859 + $0x8f] sm:$0xff]
      %v5039 = vld [vmem:[%s3859 + $0xa7] sm:$0xff]
      %v5040 = vld [vmem:[%s3859 + $0xaf] sm:$0xff]
      %v5041 = vld [vmem:[%s3859 + $0xc7] sm:$0xff]
      %v5042 = vld [vmem:[%s3859 + $0xcf] sm:$0xff]
      %v5043 = vld [vmem:[%s3859 + $0xe7] sm:$0xff]
      %v5044 = vld [vmem:[%s3859 + $0xef] sm:$0xff]
      %v5045 = vld [vmem:[%s3859 + $0x107] sm:$0xff]
      %v5046 = vld [vmem:[%s3859 + $0x10f] sm:$0xff]
      %v5047 = vld [vmem:[%s3859 + $0x127] sm:$0xff]
      %v5048 = vld [vmem:[%s3859 + $0x12f] sm:$0xff]
      %v5049 = vld [vmem:[%s3859 + $0x147] sm:$0xff]
      %v5050 = vld [vmem:[%s3859 + $0x14f] sm:$0xff]
      %v5051 = vld [vmem:[%s3859 + $0x167] sm:$0xff]
      %v5052 = vld [vmem:[%s3859 + $0x16f] sm:$0xff]
      %v5053 = vld [vmem:[%s3859 + $0x187] sm:$0xff]
      %v5054 = vld [vmem:[%s3859 + $0x18f] sm:$0xff]
      %v5055 = vld [vmem:[%s3859 + $0x1a7] sm:$0xff]
      %v5056 = vld [vmem:[%s3859 + $0x1af] sm:$0xff]
      %v5057 = vld [vmem:[%s3859 + $0x1c7] sm:$0xff]
      %v5058 = vld [vmem:[%s3859 + $0x1cf] sm:$0xff]
      %v5059 = vld [vmem:[%s3859 + $0x1e7] sm:$0xff]
      %v5060 = vld [vmem:[%s3859 + $0x1ef] sm:$0xff]
      %s5061 = scalar_lea.vmem %s3, 12
      %v5062 = vld [vmem:[%s5061] sm:$0xf]
      %v5064 = vsel %vm257, %v5029, 0
      %v5067 = vsel %vm257, %v5030, 0
      %v5070 = vsel %vm257, %v5031, 0
      %v5073 = vsel %vm257, %v5032, 0
      %v5076 = vsel %vm257, %v5033, 0
      %v5079 = vsel %vm257, %v5034, 0
      %v5082 = vsel %vm257, %v5035, 0
      %v5085 = vsel %vm257, %v5036, 0
      %v5088 = vsel %vm257, %v5037, 0
      %v5091 = vsel %vm257, %v5038, 0
      %v5094 = vsel %vm257, %v5039, 0
      %v5097 = vsel %vm257, %v5040, 0
      %v5100 = vsel %vm257, %v5041, 0
      %v5103 = vsel %vm257, %v5042, 0
      %v5106 = vsel %vm257, %v5043, 0
      %v5109 = vsel %vm257, %v5044, 0
      %v5112 = vsel %vm257, %v5045, 0
      %v5115 = vsel %vm257, %v5046, 0
      %v5118 = vsel %vm257, %v5047, 0
      %v5121 = vsel %vm257, %v5048, 0
      %v5124 = vsel %vm257, %v5049, 0
      %v5127 = vsel %vm257, %v5050, 0
      %v5130 = vsel %vm257, %v5051, 0
      %v5133 = vsel %vm257, %v5052, 0
      %v5136 = vsel %vm257, %v5053, 0
      %v5139 = vsel %vm257, %v5054, 0
      %v5142 = vsel %vm257, %v5055, 0
      %v5145 = vsel %vm257, %v5056, 0
      %v5148 = vsel %vm257, %v5057, 0
      %v5151 = vsel %vm257, %v5058, 0
      %v5154 = vsel %vm257, %v5059, 0
      %v5157 = vsel %vm257, %v5060, 0
      %v5160 = vsel %vm495, %v5062, 0
      %5162 = vmatprep.subr.mxu0 0.0
      %5163 = vmatpush1.msra.mxu0 %v5160
      %5164 = vmatprep.subr.mxu0 0.0
      %5165 = vmatpush1.msra.mxu0 0.0
      %5166 = vmatprep.subr.mxu0 0.0
      %5167 = vmatpush1.msra.mxu0 0.0
      %5168 = vmatprep.subr.mxu0 0.0
      %5169 = vmatpush1.msra.mxu0 0.0
      %5170 = vmatprep.subr.mxu0 0.0
      %5171 = vmatpush1.msra.mxu0 0.0
      %5172 = vmatprep.subr.mxu0 0.0
      %5173 = vmatpush1.msra.mxu0 0.0
      %5174 = vmatprep.subr.mxu0 0.0
      %5175 = vmatpush1.msra.mxu0 0.0
      %5176 = vmatprep.subr.mxu0 0.0
      %5177 = vmatpush1.msra.mxu0 0.0
      %5178 = vmatprep.subr.mxu0 0.0
      %5179 = vmatpush1.msra.mxu0 0.0
      %5180 = vmatprep.subr.mxu0 0.0
      %5181 = vmatpush1.msra.mxu0 0.0
      %5182 = vmatprep.subr.mxu0 0.0
      %5183 = vmatpush1.msra.mxu0 0.0
      %5184 = vmatprep.subr.mxu0 0.0
      %5185 = vmatpush1.msra.mxu0 0.0
      %5186 = vmatprep.subr.mxu0 0.0
      %5187 = vmatpush1.msra.mxu0 0.0
      %5188 = vmatprep.subr.mxu0 0.0
      %5189 = vmatpush1.msra.mxu0 0.0
      %5190 = vmatprep.subr.mxu0 0.0
      %5191 = vmatpush1.msra.mxu0 0.0
      %5192 = vmatprep.subr.mxu0 0.0
      %5193 = vmatpush1.msra.mxu0 0.0
      %5194 = vmatprep.subr.mxu0 0.0
      %5195 = vmatpush1.msra.mxu0 0.0
      %5196 = vmatprep.subr.mxu0 0.0
      %5197 = vmatpush1.msra.mxu0 0.0
      %5198 = vmatprep.subr.mxu0 0.0
      %5199 = vmatpush1.msra.mxu0 0.0
      %5200 = vmatprep.subr.mxu0 0.0
      %5201 = vmatpush1.msra.mxu0 0.0
      %5202 = vmatprep.subr.mxu0 0.0
      %5203 = vmatpush1.msra.mxu0 0.0
      %5204 = vmatprep.subr.mxu0 0.0
      %5205 = vmatpush1.msra.mxu0 0.0
      %5206 = vmatprep.subr.mxu0 0.0
      %5207 = vmatpush1.msra.mxu0 0.0
      %5208 = vmatprep.subr.mxu0 0.0
      %5209 = vmatpush1.msra.mxu0 0.0
      %5210 = vmatprep.subr.mxu0 0.0
      %5211 = vmatpush1.msra.mxu0 0.0
      %5212 = vmatprep.subr.mxu0 0.0
      %5213 = vmatpush1.msra.mxu0 0.0
      %5214 = vmatprep.subr.mxu0 0.0
      %5215 = vmatpush1.msra.mxu0 0.0
      %5216 = vmatprep.subr.mxu0 0.0
      %5217 = vmatpush1.msra.mxu0 0.0
      %5218 = vmatprep.subr.mxu0 0.0
      %5219 = vmatpush1.msra.mxu0 0.0
      %5220 = vmatprep.subr.mxu0 0.0
      %5221 = vmatpush1.msra.mxu0 0.0
      %5222 = vmatprep.subr.mxu0 0.0
      %5223 = vmatpush1.msra.mxu0 0.0
      %5224 = vmatprep.subr.mxu0 0.0
      %5225 = vmatpush1.msra.mxu0 0.0
      %5226 = vmatprep.mubr.f32.mxu0 0.0
      %5227 = vmatmul.mubr.f32.gmra.mrb[0].mxu0 %v5064
      %v5228 = vpop.f32.mrb[0].mxu0
      %v5229 = vadd.f32 0.0, %v5228
      %v5230 = vpop.f32.mrb[0].mxu0
      %5231 = vmatprep.mubr.f32.mxu0 0.0
      %5232 = vmatmul.mubr.f32.gmra.mrb[0].mxu0 %v5067
      %v5233 = vpop.f32.mrb[0].mxu0
      %v5234 = vadd.f32 0.0, %v5233
      %v5235 = vpop.f32.mrb[0].mxu0
      %5236 = vmatprep.mubr.f32.mxu0 0.0
      %5237 = vmatmul.mubr.f32.gmra.mrb[0].mxu0 %v5070
      %v5238 = vpop.f32.mrb[0].mxu0
      %v5239 = vadd.f32 0.0, %v5238
      %v5240 = vpop.f32.mrb[0].mxu0
      %5241 = vmatprep.mubr.f32.mxu0 0.0
      %5242 = vmatmul.mubr.f32.gmra.mrb[0].mxu0 %v5073
      %v5243 = vpop.f32.mrb[0].mxu0
      %v5244 = vadd.f32 0.0, %v5243
      %v5245 = vpop.f32.mrb[0].mxu0
      %5246 = vmatprep.mubr.f32.mxu0 0.0
      %5247 = vmatmul.mubr.f32.gmra.mrb[0].mxu0 %v5076
      %v5248 = vpop.f32.mrb[0].mxu0
      %v5249 = vadd.f32 0.0, %v5248
      %v5250 = vpop.f32.mrb[0].mxu0
      %5251 = vmatprep.mubr.f32.mxu0 0.0
      %5252 = vmatmul.mubr.f32.gmra.mrb[0].mxu0 %v5079
      %v5253 = vpop.f32.mrb[0].mxu0
      %v5254 = vadd.f32 0.0, %v5253
      %v5255 = vpop.f32.mrb[0].mxu0
      %5256 = vmatprep.mubr.f32.mxu0 0.0
      %5257 = vmatmul.mubr.f32.gmra.mrb[0].mxu0 %v5082
      %v5258 = vpop.f32.mrb[0].mxu0
      %v5259 = vadd.f32 0.0, %v5258
      %v5260 = vpop.f32.mrb[0].mxu0
      %5261 = vmatprep.mubr.f32.mxu0 0.0
      %5262 = vmatmul.mubr.f32.gmra.mrb[0].mxu0 %v5085
      %v5263 = vpop.f32.mrb[0].mxu0
      %v5264 = vadd.f32 0.0, %v5263
      %v5265 = vpop.f32.mrb[0].mxu0
      %5266 = vmatprep.mubr.f32.mxu0 0.0
      %5267 = vmatmul.mubr.f32.gmra.mrb[0].mxu0 %v5088
      %v5268 = vpop.f32.mrb[0].mxu0
      %v5269 = vadd.f32 0.0, %v5268
      %v5270 = vpop.f32.mrb[0].mxu0
      %5271 = vmatprep.mubr.f32.mxu0 0.0
      %5272 = vmatmul.mubr.f32.gmra.mrb[0].mxu0 %v5091
      %v5273 = vpop.f32.mrb[0].mxu0
      %v5274 = vadd.f32 0.0, %v5273
      %v5275 = vpop.f32.mrb[0].mxu0
      %5276 = vmatprep.mubr.f32.mxu0 0.0
      %5277 = vmatmul.mubr.f32.gmra.mrb[0].mxu0 %v5094
      %v5278 = vpop.f32.mrb[0].mxu0
      %v5279 = vadd.f32 0.0, %v5278
      %v5280 = vpop.f32.mrb[0].mxu0
      %5281 = vmatprep.mubr.f32.mxu0 0.0
      %5282 = vmatmul.mubr.f32.gmra.mrb[0].mxu0 %v5097
      %v5283 = vpop.f32.mrb[0].mxu0
      %v5284 = vadd.f32 0.0, %v5283
      %v5285 = vpop.f32.mrb[0].mxu0
      %5286 = vmatprep.mubr.f32.mxu0 0.0
      %5287 = vmatmul.mubr.f32.gmra.mrb[0].mxu0 %v5100
      %v5288 = vpop.f32.mrb[0].mxu0
      %v5289 = vadd.f32 0.0, %v5288
      %v5290 = vpop.f32.mrb[0].mxu0
      %5291 = vmatprep.mubr.f32.mxu0 0.0
      %5292 = vmatmul.mubr.f32.gmra.mrb[0].mxu0 %v5103
      %v5293 = vpop.f32.mrb[0].mxu0
      %v5294 = vadd.f32 0.0, %v5293
      %v5295 = vpop.f32.mrb[0].mxu0
      %5296 = vmatprep.mubr.f32.mxu0 0.0
      %5297 = vmatmul.mubr.f32.gmra.mrb[0].mxu0 %v5106
      %v5298 = vpop.f32.mrb[0].mxu0
      %v5299 = vadd.f32 0.0, %v5298
      %v5300 = vpop.f32.mrb[0].mxu0
      %5301 = vmatprep.mubr.f32.mxu0 0.0
      %5302 = vmatmul.mubr.f32.gmra.mrb[0].mxu0 %v5109
      %v5303 = vpop.f32.mrb[0].mxu0
      %v5304 = vadd.f32 0.0, %v5303
      %v5305 = vpop.f32.mrb[0].mxu0
      %5306 = vmatprep.mubr.f32.mxu0 0.0
      %5307 = vmatmul.mubr.f32.gmra.mrb[0].mxu0 %v5112
      %v5308 = vpop.f32.mrb[0].mxu0
      %v5309 = vadd.f32 0.0, %v5308
      %v5310 = vpop.f32.mrb[0].mxu0
      %5311 = vmatprep.mubr.f32.mxu0 0.0
      %5312 = vmatmul.mubr.f32.gmra.mrb[0].mxu0 %v5115
      %v5313 = vpop.f32.mrb[0].mxu0
      %v5314 = vadd.f32 0.0, %v5313
      %v5315 = vpop.f32.mrb[0].mxu0
      %5316 = vmatprep.mubr.f32.mxu0 0.0
      %5317 = vmatmul.mubr.f32.gmra.mrb[0].mxu0 %v5118
      %v5318 = vpop.f32.mrb[0].mxu0
      %v5319 = vadd.f32 0.0, %v5318
      %v5320 = vpop.f32.mrb[0].mxu0
      %5321 = vmatprep.mubr.f32.mxu0 0.0
      %5322 = vmatmul.mubr.f32.gmra.mrb[0].mxu0 %v5121
      %v5323 = vpop.f32.mrb[0].mxu0
      %v5324 = vadd.f32 0.0, %v5323
      %v5325 = vpop.f32.mrb[0].mxu0
      %5326 = vmatprep.mubr.f32.mxu0 0.0
      %5327 = vmatmul.mubr.f32.gmra.mrb[0].mxu0 %v5124
      %v5328 = vpop.f32.mrb[0].mxu0
      %v5329 = vadd.f32 0.0, %v5328
      %v5330 = vpop.f32.mrb[0].mxu0
      %5331 = vmatprep.mubr.f32.mxu0 0.0
      %5332 = vmatmul.mubr.f32.gmra.mrb[0].mxu0 %v5127
      %v5333 = vpop.f32.mrb[0].mxu0
      %v5334 = vadd.f32 0.0, %v5333
      %v5335 = vpop.f32.mrb[0].mxu0
      %5336 = vmatprep.mubr.f32.mxu0 0.0
      %5337 = vmatmul.mubr.f32.gmra.mrb[0].mxu0 %v5130
      %v5338 = vpop.f32.mrb[0].mxu0
      %v5339 = vadd.f32 0.0, %v5338
      %v5340 = vpop.f32.mrb[0].mxu0
      %5341 = vmatprep.mubr.f32.mxu0 0.0
      %5342 = vmatmul.mubr.f32.gmra.mrb[0].mxu0 %v5133
      %v5343 = vpop.f32.mrb[0].mxu0
      %v5344 = vadd.f32 0.0, %v5343
      %v5345 = vpop.f32.mrb[0].mxu0
      %5346 = vmatprep.mubr.f32.mxu0 0.0
      %5347 = vmatmul.mubr.f32.gmra.mrb[0].mxu0 %v5136
      %v5348 = vpop.f32.mrb[0].mxu0
      %v5349 = vadd.f32 0.0, %v5348
      %v5350 = vpop.f32.mrb[0].mxu0
      %5351 = vmatprep.mubr.f32.mxu0 0.0
      %5352 = vmatmul.mubr.f32.gmra.mrb[0].mxu0 %v5139
      %v5353 = vpop.f32.mrb[0].mxu0
      %v5354 = vadd.f32 0.0, %v5353
      %v5355 = vpop.f32.mrb[0].mxu0
      %5356 = vmatprep.mubr.f32.mxu0 0.0
      %5357 = vmatmul.mubr.f32.gmra.mrb[0].mxu0 %v5142
      %v5358 = vpop.f32.mrb[0].mxu0
      %v5359 = vadd.f32 0.0, %v5358
      %v5360 = vpop.f32.mrb[0].mxu0
      %5361 = vmatprep.mubr.f32.mxu0 0.0
      %5362 = vmatmul.mubr.f32.gmra.mrb[0].mxu0 %v5145
      %v5363 = vpop.f32.mrb[0].mxu0
      %v5364 = vadd.f32 0.0, %v5363
      %v5365 = vpop.f32.mrb[0].mxu0
      %5366 = vmatprep.mubr.f32.mxu0 0.0
      %5367 = vmatmul.mubr.f32.gmra.mrb[0].mxu0 %v5148
      %v5368 = vpop.f32.mrb[0].mxu0
      %v5369 = vadd.f32 0.0, %v5368
      %v5370 = vpop.f32.mrb[0].mxu0
      %5371 = vmatprep.mubr.f32.mxu0 0.0
      %5372 = vmatmul.mubr.f32.gmra.mrb[0].mxu0 %v5151
      %v5373 = vpop.f32.mrb[0].mxu0
      %v5374 = vadd.f32 0.0, %v5373
      %v5375 = vpop.f32.mrb[0].mxu0
      %5376 = vmatprep.mubr.f32.mxu0 0.0
      %5377 = vmatmul.mubr.f32.gmra.mrb[0].mxu0 %v5154
      %v5378 = vpop.f32.mrb[0].mxu0
      %v5379 = vadd.f32 0.0, %v5378
      %v5380 = vpop.f32.mrb[0].mxu0
      %5381 = vmatprep.mubr.f32.mxu0 0.0
      %5382 = vmatmul.mubr.f32.gmra.mrb[0].mxu0 %v5157
      %v5383 = vpop.f32.mrb[0].mxu0
      %v5384 = vadd.f32 0.0, %v5383
      %v5385 = vpop.f32.mrb[0].mxu0
      %5386 = vdwg.mxu0
      %v5387 = vadd.f32 %v4997, %v5229
      %v5388 = vadd.f32 %v4998, %v5234
      %v5389 = vadd.f32 %v4999, %v5239
      %v5390 = vadd.f32 %v5000, %v5244
      %v5391 = vadd.f32 %v5001, %v5249
      %v5392 = vadd.f32 %v5002, %v5254
      %v5393 = vadd.f32 %v5003, %v5259
      %v5394 = vadd.f32 %v5004, %v5264
      %v5395 = vadd.f32 %v5005, %v5269
      %v5396 = vadd.f32 %v5006, %v5274
      %v5397 = vadd.f32 %v5007, %v5279
      %v5398 = vadd.f32 %v5008, %v5284
      %v5399 = vadd.f32 %v5009, %v5289
      %v5400 = vadd.f32 %v5010, %v5294
      %v5401 = vadd.f32 %v5011, %v5299
      %v5402 = vadd.f32 %v5012, %v5304
      %v5403 = vadd.f32 %v5013, %v5309
      %v5404 = vadd.f32 %v5014, %v5314
      %v5405 = vadd.f32 %v5015, %v5319
      %v5406 = vadd.f32 %v5016, %v5324
      %v5407 = vadd.f32 %v5017, %v5329
      %v5408 = vadd.f32 %v5018, %v5334
      %v5409 = vadd.f32 %v5019, %v5339
      %v5410 = vadd.f32 %v5020, %v5344
      %v5411 = vadd.f32 %v5021, %v5349
      %v5412 = vadd.f32 %v5022, %v5354
      %v5413 = vadd.f32 %v5023, %v5359
      %v5414 = vadd.f32 %v5024, %v5364
      %v5415 = vadd.f32 %v5025, %v5369
      %v5416 = vadd.f32 %v5026, %v5374
      %v5417 = vadd.f32 %v5027, %v5379
      %v5418 = vadd.f32 %v5028, %v5384
      %v5419 = vld [vmem:[%s3859 + $0x8] sm:$0xff]
      %v5420 = vld [vmem:[%s3859 + $0x10] sm:$0xff]
      %v5421 = vld [vmem:[%s3859 + $0x28] sm:$0xff]
      %v5422 = vld [vmem:[%s3859 + $0x30] sm:$0xff]
      %v5423 = vld [vmem:[%s3859 + $0x48] sm:$0xff]
      %v5424 = vld [vmem:[%s3859 + $0x50] sm:$0xff]
      %v5425 = vld [vmem:[%s3859 + $0x68] sm:$0xff]
      %v5426 = vld [vmem:[%s3859 + $0x70] sm:$0xff]
      %v5427 = vld [vmem:[%s3859 + $0x88] sm:$0xff]
      %v5428 = vld [vmem:[%s3859 + $0x90] sm:$0xff]
      %v5429 = vld [vmem:[%s3859 + $0xa8] sm:$0xff]
      %v5430 = vld [vmem:[%s3859 + $0xb0] sm:$0xff]
      %v5431 = vld [vmem:[%s3859 + $0xc8] sm:$0xff]
      %v5432 = vld [vmem:[%s3859 + $0xd0] sm:$0xff]
      %v5433 = vld [vmem:[%s3859 + $0xe8] sm:$0xff]
      %v5434 = vld [vmem:[%s3859 + $0xf0] sm:$0xff]
      %v5435 = vld [vmem:[%s3859 + $0x108] sm:$0xff]
      %v5436 = vld [vmem:[%s3859 + $0x110] sm:$0xff]
      %v5437 = vld [vmem:[%s3859 + $0x128] sm:$0xff]
      %v5438 = vld [vmem:[%s3859 + $0x130] sm:$0xff]
      %v5439 = vld [vmem:[%s3859 + $0x148] sm:$0xff]
      %v5440 = vld [vmem:[%s3859 + $0x150] sm:$0xff]
      %v5441 = vld [vmem:[%s3859 + $0x168] sm:$0xff]
      %v5442 = vld [vmem:[%s3859 + $0x170] sm:$0xff]
      %v5443 = vld [vmem:[%s3859 + $0x188] sm:$0xff]
      %v5444 = vld [vmem:[%s3859 + $0x190] sm:$0xff]
      %v5445 = vld [vmem:[%s3859 + $0x1a8] sm:$0xff]
      %v5446 = vld [vmem:[%s3859 + $0x1b0] sm:$0xff]
      %v5447 = vld [vmem:[%s3859 + $0x1c8] sm:$0xff]
      %v5448 = vld [vmem:[%s3859 + $0x1d0] sm:$0xff]
      %v5449 = vld [vmem:[%s3859 + $0x1e8] sm:$0xff]
      %v5450 = vld [vmem:[%s3859 + $0x1f0] sm:$0xff]
      %s5451 = scalar_lea.vmem %s3, 16
      %v5452 = vld [vmem:[%s5451] sm:$0xf]
      %v5454 = vsel %vm257, %v5419, 0
      %v5457 = vsel %vm257, %v5420, 0
      %v5460 = vsel %vm257, %v5421, 0
      %v5463 = vsel %vm257, %v5422, 0
      %v5466 = vsel %vm257, %v5423, 0
      %v5469 = vsel %vm257, %v5424, 0
      %v5472 = vsel %vm257, %v5425, 0
      %v5475 = vsel %vm257, %v5426, 0
      %v5478 = vsel %vm257, %v5427, 0
      %v5481 = vsel %vm257, %v5428, 0
      %v5484 = vsel %vm257, %v5429, 0
      %v5487 = vsel %vm257, %v5430, 0
      %v5490 = vsel %vm257, %v5431, 0
      %v5493 = vsel %vm257, %v5432, 0
      %v5496 = vsel %vm257, %v5433, 0
      %v5499 = vsel %vm257, %v5434, 0
      %v5502 = vsel %vm257, %v5435, 0
      %v5505 = vsel %vm257, %v5436, 0
      %v5508 = vsel %vm257, %v5437, 0
      %v5511 = vsel %vm257, %v5438, 0
      %v5514 = vsel %vm257, %v5439, 0
      %v5517 = vsel %vm257, %v5440, 0
      %v5520 = vsel %vm257, %v5441, 0
      %v5523 = vsel %vm257, %v5442, 0
      %v5526 = vsel %vm257, %v5443, 0
      %v5529 = vsel %vm257, %v5444, 0
      %v5532 = vsel %vm257, %v5445, 0
      %v5535 = vsel %vm257, %v5446, 0
      %v5538 = vsel %vm257, %v5447, 0
      %v5541 = vsel %vm257, %v5448, 0
      %v5544 = vsel %vm257, %v5449, 0
      %v5547 = vsel %vm257, %v5450, 0
      %v5550 = vsel %vm495, %v5452, 0
      %5552 = vmatprep.subr.mxu0 0.0
      %5553 = vmatpush1.msra.mxu0 %v5550
      %5554 = vmatprep.subr.mxu0 0.0
      %5555 = vmatpush1.msra.mxu0 0.0
      %5556 = vmatprep.subr.mxu0 0.0
      %5557 = vmatpush1.msra.mxu0 0.0
      %5558 = vmatprep.subr.mxu0 0.0
      %5559 = vmatpush1.msra.mxu0 0.0
      %5560 = vmatprep.subr.mxu0 0.0
      %5561 = vmatpush1.msra.mxu0 0.0
      %5562 = vmatprep.subr.mxu0 0.0
      %5563 = vmatpush1.msra.mxu0 0.0
      %5564 = vmatprep.subr.mxu0 0.0
      %5565 = vmatpush1.msra.mxu0 0.0
      %5566 = vmatprep.subr.mxu0 0.0
      %5567 = vmatpush1.msra.mxu0 0.0
      %5568 = vmatprep.subr.mxu0 0.0
      %5569 = vmatpush1.msra.mxu0 0.0
      %5570 = vmatprep.subr.mxu0 0.0
      %5571 = vmatpush1.msra.mxu0 0.0
      %5572 = vmatprep.subr.mxu0 0.0
      %5573 = vmatpush1.msra.mxu0 0.0
      %5574 = vmatprep.subr.mxu0 0.0
      %5575 = vmatpush1.msra.mxu0 0.0
      %5576 = vmatprep.subr.mxu0 0.0
      %5577 = vmatpush1.msra.mxu0 0.0
      %5578 = vmatprep.subr.mxu0 0.0
      %5579 = vmatpush1.msra.mxu0 0.0
      %5580 = vmatprep.subr.mxu0 0.0
      %5581 = vmatpush1.msra.mxu0 0.0
      %5582 = vmatprep.subr.mxu0 0.0
      %5583 = vmatpush1.msra.mxu0 0.0
      %5584 = vmatprep.subr.mxu0 0.0
      %5585 = vmatpush1.msra.mxu0 0.0
      %5586 = vmatprep.subr.mxu0 0.0
      %5587 = vmatpush1.msra.mxu0 0.0
      %5588 = vmatprep.subr.mxu0 0.0
      %5589 = vmatpush1.msra.mxu0 0.0
      %5590 = vmatprep.subr.mxu0 0.0
      %5591 = vmatpush1.msra.mxu0 0.0
      %5592 = vmatprep.subr.mxu0 0.0
      %5593 = vmatpush1.msra.mxu0 0.0
      %5594 = vmatprep.subr.mxu0 0.0
      %5595 = vmatpush1.msra.mxu0 0.0
      %5596 = vmatprep.subr.mxu0 0.0
      %5597 = vmatpush1.msra.mxu0 0.0
      %5598 = vmatprep.subr.mxu0 0.0
      %5599 = vmatpush1.msra.mxu0 0.0
      %5600 = vmatprep.subr.mxu0 0.0
      %5601 = vmatpush1.msra.mxu0 0.0
      %5602 = vmatprep.subr.mxu0 0.0
      %5603 = vmatpush1.msra.mxu0 0.0
      %5604 = vmatprep.subr.mxu0 0.0
      %5605 = vmatpush1.msra.mxu0 0.0
      %5606 = vmatprep.subr.mxu0 0.0
      %5607 = vmatpush1.msra.mxu0 0.0
      %5608 = vmatprep.subr.mxu0 0.0
      %5609 = vmatpush1.msra.mxu0 0.0
      %5610 = vmatprep.subr.mxu0 0.0
      %5611 = vmatpush1.msra.mxu0 0.0
      %5612 = vmatprep.subr.mxu0 0.0
      %5613 = vmatpush1.msra.mxu0 0.0
      %5614 = vmatprep.subr.mxu0 0.0
      %5615 = vmatpush1.msra.mxu0 0.0
      %5616 = vmatprep.mubr.f32.mxu0 0.0
      %5617 = vmatmul.mubr.f32.gmra.mrb[0].mxu0 %v5454
      %v5618 = vpop.f32.mrb[0].mxu0
      %v5619 = vadd.f32 0.0, %v5618
      %v5620 = vpop.f32.mrb[0].mxu0
      %5621 = vmatprep.mubr.f32.mxu0 0.0
      %5622 = vmatmul.mubr.f32.gmra.mrb[0].mxu0 %v5457
      %v5623 = vpop.f32.mrb[0].mxu0
      %v5624 = vadd.f32 0.0, %v5623
      %v5625 = vpop.f32.mrb[0].mxu0
      %5626 = vmatprep.mubr.f32.mxu0 0.0
      %5627 = vmatmul.mubr.f32.gmra.mrb[0].mxu0 %v5460
      %v5628 = vpop.f32.mrb[0].mxu0
      %v5629 = vadd.f32 0.0, %v5628
      %v5630 = vpop.f32.mrb[0].mxu0
      %5631 = vmatprep.mubr.f32.mxu0 0.0
      %5632 = vmatmul.mubr.f32.gmra.mrb[0].mxu0 %v5463
      %v5633 = vpop.f32.mrb[0].mxu0
      %v5634 = vadd.f32 0.0, %v5633
      %v5635 = vpop.f32.mrb[0].mxu0
      %5636 = vmatprep.mubr.f32.mxu0 0.0
      %5637 = vmatmul.mubr.f32.gmra.mrb[0].mxu0 %v5466
      %v5638 = vpop.f32.mrb[0].mxu0
      %v5639 = vadd.f32 0.0, %v5638
      %v5640 = vpop.f32.mrb[0].mxu0
      %5641 = vmatprep.mubr.f32.mxu0 0.0
      %5642 = vmatmul.mubr.f32.gmra.mrb[0].mxu0 %v5469
      %v5643 = vpop.f32.mrb[0].mxu0
      %v5644 = vadd.f32 0.0, %v5643
      %v5645 = vpop.f32.mrb[0].mxu0
      %5646 = vmatprep.mubr.f32.mxu0 0.0
      %5647 = vmatmul.mubr.f32.gmra.mrb[0].mxu0 %v5472
      %v5648 = vpop.f32.mrb[0].mxu0
      %v5649 = vadd.f32 0.0, %v5648
      %v5650 = vpop.f32.mrb[0].mxu0
      %5651 = vmatprep.mubr.f32.mxu0 0.0
      %5652 = vmatmul.mubr.f32.gmra.mrb[0].mxu0 %v5475
      %v5653 = vpop.f32.mrb[0].mxu0
      %v5654 = vadd.f32 0.0, %v5653
      %v5655 = vpop.f32.mrb[0].mxu0
      %5656 = vmatprep.mubr.f32.mxu0 0.0
      %5657 = vmatmul.mubr.f32.gmra.mrb[0].mxu0 %v5478
      %v5658 = vpop.f32.mrb[0].mxu0
      %v5659 = vadd.f32 0.0, %v5658
      %v5660 = vpop.f32.mrb[0].mxu0
      %5661 = vmatprep.mubr.f32.mxu0 0.0
      %5662 = vmatmul.mubr.f32.gmra.mrb[0].mxu0 %v5481
      %v5663 = vpop.f32.mrb[0].mxu0
      %v5664 = vadd.f32 0.0, %v5663
      %v5665 = vpop.f32.mrb[0].mxu0
      %5666 = vmatprep.mubr.f32.mxu0 0.0
      %5667 = vmatmul.mubr.f32.gmra.mrb[0].mxu0 %v5484
      %v5668 = vpop.f32.mrb[0].mxu0
      %v5669 = vadd.f32 0.0, %v5668
      %v5670 = vpop.f32.mrb[0].mxu0
      %5671 = vmatprep.mubr.f32.mxu0 0.0
      %5672 = vmatmul.mubr.f32.gmra.mrb[0].mxu0 %v5487
      %v5673 = vpop.f32.mrb[0].mxu0
      %v5674 = vadd.f32 0.0, %v5673
      %v5675 = vpop.f32.mrb[0].mxu0
      %5676 = vmatprep.mubr.f32.mxu0 0.0
      %5677 = vmatmul.mubr.f32.gmra.mrb[0].mxu0 %v5490
      %v5678 = vpop.f32.mrb[0].mxu0
      %v5679 = vadd.f32 0.0, %v5678
      %v5680 = vpop.f32.mrb[0].mxu0
      %5681 = vmatprep.mubr.f32.mxu0 0.0
      %5682 = vmatmul.mubr.f32.gmra.mrb[0].mxu0 %v5493
      %v5683 = vpop.f32.mrb[0].mxu0
      %v5684 = vadd.f32 0.0, %v5683
      %v5685 = vpop.f32.mrb[0].mxu0
      %5686 = vmatprep.mubr.f32.mxu0 0.0
      %5687 = vmatmul.mubr.f32.gmra.mrb[0].mxu0 %v5496
      %v5688 = vpop.f32.mrb[0].mxu0
      %v5689 = vadd.f32 0.0, %v5688
      %v5690 = vpop.f32.mrb[0].mxu0
      %5691 = vmatprep.mubr.f32.mxu0 0.0
      %5692 = vmatmul.mubr.f32.gmra.mrb[0].mxu0 %v5499
      %v5693 = vpop.f32.mrb[0].mxu0
      %v5694 = vadd.f32 0.0, %v5693
      %v5695 = vpop.f32.mrb[0].mxu0
      %5696 = vmatprep.mubr.f32.mxu0 0.0
      %5697 = vmatmul.mubr.f32.gmra.mrb[0].mxu0 %v5502
      %v5698 = vpop.f32.mrb[0].mxu0
      %v5699 = vadd.f32 0.0, %v5698
      %v5700 = vpop.f32.mrb[0].mxu0
      %5701 = vmatprep.mubr.f32.mxu0 0.0
      %5702 = vmatmul.mubr.f32.gmra.mrb[0].mxu0 %v5505
      %v5703 = vpop.f32.mrb[0].mxu0
      %v5704 = vadd.f32 0.0, %v5703
      %v5705 = vpop.f32.mrb[0].mxu0
      %5706 = vmatprep.mubr.f32.mxu0 0.0
      %5707 = vmatmul.mubr.f32.gmra.mrb[0].mxu0 %v5508
      %v5708 = vpop.f32.mrb[0].mxu0
      %v5709 = vadd.f32 0.0, %v5708
      %v5710 = vpop.f32.mrb[0].mxu0
      %5711 = vmatprep.mubr.f32.mxu0 0.0
      %5712 = vmatmul.mubr.f32.gmra.mrb[0].mxu0 %v5511
      %v5713 = vpop.f32.mrb[0].mxu0
      %v5714 = vadd.f32 0.0, %v5713
      %v5715 = vpop.f32.mrb[0].mxu0
      %5716 = vmatprep.mubr.f32.mxu0 0.0
      %5717 = vmatmul.mubr.f32.gmra.mrb[0].mxu0 %v5514
      %v5718 = vpop.f32.mrb[0].mxu0
      %v5719 = vadd.f32 0.0, %v5718
      %v5720 = vpop.f32.mrb[0].mxu0
      %5721 = vmatprep.mubr.f32.mxu0 0.0
      %5722 = vmatmul.mubr.f32.gmra.mrb[0].mxu0 %v5517
      %v5723 = vpop.f32.mrb[0].mxu0
      %v5724 = vadd.f32 0.0, %v5723
      %v5725 = vpop.f32.mrb[0].mxu0
      %5726 = vmatprep.mubr.f32.mxu0 0.0
      %5727 = vmatmul.mubr.f32.gmra.mrb[0].mxu0 %v5520
      %v5728 = vpop.f32.mrb[0].mxu0
      %v5729 = vadd.f32 0.0, %v5728
      %v5730 = vpop.f32.mrb[0].mxu0
      %5731 = vmatprep.mubr.f32.mxu0 0.0
      %5732 = vmatmul.mubr.f32.gmra.mrb[0].mxu0 %v5523
      %v5733 = vpop.f32.mrb[0].mxu0
      %v5734 = vadd.f32 0.0, %v5733
      %v5735 = vpop.f32.mrb[0].mxu0
      %5736 = vmatprep.mubr.f32.mxu0 0.0
      %5737 = vmatmul.mubr.f32.gmra.mrb[0].mxu0 %v5526
      %v5738 = vpop.f32.mrb[0].mxu0
      %v5739 = vadd.f32 0.0, %v5738
      %v5740 = vpop.f32.mrb[0].mxu0
      %5741 = vmatprep.mubr.f32.mxu0 0.0
      %5742 = vmatmul.mubr.f32.gmra.mrb[0].mxu0 %v5529
      %v5743 = vpop.f32.mrb[0].mxu0
      %v5744 = vadd.f32 0.0, %v5743
      %v5745 = vpop.f32.mrb[0].mxu0
      %5746 = vmatprep.mubr.f32.mxu0 0.0
      %5747 = vmatmul.mubr.f32.gmra.mrb[0].mxu0 %v5532
      %v5748 = vpop.f32.mrb[0].mxu0
      %v5749 = vadd.f32 0.0, %v5748
      %v5750 = vpop.f32.mrb[0].mxu0
      %5751 = vmatprep.mubr.f32.mxu0 0.0
      %5752 = vmatmul.mubr.f32.gmra.mrb[0].mxu0 %v5535
      %v5753 = vpop.f32.mrb[0].mxu0
      %v5754 = vadd.f32 0.0, %v5753
      %v5755 = vpop.f32.mrb[0].mxu0
      %5756 = vmatprep.mubr.f32.mxu0 0.0
      %5757 = vmatmul.mubr.f32.gmra.mrb[0].mxu0 %v5538
      %v5758 = vpop.f32.mrb[0].mxu0
      %v5759 = vadd.f32 0.0, %v5758
      %v5760 = vpop.f32.mrb[0].mxu0
      %5761 = vmatprep.mubr.f32.mxu0 0.0
      %5762 = vmatmul.mubr.f32.gmra.mrb[0].mxu0 %v5541
      %v5763 = vpop.f32.mrb[0].mxu0
      %v5764 = vadd.f32 0.0, %v5763
      %v5765 = vpop.f32.mrb[0].mxu0
      %5766 = vmatprep.mubr.f32.mxu0 0.0
      %5767 = vmatmul.mubr.f32.gmra.mrb[0].mxu0 %v5544
      %v5768 = vpop.f32.mrb[0].mxu0
      %v5769 = vadd.f32 0.0, %v5768
      %v5770 = vpop.f32.mrb[0].mxu0
      %5771 = vmatprep.mubr.f32.mxu0 0.0
      %5772 = vmatmul.mubr.f32.gmra.mrb[0].mxu0 %v5547
      %v5773 = vpop.f32.mrb[0].mxu0
      %v5774 = vadd.f32 0.0, %v5773
      %v5775 = vpop.f32.mrb[0].mxu0
      %5776 = vdwg.mxu0
      %v5777 = vadd.f32 %v5387, %v5619
      %v5778 = vadd.f32 %v5388, %v5624
      %v5779 = vadd.f32 %v5389, %v5629
      %v5780 = vadd.f32 %v5390, %v5634
      %v5781 = vadd.f32 %v5391, %v5639
      %v5782 = vadd.f32 %v5392, %v5644
      %v5783 = vadd.f32 %v5393, %v5649
      %v5784 = vadd.f32 %v5394, %v5654
      %v5785 = vadd.f32 %v5395, %v5659
      %v5786 = vadd.f32 %v5396, %v5664
      %v5787 = vadd.f32 %v5397, %v5669
      %v5788 = vadd.f32 %v5398, %v5674
      %v5789 = vadd.f32 %v5399, %v5679
      %v5790 = vadd.f32 %v5400, %v5684
      %v5791 = vadd.f32 %v5401, %v5689
      %v5792 = vadd.f32 %v5402, %v5694
      %v5793 = vadd.f32 %v5403, %v5699
      %v5794 = vadd.f32 %v5404, %v5704
      %v5795 = vadd.f32 %v5405, %v5709
      %v5796 = vadd.f32 %v5406, %v5714
      %v5797 = vadd.f32 %v5407, %v5719
      %v5798 = vadd.f32 %v5408, %v5724
      %v5799 = vadd.f32 %v5409, %v5729
      %v5800 = vadd.f32 %v5410, %v5734
      %v5801 = vadd.f32 %v5411, %v5739
      %v5802 = vadd.f32 %v5412, %v5744
      %v5803 = vadd.f32 %v5413, %v5749
      %v5804 = vadd.f32 %v5414, %v5754
      %v5805 = vadd.f32 %v5415, %v5759
      %v5806 = vadd.f32 %v5416, %v5764
      %v5807 = vadd.f32 %v5417, %v5769
      %v5808 = vadd.f32 %v5418, %v5774
      %v5809 = vld [vmem:[%s3859 + $0x9] sm:$0xff]
      %v5810 = vld [vmem:[%s3859 + $0x11] sm:$0xff]
      %v5811 = vld [vmem:[%s3859 + $0x29] sm:$0xff]
      %v5812 = vld [vmem:[%s3859 + $0x31] sm:$0xff]
      %v5813 = vld [vmem:[%s3859 + $0x49] sm:$0xff]
      %v5814 = vld [vmem:[%s3859 + $0x51] sm:$0xff]
      %v5815 = vld [vmem:[%s3859 + $0x69] sm:$0xff]
      %v5816 = vld [vmem:[%s3859 + $0x71] sm:$0xff]
      %v5817 = vld [vmem:[%s3859 + $0x89] sm:$0xff]
      %v5818 = vld [vmem:[%s3859 + $0x91] sm:$0xff]
      %v5819 = vld [vmem:[%s3859 + $0xa9] sm:$0xff]
      %v5820 = vld [vmem:[%s3859 + $0xb1] sm:$0xff]
      %v5821 = vld [vmem:[%s3859 + $0xc9] sm:$0xff]
      %v5822 = vld [vmem:[%s3859 + $0xd1] sm:$0xff]
      %v5823 = vld [vmem:[%s3859 + $0xe9] sm:$0xff]
      %v5824 = vld [vmem:[%s3859 + $0xf1] sm:$0xff]
      %v5825 = vld [vmem:[%s3859 + $0x109] sm:$0xff]
      %v5826 = vld [vmem:[%s3859 + $0x111] sm:$0xff]
      %v5827 = vld [vmem:[%s3859 + $0x129] sm:$0xff]
      %v5828 = vld [vmem:[%s3859 + $0x131] sm:$0xff]
      %v5829 = vld [vmem:[%s3859 + $0x149] sm:$0xff]
      %v5830 = vld [vmem:[%s3859 + $0x151] sm:$0xff]
      %v5831 = vld [vmem:[%s3859 + $0x169] sm:$0xff]
      %v5832 = vld [vmem:[%s3859 + $0x171] sm:$0xff]
      %v5833 = vld [vmem:[%s3859 + $0x189] sm:$0xff]
      %v5834 = vld [vmem:[%s3859 + $0x191] sm:$0xff]
      %v5835 = vld [vmem:[%s3859 + $0x1a9] sm:$0xff]
      %v5836 = vld [vmem:[%s3859 + $0x1b1] sm:$0xff]
      %v5837 = vld [vmem:[%s3859 + $0x1c9] sm:$0xff]
      %v5838 = vld [vmem:[%s3859 + $0x1d1] sm:$0xff]
      %v5839 = vld [vmem:[%s3859 + $0x1e9] sm:$0xff]
      %v5840 = vld [vmem:[%s3859 + $0x1f1] sm:$0xff]
      %s5841 = scalar_lea.vmem %s3, 20
      %v5842 = vld [vmem:[%s5841] sm:$0xf]
      %v5844 = vsel %vm257, %v5809, 0
      %v5847 = vsel %vm257, %v5810, 0
      %v5850 = vsel %vm257, %v5811, 0
      %v5853 = vsel %vm257, %v5812, 0
      %v5856 = vsel %vm257, %v5813, 0
      %v5859 = vsel %vm257, %v5814, 0
      %v5862 = vsel %vm257, %v5815, 0
      %v5865 = vsel %vm257, %v5816, 0
      %v5868 = vsel %vm257, %v5817, 0
      %v5871 = vsel %vm257, %v5818, 0
      %v5874 = vsel %vm257, %v5819, 0
      %v5877 = vsel %vm257, %v5820, 0
      %v5880 = vsel %vm257, %v5821, 0
      %v5883 = vsel %vm257, %v5822, 0
      %v5886 = vsel %vm257, %v5823, 0
      %v5889 = vsel %vm257, %v5824, 0
      %v5892 = vsel %vm257, %v5825, 0
      %v5895 = vsel %vm257, %v5826, 0
      %v5898 = vsel %vm257, %v5827, 0
      %v5901 = vsel %vm257, %v5828, 0
      %v5904 = vsel %vm257, %v5829, 0
      %v5907 = vsel %vm257, %v5830, 0
      %v5910 = vsel %vm257, %v5831, 0
      %v5913 = vsel %vm257, %v5832, 0
      %v5916 = vsel %vm257, %v5833, 0
      %v5919 = vsel %vm257, %v5834, 0
      %v5922 = vsel %vm257, %v5835, 0
      %v5925 = vsel %vm257, %v5836, 0
      %v5928 = vsel %vm257, %v5837, 0
      %v5931 = vsel %vm257, %v5838, 0
      %v5934 = vsel %vm257, %v5839, 0
      %v5937 = vsel %vm257, %v5840, 0
      %v5940 = vsel %vm495, %v5842, 0
      %5942 = vmatprep.subr.mxu0 0.0
      %5943 = vmatpush1.msra.mxu0 %v5940
      %5944 = vmatprep.subr.mxu0 0.0
      %5945 = vmatpush1.msra.mxu0 0.0
      %5946 = vmatprep.subr.mxu0 0.0
      %5947 = vmatpush1.msra.mxu0 0.0
      %5948 = vmatprep.subr.mxu0 0.0
      %5949 = vmatpush1.msra.mxu0 0.0
      %5950 = vmatprep.subr.mxu0 0.0
      %5951 = vmatpush1.msra.mxu0 0.0
      %5952 = vmatprep.subr.mxu0 0.0
      %5953 = vmatpush1.msra.mxu0 0.0
      %5954 = vmatprep.subr.mxu0 0.0
      %5955 = vmatpush1.msra.mxu0 0.0
      %5956 = vmatprep.subr.mxu0 0.0
      %5957 = vmatpush1.msra.mxu0 0.0
      %5958 = vmatprep.subr.mxu0 0.0
      %5959 = vmatpush1.msra.mxu0 0.0
      %5960 = vmatprep.subr.mxu0 0.0
      %5961 = vmatpush1.msra.mxu0 0.0
      %5962 = vmatprep.subr.mxu0 0.0
      %5963 = vmatpush1.msra.mxu0 0.0
      %5964 = vmatprep.subr.mxu0 0.0
      %5965 = vmatpush1.msra.mxu0 0.0
      %5966 = vmatprep.subr.mxu0 0.0
      %5967 = vmatpush1.msra.mxu0 0.0
      %5968 = vmatprep.subr.mxu0 0.0
      %5969 = vmatpush1.msra.mxu0 0.0
      %5970 = vmatprep.subr.mxu0 0.0
      %5971 = vmatpush1.msra.mxu0 0.0
      %5972 = vmatprep.subr.mxu0 0.0
      %5973 = vmatpush1.msra.mxu0 0.0
      %5974 = vmatprep.subr.mxu0 0.0
      %5975 = vmatpush1.msra.mxu0 0.0
      %5976 = vmatprep.subr.mxu0 0.0
      %5977 = vmatpush1.msra.mxu0 0.0
      %5978 = vmatprep.subr.mxu0 0.0
      %5979 = vmatpush1.msra.mxu0 0.0
      %5980 = vmatprep.subr.mxu0 0.0
      %5981 = vmatpush1.msra.mxu0 0.0
      %5982 = vmatprep.subr.mxu0 0.0
      %5983 = vmatpush1.msra.mxu0 0.0
      %5984 = vmatprep.subr.mxu0 0.0
      %5985 = vmatpush1.msra.mxu0 0.0
      %5986 = vmatprep.subr.mxu0 0.0
      %5987 = vmatpush1.msra.mxu0 0.0
      %5988 = vmatprep.subr.mxu0 0.0
      %5989 = vmatpush1.msra.mxu0 0.0
      %5990 = vmatprep.subr.mxu0 0.0
      %5991 = vmatpush1.msra.mxu0 0.0
      %5992 = vmatprep.subr.mxu0 0.0
      %5993 = vmatpush1.msra.mxu0 0.0
      %5994 = vmatprep.subr.mxu0 0.0
      %5995 = vmatpush1.msra.mxu0 0.0
      %5996 = vmatprep.subr.mxu0 0.0
      %5997 = vmatpush1.msra.mxu0 0.0
      %5998 = vmatprep.subr.mxu0 0.0
      %5999 = vmatpush1.msra.mxu0 0.0
      %6000 = vmatprep.subr.mxu0 0.0
      %6001 = vmatpush1.msra.mxu0 0.0
      %6002 = vmatprep.subr.mxu0 0.0
      %6003 = vmatpush1.msra.mxu0 0.0
      %6004 = vmatprep.subr.mxu0 0.0
      %6005 = vmatpush1.msra.mxu0 0.0
      %6006 = vmatprep.mubr.f32.mxu0 0.0
      %6007 = vmatmul.mubr.f32.gmra.mrb[0].mxu0 %v5844
      %v6008 = vpop.f32.mrb[0].mxu0
      %v6009 = vadd.f32 0.0, %v6008
      %v6010 = vpop.f32.mrb[0].mxu0
      %6011 = vmatprep.mubr.f32.mxu0 0.0
      %6012 = vmatmul.mubr.f32.gmra.mrb[0].mxu0 %v5847
      %v6013 = vpop.f32.mrb[0].mxu0
      %v6014 = vadd.f32 0.0, %v6013
      %v6015 = vpop.f32.mrb[0].mxu0
      %6016 = vmatprep.mubr.f32.mxu0 0.0
      %6017 = vmatmul.mubr.f32.gmra.mrb[0].mxu0 %v5850
      %v6018 = vpop.f32.mrb[0].mxu0
      %v6019 = vadd.f32 0.0, %v6018
      %v6020 = vpop.f32.mrb[0].mxu0
      %6021 = vmatprep.mubr.f32.mxu0 0.0
      %6022 = vmatmul.mubr.f32.gmra.mrb[0].mxu0 %v5853
      %v6023 = vpop.f32.mrb[0].mxu0
      %v6024 = vadd.f32 0.0, %v6023
      %v6025 = vpop.f32.mrb[0].mxu0
      %6026 = vmatprep.mubr.f32.mxu0 0.0
      %6027 = vmatmul.mubr.f32.gmra.mrb[0].mxu0 %v5856
      %v6028 = vpop.f32.mrb[0].mxu0
      %v6029 = vadd.f32 0.0, %v6028
      %v6030 = vpop.f32.mrb[0].mxu0
      %6031 = vmatprep.mubr.f32.mxu0 0.0
      %6032 = vmatmul.mubr.f32.gmra.mrb[0].mxu0 %v5859
      %v6033 = vpop.f32.mrb[0].mxu0
      %v6034 = vadd.f32 0.0, %v6033
      %v6035 = vpop.f32.mrb[0].mxu0
      %6036 = vmatprep.mubr.f32.mxu0 0.0
      %6037 = vmatmul.mubr.f32.gmra.mrb[0].mxu0 %v5862
      %v6038 = vpop.f32.mrb[0].mxu0
      %v6039 = vadd.f32 0.0, %v6038
      %v6040 = vpop.f32.mrb[0].mxu0
      %6041 = vmatprep.mubr.f32.mxu0 0.0
      %6042 = vmatmul.mubr.f32.gmra.mrb[0].mxu0 %v5865
      %v6043 = vpop.f32.mrb[0].mxu0
      %v6044 = vadd.f32 0.0, %v6043
      %v6045 = vpop.f32.mrb[0].mxu0
      %6046 = vmatprep.mubr.f32.mxu0 0.0
      %6047 = vmatmul.mubr.f32.gmra.mrb[0].mxu0 %v5868
      %v6048 = vpop.f32.mrb[0].mxu0
      %v6049 = vadd.f32 0.0, %v6048
      %v6050 = vpop.f32.mrb[0].mxu0
      %6051 = vmatprep.mubr.f32.mxu0 0.0
      %6052 = vmatmul.mubr.f32.gmra.mrb[0].mxu0 %v5871
      %v6053 = vpop.f32.mrb[0].mxu0
      %v6054 = vadd.f32 0.0, %v6053
      %v6055 = vpop.f32.mrb[0].mxu0
      %6056 = vmatprep.mubr.f32.mxu0 0.0
      %6057 = vmatmul.mubr.f32.gmra.mrb[0].mxu0 %v5874
      %v6058 = vpop.f32.mrb[0].mxu0
      %v6059 = vadd.f32 0.0, %v6058
      %v6060 = vpop.f32.mrb[0].mxu0
      %6061 = vmatprep.mubr.f32.mxu0 0.0
      %6062 = vmatmul.mubr.f32.gmra.mrb[0].mxu0 %v5877
      %v6063 = vpop.f32.mrb[0].mxu0
      %v6064 = vadd.f32 0.0, %v6063
      %v6065 = vpop.f32.mrb[0].mxu0
      %6066 = vmatprep.mubr.f32.mxu0 0.0
      %6067 = vmatmul.mubr.f32.gmra.mrb[0].mxu0 %v5880
      %v6068 = vpop.f32.mrb[0].mxu0
      %v6069 = vadd.f32 0.0, %v6068
      %v6070 = vpop.f32.mrb[0].mxu0
      %6071 = vmatprep.mubr.f32.mxu0 0.0
      %6072 = vmatmul.mubr.f32.gmra.mrb[0].mxu0 %v5883
      %v6073 = vpop.f32.mrb[0].mxu0
      %v6074 = vadd.f32 0.0, %v6073
      %v6075 = vpop.f32.mrb[0].mxu0
      %6076 = vmatprep.mubr.f32.mxu0 0.0
      %6077 = vmatmul.mubr.f32.gmra.mrb[0].mxu0 %v5886
      %v6078 = vpop.f32.mrb[0].mxu0
      %v6079 = vadd.f32 0.0, %v6078
      %v6080 = vpop.f32.mrb[0].mxu0
      %6081 = vmatprep.mubr.f32.mxu0 0.0
      %6082 = vmatmul.mubr.f32.gmra.mrb[0].mxu0 %v5889
      %v6083 = vpop.f32.mrb[0].mxu0
      %v6084 = vadd.f32 0.0, %v6083
      %v6085 = vpop.f32.mrb[0].mxu0
      %6086 = vmatprep.mubr.f32.mxu0 0.0
      %6087 = vmatmul.mubr.f32.gmra.mrb[0].mxu0 %v5892
      %v6088 = vpop.f32.mrb[0].mxu0
      %v6089 = vadd.f32 0.0, %v6088
      %v6090 = vpop.f32.mrb[0].mxu0
      %6091 = vmatprep.mubr.f32.mxu0 0.0
      %6092 = vmatmul.mubr.f32.gmra.mrb[0].mxu0 %v5895
      %v6093 = vpop.f32.mrb[0].mxu0
      %v6094 = vadd.f32 0.0, %v6093
      %v6095 = vpop.f32.mrb[0].mxu0
      %6096 = vmatprep.mubr.f32.mxu0 0.0
      %6097 = vmatmul.mubr.f32.gmra.mrb[0].mxu0 %v5898
      %v6098 = vpop.f32.mrb[0].mxu0
      %v6099 = vadd.f32 0.0, %v6098
      %v6100 = vpop.f32.mrb[0].mxu0
      %6101 = vmatprep.mubr.f32.mxu0 0.0
      %6102 = vmatmul.mubr.f32.gmra.mrb[0].mxu0 %v5901
      %v6103 = vpop.f32.mrb[0].mxu0
      %v6104 = vadd.f32 0.0, %v6103
      %v6105 = vpop.f32.mrb[0].mxu0
      %6106 = vmatprep.mubr.f32.mxu0 0.0
      %6107 = vmatmul.mubr.f32.gmra.mrb[0].mxu0 %v5904
      %v6108 = vpop.f32.mrb[0].mxu0
      %v6109 = vadd.f32 0.0, %v6108
      %v6110 = vpop.f32.mrb[0].mxu0
      %6111 = vmatprep.mubr.f32.mxu0 0.0
      %6112 = vmatmul.mubr.f32.gmra.mrb[0].mxu0 %v5907
      %v6113 = vpop.f32.mrb[0].mxu0
      %v6114 = vadd.f32 0.0, %v6113
      %v6115 = vpop.f32.mrb[0].mxu0
      %6116 = vmatprep.mubr.f32.mxu0 0.0
      %6117 = vmatmul.mubr.f32.gmra.mrb[0].mxu0 %v5910
      %v6118 = vpop.f32.mrb[0].mxu0
      %v6119 = vadd.f32 0.0, %v6118
      %v6120 = vpop.f32.mrb[0].mxu0
      %6121 = vmatprep.mubr.f32.mxu0 0.0
      %6122 = vmatmul.mubr.f32.gmra.mrb[0].mxu0 %v5913
      %v6123 = vpop.f32.mrb[0].mxu0
      %v6124 = vadd.f32 0.0, %v6123
      %v6125 = vpop.f32.mrb[0].mxu0
      %6126 = vmatprep.mubr.f32.mxu0 0.0
      %6127 = vmatmul.mubr.f32.gmra.mrb[0].mxu0 %v5916
      %v6128 = vpop.f32.mrb[0].mxu0
      %v6129 = vadd.f32 0.0, %v6128
      %v6130 = vpop.f32.mrb[0].mxu0
      %6131 = vmatprep.mubr.f32.mxu0 0.0
      %6132 = vmatmul.mubr.f32.gmra.mrb[0].mxu0 %v5919
      %v6133 = vpop.f32.mrb[0].mxu0
      %v6134 = vadd.f32 0.0, %v6133
      %v6135 = vpop.f32.mrb[0].mxu0
      %6136 = vmatprep.mubr.f32.mxu0 0.0
      %6137 = vmatmul.mubr.f32.gmra.mrb[0].mxu0 %v5922
      %v6138 = vpop.f32.mrb[0].mxu0
      %v6139 = vadd.f32 0.0, %v6138
      %v6140 = vpop.f32.mrb[0].mxu0
      %6141 = vmatprep.mubr.f32.mxu0 0.0
      %6142 = vmatmul.mubr.f32.gmra.mrb[0].mxu0 %v5925
      %v6143 = vpop.f32.mrb[0].mxu0
      %v6144 = vadd.f32 0.0, %v6143
      %v6145 = vpop.f32.mrb[0].mxu0
      %6146 = vmatprep.mubr.f32.mxu0 0.0
      %6147 = vmatmul.mubr.f32.gmra.mrb[0].mxu0 %v5928
      %v6148 = vpop.f32.mrb[0].mxu0
      %v6149 = vadd.f32 0.0, %v6148
      %v6150 = vpop.f32.mrb[0].mxu0
      %6151 = vmatprep.mubr.f32.mxu0 0.0
      %6152 = vmatmul.mubr.f32.gmra.mrb[0].mxu0 %v5931
      %v6153 = vpop.f32.mrb[0].mxu0
      %v6154 = vadd.f32 0.0, %v6153
      %v6155 = vpop.f32.mrb[0].mxu0
      %6156 = vmatprep.mubr.f32.mxu0 0.0
      %6157 = vmatmul.mubr.f32.gmra.mrb[0].mxu0 %v5934
      %v6158 = vpop.f32.mrb[0].mxu0
      %v6159 = vadd.f32 0.0, %v6158
      %v6160 = vpop.f32.mrb[0].mxu0
      %6161 = vmatprep.mubr.f32.mxu0 0.0
      %6162 = vmatmul.mubr.f32.gmra.mrb[0].mxu0 %v5937
      %v6163 = vpop.f32.mrb[0].mxu0
      %v6164 = vadd.f32 0.0, %v6163
      %v6165 = vpop.f32.mrb[0].mxu0
      %6166 = vdwg.mxu0
      %v6167 = vadd.f32 %v5777, %v6009
      %v6168 = vadd.f32 %v5778, %v6014
      %v6169 = vadd.f32 %v5779, %v6019
      %v6170 = vadd.f32 %v5780, %v6024
      %v6171 = vadd.f32 %v5781, %v6029
      %v6172 = vadd.f32 %v5782, %v6034
      %v6173 = vadd.f32 %v5783, %v6039
      %v6174 = vadd.f32 %v5784, %v6044
      %v6175 = vadd.f32 %v5785, %v6049
      %v6176 = vadd.f32 %v5786, %v6054
      %v6177 = vadd.f32 %v5787, %v6059
      %v6178 = vadd.f32 %v5788, %v6064
      %v6179 = vadd.f32 %v5789, %v6069
      %v6180 = vadd.f32 %v5790, %v6074
      %v6181 = vadd.f32 %v5791, %v6079
      %v6182 = vadd.f32 %v5792, %v6084
      %v6183 = vadd.f32 %v5793, %v6089
      %v6184 = vadd.f32 %v5794, %v6094
      %v6185 = vadd.f32 %v5795, %v6099
      %v6186 = vadd.f32 %v5796, %v6104
      %v6187 = vadd.f32 %v5797, %v6109
      %v6188 = vadd.f32 %v5798, %v6114
      %v6189 = vadd.f32 %v5799, %v6119
      %v6190 = vadd.f32 %v5800, %v6124
      %v6191 = vadd.f32 %v5801, %v6129
      %v6192 = vadd.f32 %v5802, %v6134
      %v6193 = vadd.f32 %v5803, %v6139
      %v6194 = vadd.f32 %v5804, %v6144
      %v6195 = vadd.f32 %v5805, %v6149
      %v6196 = vadd.f32 %v5806, %v6154
      %v6197 = vadd.f32 %v5807, %v6159
      %v6198 = vadd.f32 %v5808, %v6164
      %s6199 = scalar_lea.vmem [#allocation3], 64
      %v6200 = vld [vmem:[%s6199 + $0x7] sm:$0xff]
      %v6201 = vld [vmem:[%s6199 + $0xf] sm:$0xff]
      %v6202 = vld [vmem:[%s6199 + $0x27] sm:$0xff]
      %v6203 = vld [vmem:[%s6199 + $0x2f] sm:$0xff]
      %v6204 = vld [vmem:[%s6199 + $0x47] sm:$0xff]
      %v6205 = vld [vmem:[%s6199 + $0x4f] sm:$0xff]
      %v6206 = vld [vmem:[%s6199 + $0x67] sm:$0xff]
      %v6207 = vld [vmem:[%s6199 + $0x6f] sm:$0xff]
      %v6208 = vld [vmem:[%s6199 + $0x87] sm:$0xff]
      %v6209 = vld [vmem:[%s6199 + $0x8f] sm:$0xff]
      %v6210 = vld [vmem:[%s6199 + $0xa7] sm:$0xff]
      %v6211 = vld [vmem:[%s6199 + $0xaf] sm:$0xff]
      %v6212 = vld [vmem:[%s6199 + $0xc7] sm:$0xff]
      %v6213 = vld [vmem:[%s6199 + $0xcf] sm:$0xff]
      %v6214 = vld [vmem:[%s6199 + $0xe7] sm:$0xff]
      %v6215 = vld [vmem:[%s6199 + $0xef] sm:$0xff]
      %v6216 = vld [vmem:[%s6199 + $0x107] sm:$0xff]
      %v6217 = vld [vmem:[%s6199 + $0x10f] sm:$0xff]
      %v6218 = vld [vmem:[%s6199 + $0x127] sm:$0xff]
      %v6219 = vld [vmem:[%s6199 + $0x12f] sm:$0xff]
      %v6220 = vld [vmem:[%s6199 + $0x147] sm:$0xff]
      %v6221 = vld [vmem:[%s6199 + $0x14f] sm:$0xff]
      %v6222 = vld [vmem:[%s6199 + $0x167] sm:$0xff]
      %v6223 = vld [vmem:[%s6199 + $0x16f] sm:$0xff]
      %v6224 = vld [vmem:[%s6199 + $0x187] sm:$0xff]
      %v6225 = vld [vmem:[%s6199 + $0x18f] sm:$0xff]
      %v6226 = vld [vmem:[%s6199 + $0x1a7] sm:$0xff]
      %v6227 = vld [vmem:[%s6199 + $0x1af] sm:$0xff]
      %v6228 = vld [vmem:[%s6199 + $0x1c7] sm:$0xff]
      %v6229 = vld [vmem:[%s6199 + $0x1cf] sm:$0xff]
      %v6230 = vld [vmem:[%s6199 + $0x1e7] sm:$0xff]
      %v6231 = vld [vmem:[%s6199 + $0x1ef] sm:$0xff]
      %s6232 = scalar_lea.vmem %s3, 24
      %v6233 = vld [vmem:[%s6232] sm:$0xf]
      %v6235 = vsel %vm257, %v6200, 0
      %v6238 = vsel %vm257, %v6201, 0
      %v6241 = vsel %vm257, %v6202, 0
      %v6244 = vsel %vm257, %v6203, 0
      %v6247 = vsel %vm257, %v6204, 0
      %v6250 = vsel %vm257, %v6205, 0
      %v6253 = vsel %vm257, %v6206, 0
      %v6256 = vsel %vm257, %v6207, 0
      %v6259 = vsel %vm257, %v6208, 0
      %v6262 = vsel %vm257, %v6209, 0
      %v6265 = vsel %vm257, %v6210, 0
      %v6268 = vsel %vm257, %v6211, 0
      %v6271 = vsel %vm257, %v6212, 0
      %v6274 = vsel %vm257, %v6213, 0
      %v6277 = vsel %vm257, %v6214, 0
      %v6280 = vsel %vm257, %v6215, 0
      %v6283 = vsel %vm257, %v6216, 0
      %v6286 = vsel %vm257, %v6217, 0
      %v6289 = vsel %vm257, %v6218, 0
      %v6292 = vsel %vm257, %v6219, 0
      %v6295 = vsel %vm257, %v6220, 0
      %v6298 = vsel %vm257, %v6221, 0
      %v6301 = vsel %vm257, %v6222, 0
      %v6304 = vsel %vm257, %v6223, 0
      %v6307 = vsel %vm257, %v6224, 0
      %v6310 = vsel %vm257, %v6225, 0
      %v6313 = vsel %vm257, %v6226, 0
      %v6316 = vsel %vm257, %v6227, 0
      %v6319 = vsel %vm257, %v6228, 0
      %v6322 = vsel %vm257, %v6229, 0
      %v6325 = vsel %vm257, %v6230, 0
      %v6328 = vsel %vm257, %v6231, 0
      %v6331 = vsel %vm495, %v6233, 0
      %6333 = vmatprep.subr.mxu0 0.0
      %6334 = vmatpush1.msra.mxu0 %v6331
      %6335 = vmatprep.subr.mxu0 0.0
      %6336 = vmatpush1.msra.mxu0 0.0
      %6337 = vmatprep.subr.mxu0 0.0
      %6338 = vmatpush1.msra.mxu0 0.0
      %6339 = vmatprep.subr.mxu0 0.0
      %6340 = vmatpush1.msra.mxu0 0.0
      %6341 = vmatprep.subr.mxu0 0.0
      %6342 = vmatpush1.msra.mxu0 0.0
      %6343 = vmatprep.subr.mxu0 0.0
      %6344 = vmatpush1.msra.mxu0 0.0
      %6345 = vmatprep.subr.mxu0 0.0
      %6346 = vmatpush1.msra.mxu0 0.0
      %6347 = vmatprep.subr.mxu0 0.0
      %6348 = vmatpush1.msra.mxu0 0.0
      %6349 = vmatprep.subr.mxu0 0.0
      %6350 = vmatpush1.msra.mxu0 0.0
      %6351 = vmatprep.subr.mxu0 0.0
      %6352 = vmatpush1.msra.mxu0 0.0
      %6353 = vmatprep.subr.mxu0 0.0
      %6354 = vmatpush1.msra.mxu0 0.0
      %6355 = vmatprep.subr.mxu0 0.0
      %6356 = vmatpush1.msra.mxu0 0.0
      %6357 = vmatprep.subr.mxu0 0.0
      %6358 = vmatpush1.msra.mxu0 0.0
      %6359 = vmatprep.subr.mxu0 0.0
      %6360 = vmatpush1.msra.mxu0 0.0
      %6361 = vmatprep.subr.mxu0 0.0
      %6362 = vmatpush1.msra.mxu0 0.0
      %6363 = vmatprep.subr.mxu0 0.0
      %6364 = vmatpush1.msra.mxu0 0.0
      %6365 = vmatprep.subr.mxu0 0.0
      %6366 = vmatpush1.msra.mxu0 0.0
      %6367 = vmatprep.subr.mxu0 0.0
      %6368 = vmatpush1.msra.mxu0 0.0
      %6369 = vmatprep.subr.mxu0 0.0
      %6370 = vmatpush1.msra.mxu0 0.0
      %6371 = vmatprep.subr.mxu0 0.0
      %6372 = vmatpush1.msra.mxu0 0.0
      %6373 = vmatprep.subr.mxu0 0.0
      %6374 = vmatpush1.msra.mxu0 0.0
      %6375 = vmatprep.subr.mxu0 0.0
      %6376 = vmatpush1.msra.mxu0 0.0
      %6377 = vmatprep.subr.mxu0 0.0
      %6378 = vmatpush1.msra.mxu0 0.0
      %6379 = vmatprep.subr.mxu0 0.0
      %6380 = vmatpush1.msra.mxu0 0.0
      %6381 = vmatprep.subr.mxu0 0.0
      %6382 = vmatpush1.msra.mxu0 0.0
      %6383 = vmatprep.subr.mxu0 0.0
      %6384 = vmatpush1.msra.mxu0 0.0
      %6385 = vmatprep.subr.mxu0 0.0
      %6386 = vmatpush1.msra.mxu0 0.0
      %6387 = vmatprep.subr.mxu0 0.0
      %6388 = vmatpush1.msra.mxu0 0.0
      %6389 = vmatprep.subr.mxu0 0.0
      %6390 = vmatpush1.msra.mxu0 0.0
      %6391 = vmatprep.subr.mxu0 0.0
      %6392 = vmatpush1.msra.mxu0 0.0
      %6393 = vmatprep.subr.mxu0 0.0
      %6394 = vmatpush1.msra.mxu0 0.0
      %6395 = vmatprep.subr.mxu0 0.0
      %6396 = vmatpush1.msra.mxu0 0.0
      %6397 = vmatprep.mubr.f32.mxu0 0.0
      %6398 = vmatmul.mubr.f32.gmra.mrb[0].mxu0 %v6235
      %v6399 = vpop.f32.mrb[0].mxu0
      %v6400 = vadd.f32 0.0, %v6399
      %v6401 = vpop.f32.mrb[0].mxu0
      %6402 = vmatprep.mubr.f32.mxu0 0.0
      %6403 = vmatmul.mubr.f32.gmra.mrb[0].mxu0 %v6238
      %v6404 = vpop.f32.mrb[0].mxu0
      %v6405 = vadd.f32 0.0, %v6404
      %v6406 = vpop.f32.mrb[0].mxu0
      %6407 = vmatprep.mubr.f32.mxu0 0.0
      %6408 = vmatmul.mubr.f32.gmra.mrb[0].mxu0 %v6241
      %v6409 = vpop.f32.mrb[0].mxu0
      %v6410 = vadd.f32 0.0, %v6409
      %v6411 = vpop.f32.mrb[0].mxu0
      %6412 = vmatprep.mubr.f32.mxu0 0.0
      %6413 = vmatmul.mubr.f32.gmra.mrb[0].mxu0 %v6244
      %v6414 = vpop.f32.mrb[0].mxu0
      %v6415 = vadd.f32 0.0, %v6414
      %v6416 = vpop.f32.mrb[0].mxu0
      %6417 = vmatprep.mubr.f32.mxu0 0.0
      %6418 = vmatmul.mubr.f32.gmra.mrb[0].mxu0 %v6247
      %v6419 = vpop.f32.mrb[0].mxu0
      %v6420 = vadd.f32 0.0, %v6419
      %v6421 = vpop.f32.mrb[0].mxu0
      %6422 = vmatprep.mubr.f32.mxu0 0.0
      %6423 = vmatmul.mubr.f32.gmra.mrb[0].mxu0 %v6250
      %v6424 = vpop.f32.mrb[0].mxu0
      %v6425 = vadd.f32 0.0, %v6424
      %v6426 = vpop.f32.mrb[0].mxu0
      %6427 = vmatprep.mubr.f32.mxu0 0.0
      %6428 = vmatmul.mubr.f32.gmra.mrb[0].mxu0 %v6253
      %v6429 = vpop.f32.mrb[0].mxu0
      %v6430 = vadd.f32 0.0, %v6429
      %v6431 = vpop.f32.mrb[0].mxu0
      %6432 = vmatprep.mubr.f32.mxu0 0.0
      %6433 = vmatmul.mubr.f32.gmra.mrb[0].mxu0 %v6256
      %v6434 = vpop.f32.mrb[0].mxu0
      %v6435 = vadd.f32 0.0, %v6434
      %v6436 = vpop.f32.mrb[0].mxu0
      %6437 = vmatprep.mubr.f32.mxu0 0.0
      %6438 = vmatmul.mubr.f32.gmra.mrb[0].mxu0 %v6259
      %v6439 = vpop.f32.mrb[0].mxu0
      %v6440 = vadd.f32 0.0, %v6439
      %v6441 = vpop.f32.mrb[0].mxu0
      %6442 = vmatprep.mubr.f32.mxu0 0.0
      %6443 = vmatmul.mubr.f32.gmra.mrb[0].mxu0 %v6262
      %v6444 = vpop.f32.mrb[0].mxu0
      %v6445 = vadd.f32 0.0, %v6444
      %v6446 = vpop.f32.mrb[0].mxu0
      %6447 = vmatprep.mubr.f32.mxu0 0.0
      %6448 = vmatmul.mubr.f32.gmra.mrb[0].mxu0 %v6265
      %v6449 = vpop.f32.mrb[0].mxu0
      %v6450 = vadd.f32 0.0, %v6449
      %v6451 = vpop.f32.mrb[0].mxu0
      %6452 = vmatprep.mubr.f32.mxu0 0.0
      %6453 = vmatmul.mubr.f32.gmra.mrb[0].mxu0 %v6268
      %v6454 = vpop.f32.mrb[0].mxu0
      %v6455 = vadd.f32 0.0, %v6454
      %v6456 = vpop.f32.mrb[0].mxu0
      %6457 = vmatprep.mubr.f32.mxu0 0.0
      %6458 = vmatmul.mubr.f32.gmra.mrb[0].mxu0 %v6271
      %v6459 = vpop.f32.mrb[0].mxu0
      %v6460 = vadd.f32 0.0, %v6459
      %v6461 = vpop.f32.mrb[0].mxu0
      %6462 = vmatprep.mubr.f32.mxu0 0.0
      %6463 = vmatmul.mubr.f32.gmra.mrb[0].mxu0 %v6274
      %v6464 = vpop.f32.mrb[0].mxu0
      %v6465 = vadd.f32 0.0, %v6464
      %v6466 = vpop.f32.mrb[0].mxu0
      %6467 = vmatprep.mubr.f32.mxu0 0.0
      %6468 = vmatmul.mubr.f32.gmra.mrb[0].mxu0 %v6277
      %v6469 = vpop.f32.mrb[0].mxu0
      %v6470 = vadd.f32 0.0, %v6469
      %v6471 = vpop.f32.mrb[0].mxu0
      %6472 = vmatprep.mubr.f32.mxu0 0.0
      %6473 = vmatmul.mubr.f32.gmra.mrb[0].mxu0 %v6280
      %v6474 = vpop.f32.mrb[0].mxu0
      %v6475 = vadd.f32 0.0, %v6474
      %v6476 = vpop.f32.mrb[0].mxu0
      %6477 = vmatprep.mubr.f32.mxu0 0.0
      %6478 = vmatmul.mubr.f32.gmra.mrb[0].mxu0 %v6283
      %v6479 = vpop.f32.mrb[0].mxu0
      %v6480 = vadd.f32 0.0, %v6479
      %v6481 = vpop.f32.mrb[0].mxu0
      %6482 = vmatprep.mubr.f32.mxu0 0.0
      %6483 = vmatmul.mubr.f32.gmra.mrb[0].mxu0 %v6286
      %v6484 = vpop.f32.mrb[0].mxu0
      %v6485 = vadd.f32 0.0, %v6484
      %v6486 = vpop.f32.mrb[0].mxu0
      %6487 = vmatprep.mubr.f32.mxu0 0.0
      %6488 = vmatmul.mubr.f32.gmra.mrb[0].mxu0 %v6289
      %v6489 = vpop.f32.mrb[0].mxu0
      %v6490 = vadd.f32 0.0, %v6489
      %v6491 = vpop.f32.mrb[0].mxu0
      %6492 = vmatprep.mubr.f32.mxu0 0.0
      %6493 = vmatmul.mubr.f32.gmra.mrb[0].mxu0 %v6292
      %v6494 = vpop.f32.mrb[0].mxu0
      %v6495 = vadd.f32 0.0, %v6494
      %v6496 = vpop.f32.mrb[0].mxu0
      %6497 = vmatprep.mubr.f32.mxu0 0.0
      %6498 = vmatmul.mubr.f32.gmra.mrb[0].mxu0 %v6295
      %v6499 = vpop.f32.mrb[0].mxu0
      %v6500 = vadd.f32 0.0, %v6499
      %v6501 = vpop.f32.mrb[0].mxu0
      %6502 = vmatprep.mubr.f32.mxu0 0.0
      %6503 = vmatmul.mubr.f32.gmra.mrb[0].mxu0 %v6298
      %v6504 = vpop.f32.mrb[0].mxu0
      %v6505 = vadd.f32 0.0, %v6504
      %v6506 = vpop.f32.mrb[0].mxu0
      %6507 = vmatprep.mubr.f32.mxu0 0.0
      %6508 = vmatmul.mubr.f32.gmra.mrb[0].mxu0 %v6301
      %v6509 = vpop.f32.mrb[0].mxu0
      %v6510 = vadd.f32 0.0, %v6509
      %v6511 = vpop.f32.mrb[0].mxu0
      %6512 = vmatprep.mubr.f32.mxu0 0.0
      %6513 = vmatmul.mubr.f32.gmra.mrb[0].mxu0 %v6304
      %v6514 = vpop.f32.mrb[0].mxu0
      %v6515 = vadd.f32 0.0, %v6514
      %v6516 = vpop.f32.mrb[0].mxu0
      %6517 = vmatprep.mubr.f32.mxu0 0.0
      %6518 = vmatmul.mubr.f32.gmra.mrb[0].mxu0 %v6307
      %v6519 = vpop.f32.mrb[0].mxu0
      %v6520 = vadd.f32 0.0, %v6519
      %v6521 = vpop.f32.mrb[0].mxu0
      %6522 = vmatprep.mubr.f32.mxu0 0.0
      %6523 = vmatmul.mubr.f32.gmra.mrb[0].mxu0 %v6310
      %v6524 = vpop.f32.mrb[0].mxu0
      %v6525 = vadd.f32 0.0, %v6524
      %v6526 = vpop.f32.mrb[0].mxu0
      %6527 = vmatprep.mubr.f32.mxu0 0.0
      %6528 = vmatmul.mubr.f32.gmra.mrb[0].mxu0 %v6313
      %v6529 = vpop.f32.mrb[0].mxu0
      %v6530 = vadd.f32 0.0, %v6529
      %v6531 = vpop.f32.mrb[0].mxu0
      %6532 = vmatprep.mubr.f32.mxu0 0.0
      %6533 = vmatmul.mubr.f32.gmra.mrb[0].mxu0 %v6316
      %v6534 = vpop.f32.mrb[0].mxu0
      %v6535 = vadd.f32 0.0, %v6534
      %v6536 = vpop.f32.mrb[0].mxu0
      %6537 = vmatprep.mubr.f32.mxu0 0.0
      %6538 = vmatmul.mubr.f32.gmra.mrb[0].mxu0 %v6319
      %v6539 = vpop.f32.mrb[0].mxu0
      %v6540 = vadd.f32 0.0, %v6539
      %v6541 = vpop.f32.mrb[0].mxu0
      %6542 = vmatprep.mubr.f32.mxu0 0.0
      %6543 = vmatmul.mubr.f32.gmra.mrb[0].mxu0 %v6322
      %v6544 = vpop.f32.mrb[0].mxu0
      %v6545 = vadd.f32 0.0, %v6544
      %v6546 = vpop.f32.mrb[0].mxu0
      %6547 = vmatprep.mubr.f32.mxu0 0.0
      %6548 = vmatmul.mubr.f32.gmra.mrb[0].mxu0 %v6325
      %v6549 = vpop.f32.mrb[0].mxu0
      %v6550 = vadd.f32 0.0, %v6549
      %v6551 = vpop.f32.mrb[0].mxu0
      %6552 = vmatprep.mubr.f32.mxu0 0.0
      %6553 = vmatmul.mubr.f32.gmra.mrb[0].mxu0 %v6328
      %v6554 = vpop.f32.mrb[0].mxu0
      %v6555 = vadd.f32 0.0, %v6554
      %v6556 = vpop.f32.mrb[0].mxu0
      %6557 = vdwg.mxu0
      %v6558 = vadd.f32 %v6167, %v6400
      %v6559 = vadd.f32 %v6168, %v6405
      %v6560 = vadd.f32 %v6169, %v6410
      %v6561 = vadd.f32 %v6170, %v6415
      %v6562 = vadd.f32 %v6171, %v6420
      %v6563 = vadd.f32 %v6172, %v6425
      %v6564 = vadd.f32 %v6173, %v6430
      %v6565 = vadd.f32 %v6174, %v6435
      %v6566 = vadd.f32 %v6175, %v6440
      %v6567 = vadd.f32 %v6176, %v6445
      %v6568 = vadd.f32 %v6177, %v6450
      %v6569 = vadd.f32 %v6178, %v6455
      %v6570 = vadd.f32 %v6179, %v6460
      %v6571 = vadd.f32 %v6180, %v6465
      %v6572 = vadd.f32 %v6181, %v6470
      %v6573 = vadd.f32 %v6182, %v6475
      %v6574 = vadd.f32 %v6183, %v6480
      %v6575 = vadd.f32 %v6184, %v6485
      %v6576 = vadd.f32 %v6185, %v6490
      %v6577 = vadd.f32 %v6186, %v6495
      %v6578 = vadd.f32 %v6187, %v6500
      %v6579 = vadd.f32 %v6188, %v6505
      %v6580 = vadd.f32 %v6189, %v6510
      %v6581 = vadd.f32 %v6190, %v6515
      %v6582 = vadd.f32 %v6191, %v6520
      %v6583 = vadd.f32 %v6192, %v6525
      %v6584 = vadd.f32 %v6193, %v6530
      %v6585 = vadd.f32 %v6194, %v6535
      %v6586 = vadd.f32 %v6195, %v6540
      %v6587 = vadd.f32 %v6196, %v6545
      %v6588 = vadd.f32 %v6197, %v6550
      %v6589 = vadd.f32 %v6198, %v6555
      %v6590 = vld [vmem:[%s6199 + $0x8] sm:$0xff]
      %v6591 = vld [vmem:[%s6199 + $0x10] sm:$0xff]
      %v6592 = vld [vmem:[%s6199 + $0x28] sm:$0xff]
      %v6593 = vld [vmem:[%s6199 + $0x30] sm:$0xff]
      %v6594 = vld [vmem:[%s6199 + $0x48] sm:$0xff]
      %v6595 = vld [vmem:[%s6199 + $0x50] sm:$0xff]
      %v6596 = vld [vmem:[%s6199 + $0x68] sm:$0xff]
      %v6597 = vld [vmem:[%s6199 + $0x70] sm:$0xff]
      %v6598 = vld [vmem:[%s6199 + $0x88] sm:$0xff]
      %v6599 = vld [vmem:[%s6199 + $0x90] sm:$0xff]
      %v6600 = vld [vmem:[%s6199 + $0xa8] sm:$0xff]
      %v6601 = vld [vmem:[%s6199 + $0xb0] sm:$0xff]
      %v6602 = vld [vmem:[%s6199 + $0xc8] sm:$0xff]
      %v6603 = vld [vmem:[%s6199 + $0xd0] sm:$0xff]
      %v6604 = vld [vmem:[%s6199 + $0xe8] sm:$0xff]
      %v6605 = vld [vmem:[%s6199 + $0xf0] sm:$0xff]
      %v6606 = vld [vmem:[%s6199 + $0x108] sm:$0xff]
      %v6607 = vld [vmem:[%s6199 + $0x110] sm:$0xff]
      %v6608 = vld [vmem:[%s6199 + $0x128] sm:$0xff]
      %v6609 = vld [vmem:[%s6199 + $0x130] sm:$0xff]
      %v6610 = vld [vmem:[%s6199 + $0x148] sm:$0xff]
      %v6611 = vld [vmem:[%s6199 + $0x150] sm:$0xff]
      %v6612 = vld [vmem:[%s6199 + $0x168] sm:$0xff]
      %v6613 = vld [vmem:[%s6199 + $0x170] sm:$0xff]
      %v6614 = vld [vmem:[%s6199 + $0x188] sm:$0xff]
      %v6615 = vld [vmem:[%s6199 + $0x190] sm:$0xff]
      %v6616 = vld [vmem:[%s6199 + $0x1a8] sm:$0xff]
      %v6617 = vld [vmem:[%s6199 + $0x1b0] sm:$0xff]
      %v6618 = vld [vmem:[%s6199 + $0x1c8] sm:$0xff]
      %v6619 = vld [vmem:[%s6199 + $0x1d0] sm:$0xff]
      %v6620 = vld [vmem:[%s6199 + $0x1e8] sm:$0xff]
      %v6621 = vld [vmem:[%s6199 + $0x1f0] sm:$0xff]
      %s6622 = scalar_lea.vmem %s3, 28
      %v6623 = vld [vmem:[%s6622] sm:$0xf]
      %v6625 = vsel %vm257, %v6590, 0
      %v6628 = vsel %vm257, %v6591, 0
      %v6631 = vsel %vm257, %v6592, 0
      %v6634 = vsel %vm257, %v6593, 0
      %v6637 = vsel %vm257, %v6594, 0
      %v6640 = vsel %vm257, %v6595, 0
      %v6643 = vsel %vm257, %v6596, 0
      %v6646 = vsel %vm257, %v6597, 0
      %v6649 = vsel %vm257, %v6598, 0
      %v6652 = vsel %vm257, %v6599, 0
      %v6655 = vsel %vm257, %v6600, 0
      %v6658 = vsel %vm257, %v6601, 0
      %v6661 = vsel %vm257, %v6602, 0
      %v6664 = vsel %vm257, %v6603, 0
      %v6667 = vsel %vm257, %v6604, 0
      %v6670 = vsel %vm257, %v6605, 0
      %v6673 = vsel %vm257, %v6606, 0
      %v6676 = vsel %vm257, %v6607, 0
      %v6679 = vsel %vm257, %v6608, 0
      %v6682 = vsel %vm257, %v6609, 0
      %v6685 = vsel %vm257, %v6610, 0
      %v6688 = vsel %vm257, %v6611, 0
      %v6691 = vsel %vm257, %v6612, 0
      %v6694 = vsel %vm257, %v6613, 0
      %v6697 = vsel %vm257, %v6614, 0
      %v6700 = vsel %vm257, %v6615, 0
      %v6703 = vsel %vm257, %v6616, 0
      %v6706 = vsel %vm257, %v6617, 0
      %v6709 = vsel %vm257, %v6618, 0
      %v6712 = vsel %vm257, %v6619, 0
      %v6715 = vsel %vm257, %v6620, 0
      %v6718 = vsel %vm257, %v6621, 0
      %v6721 = vsel %vm495, %v6623, 0
      %6723 = vmatprep.subr.mxu0 0.0
      %6724 = vmatpush1.msra.mxu0 %v6721
      %6725 = vmatprep.subr.mxu0 0.0
      %6726 = vmatpush1.msra.mxu0 0.0
      %6727 = vmatprep.subr.mxu0 0.0
      %6728 = vmatpush1.msra.mxu0 0.0
      %6729 = vmatprep.subr.mxu0 0.0
      %6730 = vmatpush1.msra.mxu0 0.0
      %6731 = vmatprep.subr.mxu0 0.0
      %6732 = vmatpush1.msra.mxu0 0.0
      %6733 = vmatprep.subr.mxu0 0.0
      %6734 = vmatpush1.msra.mxu0 0.0
      %6735 = vmatprep.subr.mxu0 0.0
      %6736 = vmatpush1.msra.mxu0 0.0
      %6737 = vmatprep.subr.mxu0 0.0
      %6738 = vmatpush1.msra.mxu0 0.0
      %6739 = vmatprep.subr.mxu0 0.0
      %6740 = vmatpush1.msra.mxu0 0.0
      %6741 = vmatprep.subr.mxu0 0.0
      %6742 = vmatpush1.msra.mxu0 0.0
      %6743 = vmatprep.subr.mxu0 0.0
      %6744 = vmatpush1.msra.mxu0 0.0
      %6745 = vmatprep.subr.mxu0 0.0
      %6746 = vmatpush1.msra.mxu0 0.0
      %6747 = vmatprep.subr.mxu0 0.0
      %6748 = vmatpush1.msra.mxu0 0.0
      %6749 = vmatprep.subr.mxu0 0.0
      %6750 = vmatpush1.msra.mxu0 0.0
      %6751 = vmatprep.subr.mxu0 0.0
      %6752 = vmatpush1.msra.mxu0 0.0
      %6753 = vmatprep.subr.mxu0 0.0
      %6754 = vmatpush1.msra.mxu0 0.0
      %6755 = vmatprep.subr.mxu0 0.0
      %6756 = vmatpush1.msra.mxu0 0.0
      %6757 = vmatprep.subr.mxu0 0.0
      %6758 = vmatpush1.msra.mxu0 0.0
      %6759 = vmatprep.subr.mxu0 0.0
      %6760 = vmatpush1.msra.mxu0 0.0
      %6761 = vmatprep.subr.mxu0 0.0
      %6762 = vmatpush1.msra.mxu0 0.0
      %6763 = vmatprep.subr.mxu0 0.0
      %6764 = vmatpush1.msra.mxu0 0.0
      %6765 = vmatprep.subr.mxu0 0.0
      %6766 = vmatpush1.msra.mxu0 0.0
      %6767 = vmatprep.subr.mxu0 0.0
      %6768 = vmatpush1.msra.mxu0 0.0
      %6769 = vmatprep.subr.mxu0 0.0
      %6770 = vmatpush1.msra.mxu0 0.0
      %6771 = vmatprep.subr.mxu0 0.0
      %6772 = vmatpush1.msra.mxu0 0.0
      %6773 = vmatprep.subr.mxu0 0.0
      %6774 = vmatpush1.msra.mxu0 0.0
      %6775 = vmatprep.subr.mxu0 0.0
      %6776 = vmatpush1.msra.mxu0 0.0
      %6777 = vmatprep.subr.mxu0 0.0
      %6778 = vmatpush1.msra.mxu0 0.0
      %6779 = vmatprep.subr.mxu0 0.0
      %6780 = vmatpush1.msra.mxu0 0.0
      %6781 = vmatprep.subr.mxu0 0.0
      %6782 = vmatpush1.msra.mxu0 0.0
      %6783 = vmatprep.subr.mxu0 0.0
      %6784 = vmatpush1.msra.mxu0 0.0
      %6785 = vmatprep.subr.mxu0 0.0
      %6786 = vmatpush1.msra.mxu0 0.0
      %6787 = vmatprep.mubr.f32.mxu0 0.0
      %6788 = vmatmul.mubr.f32.gmra.mrb[0].mxu0 %v6625
      %v6789 = vpop.f32.mrb[0].mxu0
      %v6790 = vadd.f32 0.0, %v6789
      %v6791 = vpop.f32.mrb[0].mxu0
      %6792 = vmatprep.mubr.f32.mxu0 0.0
      %6793 = vmatmul.mubr.f32.gmra.mrb[0].mxu0 %v6628
      %v6794 = vpop.f32.mrb[0].mxu0
      %v6795 = vadd.f32 0.0, %v6794
      %v6796 = vpop.f32.mrb[0].mxu0
      %6797 = vmatprep.mubr.f32.mxu0 0.0
      %6798 = vmatmul.mubr.f32.gmra.mrb[0].mxu0 %v6631
      %v6799 = vpop.f32.mrb[0].mxu0
      %v6800 = vadd.f32 0.0, %v6799
      %v6801 = vpop.f32.mrb[0].mxu0
      %6802 = vmatprep.mubr.f32.mxu0 0.0
      %6803 = vmatmul.mubr.f32.gmra.mrb[0].mxu0 %v6634
      %v6804 = vpop.f32.mrb[0].mxu0
      %v6805 = vadd.f32 0.0, %v6804
      %v6806 = vpop.f32.mrb[0].mxu0
      %6807 = vmatprep.mubr.f32.mxu0 0.0
      %6808 = vmatmul.mubr.f32.gmra.mrb[0].mxu0 %v6637
      %v6809 = vpop.f32.mrb[0].mxu0
      %v6810 = vadd.f32 0.0, %v6809
      %v6811 = vpop.f32.mrb[0].mxu0
      %6812 = vmatprep.mubr.f32.mxu0 0.0
      %6813 = vmatmul.mubr.f32.gmra.mrb[0].mxu0 %v6640
      %v6814 = vpop.f32.mrb[0].mxu0
      %v6815 = vadd.f32 0.0, %v6814
      %v6816 = vpop.f32.mrb[0].mxu0
      %6817 = vmatprep.mubr.f32.mxu0 0.0
      %6818 = vmatmul.mubr.f32.gmra.mrb[0].mxu0 %v6643
      %v6819 = vpop.f32.mrb[0].mxu0
      %v6820 = vadd.f32 0.0, %v6819
      %v6821 = vpop.f32.mrb[0].mxu0
      %6822 = vmatprep.mubr.f32.mxu0 0.0
      %6823 = vmatmul.mubr.f32.gmra.mrb[0].mxu0 %v6646
      %v6824 = vpop.f32.mrb[0].mxu0
      %v6825 = vadd.f32 0.0, %v6824
      %v6826 = vpop.f32.mrb[0].mxu0
      %6827 = vmatprep.mubr.f32.mxu0 0.0
      %6828 = vmatmul.mubr.f32.gmra.mrb[0].mxu0 %v6649
      %v6829 = vpop.f32.mrb[0].mxu0
      %v6830 = vadd.f32 0.0, %v6829
      %v6831 = vpop.f32.mrb[0].mxu0
      %6832 = vmatprep.mubr.f32.mxu0 0.0
      %6833 = vmatmul.mubr.f32.gmra.mrb[0].mxu0 %v6652
      %v6834 = vpop.f32.mrb[0].mxu0
      %v6835 = vadd.f32 0.0, %v6834
      %v6836 = vpop.f32.mrb[0].mxu0
      %6837 = vmatprep.mubr.f32.mxu0 0.0
      %6838 = vmatmul.mubr.f32.gmra.mrb[0].mxu0 %v6655
      %v6839 = vpop.f32.mrb[0].mxu0
      %v6840 = vadd.f32 0.0, %v6839
      %v6841 = vpop.f32.mrb[0].mxu0
      %6842 = vmatprep.mubr.f32.mxu0 0.0
      %6843 = vmatmul.mubr.f32.gmra.mrb[0].mxu0 %v6658
      %v6844 = vpop.f32.mrb[0].mxu0
      %v6845 = vadd.f32 0.0, %v6844
      %v6846 = vpop.f32.mrb[0].mxu0
      %6847 = vmatprep.mubr.f32.mxu0 0.0
      %6848 = vmatmul.mubr.f32.gmra.mrb[0].mxu0 %v6661
      %v6849 = vpop.f32.mrb[0].mxu0
      %v6850 = vadd.f32 0.0, %v6849
      %v6851 = vpop.f32.mrb[0].mxu0
      %6852 = vmatprep.mubr.f32.mxu0 0.0
      %6853 = vmatmul.mubr.f32.gmra.mrb[0].mxu0 %v6664
      %v6854 = vpop.f32.mrb[0].mxu0
      %v6855 = vadd.f32 0.0, %v6854
      %v6856 = vpop.f32.mrb[0].mxu0
      %6857 = vmatprep.mubr.f32.mxu0 0.0
      %6858 = vmatmul.mubr.f32.gmra.mrb[0].mxu0 %v6667
      %v6859 = vpop.f32.mrb[0].mxu0
      %v6860 = vadd.f32 0.0, %v6859
      %v6861 = vpop.f32.mrb[0].mxu0
      %6862 = vmatprep.mubr.f32.mxu0 0.0
      %6863 = vmatmul.mubr.f32.gmra.mrb[0].mxu0 %v6670
      %v6864 = vpop.f32.mrb[0].mxu0
      %v6865 = vadd.f32 0.0, %v6864
      %v6866 = vpop.f32.mrb[0].mxu0
      %6867 = vmatprep.mubr.f32.mxu0 0.0
      %6868 = vmatmul.mubr.f32.gmra.mrb[0].mxu0 %v6673
      %v6869 = vpop.f32.mrb[0].mxu0
      %v6870 = vadd.f32 0.0, %v6869
      %v6871 = vpop.f32.mrb[0].mxu0
      %6872 = vmatprep.mubr.f32.mxu0 0.0
      %6873 = vmatmul.mubr.f32.gmra.mrb[0].mxu0 %v6676
      %v6874 = vpop.f32.mrb[0].mxu0
      %v6875 = vadd.f32 0.0, %v6874
      %v6876 = vpop.f32.mrb[0].mxu0
      %6877 = vmatprep.mubr.f32.mxu0 0.0
      %6878 = vmatmul.mubr.f32.gmra.mrb[0].mxu0 %v6679
      %v6879 = vpop.f32.mrb[0].mxu0
      %v6880 = vadd.f32 0.0, %v6879
      %v6881 = vpop.f32.mrb[0].mxu0
      %6882 = vmatprep.mubr.f32.mxu0 0.0
      %6883 = vmatmul.mubr.f32.gmra.mrb[0].mxu0 %v6682
      %v6884 = vpop.f32.mrb[0].mxu0
      %v6885 = vadd.f32 0.0, %v6884
      %v6886 = vpop.f32.mrb[0].mxu0
      %6887 = vmatprep.mubr.f32.mxu0 0.0
      %6888 = vmatmul.mubr.f32.gmra.mrb[0].mxu0 %v6685
      %v6889 = vpop.f32.mrb[0].mxu0
      %v6890 = vadd.f32 0.0, %v6889
      %v6891 = vpop.f32.mrb[0].mxu0
      %6892 = vmatprep.mubr.f32.mxu0 0.0
      %6893 = vmatmul.mubr.f32.gmra.mrb[0].mxu0 %v6688
      %v6894 = vpop.f32.mrb[0].mxu0
      %v6895 = vadd.f32 0.0, %v6894
      %v6896 = vpop.f32.mrb[0].mxu0
      %6897 = vmatprep.mubr.f32.mxu0 0.0
      %6898 = vmatmul.mubr.f32.gmra.mrb[0].mxu0 %v6691
      %v6899 = vpop.f32.mrb[0].mxu0
      %v6900 = vadd.f32 0.0, %v6899
      %v6901 = vpop.f32.mrb[0].mxu0
      %6902 = vmatprep.mubr.f32.mxu0 0.0
      %6903 = vmatmul.mubr.f32.gmra.mrb[0].mxu0 %v6694
      %v6904 = vpop.f32.mrb[0].mxu0
      %v6905 = vadd.f32 0.0, %v6904
      %v6906 = vpop.f32.mrb[0].mxu0
      %6907 = vmatprep.mubr.f32.mxu0 0.0
      %6908 = vmatmul.mubr.f32.gmra.mrb[0].mxu0 %v6697
      %v6909 = vpop.f32.mrb[0].mxu0
      %v6910 = vadd.f32 0.0, %v6909
      %v6911 = vpop.f32.mrb[0].mxu0
      %6912 = vmatprep.mubr.f32.mxu0 0.0
      %6913 = vmatmul.mubr.f32.gmra.mrb[0].mxu0 %v6700
      %v6914 = vpop.f32.mrb[0].mxu0
      %v6915 = vadd.f32 0.0, %v6914
      %v6916 = vpop.f32.mrb[0].mxu0
      %6917 = vmatprep.mubr.f32.mxu0 0.0
      %6918 = vmatmul.mubr.f32.gmra.mrb[0].mxu0 %v6703
      %v6919 = vpop.f32.mrb[0].mxu0
      %v6920 = vadd.f32 0.0, %v6919
      %v6921 = vpop.f32.mrb[0].mxu0
      %6922 = vmatprep.mubr.f32.mxu0 0.0
      %6923 = vmatmul.mubr.f32.gmra.mrb[0].mxu0 %v6706
      %v6924 = vpop.f32.mrb[0].mxu0
      %v6925 = vadd.f32 0.0, %v6924
      %v6926 = vpop.f32.mrb[0].mxu0
      %6927 = vmatprep.mubr.f32.mxu0 0.0
      %6928 = vmatmul.mubr.f32.gmra.mrb[0].mxu0 %v6709
      %v6929 = vpop.f32.mrb[0].mxu0
      %v6930 = vadd.f32 0.0, %v6929
      %v6931 = vpop.f32.mrb[0].mxu0
      %6932 = vmatprep.mubr.f32.mxu0 0.0
      %6933 = vmatmul.mubr.f32.gmra.mrb[0].mxu0 %v6712
      %v6934 = vpop.f32.mrb[0].mxu0
      %v6935 = vadd.f32 0.0, %v6934
      %v6936 = vpop.f32.mrb[0].mxu0
      %6937 = vmatprep.mubr.f32.mxu0 0.0
      %6938 = vmatmul.mubr.f32.gmra.mrb[0].mxu0 %v6715
      %v6939 = vpop.f32.mrb[0].mxu0
      %v6940 = vadd.f32 0.0, %v6939
      %v6941 = vpop.f32.mrb[0].mxu0
      %6942 = vmatprep.mubr.f32.mxu0 0.0
      %6943 = vmatmul.mubr.f32.gmra.mrb[0].mxu0 %v6718
      %v6944 = vpop.f32.mrb[0].mxu0
      %v6945 = vadd.f32 0.0, %v6944
      %v6946 = vpop.f32.mrb[0].mxu0
      %6947 = vdwg.mxu0
      %v6948 = vadd.f32 %v6558, %v6790
      %v6949 = vadd.f32 %v6559, %v6795
      %v6950 = vadd.f32 %v6560, %v6800
      %v6951 = vadd.f32 %v6561, %v6805
      %v6952 = vadd.f32 %v6562, %v6810
      %v6953 = vadd.f32 %v6563, %v6815
      %v6954 = vadd.f32 %v6564, %v6820
      %v6955 = vadd.f32 %v6565, %v6825
      %v6956 = vadd.f32 %v6566, %v6830
      %v6957 = vadd.f32 %v6567, %v6835
      %v6958 = vadd.f32 %v6568, %v6840
      %v6959 = vadd.f32 %v6569, %v6845
      %v6960 = vadd.f32 %v6570, %v6850
      %v6961 = vadd.f32 %v6571, %v6855
      %v6962 = vadd.f32 %v6572, %v6860
      %v6963 = vadd.f32 %v6573, %v6865
      %v6964 = vadd.f32 %v6574, %v6870
      %v6965 = vadd.f32 %v6575, %v6875
      %v6966 = vadd.f32 %v6576, %v6880
      %v6967 = vadd.f32 %v6577, %v6885
      %v6968 = vadd.f32 %v6578, %v6890
      %v6969 = vadd.f32 %v6579, %v6895
      %v6970 = vadd.f32 %v6580, %v6900
      %v6971 = vadd.f32 %v6581, %v6905
      %v6972 = vadd.f32 %v6582, %v6910
      %v6973 = vadd.f32 %v6583, %v6915
      %v6974 = vadd.f32 %v6584, %v6920
      %v6975 = vadd.f32 %v6585, %v6925
      %v6976 = vadd.f32 %v6586, %v6930
      %v6977 = vadd.f32 %v6587, %v6935
      %v6978 = vadd.f32 %v6588, %v6940
      %v6979 = vadd.f32 %v6589, %v6945
      %v6980 = vld [vmem:[%s6199 + $0x9] sm:$0xff]
      %v6981 = vld [vmem:[%s6199 + $0x11] sm:$0xff]
      %v6982 = vld [vmem:[%s6199 + $0x29] sm:$0xff]
      %v6983 = vld [vmem:[%s6199 + $0x31] sm:$0xff]
      %v6984 = vld [vmem:[%s6199 + $0x49] sm:$0xff]
      %v6985 = vld [vmem:[%s6199 + $0x51] sm:$0xff]
      %v6986 = vld [vmem:[%s6199 + $0x69] sm:$0xff]
      %v6987 = vld [vmem:[%s6199 + $0x71] sm:$0xff]
      %v6988 = vld [vmem:[%s6199 + $0x89] sm:$0xff]
      %v6989 = vld [vmem:[%s6199 + $0x91] sm:$0xff]
      %v6990 = vld [vmem:[%s6199 + $0xa9] sm:$0xff]
      %v6991 = vld [vmem:[%s6199 + $0xb1] sm:$0xff]
      %v6992 = vld [vmem:[%s6199 + $0xc9] sm:$0xff]
      %v6993 = vld [vmem:[%s6199 + $0xd1] sm:$0xff]
      %v6994 = vld [vmem:[%s6199 + $0xe9] sm:$0xff]
      %v6995 = vld [vmem:[%s6199 + $0xf1] sm:$0xff]
      %v6996 = vld [vmem:[%s6199 + $0x109] sm:$0xff]
      %v6997 = vld [vmem:[%s6199 + $0x111] sm:$0xff]
      %v6998 = vld [vmem:[%s6199 + $0x129] sm:$0xff]
      %v6999 = vld [vmem:[%s6199 + $0x131] sm:$0xff]
      %v7000 = vld [vmem:[%s6199 + $0x149] sm:$0xff]
      %v7001 = vld [vmem:[%s6199 + $0x151] sm:$0xff]
      %v7002 = vld [vmem:[%s6199 + $0x169] sm:$0xff]
      %v7003 = vld [vmem:[%s6199 + $0x171] sm:$0xff]
      %v7004 = vld [vmem:[%s6199 + $0x189] sm:$0xff]
      %v7005 = vld [vmem:[%s6199 + $0x191] sm:$0xff]
      %v7006 = vld [vmem:[%s6199 + $0x1a9] sm:$0xff]
      %v7007 = vld [vmem:[%s6199 + $0x1b1] sm:$0xff]
      %v7008 = vld [vmem:[%s6199 + $0x1c9] sm:$0xff]
      %v7009 = vld [vmem:[%s6199 + $0x1d1] sm:$0xff]
      %v7010 = vld [vmem:[%s6199 + $0x1e9] sm:$0xff]
      %v7011 = vld [vmem:[%s6199 + $0x1f1] sm:$0xff]
      %s7012 = scalar_lea.vmem %s3, 32
      %v7013 = vld [vmem:[%s7012] sm:$0xf]
      %v7015 = vsel %vm257, %v6980, 0
      %v7018 = vsel %vm257, %v6981, 0
      %v7021 = vsel %vm257, %v6982, 0
      %v7024 = vsel %vm257, %v6983, 0
      %v7027 = vsel %vm257, %v6984, 0
      %v7030 = vsel %vm257, %v6985, 0
      %v7033 = vsel %vm257, %v6986, 0
      %v7036 = vsel %vm257, %v6987, 0
      %v7039 = vsel %vm257, %v6988, 0
      %v7042 = vsel %vm257, %v6989, 0
      %v7045 = vsel %vm257, %v6990, 0
      %v7048 = vsel %vm257, %v6991, 0
      %v7051 = vsel %vm257, %v6992, 0
      %v7054 = vsel %vm257, %v6993, 0
      %v7057 = vsel %vm257, %v6994, 0
      %v7060 = vsel %vm257, %v6995, 0
      %v7063 = vsel %vm257, %v6996, 0
      %v7066 = vsel %vm257, %v6997, 0
      %v7069 = vsel %vm257, %v6998, 0
      %v7072 = vsel %vm257, %v6999, 0
      %v7075 = vsel %vm257, %v7000, 0
      %v7078 = vsel %vm257, %v7001, 0
      %v7081 = vsel %vm257, %v7002, 0
      %v7084 = vsel %vm257, %v7003, 0
      %v7087 = vsel %vm257, %v7004, 0
      %v7090 = vsel %vm257, %v7005, 0
      %v7093 = vsel %vm257, %v7006, 0
      %v7096 = vsel %vm257, %v7007, 0
      %v7099 = vsel %vm257, %v7008, 0
      %v7102 = vsel %vm257, %v7009, 0
      %v7105 = vsel %vm257, %v7010, 0
      %v7108 = vsel %vm257, %v7011, 0
      %v7111 = vsel %vm495, %v7013, 0
      %7113 = vmatprep.subr.mxu0 0.0
      %7114 = vmatpush1.msra.mxu0 %v7111
      %7115 = vmatprep.subr.mxu0 0.0
      %7116 = vmatpush1.msra.mxu0 0.0
      %7117 = vmatprep.subr.mxu0 0.0
      %7118 = vmatpush1.msra.mxu0 0.0
      %7119 = vmatprep.subr.mxu0 0.0
      %7120 = vmatpush1.msra.mxu0 0.0
      %7121 = vmatprep.subr.mxu0 0.0
      %7122 = vmatpush1.msra.mxu0 0.0
      %7123 = vmatprep.subr.mxu0 0.0
      %7124 = vmatpush1.msra.mxu0 0.0
      %7125 = vmatprep.subr.mxu0 0.0
      %7126 = vmatpush1.msra.mxu0 0.0
      %7127 = vmatprep.subr.mxu0 0.0
      %7128 = vmatpush1.msra.mxu0 0.0
      %7129 = vmatprep.subr.mxu0 0.0
      %7130 = vmatpush1.msra.mxu0 0.0
      %7131 = vmatprep.subr.mxu0 0.0
      %7132 = vmatpush1.msra.mxu0 0.0
      %7133 = vmatprep.subr.mxu0 0.0
      %7134 = vmatpush1.msra.mxu0 0.0
      %7135 = vmatprep.subr.mxu0 0.0
      %7136 = vmatpush1.msra.mxu0 0.0
      %7137 = vmatprep.subr.mxu0 0.0
      %7138 = vmatpush1.msra.mxu0 0.0
      %7139 = vmatprep.subr.mxu0 0.0
      %7140 = vmatpush1.msra.mxu0 0.0
      %7141 = vmatprep.subr.mxu0 0.0
      %7142 = vmatpush1.msra.mxu0 0.0
      %7143 = vmatprep.subr.mxu0 0.0
      %7144 = vmatpush1.msra.mxu0 0.0
      %7145 = vmatprep.subr.mxu0 0.0
      %7146 = vmatpush1.msra.mxu0 0.0
      %7147 = vmatprep.subr.mxu0 0.0
      %7148 = vmatpush1.msra.mxu0 0.0
      %7149 = vmatprep.subr.mxu0 0.0
      %7150 = vmatpush1.msra.mxu0 0.0
      %7151 = vmatprep.subr.mxu0 0.0
      %7152 = vmatpush1.msra.mxu0 0.0
      %7153 = vmatprep.subr.mxu0 0.0
      %7154 = vmatpush1.msra.mxu0 0.0
      %7155 = vmatprep.subr.mxu0 0.0
      %7156 = vmatpush1.msra.mxu0 0.0
      %7157 = vmatprep.subr.mxu0 0.0
      %7158 = vmatpush1.msra.mxu0 0.0
      %7159 = vmatprep.subr.mxu0 0.0
      %7160 = vmatpush1.msra.mxu0 0.0
      %7161 = vmatprep.subr.mxu0 0.0
      %7162 = vmatpush1.msra.mxu0 0.0
      %7163 = vmatprep.subr.mxu0 0.0
      %7164 = vmatpush1.msra.mxu0 0.0
      %7165 = vmatprep.subr.mxu0 0.0
      %7166 = vmatpush1.msra.mxu0 0.0
      %7167 = vmatprep.subr.mxu0 0.0
      %7168 = vmatpush1.msra.mxu0 0.0
      %7169 = vmatprep.subr.mxu0 0.0
      %7170 = vmatpush1.msra.mxu0 0.0
      %7171 = vmatprep.subr.mxu0 0.0
      %7172 = vmatpush1.msra.mxu0 0.0
      %7173 = vmatprep.subr.mxu0 0.0
      %7174 = vmatpush1.msra.mxu0 0.0
      %7175 = vmatprep.subr.mxu0 0.0
      %7176 = vmatpush1.msra.mxu0 0.0
      %7177 = vmatprep.mubr.f32.mxu0 0.0
      %7178 = vmatmul.mubr.f32.gmra.mrb[0].mxu0 %v7015
      %v7179 = vpop.f32.mrb[0].mxu0
      %v7180 = vadd.f32 0.0, %v7179
      %v7181 = vpop.f32.mrb[0].mxu0
      %7182 = vmatprep.mubr.f32.mxu0 0.0
      %7183 = vmatmul.mubr.f32.gmra.mrb[0].mxu0 %v7018
      %v7184 = vpop.f32.mrb[0].mxu0
      %v7185 = vadd.f32 0.0, %v7184
      %v7186 = vpop.f32.mrb[0].mxu0
      %7187 = vmatprep.mubr.f32.mxu0 0.0
      %7188 = vmatmul.mubr.f32.gmra.mrb[0].mxu0 %v7021
      %v7189 = vpop.f32.mrb[0].mxu0
      %v7190 = vadd.f32 0.0, %v7189
      %v7191 = vpop.f32.mrb[0].mxu0
      %7192 = vmatprep.mubr.f32.mxu0 0.0
      %7193 = vmatmul.mubr.f32.gmra.mrb[0].mxu0 %v7024
      %v7194 = vpop.f32.mrb[0].mxu0
      %v7195 = vadd.f32 0.0, %v7194
      %v7196 = vpop.f32.mrb[0].mxu0
      %7197 = vmatprep.mubr.f32.mxu0 0.0
      %7198 = vmatmul.mubr.f32.gmra.mrb[0].mxu0 %v7027
      %v7199 = vpop.f32.mrb[0].mxu0
      %v7200 = vadd.f32 0.0, %v7199
      %v7201 = vpop.f32.mrb[0].mxu0
      %7202 = vmatprep.mubr.f32.mxu0 0.0
      %7203 = vmatmul.mubr.f32.gmra.mrb[0].mxu0 %v7030
      %v7204 = vpop.f32.mrb[0].mxu0
      %v7205 = vadd.f32 0.0, %v7204
      %v7206 = vpop.f32.mrb[0].mxu0
      %7207 = vmatprep.mubr.f32.mxu0 0.0
      %7208 = vmatmul.mubr.f32.gmra.mrb[0].mxu0 %v7033
      %v7209 = vpop.f32.mrb[0].mxu0
      %v7210 = vadd.f32 0.0, %v7209
      %v7211 = vpop.f32.mrb[0].mxu0
      %7212 = vmatprep.mubr.f32.mxu0 0.0
      %7213 = vmatmul.mubr.f32.gmra.mrb[0].mxu0 %v7036
      %v7214 = vpop.f32.mrb[0].mxu0
      %v7215 = vadd.f32 0.0, %v7214
      %v7216 = vpop.f32.mrb[0].mxu0
      %7217 = vmatprep.mubr.f32.mxu0 0.0
      %7218 = vmatmul.mubr.f32.gmra.mrb[0].mxu0 %v7039
      %v7219 = vpop.f32.mrb[0].mxu0
      %v7220 = vadd.f32 0.0, %v7219
      %v7221 = vpop.f32.mrb[0].mxu0
      %7222 = vmatprep.mubr.f32.mxu0 0.0
      %7223 = vmatmul.mubr.f32.gmra.mrb[0].mxu0 %v7042
      %v7224 = vpop.f32.mrb[0].mxu0
      %v7225 = vadd.f32 0.0, %v7224
      %v7226 = vpop.f32.mrb[0].mxu0
      %7227 = vmatprep.mubr.f32.mxu0 0.0
      %7228 = vmatmul.mubr.f32.gmra.mrb[0].mxu0 %v7045
      %v7229 = vpop.f32.mrb[0].mxu0
      %v7230 = vadd.f32 0.0, %v7229
      %v7231 = vpop.f32.mrb[0].mxu0
      %7232 = vmatprep.mubr.f32.mxu0 0.0
      %7233 = vmatmul.mubr.f32.gmra.mrb[0].mxu0 %v7048
      %v7234 = vpop.f32.mrb[0].mxu0
      %v7235 = vadd.f32 0.0, %v7234
      %v7236 = vpop.f32.mrb[0].mxu0
      %7237 = vmatprep.mubr.f32.mxu0 0.0
      %7238 = vmatmul.mubr.f32.gmra.mrb[0].mxu0 %v7051
      %v7239 = vpop.f32.mrb[0].mxu0
      %v7240 = vadd.f32 0.0, %v7239
      %v7241 = vpop.f32.mrb[0].mxu0
      %7242 = vmatprep.mubr.f32.mxu0 0.0
      %7243 = vmatmul.mubr.f32.gmra.mrb[0].mxu0 %v7054
      %v7244 = vpop.f32.mrb[0].mxu0
      %v7245 = vadd.f32 0.0, %v7244
      %v7246 = vpop.f32.mrb[0].mxu0
      %7247 = vmatprep.mubr.f32.mxu0 0.0
      %7248 = vmatmul.mubr.f32.gmra.mrb[0].mxu0 %v7057
      %v7249 = vpop.f32.mrb[0].mxu0
      %v7250 = vadd.f32 0.0, %v7249
      %v7251 = vpop.f32.mrb[0].mxu0
      %7252 = vmatprep.mubr.f32.mxu0 0.0
      %7253 = vmatmul.mubr.f32.gmra.mrb[0].mxu0 %v7060
      %v7254 = vpop.f32.mrb[0].mxu0
      %v7255 = vadd.f32 0.0, %v7254
      %v7256 = vpop.f32.mrb[0].mxu0
      %7257 = vmatprep.mubr.f32.mxu0 0.0
      %7258 = vmatmul.mubr.f32.gmra.mrb[0].mxu0 %v7063
      %v7259 = vpop.f32.mrb[0].mxu0
      %v7260 = vadd.f32 0.0, %v7259
      %v7261 = vpop.f32.mrb[0].mxu0
      %7262 = vmatprep.mubr.f32.mxu0 0.0
      %7263 = vmatmul.mubr.f32.gmra.mrb[0].mxu0 %v7066
      %v7264 = vpop.f32.mrb[0].mxu0
      %v7265 = vadd.f32 0.0, %v7264
      %v7266 = vpop.f32.mrb[0].mxu0
      %7267 = vmatprep.mubr.f32.mxu0 0.0
      %7268 = vmatmul.mubr.f32.gmra.mrb[0].mxu0 %v7069
      %v7269 = vpop.f32.mrb[0].mxu0
      %v7270 = vadd.f32 0.0, %v7269
      %v7271 = vpop.f32.mrb[0].mxu0
      %7272 = vmatprep.mubr.f32.mxu0 0.0
      %7273 = vmatmul.mubr.f32.gmra.mrb[0].mxu0 %v7072
      %v7274 = vpop.f32.mrb[0].mxu0
      %v7275 = vadd.f32 0.0, %v7274
      %v7276 = vpop.f32.mrb[0].mxu0
      %7277 = vmatprep.mubr.f32.mxu0 0.0
      %7278 = vmatmul.mubr.f32.gmra.mrb[0].mxu0 %v7075
      %v7279 = vpop.f32.mrb[0].mxu0
      %v7280 = vadd.f32 0.0, %v7279
      %v7281 = vpop.f32.mrb[0].mxu0
      %7282 = vmatprep.mubr.f32.mxu0 0.0
      %7283 = vmatmul.mubr.f32.gmra.mrb[0].mxu0 %v7078
      %v7284 = vpop.f32.mrb[0].mxu0
      %v7285 = vadd.f32 0.0, %v7284
      %v7286 = vpop.f32.mrb[0].mxu0
      %7287 = vmatprep.mubr.f32.mxu0 0.0
      %7288 = vmatmul.mubr.f32.gmra.mrb[0].mxu0 %v7081
      %v7289 = vpop.f32.mrb[0].mxu0
      %v7290 = vadd.f32 0.0, %v7289
      %v7291 = vpop.f32.mrb[0].mxu0
      %7292 = vmatprep.mubr.f32.mxu0 0.0
      %7293 = vmatmul.mubr.f32.gmra.mrb[0].mxu0 %v7084
      %v7294 = vpop.f32.mrb[0].mxu0
      %v7295 = vadd.f32 0.0, %v7294
      %v7296 = vpop.f32.mrb[0].mxu0
      %7297 = vmatprep.mubr.f32.mxu0 0.0
      %7298 = vmatmul.mubr.f32.gmra.mrb[0].mxu0 %v7087
      %v7299 = vpop.f32.mrb[0].mxu0
      %v7300 = vadd.f32 0.0, %v7299
      %v7301 = vpop.f32.mrb[0].mxu0
      %7302 = vmatprep.mubr.f32.mxu0 0.0
      %7303 = vmatmul.mubr.f32.gmra.mrb[0].mxu0 %v7090
      %v7304 = vpop.f32.mrb[0].mxu0
      %v7305 = vadd.f32 0.0, %v7304
      %v7306 = vpop.f32.mrb[0].mxu0
      %7307 = vmatprep.mubr.f32.mxu0 0.0
      %7308 = vmatmul.mubr.f32.gmra.mrb[0].mxu0 %v7093
      %v7309 = vpop.f32.mrb[0].mxu0
      %v7310 = vadd.f32 0.0, %v7309
      %v7311 = vpop.f32.mrb[0].mxu0
      %7312 = vmatprep.mubr.f32.mxu0 0.0
      %7313 = vmatmul.mubr.f32.gmra.mrb[0].mxu0 %v7096
      %v7314 = vpop.f32.mrb[0].mxu0
      %v7315 = vadd.f32 0.0, %v7314
      %v7316 = vpop.f32.mrb[0].mxu0
      %7317 = vmatprep.mubr.f32.mxu0 0.0
      %7318 = vmatmul.mubr.f32.gmra.mrb[0].mxu0 %v7099
      %v7319 = vpop.f32.mrb[0].mxu0
      %v7320 = vadd.f32 0.0, %v7319
      %v7321 = vpop.f32.mrb[0].mxu0
      %7322 = vmatprep.mubr.f32.mxu0 0.0
      %7323 = vmatmul.mubr.f32.gmra.mrb[0].mxu0 %v7102
      %v7324 = vpop.f32.mrb[0].mxu0
      %v7325 = vadd.f32 0.0, %v7324
      %v7326 = vpop.f32.mrb[0].mxu0
      %7327 = vmatprep.mubr.f32.mxu0 0.0
      %7328 = vmatmul.mubr.f32.gmra.mrb[0].mxu0 %v7105
      %v7329 = vpop.f32.mrb[0].mxu0
      %v7330 = vadd.f32 0.0, %v7329
      %v7331 = vpop.f32.mrb[0].mxu0
      %7332 = vmatprep.mubr.f32.mxu0 0.0
      %7333 = vmatmul.mubr.f32.gmra.mrb[0].mxu0 %v7108
      %v7334 = vpop.f32.mrb[0].mxu0
      %v7335 = vadd.f32 0.0, %v7334
      %v7336 = vpop.f32.mrb[0].mxu0
      %7337 = vdwg.mxu0
      %v7338 = vadd.f32 %v6948, %v7180
      %v7339 = vadd.f32 %v6949, %v7185
      %v7340 = vadd.f32 %v6950, %v7190
      %v7341 = vadd.f32 %v6951, %v7195
      %v7342 = vadd.f32 %v6952, %v7200
      %v7343 = vadd.f32 %v6953, %v7205
      %v7344 = vadd.f32 %v6954, %v7210
      %v7345 = vadd.f32 %v6955, %v7215
      %v7346 = vadd.f32 %v6956, %v7220
      %v7347 = vadd.f32 %v6957, %v7225
      %v7348 = vadd.f32 %v6958, %v7230
      %v7349 = vadd.f32 %v6959, %v7235
      %v7350 = vadd.f32 %v6960, %v7240
      %v7351 = vadd.f32 %v6961, %v7245
      %v7352 = vadd.f32 %v6962, %v7250
      %v7353 = vadd.f32 %v6963, %v7255
      %v7354 = vadd.f32 %v6964, %v7260
      %v7355 = vadd.f32 %v6965, %v7265
      %v7356 = vadd.f32 %v6966, %v7270
      %v7357 = vadd.f32 %v6967, %v7275
      %v7358 = vadd.f32 %v6968, %v7280
      %v7359 = vadd.f32 %v6969, %v7285
      %v7360 = vadd.f32 %v6970, %v7290
      %v7361 = vadd.f32 %v6971, %v7295
      %v7362 = vadd.f32 %v6972, %v7300
      %v7363 = vadd.f32 %v6973, %v7305
      %v7364 = vadd.f32 %v6974, %v7310
      %v7365 = vadd.f32 %v6975, %v7315
      %v7366 = vadd.f32 %v6976, %v7320
      %v7367 = vadd.f32 %v6977, %v7325
      %v7368 = vadd.f32 %v6978, %v7330
      %v7369 = vadd.f32 %v6979, %v7335
      %v7370 = vld [vmem:[%s4] sm:$0x1]
      %v7372 = vlaneseq
      %v7373 = vshrl.u32 %v7372, 7
      %v7374 = vsub.s32 0, %v7373
      %v7375 = vrot.slane %v7370, %v7374
      %v7377 = vadd.f32 %v7338, %v7375
      %v7378 = vadd.f32 %v7339, %v7375
      %v7379 = vadd.f32 %v7340, %v7375
      %v7380 = vadd.f32 %v7341, %v7375
      %v7381 = vadd.f32 %v7342, %v7375
      %v7382 = vadd.f32 %v7343, %v7375
      %v7383 = vadd.f32 %v7344, %v7375
      %v7384 = vadd.f32 %v7345, %v7375
      %v7385 = vadd.f32 %v7346, %v7375
      %v7386 = vadd.f32 %v7347, %v7375
      %v7387 = vadd.f32 %v7348, %v7375
      %v7388 = vadd.f32 %v7349, %v7375
      %v7389 = vadd.f32 %v7350, %v7375
      %v7390 = vadd.f32 %v7351, %v7375
      %v7391 = vadd.f32 %v7352, %v7375
      %v7392 = vadd.f32 %v7353, %v7375
      %v7393 = vadd.f32 %v7354, %v7375
      %v7394 = vadd.f32 %v7355, %v7375
      %v7395 = vadd.f32 %v7356, %v7375
      %v7396 = vadd.f32 %v7357, %v7375
      %v7397 = vadd.f32 %v7358, %v7375
      %v7398 = vadd.f32 %v7359, %v7375
      %v7399 = vadd.f32 %v7360, %v7375
      %v7400 = vadd.f32 %v7361, %v7375
      %v7401 = vadd.f32 %v7362, %v7375
      %v7402 = vadd.f32 %v7363, %v7375
      %v7403 = vadd.f32 %v7364, %v7375
      %v7404 = vadd.f32 %v7365, %v7375
      %v7405 = vadd.f32 %v7366, %v7375
      %v7406 = vadd.f32 %v7367, %v7375
      %v7407 = vadd.f32 %v7368, %v7375
      %v7408 = vadd.f32 %v7369, %v7375
      %v7409 = vadd.f32 %v7377, %v225
      %v7410 = vadd.f32 %v7378, %v226
      %v7411 = vadd.f32 %v7379, %v227
      %v7412 = vadd.f32 %v7380, %v228
      %v7413 = vadd.f32 %v7381, %v229
      %v7414 = vadd.f32 %v7382, %v230
      %v7415 = vadd.f32 %v7383, %v231
      %v7416 = vadd.f32 %v7384, %v232
      %v7417 = vadd.f32 %v7385, %v233
      %v7418 = vadd.f32 %v7386, %v234
      %v7419 = vadd.f32 %v7387, %v235
      %v7420 = vadd.f32 %v7388, %v236
      %v7421 = vadd.f32 %v7389, %v237
      %v7422 = vadd.f32 %v7390, %v238
      %v7423 = vadd.f32 %v7391, %v239
      %v7424 = vadd.f32 %v7392, %v240
      %v7425 = vadd.f32 %v7393, %v241
      %v7426 = vadd.f32 %v7394, %v242
      %v7427 = vadd.f32 %v7395, %v243
      %v7428 = vadd.f32 %v7396, %v244
      %v7429 = vadd.f32 %v7397, %v245
      %v7430 = vadd.f32 %v7398, %v246
      %v7431 = vadd.f32 %v7399, %v247
      %v7432 = vadd.f32 %v7400, %v248
      %v7433 = vadd.f32 %v7401, %v249
      %v7434 = vadd.f32 %v7402, %v250
      %v7435 = vadd.f32 %v7403, %v251
      %v7436 = vadd.f32 %v7404, %v252
      %v7437 = vadd.f32 %v7405, %v253
      %v7438 = vadd.f32 %v7406, %v254
      %v7439 = vadd.f32 %v7407, %v255
      %v7440 = vadd.f32 %v7408, %v256
      %v7441 = vmax.f32 %v7409, 0.0
      %v7442 = vmax.f32 %v7410, 0.0
      %v7443 = vmax.f32 %v7411, 0.0
      %v7444 = vmax.f32 %v7412, 0.0
      %v7445 = vmax.f32 %v7413, 0.0
      %v7446 = vmax.f32 %v7414, 0.0
      %v7447 = vmax.f32 %v7415, 0.0
      %v7448 = vmax.f32 %v7416, 0.0
      %v7449 = vmax.f32 %v7417, 0.0
      %v7450 = vmax.f32 %v7418, 0.0
      %v7451 = vmax.f32 %v7419, 0.0
      %v7452 = vmax.f32 %v7420, 0.0
      %v7453 = vmax.f32 %v7421, 0.0
      %v7454 = vmax.f32 %v7422, 0.0
      %v7455 = vmax.f32 %v7423, 0.0
      %v7456 = vmax.f32 %v7424, 0.0
      %v7457 = vmax.f32 %v7425, 0.0
      %v7458 = vmax.f32 %v7426, 0.0
      %v7459 = vmax.f32 %v7427, 0.0
      %v7460 = vmax.f32 %v7428, 0.0
      %v7461 = vmax.f32 %v7429, 0.0
      %v7462 = vmax.f32 %v7430, 0.0
      %v7463 = vmax.f32 %v7431, 0.0
      %v7464 = vmax.f32 %v7432, 0.0
      %v7465 = vmax.f32 %v7433, 0.0
      %v7466 = vmax.f32 %v7434, 0.0
      %v7467 = vmax.f32 %v7435, 0.0
      %v7468 = vmax.f32 %v7436, 0.0
      %v7469 = vmax.f32 %v7437, 0.0
      %v7470 = vmax.f32 %v7438, 0.0
      %v7471 = vmax.f32 %v7439, 0.0
      %v7472 = vmax.f32 %v7440, 0.0
      %7473 = vst.msk [vmem:[%s224] sm:$0xff] %vm257, %v7441
      %7474 = vst.msk [vmem:[%s224 + $0x8] sm:$0xff] %vm257, %v7442
      %7475 = vst.msk [vmem:[%s224 + $0x10] sm:$0xff] %vm257, %v7443
      %7476 = vst.msk [vmem:[%s224 + $0x18] sm:$0xff] %vm257, %v7444
      %7477 = vst.msk [vmem:[%s224 + $0x20] sm:$0xff] %vm257, %v7445
      %7478 = vst.msk [vmem:[%s224 + $0x28] sm:$0xff] %vm257, %v7446
      %7479 = vst.msk [vmem:[%s224 + $0x30] sm:$0xff] %vm257, %v7447
      %7480 = vst.msk [vmem:[%s224 + $0x38] sm:$0xff] %vm257, %v7448
      %7481 = vst.msk [vmem:[%s224 + $0x40] sm:$0xff] %vm257, %v7449
      %7482 = vst.msk [vmem:[%s224 + $0x48] sm:$0xff] %vm257, %v7450
      %7483 = vst.msk [vmem:[%s224 + $0x50] sm:$0xff] %vm257, %v7451
      %7484 = vst.msk [vmem:[%s224 + $0x58] sm:$0xff] %vm257, %v7452
      %7485 = vst.msk [vmem:[%s224 + $0x60] sm:$0xff] %vm257, %v7453
      %7486 = vst.msk [vmem:[%s224 + $0x68] sm:$0xff] %vm257, %v7454
      %7487 = vst.msk [vmem:[%s224 + $0x70] sm:$0xff] %vm257, %v7455
      %7488 = vst.msk [vmem:[%s224 + $0x78] sm:$0xff] %vm257, %v7456
      %7489 = vst.msk [vmem:[%s224 + $0x80] sm:$0xff] %vm257, %v7457
      %7490 = vst.msk [vmem:[%s224 + $0x88] sm:$0xff] %vm257, %v7458
      %7491 = vst.msk [vmem:[%s224 + $0x90] sm:$0xff] %vm257, %v7459
      %7492 = vst.msk [vmem:[%s224 + $0x98] sm:$0xff] %vm257, %v7460
      %7493 = vst.msk [vmem:[%s224 + $0xa0] sm:$0xff] %vm257, %v7461
      %7494 = vst.msk [vmem:[%s224 + $0xa8] sm:$0xff] %vm257, %v7462
      %7495 = vst.msk [vmem:[%s224 + $0xb0] sm:$0xff] %vm257, %v7463
      %7496 = vst.msk [vmem:[%s224 + $0xb8] sm:$0xff] %vm257, %v7464
      %7497 = vst.msk [vmem:[%s224 + $0xc0] sm:$0xff] %vm257, %v7465
      %7498 = vst.msk [vmem:[%s224 + $0xc8] sm:$0xff] %vm257, %v7466
      %7499 = vst.msk [vmem:[%s224 + $0xd0] sm:$0xff] %vm257, %v7467
      %7500 = vst.msk [vmem:[%s224 + $0xd8] sm:$0xff] %vm257, %v7468
      %7501 = vst.msk [vmem:[%s224 + $0xe0] sm:$0xff] %vm257, %v7469
      %7502 = vst.msk [vmem:[%s224 + $0xe8] sm:$0xff] %vm257, %v7470
      %7503 = vst.msk [vmem:[%s224 + $0xf0] sm:$0xff] %vm257, %v7471
      %7504 = vst.msk [vmem:[%s224 + $0xf8] sm:$0xff] %vm257, %v7472
      %p7505 = scmp.lt.s32.totalorder %s16, 1
      %s7506 = scalar_select %p7505, %s16, 1
      %s7507 = smul.addr %s7506, 32
      %s7508 = smul.addr %s7507, 8
      %s7509 = scalar_lea.vmem %s5, %s7508
      // Predicated region
      $region41: #{basic_block_forward.1} parent=39 // pred_check
        %p7510 = pneg %p144
      $region42: #{basic_block_forward.1} parent=39 // pred_check_branch
        %7512 = sbr.rel (%p7510) target = $region44
      $region43: #{basic_block_forward.1} parent=39 // pred_region
        _
      $region44: #{basic_block_forward.1} parent=39 // pred_fallthru
        _
    $region40: #{basic_block_forward.1} parent=5 // pred_fallthru
      _
    %p7513 = scmp.le.s32.totalorder 2, %s11
    // Predicated region
    $region45: #{basic_block_forward.1} parent=5 // pred_check
      %p7514 = pneg %p7513
    $region46: #{basic_block_forward.1} parent=5 // pred_check_branch
      %7516 = sbr.rel (%p7514) target = $region48
    $region47: #{basic_block_forward.1} parent=5 // pred_region
      %s7517 = ssub.s32 %s11, 2
      // Predicated region
      $region49: #{basic_block_forward.1} parent=47 // pred_check
        %p7518 = pneg %p150
      $region50: #{basic_block_forward.1} parent=47 // pred_check_branch
        %7520 = sbr.rel (%p7518) target = $region52
      $region51: #{basic_block_forward.1} parent=47 // pred_region
        %p7521 = scmp.lt.s32.totalorder %s17, 1
        %s7522 = scalar_select %p7521, %s17, 1
        %s7523 = smul.addr %s7522, 32
        %s7524 = smul.addr %s7523, 8
        %s7525 = scalar_lea.vmem %s5, %s7524
      $region52: #{basic_block_forward.1} parent=47 // pred_fallthru
        _
    $region48: #{basic_block_forward.1} parent=5 // pred_fallthru
      _
  $region6: #{basic_block_forward.1} parent=0 // loop_footer
    %s15 = sadd.s32 1, %s11
  $region7: #{basic_block_forward.1} parent=0 // loop_footer_branch
    %10 = sbr.rel target = $region3
  $region8: #{basic_block_forward.1} parent=0 // loop_exit
    _

</llo_original>
